<compile_context>
chip_gen: v6e
topology: v6e:2x2x1
jax: 0.10.0
libtpu: 0.0.40
codegen_flags: <defaults>
</compile_context>

<pallas_src>
import functools

import jax
import jax.numpy as jnp
from jax.experimental import pallas as pl
from jax.experimental.pallas import tpu as pltpu


def _ceil_to(x, m):
    return ((x + m - 1) // m) * m


def _basic_block_kernel_direct(H, W, Mp, A, x_ref, w1_ref, b1_ref, w2_ref,
                               b2_ref, o_ref, mid_ref):
    """9 accumulated matmuls per conv (no im2col) — v6e/v7x preferred path."""
    # x_ref   : (1, B, C)   flat zero-haloed input slab (compute dtype)
    # w*_ref  : (9*C, C)    conv weights, tap-stacked, BN scale folded in
    # b*_ref  : (1, C)      folded BN bias (f32)
    # o_ref   : (1, Mp, C)  compute-dtype output frame (halo cols zeroed)
    # mid_ref : (B, C)      VMEM staging frame for the conv2 input
    Wp = W + 2
    M = H * Wp
    B, C = mid_ref.shape
    S0 = A - (Wp + 1)                    # slab row of tap (ky=0, kx=0)
    cdt = mid_ref.dtype

    # Row-validity mask: valid frame column AND not a padded (row >= M) row.
    r = jax.lax.broadcasted_iota(jnp.int32, (Mp, 1), 0)
    valid = jnp.logical_and((r % Wp) < W, r < M)

    # ---- conv1: accumulate 9 (Mp,C)@(C,C) matmuls off shifted row slices ----
    acc1 = jnp.dot(x_ref[0, S0:S0 + Mp, :], w1_ref[0:C, :],
                   preferred_element_type=jnp.float32)
    for k in range(1, 9):
        ky, kx = divmod(k, 3)
        s = S0 + ky * Wp + kx
        acc1 = acc1 + jnp.dot(x_ref[0, s:s + Mp, :],
                              w1_ref[k * C:(k + 1) * C, :],
                              preferred_element_type=jnp.float32)

    # ---- bn1 (scale pre-folded) + relu; zero halo cols & padded rows ----
    out1 = jnp.where(valid, jnp.maximum(acc1 + b1_ref[...], 0.0), 0.0)

    # ---- stage conv2 input frame; zero only the border strips ----
    mid_ref[0:A, :] = jnp.zeros((A, C), cdt)
    mid_ref[A + Mp:B, :] = jnp.zeros((B - A - Mp, C), cdt)
    mid_ref[A:A + Mp, :] = out1.astype(cdt)      # 8-aligned interior write

    # ---- conv2: same 9-tap accumulation on the staged frame ----
    acc2 = jnp.dot(mid_ref[S0:S0 + Mp, :], w2_ref[0:C, :],
                   preferred_element_type=jnp.float32)
    for k in range(1, 9):
        ky, kx = divmod(k, 3)
        s = S0 + ky * Wp + kx
        acc2 = acc2 + jnp.dot(mid_ref[s:s + Mp, :],
                              w2_ref[k * C:(k + 1) * C, :],
                              preferred_element_type=jnp.float32)

    # ---- bn2 + residual + relu; mask + cast to compute dtype ----
    residual = x_ref[0, A:A + Mp, :].astype(jnp.float32)
    out = jnp.maximum(acc2 + b2_ref[...] + residual, 0.0)
    o_ref[0, :, :] = jnp.where(valid, out, 0.0).astype(o_ref.dtype)


def _basic_block_kernel_im2col(H, W, Mp, A, x_ref, w1_ref, b1_ref, w2_ref,
                               b2_ref, o_ref, col_ref, mid_ref):
    """Deep-K (K=9*C) im2col matmul per conv — kept for v5e (128-wide MXU)."""
    Wp = W + 2
    M = H * Wp
    B, C = mid_ref.shape
    S0 = A - (Wp + 1)
    cdt = mid_ref.dtype

    r = jax.lax.broadcasted_iota(jnp.int32, (Mp, 1), 0)
    valid = jnp.logical_and((r % Wp) < W, r < M)

    for k in range(9):
        ky, kx = divmod(k, 3)
        s = S0 + ky * Wp + kx
        col_ref[:, k * C:(k + 1) * C] = x_ref[0, s:s + Mp, :]
    acc1 = jnp.dot(col_ref[...], w1_ref[...],
                   preferred_element_type=jnp.float32)
    out1 = jnp.where(valid, jnp.maximum(acc1 + b1_ref[...], 0.0), 0.0)

    mid_ref[0:A, :] = jnp.zeros((A, C), cdt)
    mid_ref[A + Mp:B, :] = jnp.zeros((B - A - Mp, C), cdt)
    mid_ref[A:A + Mp, :] = out1.astype(cdt)

    for k in range(9):
        ky, kx = divmod(k, 3)
        s = S0 + ky * Wp + kx
        col_ref[:, k * C:(k + 1) * C] = mid_ref[s:s + Mp, :]
    acc2 = jnp.dot(col_ref[...], w2_ref[...],
                   preferred_element_type=jnp.float32)

    residual = x_ref[0, A:A + Mp, :].astype(jnp.float32)
    out = jnp.maximum(acc2 + b2_ref[...] + residual, 0.0)
    o_ref[0, :, :] = jnp.where(valid, out, 0.0).astype(o_ref.dtype)


def _default_use_im2col():
    """Pick the deep-K im2col path only on v5e (128-wide MXU is the binder)."""
    kind = jax.devices()[0].device_kind.lower()
    return ("v5 lite" in kind) or ("v5e" in kind)


@functools.partial(jax.jit,
                   static_argnames=("eps", "compute_dtype", "use_im2col"))
def basic_block_forward(x_nchw, w1, g1, be1, m1, v1, w2, g2, be2, m2, v2,
                        eps=1e-5, compute_dtype=jnp.bfloat16,
                        use_im2col=False):
    """x_nchw: (N, C, H, W) f32. w1, w2 in PyTorch OIHW layout."""
    N, C, H, W = x_nchw.shape
    P = w1.shape[0]
    assert C == P and w2.shape[0] == P and w2.shape[1] == P, \
        "no-downsample BasicBlock requires inplanes == planes"

    LANE = 128
    Cp = _ceil_to(C, LANE)                    # lane-dense channel count
    cpad = Cp - C
    Wp = W + 2
    M = H * Wp                                # valid frame rows per image
    Mp = _ceil_to(M, 8)                       # padded (8-aligned) frame rows
    A = _ceil_to(Wp + 1, 8)                   # 8-aligned zero lead strip
    tail0 = (Mp - M) + Wp + 1                 # minimum tail halo rows
    tail = tail0 + (-(A + M + tail0)) % 8     # keep slab rows 8-aligned
    B = A + M + tail                          # slab rows per image

    bpe = jnp.dtype(compute_dtype).itemsize

    # ---- fold eval-mode BN to scale/bias; fold scale into conv weights ----
    s1 = g1 / jnp.sqrt(v1 + eps)
    b1 = be1 - m1 * s1
    s2 = g2 / jnp.sqrt(v2 + eps)
    b2 = be2 - m2 * s2

    # OIHW -> HWIO, scale on output channels, pad channels, tap-stack to 2-D.
    w1h = jnp.transpose(w1, (2, 3, 1, 0)) * s1[None, None, None, :]
    w2h = jnp.transpose(w2, (2, 3, 1, 0)) * s2[None, None, None, :]
    w1p = jnp.pad(w1h, ((0, 0), (0, 0), (0, cpad), (0, cpad)))
    w2p = jnp.pad(w2h, ((0, 0), (0, 0), (0, cpad), (0, cpad)))
    w1s = w1p.reshape(9 * Cp, Cp).astype(compute_dtype)
    w2s = w2p.reshape(9 * Cp, Cp).astype(compute_dtype)
    b1p = jnp.pad(b1, (0, cpad)).reshape(1, Cp).astype(jnp.float32)
    b2p = jnp.pad(b2, (0, cpad)).reshape(1, Cp).astype(jnp.float32)

    # ---- lay the input out as a flat lane-dense slab: (N, B, Cp) ----
    # slab row A + h*(W+2) + w holds pixel (h, w); the 2 zero columns per row
    # and the zero lead/tail strips are the halo for both 3x3 / pad=1 convs.
    x_nhwc = jnp.transpose(x_nchw, (0, 2, 3, 1))
    x_nhwc = jnp.pad(x_nhwc, ((0, 0), (0, 0), (0, 2), (0, cpad)))
    x_flat = x_nhwc.reshape(N, M, Cp)
    x_flat = jnp.pad(x_flat, ((0, 0), (A, tail), (0, 0))).astype(compute_dtype)

    if use_im2col:
        kernel = functools.partial(_basic_block_kernel_im2col, H, W, Mp, A)
        scratch = [pltpu.VMEM((Mp, 9 * Cp), compute_dtype),   # im2col scratch
                   pltpu.VMEM((B, Cp), compute_dtype)]        # conv2 frame
        scratch_bytes = Mp * 9 * Cp * bpe + B * Cp * bpe
    else:
        kernel = functools.partial(_basic_block_kernel_direct, H, W, Mp, A)
        scratch = [pltpu.VMEM((B, Cp), compute_dtype)]        # conv2 frame
        scratch_bytes = B * Cp * bpe + Mp * Cp * 4            # frame + f32 acc

    # Explicit VMEM budget (double-buffered x / weights / out + scratch).
    vmem_need = (2 * B * Cp * bpe + 2 * 2 * 9 * Cp * Cp * bpe
                 + 2 * 2 * Cp * 4 + 2 * Mp * Cp * bpe + scratch_bytes)
    vmem_limit = int(min(max(2 * vmem_need + (8 << 20), 32 << 20), 48 << 20))

    flops = 4 * N * Mp * 9 * Cp * Cp            # two convs, 2 flops / MAC
    bytes_accessed = (N * B * Cp * bpe + 2 * 9 * Cp * Cp * bpe
                      + 2 * Cp * 4 + N * Mp * Cp * bpe)

    out_flat = pl.pallas_call(
        kernel,
        out_shape=jax.ShapeDtypeStruct((N, Mp, Cp), compute_dtype),
        grid_spec=pltpu.PrefetchScalarGridSpec(
            num_scalar_prefetch=0,
            grid=(N,),
            in_specs=[
                pl.BlockSpec((1, B, Cp), lambda n: (n, 0, 0)),
                pl.BlockSpec((9 * Cp, Cp), lambda n: (0, 0)),
                pl.BlockSpec((1, Cp), lambda n: (0, 0)),
                pl.BlockSpec((9 * Cp, Cp), lambda n: (0, 0)),
                pl.BlockSpec((1, Cp), lambda n: (0, 0)),
            ],
            out_specs=pl.BlockSpec((1, Mp, Cp), lambda n: (n, 0, 0)),
            scratch_shapes=scratch,
        ),
        compiler_params=pltpu.CompilerParams(
            dimension_semantics=("parallel",),
            vmem_limit_bytes=vmem_limit),
        cost_estimate=pl.CostEstimate(flops=flops, transcendentals=0,
                                      bytes_accessed=bytes_accessed),
    )(x_flat, w1s, b1p, w2s, b2p)

    # Drop padded rows / halo columns / padded channels, back to NCHW (cheap
    # XLA layout plumbing).
    out_nhwc = out_flat[:, :M, :].reshape(N, H, Wp, Cp)[:, :, :W, :P]
    return jnp.transpose(out_nhwc, (0, 3, 1, 2)).astype(jnp.float32)


# ---------------------------- references ----------------------------------

def _conv3x3(x, w):
    return jax.lax.conv_general_dilated(
        x, w, window_strides=(1, 1), padding=((1, 1), (1, 1)),
        dimension_numbers=("NCHW", "OIHW", "NCHW"),
        preferred_element_type=jnp.float32)


def _reference_f32(x, w1, g1, be1, m1, v1, w2, g2, be2, m2, v2, eps=1e-5):
    """Pure-JAX f32 reference matching the PyTorch eval-mode BasicBlock."""
    def bn(y, g, b, m, v):
        g = g.reshape(1, -1, 1, 1); b = b.reshape(1, -1, 1, 1)
        m = m.reshape(1, -1, 1, 1); v = v.reshape(1, -1, 1, 1)
        return (y - m) / jnp.sqrt(v + eps) * g + b
    out = jax.nn.relu(bn(_conv3x3(x, w1), g1, be1, m1, v1))
    out = bn(_conv3x3(out, w2), g2, be2, m2, v2)
    return jax.nn.relu(out + x)


def _reference_matched(x, w1, g1, be1, m1, v1, w2, g2, be2, m2, v2,
                       eps=1e-5, compute_dtype=jnp.bfloat16):
    """Same math as the kernel (folded BN scale, compute_dtype conv operands,
    f32 accumulation, compute_dtype output) — isolates layout correctness."""
    s1 = g1 / jnp.sqrt(v1 + eps); b1 = (be1 - m1 * s1).reshape(1, -1, 1, 1)
    s2 = g2 / jnp.sqrt(v2 + eps); b2 = (be2 - m2 * s2).reshape(1, -1, 1, 1)
    w1f = (w1 * s1[:, None, None, None]).astype(compute_dtype)
    w2f = (w2 * s2[:, None, None, None]).astype(compute_dtype)
    xc = x.astype(compute_dtype)
    out = jax.nn.relu(_conv3x3(xc, w1f) + b1)
    out = _conv3x3(out.astype(compute_dtype), w2f) + b2
    out = jax.nn.relu(out + xc.astype(jnp.float32))
    return out.astype(compute_dtype).astype(jnp.float32)


if __name__ == "__main__":
    key = jax.random.PRNGKey(0)
    # Lane-dense BasicBlock sizes (ResNet layer2-style channels, small spatial).
    N, C, H, W = 2, 128, 16, 16
    P = C

    keys = jax.random.split(key, 9)
    x = jax.random.normal(keys[0], (N, C, H, W), jnp.float32)
    w1 = jax.random.normal(keys[1], (P, C, 3, 3), jnp.float32) * 0.05
    w2 = jax.random.normal(keys[2], (P, P, 3, 3), jnp.float32) * 0.05

    g1 = 1.0 + 0.1 * jax.random.normal(keys[3], (P,), jnp.float32)
    be1 = 0.1 * jax.random.normal(keys[4], (P,), jnp.float32)
    m1 = 0.05 * jax.random.normal(keys[5], (P,), jnp.float32)
    v1 = 1.0 + 0.1 * jnp.abs(jax.random.normal(keys[6], (P,), jnp.float32))

    g2 = 1.0 + 0.1 * jax.random.normal(keys[7], (P,), jnp.float32)
    be2 = 0.1 * jax.random.normal(keys[8], (P,), jnp.float32)
    m2 = jnp.zeros((P,), jnp.float32)
    v2 = jnp.ones((P,), jnp.float32)

    ref_matched = _reference_matched(x, w1, g1, be1, m1, v1,
                                     w2, g2, be2, m2, v2,
                                     compute_dtype=jnp.bfloat16)
    ref_f32 = _reference_f32(x, w1, g1, be1, m1, v1, w2, g2, be2, m2, v2)

    # Default path for this chip (im2col on v5e, direct 9-tap otherwise);
    # exercise BOTH paths for correctness.
    default_im2col = _default_use_im2col()
    for use_im2col in (default_im2col, not default_im2col):
        out = basic_block_forward(x, w1, g1, be1, m1, v1, w2, g2, be2, m2, v2,
                                  compute_dtype=jnp.bfloat16,
                                  use_im2col=use_im2col)
        out = jax.block_until_ready(out)
        assert out.shape == (N, P, H, W)
        # Tight check vs. the operand-matched reference (same bf16 rounding,
        # f32 accumulation) — validates layout / conv / BN / residual logic.
        assert jnp.allclose(out, ref_matched, atol=2e-2, rtol=2e-2), \
            f"matched-reference mismatch (use_im2col={use_im2col})"
        # Loose check vs. exact f32 module semantics (standard bf16-conv tol).
        assert jnp.allclose(out, ref_f32, atol=3e-1, rtol=5e-2), \
            f"f32-reference mismatch (use_im2col={use_im2col})"

    print("KERNEL_OK")
</pallas_src>

<mosaic_0001>
module attributes {stable_mosaic.version = 11 : i64} {
  func.func @_basic_block_kernel_direct(%arg0: i32, %arg1: memref<1x336x128xbf16, #tpu.memory_space<vmem>>, %arg2: memref<1152x128xbf16, #tpu.memory_space<vmem>>, %arg3: memref<1x128xf32, #tpu.memory_space<vmem>>, %arg4: memref<1152x128xbf16, #tpu.memory_space<vmem>>, %arg5: memref<1x128xf32, #tpu.memory_space<vmem>>, %arg6: memref<1x288x128xbf16, #tpu.memory_space<vmem>>, %arg7: memref<336x128xbf16, #tpu.memory_space<vmem>>) attributes {dimension_semantics = [#tpu.dimension_semantics<parallel>], iteration_bounds = array<i64: 2>, scalar_prefetch = 0 : i64, scratch_operands = 1 : i64, tpu.core_type = #tpu.core_type<tc>, window_params = [{transform_indices = @transform_0, window_bounds = array<i64: 1, 336, 128>}, {pipeline_mode = #tpu.pipeline_mode<synchronous>, transform_indices = @transform_1, window_bounds = array<i64: 1152, 128>}, {pipeline_mode = #tpu.pipeline_mode<synchronous>, transform_indices = @transform_2, window_bounds = array<i64: 1, 128>}, {pipeline_mode = #tpu.pipeline_mode<synchronous>, transform_indices = @transform_3, window_bounds = array<i64: 1152, 128>}, {pipeline_mode = #tpu.pipeline_mode<synchronous>, transform_indices = @transform_4, window_bounds = array<i64: 1, 128>}, {transform_indices = @transform_5, window_bounds = array<i64: 1, 288, 128>}]} {
    %0 = tpu.iota {dimensions = array<i32: 0>} : vector<288x1xi32>
    %c18_i32 = arith.constant 18 : i32
    %c0_i32 = arith.constant 0 : i32
    %1 = arith.cmpi eq, %c18_i32, %c0_i32 : i32
    %c1_i32 = arith.constant 1 : i32
    %2 = arith.select %1, %c1_i32, %c18_i32 : i32
    %3 = vector.broadcast %2 : i32 to vector<288x1xi32>
    %4 = arith.remsi %0, %3 : vector<288x1xi32>
    %c0_i32_0 = arith.constant 0 : i32
    %5 = vector.broadcast %c0_i32_0 : i32 to vector<288x1xi32>
    %6 = arith.cmpi ne, %4, %5 : vector<288x1xi32>
    %c0_i32_1 = arith.constant 0 : i32
    %7 = vector.broadcast %c0_i32_1 : i32 to vector<288x1xi32>
    %8 = arith.cmpi slt, %4, %7 : vector<288x1xi32>
    %c0_i32_2 = arith.constant 0 : i32
    %9 = arith.cmpi slt, %2, %c0_i32_2 : i32
    %10 = vector.broadcast %9 : i1 to vector<288x1xi1>
    %11 = vector.broadcast %10 : vector<288x1xi1> to vector<288x1xi1>
    %12 = arith.xori %8, %11 : vector<288x1xi1>
    %13 = arith.andi %12, %6 : vector<288x1xi1>
    %14 = vector.broadcast %2 : i32 to vector<288x1xi32>
    %15 = arith.addi %4, %14 : vector<288x1xi32>
    %16 = arith.select %13, %15, %4 : vector<288x1xi1>, vector<288x1xi32>
    %c16_i32 = arith.constant 16 : i32
    %17 = vector.broadcast %c16_i32 : i32 to vector<288x1xi32>
    %18 = arith.cmpi slt, %16, %17 : vector<288x1xi32>
    %c288_i32 = arith.constant 288 : i32
    %19 = vector.broadcast %c288_i32 : i32 to vector<288x1xi32>
    %20 = arith.cmpi slt, %0, %19 : vector<288x1xi32>
    %21 = arith.andi %18, %20 : vector<288x1xi1>
    %c0 = arith.constant 0 : index
    %c5 = arith.constant 5 : index
    %c0_3 = arith.constant 0 : index
    %22 = vector.load %arg1[%c0, %c5, %c0_3] : memref<1x336x128xbf16, #tpu.memory_space<vmem>>, vector<1x288x128xbf16>
    %23 = vector.shape_cast %22 : vector<1x288x128xbf16> to vector<288x128xbf16>
    %c0_4 = arith.constant 0 : index
    %c0_5 = arith.constant 0 : index
    %24 = vector.load %arg2[%c0_4, %c0_5] : memref<1152x128xbf16, #tpu.memory_space<vmem>>, vector<128x128xbf16>
    %cst = arith.constant dense<0.000000e+00> : vector<288x128xf32>
    %25 = tpu.matmul %23, %24, %cst {dimension_numbers = #tpu.dot_dimension_numbers<[1], [0], [0], [1], [0, 0, 1, 1], [], []>} : vector<288x128xbf16>, vector<128x128xbf16>, vector<288x128xf32> -> vector<288x128xf32>
    %c0_6 = arith.constant 0 : index
    %c6 = arith.constant 6 : index
    %c0_7 = arith.constant 0 : index
    %26 = vector.load %arg1[%c0_6, %c6, %c0_7] : memref<1x336x128xbf16, #tpu.memory_space<vmem>>, vector<1x288x128xbf16>
    %27 = vector.shape_cast %26 : vector<1x288x128xbf16> to vector<288x128xbf16>
    %c128 = arith.constant 128 : index
    %c0_8 = arith.constant 0 : index
    %28 = vector.load %arg2[%c128, %c0_8] : memref<1152x128xbf16, #tpu.memory_space<vmem>>, vector<128x128xbf16>
    %cst_9 = arith.constant dense<0.000000e+00> : vector<288x128xf32>
    %29 = tpu.matmul %27, %28, %cst_9 {dimension_numbers = #tpu.dot_dimension_numbers<[1], [0], [0], [1], [0, 0, 1, 1], [], []>} : vector<288x128xbf16>, vector<128x128xbf16>, vector<288x128xf32> -> vector<288x128xf32>
    %30 = arith.addf %25, %29 : vector<288x128xf32>
    %c0_10 = arith.constant 0 : index
    %c7 = arith.constant 7 : index
    %c0_11 = arith.constant 0 : index
    %31 = vector.load %arg1[%c0_10, %c7, %c0_11] : memref<1x336x128xbf16, #tpu.memory_space<vmem>>, vector<1x288x128xbf16>
    %32 = vector.shape_cast %31 : vector<1x288x128xbf16> to vector<288x128xbf16>
    %c256 = arith.constant 256 : index
    %c0_12 = arith.constant 0 : index
    %33 = vector.load %arg2[%c256, %c0_12] : memref<1152x128xbf16, #tpu.memory_space<vmem>>, vector<128x128xbf16>
    %cst_13 = arith.constant dense<0.000000e+00> : vector<288x128xf32>
    %34 = tpu.matmul %32, %33, %cst_13 {dimension_numbers = #tpu.dot_dimension_numbers<[1], [0], [0], [1], [0, 0, 1, 1], [], []>} : vector<288x128xbf16>, vector<128x128xbf16>, vector<288x128xf32> -> vector<288x128xf32>
    %35 = arith.addf %30, %34 : vector<288x128xf32>
    %c0_14 = arith.constant 0 : index
    %c23 = arith.constant 23 : index
    %c0_15 = arith.constant 0 : index
    %36 = vector.load %arg1[%c0_14, %c23, %c0_15] : memref<1x336x128xbf16, #tpu.memory_space<vmem>>, vector<1x288x128xbf16>
    %37 = vector.shape_cast %36 : vector<1x288x128xbf16> to vector<288x128xbf16>
    %c384 = arith.constant 384 : index
    %c0_16 = arith.constant 0 : index
    %38 = vector.load %arg2[%c384, %c0_16] : memref<1152x128xbf16, #tpu.memory_space<vmem>>, vector<128x128xbf16>
    %cst_17 = arith.constant dense<0.000000e+00> : vector<288x128xf32>
    %39 = tpu.matmul %37, %38, %cst_17 {dimension_numbers = #tpu.dot_dimension_numbers<[1], [0], [0], [1], [0, 0, 1, 1], [], []>} : vector<288x128xbf16>, vector<128x128xbf16>, vector<288x128xf32> -> vector<288x128xf32>
    %40 = arith.addf %35, %39 : vector<288x128xf32>
    %c0_18 = arith.constant 0 : index
    %c24 = arith.constant 24 : index
    %c0_19 = arith.constant 0 : index
    %41 = vector.load %arg1[%c0_18, %c24, %c0_19] : memref<1x336x128xbf16, #tpu.memory_space<vmem>>, vector<1x288x128xbf16>
    %42 = vector.shape_cast %41 : vector<1x288x128xbf16> to vector<288x128xbf16>
    %c512 = arith.constant 512 : index
    %c0_20 = arith.constant 0 : index
    %43 = vector.load %arg2[%c512, %c0_20] : memref<1152x128xbf16, #tpu.memory_space<vmem>>, vector<128x128xbf16>
    %cst_21 = arith.constant dense<0.000000e+00> : vector<288x128xf32>
    %44 = tpu.matmul %42, %43, %cst_21 {dimension_numbers = #tpu.dot_dimension_numbers<[1], [0], [0], [1], [0, 0, 1, 1], [], []>} : vector<288x128xbf16>, vector<128x128xbf16>, vector<288x128xf32> -> vector<288x128xf32>
    %45 = arith.addf %40, %44 : vector<288x128xf32>
    %c0_22 = arith.constant 0 : index
    %c25 = arith.constant 25 : index
    %c0_23 = arith.constant 0 : index
    %46 = vector.load %arg1[%c0_22, %c25, %c0_23] : memref<1x336x128xbf16, #tpu.memory_space<vmem>>, vector<1x288x128xbf16>
    %47 = vector.shape_cast %46 : vector<1x288x128xbf16> to vector<288x128xbf16>
    %c640 = arith.constant 640 : index
    %c0_24 = arith.constant 0 : index
    %48 = vector.load %arg2[%c640, %c0_24] : memref<1152x128xbf16, #tpu.memory_space<vmem>>, vector<128x128xbf16>
    %cst_25 = arith.constant dense<0.000000e+00> : vector<288x128xf32>
    %49 = tpu.matmul %47, %48, %cst_25 {dimension_numbers = #tpu.dot_dimension_numbers<[1], [0], [0], [1], [0, 0, 1, 1], [], []>} : vector<288x128xbf16>, vector<128x128xbf16>, vector<288x128xf32> -> vector<288x128xf32>
    %50 = arith.addf %45, %49 : vector<288x128xf32>
    %c0_26 = arith.constant 0 : index
    %c41 = arith.constant 41 : index
    %c0_27 = arith.constant 0 : index
    %51 = vector.load %arg1[%c0_26, %c41, %c0_27] : memref<1x336x128xbf16, #tpu.memory_space<vmem>>, vector<1x288x128xbf16>
    %52 = vector.shape_cast %51 : vector<1x288x128xbf16> to vector<288x128xbf16>
    %c768 = arith.constant 768 : index
    %c0_28 = arith.constant 0 : index
    %53 = vector.load %arg2[%c768, %c0_28] : memref<1152x128xbf16, #tpu.memory_space<vmem>>, vector<128x128xbf16>
    %cst_29 = arith.constant dense<0.000000e+00> : vector<288x128xf32>
    %54 = tpu.matmul %52, %53, %cst_29 {dimension_numbers = #tpu.dot_dimension_numbers<[1], [0], [0], [1], [0, 0, 1, 1], [], []>} : vector<288x128xbf16>, vector<128x128xbf16>, vector<288x128xf32> -> vector<288x128xf32>
    %55 = arith.addf %50, %54 : vector<288x128xf32>
    %c0_30 = arith.constant 0 : index
    %c42 = arith.constant 42 : index
    %c0_31 = arith.constant 0 : index
    %56 = vector.load %arg1[%c0_30, %c42, %c0_31] : memref<1x336x128xbf16, #tpu.memory_space<vmem>>, vector<1x288x128xbf16>
    %57 = vector.shape_cast %56 : vector<1x288x128xbf16> to vector<288x128xbf16>
    %c896 = arith.constant 896 : index
    %c0_32 = arith.constant 0 : index
    %58 = vector.load %arg2[%c896, %c0_32] : memref<1152x128xbf16, #tpu.memory_space<vmem>>, vector<128x128xbf16>
    %cst_33 = arith.constant dense<0.000000e+00> : vector<288x128xf32>
    %59 = tpu.matmul %57, %58, %cst_33 {dimension_numbers = #tpu.dot_dimension_numbers<[1], [0], [0], [1], [0, 0, 1, 1], [], []>} : vector<288x128xbf16>, vector<128x128xbf16>, vector<288x128xf32> -> vector<288x128xf32>
    %60 = arith.addf %55, %59 : vector<288x128xf32>
    %c0_34 = arith.constant 0 : index
    %c43 = arith.constant 43 : index
    %c0_35 = arith.constant 0 : index
    %61 = vector.load %arg1[%c0_34, %c43, %c0_35] : memref<1x336x128xbf16, #tpu.memory_space<vmem>>, vector<1x288x128xbf16>
    %62 = vector.shape_cast %61 : vector<1x288x128xbf16> to vector<288x128xbf16>
    %c1024 = arith.constant 1024 : index
    %c0_36 = arith.constant 0 : index
    %63 = vector.load %arg2[%c1024, %c0_36] : memref<1152x128xbf16, #tpu.memory_space<vmem>>, vector<128x128xbf16>
    %cst_37 = arith.constant dense<0.000000e+00> : vector<288x128xf32>
    %64 = tpu.matmul %62, %63, %cst_37 {dimension_numbers = #tpu.dot_dimension_numbers<[1], [0], [0], [1], [0, 0, 1, 1], [], []>} : vector<288x128xbf16>, vector<128x128xbf16>, vector<288x128xf32> -> vector<288x128xf32>
    %65 = arith.addf %60, %64 : vector<288x128xf32>
    %c0_38 = arith.constant 0 : index
    %c0_39 = arith.constant 0 : index
    %66 = vector.load %arg3[%c0_38, %c0_39] : memref<1x128xf32, #tpu.memory_space<vmem>>, vector<1x128xf32>
    %67 = vector.broadcast %66 : vector<1x128xf32> to vector<288x128xf32>
    %68 = arith.addf %65, %67 : vector<288x128xf32>
    %cst_40 = arith.constant 0.000000e+00 : f32
    %69 = vector.broadcast %cst_40 : f32 to vector<288x128xf32>
    %70 = arith.maximumf %68, %69 : vector<288x128xf32>
    %cst_41 = arith.constant 0.000000e+00 : f32
    %71 = vector.shape_cast %21 : vector<288x1xi1> to vector<288x1xi1>
    %72 = vector.broadcast %71 : vector<288x1xi1> to vector<288x128xi1>
    %73 = vector.broadcast %cst_41 : f32 to vector<288x128xf32>
    %74 = arith.select %72, %70, %73 : vector<288x128xi1>, vector<288x128xf32>
    %cst_42 = arith.constant 0.000000e+00 : bf16
    %75 = vector.broadcast %cst_42 : bf16 to vector<24x128xbf16>
    %c0_43 = arith.constant 0 : index
    %c0_44 = arith.constant 0 : index
    %76 = vector.load %arg7[%c0_43, %c0_44] : memref<336x128xbf16, #tpu.memory_space<vmem>>, vector<24x128xbf16>
    tpu.vector_store %arg7[%c0_43, %c0_44], %75 {strides = array<i32>} : memref<336x128xbf16, #tpu.memory_space<vmem>>, vector<24x128xbf16>,
    %cst_45 = arith.constant 0.000000e+00 : bf16
    %77 = vector.broadcast %cst_45 : bf16 to vector<24x128xbf16>
    %c312 = arith.constant 312 : index
    %c0_46 = arith.constant 0 : index
    %78 = vector.load %arg7[%c312, %c0_46] : memref<336x128xbf16, #tpu.memory_space<vmem>>, vector<24x128xbf16>
    tpu.vector_store %arg7[%c312, %c0_46], %77 {strides = array<i32>} : memref<336x128xbf16, #tpu.memory_space<vmem>>, vector<24x128xbf16>,
    %79 = arith.truncf %74 : vector<288x128xf32> to vector<288x128xbf16>
    %c24_47 = arith.constant 24 : index
    %c0_48 = arith.constant 0 : index
    %80 = vector.load %arg7[%c24_47, %c0_48] : memref<336x128xbf16, #tpu.memory_space<vmem>>, vector<288x128xbf16>
    tpu.vector_store %arg7[%c24_47, %c0_48], %79 {strides = array<i32>} : memref<336x128xbf16, #tpu.memory_space<vmem>>, vector<288x128xbf16>,
    %c5_49 = arith.constant 5 : index
    %c0_50 = arith.constant 0 : index
    %81 = vector.load %arg7[%c5_49, %c0_50] : memref<336x128xbf16, #tpu.memory_space<vmem>>, vector<288x128xbf16>
    %c0_51 = arith.constant 0 : index
    %c0_52 = arith.constant 0 : index
    %82 = vector.load %arg4[%c0_51, %c0_52] : memref<1152x128xbf16, #tpu.memory_space<vmem>>, vector<128x128xbf16>
    %cst_53 = arith.constant dense<0.000000e+00> : vector<288x128xf32>
    %83 = tpu.matmul %81, %82, %cst_53 {dimension_numbers = #tpu.dot_dimension_numbers<[1], [0], [0], [1], [0, 0, 1, 1], [], []>} : vector<288x128xbf16>, vector<128x128xbf16>, vector<288x128xf32> -> vector<288x128xf32>
    %c6_54 = arith.constant 6 : index
    %c0_55 = arith.constant 0 : index
    %84 = vector.load %arg7[%c6_54, %c0_55] : memref<336x128xbf16, #tpu.memory_space<vmem>>, vector<288x128xbf16>
    %c128_56 = arith.constant 128 : index
    %c0_57 = arith.constant 0 : index
    %85 = vector.load %arg4[%c128_56, %c0_57] : memref<1152x128xbf16, #tpu.memory_space<vmem>>, vector<128x128xbf16>
    %cst_58 = arith.constant dense<0.000000e+00> : vector<288x128xf32>
    %86 = tpu.matmul %84, %85, %cst_58 {dimension_numbers = #tpu.dot_dimension_numbers<[1], [0], [0], [1], [0, 0, 1, 1], [], []>} : vector<288x128xbf16>, vector<128x128xbf16>, vector<288x128xf32> -> vector<288x128xf32>
    %87 = arith.addf %83, %86 : vector<288x128xf32>
    %c7_59 = arith.constant 7 : index
    %c0_60 = arith.constant 0 : index
    %88 = vector.load %arg7[%c7_59, %c0_60] : memref<336x128xbf16, #tpu.memory_space<vmem>>, vector<288x128xbf16>
    %c256_61 = arith.constant 256 : index
    %c0_62 = arith.constant 0 : index
    %89 = vector.load %arg4[%c256_61, %c0_62] : memref<1152x128xbf16, #tpu.memory_space<vmem>>, vector<128x128xbf16>
    %cst_63 = arith.constant dense<0.000000e+00> : vector<288x128xf32>
    %90 = tpu.matmul %88, %89, %cst_63 {dimension_numbers = #tpu.dot_dimension_numbers<[1], [0], [0], [1], [0, 0, 1, 1], [], []>} : vector<288x128xbf16>, vector<128x128xbf16>, vector<288x128xf32> -> vector<288x128xf32>
    %91 = arith.addf %87, %90 : vector<288x128xf32>
    %c23_64 = arith.constant 23 : index
    %c0_65 = arith.constant 0 : index
    %92 = vector.load %arg7[%c23_64, %c0_65] : memref<336x128xbf16, #tpu.memory_space<vmem>>, vector<288x128xbf16>
    %c384_66 = arith.constant 384 : index
    %c0_67 = arith.constant 0 : index
    %93 = vector.load %arg4[%c384_66, %c0_67] : memref<1152x128xbf16, #tpu.memory_space<vmem>>, vector<128x128xbf16>
    %cst_68 = arith.constant dense<0.000000e+00> : vector<288x128xf32>
    %94 = tpu.matmul %92, %93, %cst_68 {dimension_numbers = #tpu.dot_dimension_numbers<[1], [0], [0], [1], [0, 0, 1, 1], [], []>} : vector<288x128xbf16>, vector<128x128xbf16>, vector<288x128xf32> -> vector<288x128xf32>
    %95 = arith.addf %91, %94 : vector<288x128xf32>
    %c24_69 = arith.constant 24 : index
    %c0_70 = arith.constant 0 : index
    %96 = vector.load %arg7[%c24_69, %c0_70] : memref<336x128xbf16, #tpu.memory_space<vmem>>, vector<288x128xbf16>
    %c512_71 = arith.constant 512 : index
    %c0_72 = arith.constant 0 : index
    %97 = vector.load %arg4[%c512_71, %c0_72] : memref<1152x128xbf16, #tpu.memory_space<vmem>>, vector<128x128xbf16>
    %cst_73 = arith.constant dense<0.000000e+00> : vector<288x128xf32>
    %98 = tpu.matmul %96, %97, %cst_73 {dimension_numbers = #tpu.dot_dimension_numbers<[1], [0], [0], [1], [0, 0, 1, 1], [], []>} : vector<288x128xbf16>, vector<128x128xbf16>, vector<288x128xf32> -> vector<288x128xf32>
    %99 = arith.addf %95, %98 : vector<288x128xf32>
    %c25_74 = arith.constant 25 : index
    %c0_75 = arith.constant 0 : index
    %100 = vector.load %arg7[%c25_74, %c0_75] : memref<336x128xbf16, #tpu.memory_space<vmem>>, vector<288x128xbf16>
    %c640_76 = arith.constant 640 : index
    %c0_77 = arith.constant 0 : index
    %101 = vector.load %arg4[%c640_76, %c0_77] : memref<1152x128xbf16, #tpu.memory_space<vmem>>, vector<128x128xbf16>
    %cst_78 = arith.constant dense<0.000000e+00> : vector<288x128xf32>
    %102 = tpu.matmul %100, %101, %cst_78 {dimension_numbers = #tpu.dot_dimension_numbers<[1], [0], [0], [1], [0, 0, 1, 1], [], []>} : vector<288x128xbf16>, vector<128x128xbf16>, vector<288x128xf32> -> vector<288x128xf32>
    %103 = arith.addf %99, %102 : vector<288x128xf32>
    %c41_79 = arith.constant 41 : index
    %c0_80 = arith.constant 0 : index
    %104 = vector.load %arg7[%c41_79, %c0_80] : memref<336x128xbf16, #tpu.memory_space<vmem>>, vector<288x128xbf16>
    %c768_81 = arith.constant 768 : index
    %c0_82 = arith.constant 0 : index
    %105 = vector.load %arg4[%c768_81, %c0_82] : memref<1152x128xbf16, #tpu.memory_space<vmem>>, vector<128x128xbf16>
    %cst_83 = arith.constant dense<0.000000e+00> : vector<288x128xf32>
    %106 = tpu.matmul %104, %105, %cst_83 {dimension_numbers = #tpu.dot_dimension_numbers<[1], [0], [0], [1], [0, 0, 1, 1], [], []>} : vector<288x128xbf16>, vector<128x128xbf16>, vector<288x128xf32> -> vector<288x128xf32>
    %107 = arith.addf %103, %106 : vector<288x128xf32>
    %c42_84 = arith.constant 42 : index
    %c0_85 = arith.constant 0 : index
    %108 = vector.load %arg7[%c42_84, %c0_85] : memref<336x128xbf16, #tpu.memory_space<vmem>>, vector<288x128xbf16>
    %c896_86 = arith.constant 896 : index
    %c0_87 = arith.constant 0 : index
    %109 = vector.load %arg4[%c896_86, %c0_87] : memref<1152x128xbf16, #tpu.memory_space<vmem>>, vector<128x128xbf16>
    %cst_88 = arith.constant dense<0.000000e+00> : vector<288x128xf32>
    %110 = tpu.matmul %108, %109, %cst_88 {dimension_numbers = #tpu.dot_dimension_numbers<[1], [0], [0], [1], [0, 0, 1, 1], [], []>} : vector<288x128xbf16>, vector<128x128xbf16>, vector<288x128xf32> -> vector<288x128xf32>
    %111 = arith.addf %107, %110 : vector<288x128xf32>
    %c43_89 = arith.constant 43 : index
    %c0_90 = arith.constant 0 : index
    %112 = vector.load %arg7[%c43_89, %c0_90] : memref<336x128xbf16, #tpu.memory_space<vmem>>, vector<288x128xbf16>
    %c1024_91 = arith.constant 1024 : index
    %c0_92 = arith.constant 0 : index
    %113 = vector.load %arg4[%c1024_91, %c0_92] : memref<1152x128xbf16, #tpu.memory_space<vmem>>, vector<128x128xbf16>
    %cst_93 = arith.constant dense<0.000000e+00> : vector<288x128xf32>
    %114 = tpu.matmul %112, %113, %cst_93 {dimension_numbers = #tpu.dot_dimension_numbers<[1], [0], [0], [1], [0, 0, 1, 1], [], []>} : vector<288x128xbf16>, vector<128x128xbf16>, vector<288x128xf32> -> vector<288x128xf32>
    %115 = arith.addf %111, %114 : vector<288x128xf32>
    %c0_94 = arith.constant 0 : index
    %c24_95 = arith.constant 24 : index
    %c0_96 = arith.constant 0 : index
    %116 = vector.load %arg1[%c0_94, %c24_95, %c0_96] : memref<1x336x128xbf16, #tpu.memory_space<vmem>>, vector<1x288x128xbf16>
    %117 = vector.shape_cast %116 : vector<1x288x128xbf16> to vector<288x128xbf16>
    %118 = arith.extf %117 : vector<288x128xbf16> to vector<288x128xf32>
    %c0_97 = arith.constant 0 : index
    %c0_98 = arith.constant 0 : index
    %119 = vector.load %arg5[%c0_97, %c0_98] : memref<1x128xf32, #tpu.memory_space<vmem>>, vector<1x128xf32>
    %120 = vector.broadcast %119 : vector<1x128xf32> to vector<288x128xf32>
    %121 = arith.addf %115, %120 : vector<288x128xf32>
    %122 = arith.addf %121, %118 : vector<288x128xf32>
    %cst_99 = arith.constant 0.000000e+00 : f32
    %123 = vector.broadcast %cst_99 : f32 to vector<288x128xf32>
    %124 = arith.maximumf %122, %123 : vector<288x128xf32>
    %cst_100 = arith.constant 0.000000e+00 : f32
    %125 = vector.shape_cast %21 : vector<288x1xi1> to vector<288x1xi1>
    %126 = vector.broadcast %125 : vector<288x1xi1> to vector<288x128xi1>
    %127 = vector.broadcast %cst_100 : f32 to vector<288x128xf32>
    %128 = arith.select %126, %124, %127 : vector<288x128xi1>, vector<288x128xf32>
    %129 = arith.truncf %128 : vector<288x128xf32> to vector<288x128xbf16>
    %c0_101 = arith.constant 0 : index
    %c0_102 = arith.constant 0 : index
    %c0_103 = arith.constant 0 : index
    %130 = vector.load %arg6[%c0_101, %c0_102, %c0_103] : memref<1x288x128xbf16, #tpu.memory_space<vmem>>, vector<1x288x128xbf16>
    %131 = vector.shape_cast %130 : vector<1x288x128xbf16> to vector<288x128xbf16>
    %132 = vector.shape_cast %129 : vector<288x128xbf16> to vector<1x288x128xbf16>
    tpu.vector_store %arg6[%c0_101, %c0_102, %c0_103], %132 {strides = array<i32>} : memref<1x288x128xbf16, #tpu.memory_space<vmem>>, vector<1x288x128xbf16>,
    return
  }
  func.func @transform_0(%arg0: i32) -> (i32, i32, i32) {
    %c0_i32 = arith.constant 0 : i32
    %c0_i32_0 = arith.constant 0 : i32
    %c0_i32_1 = arith.constant 0 : i32
    return %arg0, %c0_i32, %c0_i32_0 : i32, i32, i32
  }
  func.func @transform_1(%arg0: i32) -> (i32, i32) {
    %c0_i32 = arith.constant 0 : i32
    %c0_i32_0 = arith.constant 0 : i32
    %c0_i32_1 = arith.constant 0 : i32
    return %c0_i32, %c0_i32_0 : i32, i32
  }
  func.func @transform_2(%arg0: i32) -> (i32, i32) {
    %c0_i32 = arith.constant 0 : i32
    %c0_i32_0 = arith.constant 0 : i32
    %c0_i32_1 = arith.constant 0 : i32
    return %c0_i32, %c0_i32_0 : i32, i32
  }
  func.func @transform_3(%arg0: i32) -> (i32, i32) {
    %c0_i32 = arith.constant 0 : i32
    %c0_i32_0 = arith.constant 0 : i32
    %c0_i32_1 = arith.constant 0 : i32
    return %c0_i32, %c0_i32_0 : i32, i32
  }
  func.func @transform_4(%arg0: i32) -> (i32, i32) {
    %c0_i32 = arith.constant 0 : i32
    %c0_i32_0 = arith.constant 0 : i32
    %c0_i32_1 = arith.constant 0 : i32
    return %c0_i32, %c0_i32_0 : i32, i32
  }
  func.func @transform_5(%arg0: i32) -> (i32, i32, i32) {
    %c0_i32 = arith.constant 0 : i32
    %c0_i32_0 = arith.constant 0 : i32
    %c0_i32_1 = arith.constant 0 : i32
    return %arg0, %c0_i32, %c0_i32_0 : i32, i32, i32
  }
}

</mosaic_0001>

<llo_original>
// kernel: basic_block_forward.1
$region0: #{basic_block_forward.1}
  #allocation0 [shape = 'u32[]', space=smem, size = 0x4, offset = 0x4, fixed_abs, tag = 'smem constant byte address 0x4 - core index']
  #allocation1 [shape = 'u32[144,128]{1,0:T(1,128)}', space=vmem, size = 0x12000, scoped, tag = 'internal scratch']
  #allocation2 [shape = 'bf16[336,128]{1,0:T(8,128)(2,1)}', space=vmem, size = 0x15000, scoped, tag = 'scratch operand']
  %s0 = inlined_call_operand.vmem [shape: bf16[2,336,128], index: 0, kind: input, shape index: {}]
  %s1 = inlined_call_operand.vmem [shape: bf16[1152,128], index: 1, kind: input, shape index: {}]
  %s2 = inlined_call_operand.vmem [shape: f32[1,128], index: 2, kind: input, shape index: {}]
  %s3 = inlined_call_operand.vmem [shape: bf16[1152,128], index: 3, kind: input, shape index: {}]
  %s4 = inlined_call_operand.vmem [shape: f32[1,128], index: 4, kind: input, shape index: {}]
  %s5 = inlined_call_operand.vmem [shape: bf16[2,288,128], index: 5, kind: output, shape index: {}]
  %s6 = sld [smem:[#allocation0]]
  $region53: #{basic_block_forward.1} parent=0
    _
  %s8 = ssub.s32 1, %s6
  %s9 = scalar_select 0, %s8, %s6
  loop: start=0, step=1, limit=4
  $region2: #{basic_block_forward.1} parent=0 // loop_pre_header
    _
  $region3: #{basic_block_forward.1} parent=0 // loop_header
    %s11 = sphi 0, %s15
    %p12 = scmp.ge.s32.totalorder %s11, 4
    %s21 = sphi 0, %s23
    %s24 = sphi 0, %s21
    %s25 = sphi 0, %s24
    %s41 = sphi 0, %s25
    %s45 = sphi 0, %s45
    %s47 = sphi 0, %s45
    %s48 = sphi 0, %s47
    %s62 = sphi 0, %s48
    %s66 = sphi 0, %s66
    %s68 = sphi 0, %s66
    %s69 = sphi 0, %s68
    %s83 = sphi 0, %s69
    %s87 = sphi 0, %s87
    %s89 = sphi 0, %s87
    %s90 = sphi 0, %s89
    %s104 = sphi 0, %s90
    %s108 = sphi 0, %s108
    %s110 = sphi 0, %s108
    %s111 = sphi 0, %s110
    %s125 = sphi 0, %s111
    %s131 = sphi 0, %s133
    %s134 = sphi 0, %s131
    %s135 = sphi 0, %s134
    %s151 = sphi 0, %s135
  $region4: #{basic_block_forward.1} parent=0 // loop_header_branch
    %14 = sbr.rel (%p12) target = $region8
  $region5: #{basic_block_forward.1} parent=0 // loop_body
    %s16 = ssub.s32 %s11, 1
    %s17 = ssub.s32 %s11, 2
    %s18 = sadd.s32 %s11, 1
    %s19 = ssub.s32 %s11, %s18
    %p20 = scmp.eq.s32.totalorder %s19, 0
    %s22 = sadd.s32 %s21, 1
    %s23 = scalar_select %p20, %s21, %s22
    %p26 = pneg %p20
    %p27 = scmp.eq.s32.totalorder %s11, 1
    %p28 = por %p26, %p27
    %p29 = scmp.ne.s32.totalorder %s21, %s24
    %p30 = scmp.eq.s32.totalorder %s11, 0
    %p31 = por %p29, %p30
    %p32 = scmp.ne.s32.totalorder %s21, %s24
    %p33 = scmp.eq.s32.totalorder %s16, 1
    %p34 = por %p32, %p33
    %p35 = scmp.ne.s32.totalorder %s24, %s25
    %p36 = scmp.eq.s32.totalorder %s16, 0
    %p37 = por %p35, %p36
    %p38 = scmp.ne.s32.totalorder %s24, %s25
    %p39 = scmp.eq.s32.totalorder %s17, 1
    %p40 = por %p38, %p39
    %p42 = scmp.ne.s32.totalorder %s25, %s41
    %p43 = scmp.eq.s32.totalorder %s17, 0
    %p44 = por %p42, %p43
    %s46 = sadd.s32 %s45, 1
    %p49 = scmp.eq.s32.totalorder %s11, 1
    %p50 = scmp.ne.s32.totalorder %s45, %s47
    %p51 = scmp.eq.s32.totalorder %s11, 0
    %p52 = por %p50, %p51
    %p53 = scmp.ne.s32.totalorder %s45, %s47
    %p54 = scmp.eq.s32.totalorder %s16, 1
    %p55 = por %p53, %p54
    %p56 = scmp.ne.s32.totalorder %s47, %s48
    %p57 = scmp.eq.s32.totalorder %s16, 0
    %p58 = por %p56, %p57
    %p59 = scmp.ne.s32.totalorder %s47, %s48
    %p60 = scmp.eq.s32.totalorder %s17, 1
    %p61 = por %p59, %p60
    %p63 = scmp.ne.s32.totalorder %s48, %s62
    %p64 = scmp.eq.s32.totalorder %s17, 0
    %p65 = por %p63, %p64
    %s67 = sadd.s32 %s66, 1
    %p70 = scmp.eq.s32.totalorder %s11, 1
    %p71 = scmp.ne.s32.totalorder %s66, %s68
    %p72 = scmp.eq.s32.totalorder %s11, 0
    %p73 = por %p71, %p72
    %p74 = scmp.ne.s32.totalorder %s66, %s68
    %p75 = scmp.eq.s32.totalorder %s16, 1
    %p76 = por %p74, %p75
    %p77 = scmp.ne.s32.totalorder %s68, %s69
    %p78 = scmp.eq.s32.totalorder %s16, 0
    %p79 = por %p77, %p78
    %p80 = scmp.ne.s32.totalorder %s68, %s69
    %p81 = scmp.eq.s32.totalorder %s17, 1
    %p82 = por %p80, %p81
    %p84 = scmp.ne.s32.totalorder %s69, %s83
    %p85 = scmp.eq.s32.totalorder %s17, 0
    %p86 = por %p84, %p85
    %s88 = sadd.s32 %s87, 1
    %p91 = scmp.eq.s32.totalorder %s11, 1
    %p92 = scmp.ne.s32.totalorder %s87, %s89
    %p93 = scmp.eq.s32.totalorder %s11, 0
    %p94 = por %p92, %p93
    %p95 = scmp.ne.s32.totalorder %s87, %s89
    %p96 = scmp.eq.s32.totalorder %s16, 1
    %p97 = por %p95, %p96
    %p98 = scmp.ne.s32.totalorder %s89, %s90
    %p99 = scmp.eq.s32.totalorder %s16, 0
    %p100 = por %p98, %p99
    %p101 = scmp.ne.s32.totalorder %s89, %s90
    %p102 = scmp.eq.s32.totalorder %s17, 1
    %p103 = por %p101, %p102
    %p105 = scmp.ne.s32.totalorder %s90, %s104
    %p106 = scmp.eq.s32.totalorder %s17, 0
    %p107 = por %p105, %p106
    %s109 = sadd.s32 %s108, 1
    %p112 = scmp.eq.s32.totalorder %s11, 1
    %p113 = scmp.ne.s32.totalorder %s108, %s110
    %p114 = scmp.eq.s32.totalorder %s11, 0
    %p115 = por %p113, %p114
    %p116 = scmp.ne.s32.totalorder %s108, %s110
    %p117 = scmp.eq.s32.totalorder %s16, 1
    %p118 = por %p116, %p117
    %p119 = scmp.ne.s32.totalorder %s110, %s111
    %p120 = scmp.eq.s32.totalorder %s16, 0
    %p121 = por %p119, %p120
    %p122 = scmp.ne.s32.totalorder %s110, %s111
    %p123 = scmp.eq.s32.totalorder %s17, 1
    %p124 = por %p122, %p123
    %p126 = scmp.ne.s32.totalorder %s111, %s125
    %p127 = scmp.eq.s32.totalorder %s17, 0
    %p128 = por %p126, %p127
    %s129 = ssub.s32 %s11, %s18
    %p130 = scmp.eq.s32.totalorder %s129, 0
    %s132 = sadd.s32 %s131, 1
    %s133 = scalar_select %p130, %s131, %s132
    %p136 = pneg %p130
    %p137 = scmp.eq.s32.totalorder %s11, 1
    %p138 = por %p136, %p137
    %p139 = scmp.ne.s32.totalorder %s131, %s134
    %p140 = scmp.eq.s32.totalorder %s11, 0
    %p141 = por %p139, %p140
    %p142 = scmp.ne.s32.totalorder %s131, %s134
    %p143 = scmp.eq.s32.totalorder %s16, 1
    %p144 = por %p142, %p143
    %p145 = scmp.ne.s32.totalorder %s134, %s135
    %p146 = scmp.eq.s32.totalorder %s16, 0
    %p147 = por %p145, %p146
    %p148 = scmp.ne.s32.totalorder %s134, %s135
    %p149 = scmp.eq.s32.totalorder %s17, 1
    %p150 = por %p148, %p149
    %p152 = scmp.ne.s32.totalorder %s135, %s151
    %p153 = scmp.eq.s32.totalorder %s17, 0
    %p154 = por %p152, %p153
    %p155 = scmp.le.s32.totalorder 1, %s11
    %p156 = scmp.lt.s32.totalorder %s11, 3
    %p157 = pnand %p155, %p156
    %p158 = pneg %p157
    // Predicated region
    $region9: #{basic_block_forward.1} parent=5 // pred_check
      _
    $region10: #{basic_block_forward.1} parent=5 // pred_check_branch
      %160 = sbr.rel (%p157) target = $region12
    $region11: #{basic_block_forward.1} parent=5 // pred_region
      %s161 = ssub.s32 %s11, 1
      // Predicated region
      $region13: #{basic_block_forward.1} parent=11 // pred_check
        %p162 = pneg %p58
      $region14: #{basic_block_forward.1} parent=11 // pred_check_branch
        %164 = sbr.rel (%p162) target = $region16
      $region15: #{basic_block_forward.1} parent=11 // pred_region
        _
      $region16: #{basic_block_forward.1} parent=11 // pred_fallthru
        _
      // Predicated region
      $region17: #{basic_block_forward.1} parent=11 // pred_check
        %p165 = pneg %p79
      $region18: #{basic_block_forward.1} parent=11 // pred_check_branch
        %167 = sbr.rel (%p165) target = $region20
      $region19: #{basic_block_forward.1} parent=11 // pred_region
        _
      $region20: #{basic_block_forward.1} parent=11 // pred_fallthru
        _
      // Predicated region
      $region21: #{basic_block_forward.1} parent=11 // pred_check
        %p168 = pneg %p100
      $region22: #{basic_block_forward.1} parent=11 // pred_check_branch
        %170 = sbr.rel (%p168) target = $region24
      $region23: #{basic_block_forward.1} parent=11 // pred_region
        _
      $region24: #{basic_block_forward.1} parent=11 // pred_fallthru
        _
      // Predicated region
      $region25: #{basic_block_forward.1} parent=11 // pred_check
        %p171 = pneg %p121
      $region26: #{basic_block_forward.1} parent=11 // pred_check_branch
        %173 = sbr.rel (%p171) target = $region28
      $region27: #{basic_block_forward.1} parent=11 // pred_region
        _
      $region28: #{basic_block_forward.1} parent=11 // pred_fallthru
        _
    $region12: #{basic_block_forward.1} parent=5 // pred_fallthru
      _
    %p174 = scmp.lt.s32.totalorder %s11, 2
    // Predicated region
    $region29: #{basic_block_forward.1} parent=5 // pred_check
      %p175 = pneg %p174
    $region30: #{basic_block_forward.1} parent=5 // pred_check_branch
      %177 = sbr.rel (%p175) target = $region32
    $region31: #{basic_block_forward.1} parent=5 // pred_region
      // Predicated region
      $region33: #{basic_block_forward.1} parent=31 // pred_check
        %p178 = pneg %p31
      $region34: #{basic_block_forward.1} parent=31 // pred_check_branch
        %180 = sbr.rel (%p178) target = $region36
      $region35: #{basic_block_forward.1} parent=31 // pred_region
        %p181 = scmp.lt.s32.totalorder %s11, 1
        %s182 = scalar_select %p181, %s11, 1
        %s183 = smul.addr %s182, 42
        %s184 = smul.addr %s183, 4
        %s185 = scalar_lea.vmem %s0, %s184
      $region36: #{basic_block_forward.1} parent=31 // pred_fallthru
        _
    $region32: #{basic_block_forward.1} parent=5 // pred_fallthru
      _
    %p186 = scmp.le.s32.totalorder 1, %s11
    %p187 = scmp.lt.s32.totalorder %s11, 3
    %p188 = pnand %p186, %p187
    %p189 = pneg %p188
    // Predicated region
    $region37: #{basic_block_forward.1} parent=5 // pred_check
      _
    $region38: #{basic_block_forward.1} parent=5 // pred_check_branch
      %191 = sbr.rel (%p188) target = $region40
    $region39: #{basic_block_forward.1} parent=5 // pred_region
      %s192 = ssub.s32 %s11, 1
      %p193 = scmp.lt.s32.totalorder %s16, 1
      %s194 = scalar_select %p193, %s16, 1
      %s195 = smul.addr %s194, 42
      %s196 = smul.addr %s195, 4
      %s197 = scalar_lea.vmem %s0, %s196
      %p198 = pneg %p37
      %p199 = pneg %p34
      %p200 = pneg %p58
      %p201 = pneg %p55
      %p202 = pneg %p79
      %p203 = pneg %p76
      %p204 = pneg %p100
      %p205 = pneg %p97
      %p206 = pneg %p121
      %p207 = pneg %p118
      %p208 = pneg %p147
      %p209 = pneg %p144
      %p210 = scmp.lt.s32.totalorder %s16, 1
      %s211 = scalar_select %p210, %s16, 1
      %s212 = smul.addr %s211, 36
      %s213 = smul.addr %s212, 4
      %s214 = scalar_lea.vmem %s5, %s213
      %p215 = scmp.lt.s32.totalorder %s16, 1
      %s216 = scalar_select %p215, %s16, 1
      %s217 = smul.addr %s216, 42
      %s218 = smul.addr %s217, 4
      %s219 = scalar_lea.vmem %s0, %s218
      %p220 = scmp.lt.s32.totalorder %s16, 1
      %s221 = scalar_select %p220, %s16, 1
      %s222 = smul.addr %s221, 36
      %s223 = smul.addr %s222, 4
      %s224 = scalar_lea.vmem %s5, %s223
      %v226 = vlaneseq
      %v227 = vshrl.u32 %v226, 7
      %v228 = vadd.s32 %v227, 8
      %v229 = vadd.s32 %v227, 16
      %v230 = vadd.s32 %v227, 24
      %v231 = vadd.s32 %v227, 32
      %v232 = vadd.s32 %v227, 40
      %v233 = vadd.s32 %v227, 48
      %v234 = vadd.s32 %v227, 56
      %v235 = vadd.s32 %v227, 64
      %v236 = vadd.s32 %v227, 72
      %v237 = vadd.s32 %v227, 80
      %v238 = vadd.s32 %v227, 88
      %v239 = vadd.s32 %v227, 96
      %v240 = vadd.s32 %v227, 104
      %v241 = vadd.s32 %v227, 112
      %v242 = vadd.s32 %v227, 120
      %v243 = vadd.s32 %v227, 128
      %v244 = vadd.s32 %v227, 136
      %v245 = vadd.s32 %v227, 144
      %v246 = vadd.s32 %v227, 152
      %v247 = vadd.s32 %v227, 160
      %v248 = vadd.s32 %v227, 168
      %v249 = vadd.s32 %v227, 176
      %v250 = vadd.s32 %v227, 184
      %v251 = vadd.s32 %v227, 192
      %v252 = vadd.s32 %v227, 200
      %v253 = vadd.s32 %v227, 208
      %v254 = vadd.s32 %v227, 216
      %v255 = vadd.s32 %v227, 224
      %v256 = vadd.s32 %v227, 232
      %v257 = vadd.s32 %v227, 240
      %v258 = vadd.s32 %v227, 248
      %v259 = vadd.s32 %v227, 256
      %v260 = vadd.s32 %v227, 264
      %v261 = vadd.s32 %v227, 272
      %v262 = vadd.s32 %v227, 280
      %vm263 = vcmp.lt.s32.totalorder %v227, 0
      %v264 = vsub.s32 0, %v227
      %v265 = vsel %vm263, %v264, %v227
      %v266 = vmul.u32.u64.compose %v265, 3817748708
      %v267 = vextract.low.u32 %v266
      %v268 = vextract.high.u32 %v266
      %v269 = vshrl.u32 %v268, 4
      %v270 = vmul.u32 %v269, 18
      %v271 = vsub.s32 %v265, %v270
      %v272 = vsub.s32 0, %v271
      %v273 = vsel %vm263, %v272, %v271
      %vm274 = vcmp.lt.s32.totalorder %v228, 0
      %v275 = vsub.s32 0, %v228
      %v276 = vsel %vm274, %v275, %v228
      %v277 = vmul.u32.u64.compose %v276, 3817748708
      %v278 = vextract.low.u32 %v277
      %v279 = vextract.high.u32 %v277
      %v280 = vshrl.u32 %v279, 4
      %v281 = vmul.u32 %v280, 18
      %v282 = vsub.s32 %v276, %v281
      %v283 = vsub.s32 0, %v282
      %v284 = vsel %vm274, %v283, %v282
      %vm285 = vcmp.lt.s32.totalorder %v229, 0
      %v286 = vsub.s32 0, %v229
      %v287 = vsel %vm285, %v286, %v229
      %v288 = vmul.u32.u64.compose %v287, 3817748708
      %v289 = vextract.low.u32 %v288
      %v290 = vextract.high.u32 %v288
      %v291 = vshrl.u32 %v290, 4
      %v292 = vmul.u32 %v291, 18
      %v293 = vsub.s32 %v287, %v292
      %v294 = vsub.s32 0, %v293
      %v295 = vsel %vm285, %v294, %v293
      %vm296 = vcmp.lt.s32.totalorder %v230, 0
      %v297 = vsub.s32 0, %v230
      %v298 = vsel %vm296, %v297, %v230
      %v299 = vmul.u32.u64.compose %v298, 3817748708
      %v300 = vextract.low.u32 %v299
      %v301 = vextract.high.u32 %v299
      %v302 = vshrl.u32 %v301, 4
      %v303 = vmul.u32 %v302, 18
      %v304 = vsub.s32 %v298, %v303
      %v305 = vsub.s32 0, %v304
      %v306 = vsel %vm296, %v305, %v304
      %vm307 = vcmp.lt.s32.totalorder %v231, 0
      %v308 = vsub.s32 0, %v231
      %v309 = vsel %vm307, %v308, %v231
      %v310 = vmul.u32.u64.compose %v309, 3817748708
      %v311 = vextract.low.u32 %v310
      %v312 = vextract.high.u32 %v310
      %v313 = vshrl.u32 %v312, 4
      %v314 = vmul.u32 %v313, 18
      %v315 = vsub.s32 %v309, %v314
      %v316 = vsub.s32 0, %v315
      %v317 = vsel %vm307, %v316, %v315
      %vm318 = vcmp.lt.s32.totalorder %v232, 0
      %v319 = vsub.s32 0, %v232
      %v320 = vsel %vm318, %v319, %v232
      %v321 = vmul.u32.u64.compose %v320, 3817748708
      %v322 = vextract.low.u32 %v321
      %v323 = vextract.high.u32 %v321
      %v324 = vshrl.u32 %v323, 4
      %v325 = vmul.u32 %v324, 18
      %v326 = vsub.s32 %v320, %v325
      %v327 = vsub.s32 0, %v326
      %v328 = vsel %vm318, %v327, %v326
      %vm329 = vcmp.lt.s32.totalorder %v233, 0
      %v330 = vsub.s32 0, %v233
      %v331 = vsel %vm329, %v330, %v233
      %v332 = vmul.u32.u64.compose %v331, 3817748708
      %v333 = vextract.low.u32 %v332
      %v334 = vextract.high.u32 %v332
      %v335 = vshrl.u32 %v334, 4
      %v336 = vmul.u32 %v335, 18
      %v337 = vsub.s32 %v331, %v336
      %v338 = vsub.s32 0, %v337
      %v339 = vsel %vm329, %v338, %v337
      %vm340 = vcmp.lt.s32.totalorder %v234, 0
      %v341 = vsub.s32 0, %v234
      %v342 = vsel %vm340, %v341, %v234
      %v343 = vmul.u32.u64.compose %v342, 3817748708
      %v344 = vextract.low.u32 %v343
      %v345 = vextract.high.u32 %v343
      %v346 = vshrl.u32 %v345, 4
      %v347 = vmul.u32 %v346, 18
      %v348 = vsub.s32 %v342, %v347
      %v349 = vsub.s32 0, %v348
      %v350 = vsel %vm340, %v349, %v348
      %vm351 = vcmp.lt.s32.totalorder %v235, 0
      %v352 = vsub.s32 0, %v235
      %v353 = vsel %vm351, %v352, %v235
      %v354 = vmul.u32.u64.compose %v353, 3817748708
      %v355 = vextract.low.u32 %v354
      %v356 = vextract.high.u32 %v354
      %v357 = vshrl.u32 %v356, 4
      %v358 = vmul.u32 %v357, 18
      %v359 = vsub.s32 %v353, %v358
      %v360 = vsub.s32 0, %v359
      %v361 = vsel %vm351, %v360, %v359
      %vm362 = vcmp.lt.s32.totalorder %v236, 0
      %v363 = vsub.s32 0, %v236
      %v364 = vsel %vm362, %v363, %v236
      %v365 = vmul.u32.u64.compose %v364, 3817748708
      %v366 = vextract.low.u32 %v365
      %v367 = vextract.high.u32 %v365
      %v368 = vshrl.u32 %v367, 4
      %v369 = vmul.u32 %v368, 18
      %v370 = vsub.s32 %v364, %v369
      %v371 = vsub.s32 0, %v370
      %v372 = vsel %vm362, %v371, %v370
      %vm373 = vcmp.lt.s32.totalorder %v237, 0
      %v374 = vsub.s32 0, %v237
      %v375 = vsel %vm373, %v374, %v237
      %v376 = vmul.u32.u64.compose %v375, 3817748708
      %v377 = vextract.low.u32 %v376
      %v378 = vextract.high.u32 %v376
      %v379 = vshrl.u32 %v378, 4
      %v380 = vmul.u32 %v379, 18
      %v381 = vsub.s32 %v375, %v380
      %v382 = vsub.s32 0, %v381
      %v383 = vsel %vm373, %v382, %v381
      %vm384 = vcmp.lt.s32.totalorder %v238, 0
      %v385 = vsub.s32 0, %v238
      %v386 = vsel %vm384, %v385, %v238
      %v387 = vmul.u32.u64.compose %v386, 3817748708
      %v388 = vextract.low.u32 %v387
      %v389 = vextract.high.u32 %v387
      %v390 = vshrl.u32 %v389, 4
      %v391 = vmul.u32 %v390, 18
      %v392 = vsub.s32 %v386, %v391
      %v393 = vsub.s32 0, %v392
      %v394 = vsel %vm384, %v393, %v392
      %vm395 = vcmp.lt.s32.totalorder %v239, 0
      %v396 = vsub.s32 0, %v239
      %v397 = vsel %vm395, %v396, %v239
      %v398 = vmul.u32.u64.compose %v397, 3817748708
      %v399 = vextract.low.u32 %v398
      %v400 = vextract.high.u32 %v398
      %v401 = vshrl.u32 %v400, 4
      %v402 = vmul.u32 %v401, 18
      %v403 = vsub.s32 %v397, %v402
      %v404 = vsub.s32 0, %v403
      %v405 = vsel %vm395, %v404, %v403
      %vm406 = vcmp.lt.s32.totalorder %v240, 0
      %v407 = vsub.s32 0, %v240
      %v408 = vsel %vm406, %v407, %v240
      %v409 = vmul.u32.u64.compose %v408, 3817748708
      %v410 = vextract.low.u32 %v409
      %v411 = vextract.high.u32 %v409
      %v412 = vshrl.u32 %v411, 4
      %v413 = vmul.u32 %v412, 18
      %v414 = vsub.s32 %v408, %v413
      %v415 = vsub.s32 0, %v414
      %v416 = vsel %vm406, %v415, %v414
      %vm417 = vcmp.lt.s32.totalorder %v241, 0
      %v418 = vsub.s32 0, %v241
      %v419 = vsel %vm417, %v418, %v241
      %v420 = vmul.u32.u64.compose %v419, 3817748708
      %v421 = vextract.low.u32 %v420
      %v422 = vextract.high.u32 %v420
      %v423 = vshrl.u32 %v422, 4
      %v424 = vmul.u32 %v423, 18
      %v425 = vsub.s32 %v419, %v424
      %v426 = vsub.s32 0, %v425
      %v427 = vsel %vm417, %v426, %v425
      %vm428 = vcmp.lt.s32.totalorder %v242, 0
      %v429 = vsub.s32 0, %v242
      %v430 = vsel %vm428, %v429, %v242
      %v431 = vmul.u32.u64.compose %v430, 3817748708
      %v432 = vextract.low.u32 %v431
      %v433 = vextract.high.u32 %v431
      %v434 = vshrl.u32 %v433, 4
      %v435 = vmul.u32 %v434, 18
      %v436 = vsub.s32 %v430, %v435
      %v437 = vsub.s32 0, %v436
      %v438 = vsel %vm428, %v437, %v436
      %vm439 = vcmp.lt.s32.totalorder %v243, 0
      %v440 = vsub.s32 0, %v243
      %v441 = vsel %vm439, %v440, %v243
      %v442 = vmul.u32.u64.compose %v441, 3817748708
      %v443 = vextract.low.u32 %v442
      %v444 = vextract.high.u32 %v442
      %v445 = vshrl.u32 %v444, 4
      %v446 = vmul.u32 %v445, 18
      %v447 = vsub.s32 %v441, %v446
      %v448 = vsub.s32 0, %v447
      %v449 = vsel %vm439, %v448, %v447
      %vm450 = vcmp.lt.s32.totalorder %v244, 0
      %v451 = vsub.s32 0, %v244
      %v452 = vsel %vm450, %v451, %v244
      %v453 = vmul.u32.u64.compose %v452, 3817748708
      %v454 = vextract.low.u32 %v453
      %v455 = vextract.high.u32 %v453
      %v456 = vshrl.u32 %v455, 4
      %v457 = vmul.u32 %v456, 18
      %v458 = vsub.s32 %v452, %v457
      %v459 = vsub.s32 0, %v458
      %v460 = vsel %vm450, %v459, %v458
      %vm461 = vcmp.lt.s32.totalorder %v245, 0
      %v462 = vsub.s32 0, %v245
      %v463 = vsel %vm461, %v462, %v245
      %v464 = vmul.u32.u64.compose %v463, 3817748708
      %v465 = vextract.low.u32 %v464
      %v466 = vextract.high.u32 %v464
      %v467 = vshrl.u32 %v466, 4
      %v468 = vmul.u32 %v467, 18
      %v469 = vsub.s32 %v463, %v468
      %v470 = vsub.s32 0, %v469
      %v471 = vsel %vm461, %v470, %v469
      %vm472 = vcmp.lt.s32.totalorder %v246, 0
      %v473 = vsub.s32 0, %v246
      %v474 = vsel %vm472, %v473, %v246
      %v475 = vmul.u32.u64.compose %v474, 3817748708
      %v476 = vextract.low.u32 %v475
      %v477 = vextract.high.u32 %v475
      %v478 = vshrl.u32 %v477, 4
      %v479 = vmul.u32 %v478, 18
      %v480 = vsub.s32 %v474, %v479
      %v481 = vsub.s32 0, %v480
      %v482 = vsel %vm472, %v481, %v480
      %vm483 = vcmp.lt.s32.totalorder %v247, 0
      %v484 = vsub.s32 0, %v247
      %v485 = vsel %vm483, %v484, %v247
      %v486 = vmul.u32.u64.compose %v485, 3817748708
      %v487 = vextract.low.u32 %v486
      %v488 = vextract.high.u32 %v486
      %v489 = vshrl.u32 %v488, 4
      %v490 = vmul.u32 %v489, 18
      %v491 = vsub.s32 %v485, %v490
      %v492 = vsub.s32 0, %v491
      %v493 = vsel %vm483, %v492, %v491
      %vm494 = vcmp.lt.s32.totalorder %v248, 0
      %v495 = vsub.s32 0, %v248
      %v496 = vsel %vm494, %v495, %v248
      %v497 = vmul.u32.u64.compose %v496, 3817748708
      %v498 = vextract.low.u32 %v497
      %v499 = vextract.high.u32 %v497
      %v500 = vshrl.u32 %v499, 4
      %v501 = vmul.u32 %v500, 18
      %v502 = vsub.s32 %v496, %v501
      %v503 = vsub.s32 0, %v502
      %v504 = vsel %vm494, %v503, %v502
      %vm505 = vcmp.lt.s32.totalorder %v249, 0
      %v506 = vsub.s32 0, %v249
      %v507 = vsel %vm505, %v506, %v249
      %v508 = vmul.u32.u64.compose %v507, 3817748708
      %v509 = vextract.low.u32 %v508
      %v510 = vextract.high.u32 %v508
      %v511 = vshrl.u32 %v510, 4
      %v512 = vmul.u32 %v511, 18
      %v513 = vsub.s32 %v507, %v512
      %v514 = vsub.s32 0, %v513
      %v515 = vsel %vm505, %v514, %v513
      %vm516 = vcmp.lt.s32.totalorder %v250, 0
      %v517 = vsub.s32 0, %v250
      %v518 = vsel %vm516, %v517, %v250
      %v519 = vmul.u32.u64.compose %v518, 3817748708
      %v520 = vextract.low.u32 %v519
      %v521 = vextract.high.u32 %v519
      %v522 = vshrl.u32 %v521, 4
      %v523 = vmul.u32 %v522, 18
      %v524 = vsub.s32 %v518, %v523
      %v525 = vsub.s32 0, %v524
      %v526 = vsel %vm516, %v525, %v524
      %vm527 = vcmp.lt.s32.totalorder %v251, 0
      %v528 = vsub.s32 0, %v251
      %v529 = vsel %vm527, %v528, %v251
      %v530 = vmul.u32.u64.compose %v529, 3817748708
      %v531 = vextract.low.u32 %v530
      %v532 = vextract.high.u32 %v530
      %v533 = vshrl.u32 %v532, 4
      %v534 = vmul.u32 %v533, 18
      %v535 = vsub.s32 %v529, %v534
      %v536 = vsub.s32 0, %v535
      %v537 = vsel %vm527, %v536, %v535
      %vm538 = vcmp.lt.s32.totalorder %v252, 0
      %v539 = vsub.s32 0, %v252
      %v540 = vsel %vm538, %v539, %v252
      %v541 = vmul.u32.u64.compose %v540, 3817748708
      %v542 = vextract.low.u32 %v541
      %v543 = vextract.high.u32 %v541
      %v544 = vshrl.u32 %v543, 4
      %v545 = vmul.u32 %v544, 18
      %v546 = vsub.s32 %v540, %v545
      %v547 = vsub.s32 0, %v546
      %v548 = vsel %vm538, %v547, %v546
      %vm549 = vcmp.lt.s32.totalorder %v253, 0
      %v550 = vsub.s32 0, %v253
      %v551 = vsel %vm549, %v550, %v253
      %v552 = vmul.u32.u64.compose %v551, 3817748708
      %v553 = vextract.low.u32 %v552
      %v554 = vextract.high.u32 %v552
      %v555 = vshrl.u32 %v554, 4
      %v556 = vmul.u32 %v555, 18
      %v557 = vsub.s32 %v551, %v556
      %v558 = vsub.s32 0, %v557
      %v559 = vsel %vm549, %v558, %v557
      %vm560 = vcmp.lt.s32.totalorder %v254, 0
      %v561 = vsub.s32 0, %v254
      %v562 = vsel %vm560, %v561, %v254
      %v563 = vmul.u32.u64.compose %v562, 3817748708
      %v564 = vextract.low.u32 %v563
      %v565 = vextract.high.u32 %v563
      %v566 = vshrl.u32 %v565, 4
      %v567 = vmul.u32 %v566, 18
      %v568 = vsub.s32 %v562, %v567
      %v569 = vsub.s32 0, %v568
      %v570 = vsel %vm560, %v569, %v568
      %vm571 = vcmp.lt.s32.totalorder %v255, 0
      %v572 = vsub.s32 0, %v255
      %v573 = vsel %vm571, %v572, %v255
      %v574 = vmul.u32.u64.compose %v573, 3817748708
      %v575 = vextract.low.u32 %v574
      %v576 = vextract.high.u32 %v574
      %v577 = vshrl.u32 %v576, 4
      %v578 = vmul.u32 %v577, 18
      %v579 = vsub.s32 %v573, %v578
      %v580 = vsub.s32 0, %v579
      %v581 = vsel %vm571, %v580, %v579
      %vm582 = vcmp.lt.s32.totalorder %v256, 0
      %v583 = vsub.s32 0, %v256
      %v584 = vsel %vm582, %v583, %v256
      %v585 = vmul.u32.u64.compose %v584, 3817748708
      %v586 = vextract.low.u32 %v585
      %v587 = vextract.high.u32 %v585
      %v588 = vshrl.u32 %v587, 4
      %v589 = vmul.u32 %v588, 18
      %v590 = vsub.s32 %v584, %v589
      %v591 = vsub.s32 0, %v590
      %v592 = vsel %vm582, %v591, %v590
      %vm593 = vcmp.lt.s32.totalorder %v257, 0
      %v594 = vsub.s32 0, %v257
      %v595 = vsel %vm593, %v594, %v257
      %v596 = vmul.u32.u64.compose %v595, 3817748708
      %v597 = vextract.low.u32 %v596
      %v598 = vextract.high.u32 %v596
      %v599 = vshrl.u32 %v598, 4
      %v600 = vmul.u32 %v599, 18
      %v601 = vsub.s32 %v595, %v600
      %v602 = vsub.s32 0, %v601
      %v603 = vsel %vm593, %v602, %v601
      %vm604 = vcmp.lt.s32.totalorder %v258, 0
      %v605 = vsub.s32 0, %v258
      %v606 = vsel %vm604, %v605, %v258
      %v607 = vmul.u32.u64.compose %v606, 3817748708
      %v608 = vextract.low.u32 %v607
      %v609 = vextract.high.u32 %v607
      %v610 = vshrl.u32 %v609, 4
      %v611 = vmul.u32 %v610, 18
      %v612 = vsub.s32 %v606, %v611
      %v613 = vsub.s32 0, %v612
      %v614 = vsel %vm604, %v613, %v612
      %vm615 = vcmp.lt.s32.totalorder %v259, 0
      %v616 = vsub.s32 0, %v259
      %v617 = vsel %vm615, %v616, %v259
      %v618 = vmul.u32.u64.compose %v617, 3817748708
      %v619 = vextract.low.u32 %v618
      %v620 = vextract.high.u32 %v618
      %v621 = vshrl.u32 %v620, 4
      %v622 = vmul.u32 %v621, 18
      %v623 = vsub.s32 %v617, %v622
      %v624 = vsub.s32 0, %v623
      %v625 = vsel %vm615, %v624, %v623
      %vm626 = vcmp.lt.s32.totalorder %v260, 0
      %v627 = vsub.s32 0, %v260
      %v628 = vsel %vm626, %v627, %v260
      %v629 = vmul.u32.u64.compose %v628, 3817748708
      %v630 = vextract.low.u32 %v629
      %v631 = vextract.high.u32 %v629
      %v632 = vshrl.u32 %v631, 4
      %v633 = vmul.u32 %v632, 18
      %v634 = vsub.s32 %v628, %v633
      %v635 = vsub.s32 0, %v634
      %v636 = vsel %vm626, %v635, %v634
      %vm637 = vcmp.lt.s32.totalorder %v261, 0
      %v638 = vsub.s32 0, %v261
      %v639 = vsel %vm637, %v638, %v261
      %v640 = vmul.u32.u64.compose %v639, 3817748708
      %v641 = vextract.low.u32 %v640
      %v642 = vextract.high.u32 %v640
      %v643 = vshrl.u32 %v642, 4
      %v644 = vmul.u32 %v643, 18
      %v645 = vsub.s32 %v639, %v644
      %v646 = vsub.s32 0, %v645
      %v647 = vsel %vm637, %v646, %v645
      %vm648 = vcmp.lt.s32.totalorder %v262, 0
      %v649 = vsub.s32 0, %v262
      %v650 = vsel %vm648, %v649, %v262
      %v651 = vmul.u32.u64.compose %v650, 3817748708
      %v652 = vextract.low.u32 %v651
      %v653 = vextract.high.u32 %v651
      %v654 = vshrl.u32 %v653, 4
      %v655 = vmul.u32 %v654, 18
      %v656 = vsub.s32 %v650, %v655
      %v657 = vsub.s32 0, %v656
      %v658 = vsel %vm648, %v657, %v656
      %vm659 = vcmp.ne.s32.totalorder %v273, 0
      %vm660 = vcmp.ne.s32.totalorder %v284, 0
      %vm661 = vcmp.ne.s32.totalorder %v295, 0
      %vm662 = vcmp.ne.s32.totalorder %v306, 0
      %vm663 = vcmp.ne.s32.totalorder %v317, 0
      %vm664 = vcmp.ne.s32.totalorder %v328, 0
      %vm665 = vcmp.ne.s32.totalorder %v339, 0
      %vm666 = vcmp.ne.s32.totalorder %v350, 0
      %vm667 = vcmp.ne.s32.totalorder %v361, 0
      %vm668 = vcmp.ne.s32.totalorder %v372, 0
      %vm669 = vcmp.ne.s32.totalorder %v383, 0
      %vm670 = vcmp.ne.s32.totalorder %v394, 0
      %vm671 = vcmp.ne.s32.totalorder %v405, 0
      %vm672 = vcmp.ne.s32.totalorder %v416, 0
      %vm673 = vcmp.ne.s32.totalorder %v427, 0
      %vm674 = vcmp.ne.s32.totalorder %v438, 0
      %vm675 = vcmp.ne.s32.totalorder %v449, 0
      %vm676 = vcmp.ne.s32.totalorder %v460, 0
      %vm677 = vcmp.ne.s32.totalorder %v471, 0
      %vm678 = vcmp.ne.s32.totalorder %v482, 0
      %vm679 = vcmp.ne.s32.totalorder %v493, 0
      %vm680 = vcmp.ne.s32.totalorder %v504, 0
      %vm681 = vcmp.ne.s32.totalorder %v515, 0
      %vm682 = vcmp.ne.s32.totalorder %v526, 0
      %vm683 = vcmp.ne.s32.totalorder %v537, 0
      %vm684 = vcmp.ne.s32.totalorder %v548, 0
      %vm685 = vcmp.ne.s32.totalorder %v559, 0
      %vm686 = vcmp.ne.s32.totalorder %v570, 0
      %vm687 = vcmp.ne.s32.totalorder %v581, 0
      %vm688 = vcmp.ne.s32.totalorder %v592, 0
      %vm689 = vcmp.ne.s32.totalorder %v603, 0
      %vm690 = vcmp.ne.s32.totalorder %v614, 0
      %vm691 = vcmp.ne.s32.totalorder %v625, 0
      %vm692 = vcmp.ne.s32.totalorder %v636, 0
      %vm693 = vcmp.ne.s32.totalorder %v647, 0
      %vm694 = vcmp.ne.s32.totalorder %v658, 0
      %vm695 = vcmp.lt.s32.totalorder %v273, 0
      %vm696 = vcmp.lt.s32.totalorder %v284, 0
      %vm697 = vcmp.lt.s32.totalorder %v295, 0
      %vm698 = vcmp.lt.s32.totalorder %v306, 0
      %vm699 = vcmp.lt.s32.totalorder %v317, 0
      %vm700 = vcmp.lt.s32.totalorder %v328, 0
      %vm701 = vcmp.lt.s32.totalorder %v339, 0
      %vm702 = vcmp.lt.s32.totalorder %v350, 0
      %vm703 = vcmp.lt.s32.totalorder %v361, 0
      %vm704 = vcmp.lt.s32.totalorder %v372, 0
      %vm705 = vcmp.lt.s32.totalorder %v383, 0
      %vm706 = vcmp.lt.s32.totalorder %v394, 0
      %vm707 = vcmp.lt.s32.totalorder %v405, 0
      %vm708 = vcmp.lt.s32.totalorder %v416, 0
      %vm709 = vcmp.lt.s32.totalorder %v427, 0
      %vm710 = vcmp.lt.s32.totalorder %v438, 0
      %vm711 = vcmp.lt.s32.totalorder %v449, 0
      %vm712 = vcmp.lt.s32.totalorder %v460, 0
      %vm713 = vcmp.lt.s32.totalorder %v471, 0
      %vm714 = vcmp.lt.s32.totalorder %v482, 0
      %vm715 = vcmp.lt.s32.totalorder %v493, 0
      %vm716 = vcmp.lt.s32.totalorder %v504, 0
      %vm717 = vcmp.lt.s32.totalorder %v515, 0
      %vm718 = vcmp.lt.s32.totalorder %v526, 0
      %vm719 = vcmp.lt.s32.totalorder %v537, 0
      %vm720 = vcmp.lt.s32.totalorder %v548, 0
      %vm721 = vcmp.lt.s32.totalorder %v559, 0
      %vm722 = vcmp.lt.s32.totalorder %v570, 0
      %vm723 = vcmp.lt.s32.totalorder %v581, 0
      %vm724 = vcmp.lt.s32.totalorder %v592, 0
      %vm725 = vcmp.lt.s32.totalorder %v603, 0
      %vm726 = vcmp.lt.s32.totalorder %v614, 0
      %vm727 = vcmp.lt.s32.totalorder %v625, 0
      %vm728 = vcmp.lt.s32.totalorder %v636, 0
      %vm729 = vcmp.lt.s32.totalorder %v647, 0
      %vm730 = vcmp.lt.s32.totalorder %v658, 0
      %vm731 = vmand %vm695, %vm659
      %vm732 = vmand %vm696, %vm660
      %vm733 = vmand %vm697, %vm661
      %vm734 = vmand %vm698, %vm662
      %vm735 = vmand %vm699, %vm663
      %vm736 = vmand %vm700, %vm664
      %vm737 = vmand %vm701, %vm665
      %vm738 = vmand %vm702, %vm666
      %vm739 = vmand %vm703, %vm667
      %vm740 = vmand %vm704, %vm668
      %vm741 = vmand %vm705, %vm669
      %vm742 = vmand %vm706, %vm670
      %vm743 = vmand %vm707, %vm671
      %vm744 = vmand %vm708, %vm672
      %vm745 = vmand %vm709, %vm673
      %vm746 = vmand %vm710, %vm674
      %vm747 = vmand %vm711, %vm675
      %vm748 = vmand %vm712, %vm676
      %vm749 = vmand %vm713, %vm677
      %vm750 = vmand %vm714, %vm678
      %vm751 = vmand %vm715, %vm679
      %vm752 = vmand %vm716, %vm680
      %vm753 = vmand %vm717, %vm681
      %vm754 = vmand %vm718, %vm682
      %vm755 = vmand %vm719, %vm683
      %vm756 = vmand %vm720, %vm684
      %vm757 = vmand %vm721, %vm685
      %vm758 = vmand %vm722, %vm686
      %vm759 = vmand %vm723, %vm687
      %vm760 = vmand %vm724, %vm688
      %vm761 = vmand %vm725, %vm689
      %vm762 = vmand %vm726, %vm690
      %vm763 = vmand %vm727, %vm691
      %vm764 = vmand %vm728, %vm692
      %vm765 = vmand %vm729, %vm693
      %vm766 = vmand %vm730, %vm694
      %v767 = vadd.s32 %v273, 18
      %v768 = vadd.s32 %v284, 18
      %v769 = vadd.s32 %v295, 18
      %v770 = vadd.s32 %v306, 18
      %v771 = vadd.s32 %v317, 18
      %v772 = vadd.s32 %v328, 18
      %v773 = vadd.s32 %v339, 18
      %v774 = vadd.s32 %v350, 18
      %v775 = vadd.s32 %v361, 18
      %v776 = vadd.s32 %v372, 18
      %v777 = vadd.s32 %v383, 18
      %v778 = vadd.s32 %v394, 18
      %v779 = vadd.s32 %v405, 18
      %v780 = vadd.s32 %v416, 18
      %v781 = vadd.s32 %v427, 18
      %v782 = vadd.s32 %v438, 18
      %v783 = vadd.s32 %v449, 18
      %v784 = vadd.s32 %v460, 18
      %v785 = vadd.s32 %v471, 18
      %v786 = vadd.s32 %v482, 18
      %v787 = vadd.s32 %v493, 18
      %v788 = vadd.s32 %v504, 18
      %v789 = vadd.s32 %v515, 18
      %v790 = vadd.s32 %v526, 18
      %v791 = vadd.s32 %v537, 18
      %v792 = vadd.s32 %v548, 18
      %v793 = vadd.s32 %v559, 18
      %v794 = vadd.s32 %v570, 18
      %v795 = vadd.s32 %v581, 18
      %v796 = vadd.s32 %v592, 18
      %v797 = vadd.s32 %v603, 18
      %v798 = vadd.s32 %v614, 18
      %v799 = vadd.s32 %v625, 18
      %v800 = vadd.s32 %v636, 18
      %v801 = vadd.s32 %v647, 18
      %v802 = vadd.s32 %v658, 18
      %v803 = vsel %vm731, %v767, %v273
      %v804 = vsel %vm732, %v768, %v284
      %v805 = vsel %vm733, %v769, %v295
      %v806 = vsel %vm734, %v770, %v306
      %v807 = vsel %vm735, %v771, %v317
      %v808 = vsel %vm736, %v772, %v328
      %v809 = vsel %vm737, %v773, %v339
      %v810 = vsel %vm738, %v774, %v350
      %v811 = vsel %vm739, %v775, %v361
      %v812 = vsel %vm740, %v776, %v372
      %v813 = vsel %vm741, %v777, %v383
      %v814 = vsel %vm742, %v778, %v394
      %v815 = vsel %vm743, %v779, %v405
      %v816 = vsel %vm744, %v780, %v416
      %v817 = vsel %vm745, %v781, %v427
      %v818 = vsel %vm746, %v782, %v438
      %v819 = vsel %vm747, %v783, %v449
      %v820 = vsel %vm748, %v784, %v460
      %v821 = vsel %vm749, %v785, %v471
      %v822 = vsel %vm750, %v786, %v482
      %v823 = vsel %vm751, %v787, %v493
      %v824 = vsel %vm752, %v788, %v504
      %v825 = vsel %vm753, %v789, %v515
      %v826 = vsel %vm754, %v790, %v526
      %v827 = vsel %vm755, %v791, %v537
      %v828 = vsel %vm756, %v792, %v548
      %v829 = vsel %vm757, %v793, %v559
      %v830 = vsel %vm758, %v794, %v570
      %v831 = vsel %vm759, %v795, %v581
      %v832 = vsel %vm760, %v796, %v592
      %v833 = vsel %vm761, %v797, %v603
      %v834 = vsel %vm762, %v798, %v614
      %v835 = vsel %vm763, %v799, %v625
      %v836 = vsel %vm764, %v800, %v636
      %v837 = vsel %vm765, %v801, %v647
      %v838 = vsel %vm766, %v802, %v658
      %vm839 = vcmp.lt.s32.totalorder %v803, 16
      %vm840 = vcmp.lt.s32.totalorder %v804, 16
      %vm841 = vcmp.lt.s32.totalorder %v805, 16
      %vm842 = vcmp.lt.s32.totalorder %v806, 16
      %vm843 = vcmp.lt.s32.totalorder %v807, 16
      %vm844 = vcmp.lt.s32.totalorder %v808, 16
      %vm845 = vcmp.lt.s32.totalorder %v809, 16
      %vm846 = vcmp.lt.s32.totalorder %v810, 16
      %vm847 = vcmp.lt.s32.totalorder %v811, 16
      %vm848 = vcmp.lt.s32.totalorder %v812, 16
      %vm849 = vcmp.lt.s32.totalorder %v813, 16
      %vm850 = vcmp.lt.s32.totalorder %v814, 16
      %vm851 = vcmp.lt.s32.totalorder %v815, 16
      %vm852 = vcmp.lt.s32.totalorder %v816, 16
      %vm853 = vcmp.lt.s32.totalorder %v817, 16
      %vm854 = vcmp.lt.s32.totalorder %v818, 16
      %vm855 = vcmp.lt.s32.totalorder %v819, 16
      %vm856 = vcmp.lt.s32.totalorder %v820, 16
      %vm857 = vcmp.lt.s32.totalorder %v821, 16
      %vm858 = vcmp.lt.s32.totalorder %v822, 16
      %vm859 = vcmp.lt.s32.totalorder %v823, 16
      %vm860 = vcmp.lt.s32.totalorder %v824, 16
      %vm861 = vcmp.lt.s32.totalorder %v825, 16
      %vm862 = vcmp.lt.s32.totalorder %v826, 16
      %vm863 = vcmp.lt.s32.totalorder %v827, 16
      %vm864 = vcmp.lt.s32.totalorder %v828, 16
      %vm865 = vcmp.lt.s32.totalorder %v829, 16
      %vm866 = vcmp.lt.s32.totalorder %v830, 16
      %vm867 = vcmp.lt.s32.totalorder %v831, 16
      %vm868 = vcmp.lt.s32.totalorder %v832, 16
      %vm869 = vcmp.lt.s32.totalorder %v833, 16
      %vm870 = vcmp.lt.s32.totalorder %v834, 16
      %vm871 = vcmp.lt.s32.totalorder %v835, 16
      %vm872 = vcmp.lt.s32.totalorder %v836, 16
      %vm873 = vcmp.lt.s32.totalorder %v837, 16
      %vm874 = vcmp.lt.s32.totalorder %v838, 16
      %vm875 = vcmp.lt.s32.totalorder %v227, 288
      %vm876 = vcmp.lt.s32.totalorder %v228, 288
      %vm877 = vcmp.lt.s32.totalorder %v229, 288
      %vm878 = vcmp.lt.s32.totalorder %v230, 288
      %vm879 = vcmp.lt.s32.totalorder %v231, 288
      %vm880 = vcmp.lt.s32.totalorder %v232, 288
      %vm881 = vcmp.lt.s32.totalorder %v233, 288
      %vm882 = vcmp.lt.s32.totalorder %v234, 288
      %vm883 = vcmp.lt.s32.totalorder %v235, 288
      %vm884 = vcmp.lt.s32.totalorder %v236, 288
      %vm885 = vcmp.lt.s32.totalorder %v237, 288
      %vm886 = vcmp.lt.s32.totalorder %v238, 288
      %vm887 = vcmp.lt.s32.totalorder %v239, 288
      %vm888 = vcmp.lt.s32.totalorder %v240, 288
      %vm889 = vcmp.lt.s32.totalorder %v241, 288
      %vm890 = vcmp.lt.s32.totalorder %v242, 288
      %vm891 = vcmp.lt.s32.totalorder %v243, 288
      %vm892 = vcmp.lt.s32.totalorder %v244, 288
      %vm893 = vcmp.lt.s32.totalorder %v245, 288
      %vm894 = vcmp.lt.s32.totalorder %v246, 288
      %vm895 = vcmp.lt.s32.totalorder %v247, 288
      %vm896 = vcmp.lt.s32.totalorder %v248, 288
      %vm897 = vcmp.lt.s32.totalorder %v249, 288
      %vm898 = vcmp.lt.s32.totalorder %v250, 288
      %vm899 = vcmp.lt.s32.totalorder %v251, 288
      %vm900 = vcmp.lt.s32.totalorder %v252, 288
      %vm901 = vcmp.lt.s32.totalorder %v253, 288
      %vm902 = vcmp.lt.s32.totalorder %v254, 288
      %vm903 = vcmp.lt.s32.totalorder %v255, 288
      %vm904 = vcmp.lt.s32.totalorder %v256, 288
      %vm905 = vcmp.lt.s32.totalorder %v257, 288
      %vm906 = vcmp.lt.s32.totalorder %v258, 288
      %vm907 = vcmp.lt.s32.totalorder %v259, 288
      %vm908 = vcmp.lt.s32.totalorder %v260, 288
      %vm909 = vcmp.lt.s32.totalorder %v261, 288
      %vm910 = vcmp.lt.s32.totalorder %v262, 288
      %vm911 = vmand %vm839, %vm875
      %vm912 = vmand %vm840, %vm876
      %vm913 = vmand %vm841, %vm877
      %vm914 = vmand %vm842, %vm878
      %vm915 = vmand %vm843, %vm879
      %vm916 = vmand %vm844, %vm880
      %vm917 = vmand %vm845, %vm881
      %vm918 = vmand %vm846, %vm882
      %vm919 = vmand %vm847, %vm883
      %vm920 = vmand %vm848, %vm884
      %vm921 = vmand %vm849, %vm885
      %vm922 = vmand %vm850, %vm886
      %vm923 = vmand %vm851, %vm887
      %vm924 = vmand %vm852, %vm888
      %vm925 = vmand %vm853, %vm889
      %vm926 = vmand %vm854, %vm890
      %vm927 = vmand %vm855, %vm891
      %vm928 = vmand %vm856, %vm892
      %vm929 = vmand %vm857, %vm893
      %vm930 = vmand %vm858, %vm894
      %vm931 = vmand %vm859, %vm895
      %vm932 = vmand %vm860, %vm896
      %vm933 = vmand %vm861, %vm897
      %vm934 = vmand %vm862, %vm898
      %vm935 = vmand %vm863, %vm899
      %vm936 = vmand %vm864, %vm900
      %vm937 = vmand %vm865, %vm901
      %vm938 = vmand %vm866, %vm902
      %vm939 = vmand %vm867, %vm903
      %vm940 = vmand %vm868, %vm904
      %vm941 = vmand %vm869, %vm905
      %vm942 = vmand %vm870, %vm906
      %vm943 = vmand %vm871, %vm907
      %vm944 = vmand %vm872, %vm908
      %vm945 = vmand %vm873, %vm909
      %vm946 = vmand %vm874, %vm910
      %v947 = vld [vmem:[%s219] sm:$0xc]
      %v948 = vld [vmem:[%s219 + $0x4] sm:$0xf]
      %v949 = vld [vmem:[%s219 + $0x8] sm:$0xf]
      %v950 = vld [vmem:[%s219 + $0xc] sm:$0xf]
      %v951 = vld [vmem:[%s219 + $0x10] sm:$0xf]
      %v952 = vld [vmem:[%s219 + $0x14] sm:$0xf]
      %v953 = vld [vmem:[%s219 + $0x18] sm:$0xf]
      %v954 = vld [vmem:[%s219 + $0x1c] sm:$0xf]
      %v955 = vld [vmem:[%s219 + $0x20] sm:$0xf]
      %v956 = vld [vmem:[%s219 + $0x24] sm:$0xf]
      %v957 = vld [vmem:[%s219 + $0x28] sm:$0xf]
      %v958 = vld [vmem:[%s219 + $0x2c] sm:$0xf]
      %v959 = vld [vmem:[%s219 + $0x30] sm:$0xf]
      %v960 = vld [vmem:[%s219 + $0x34] sm:$0xf]
      %v961 = vld [vmem:[%s219 + $0x38] sm:$0xf]
      %v962 = vld [vmem:[%s219 + $0x3c] sm:$0xf]
      %v963 = vld [vmem:[%s219 + $0x40] sm:$0xf]
      %v964 = vld [vmem:[%s219 + $0x44] sm:$0xf]
      %v965 = vld [vmem:[%s219 + $0x48] sm:$0xf]
      %v966 = vld [vmem:[%s219 + $0x4c] sm:$0xf]
      %v967 = vld [vmem:[%s219 + $0x50] sm:$0xf]
      %v968 = vld [vmem:[%s219 + $0x54] sm:$0xf]
      %v969 = vld [vmem:[%s219 + $0x58] sm:$0xf]
      %v970 = vld [vmem:[%s219 + $0x5c] sm:$0xf]
      %v971 = vld [vmem:[%s219 + $0x60] sm:$0xf]
      %v972 = vld [vmem:[%s219 + $0x64] sm:$0xf]
      %v973 = vld [vmem:[%s219 + $0x68] sm:$0xf]
      %v974 = vld [vmem:[%s219 + $0x6c] sm:$0xf]
      %v975 = vld [vmem:[%s219 + $0x70] sm:$0xf]
      %v976 = vld [vmem:[%s219 + $0x74] sm:$0xf]
      %v977 = vld [vmem:[%s219 + $0x78] sm:$0xf]
      %v978 = vld [vmem:[%s219 + $0x7c] sm:$0xf]
      %v979 = vld [vmem:[%s219 + $0x80] sm:$0xf]
      %v980 = vld [vmem:[%s219 + $0x84] sm:$0xf]
      %v981 = vld [vmem:[%s219 + $0x88] sm:$0xf]
      %v982 = vld [vmem:[%s219 + $0x8c] sm:$0xf]
      %v983 = vld [vmem:[%s219 + $0x90] sm:$0x7]
      %v984 = vld [vmem:[%s1] sm:$0xf]
      %v985 = vld [vmem:[%s1 + $0x4] sm:$0xf]
      %v986 = vld [vmem:[%s1 + $0x8] sm:$0xf]
      %v987 = vld [vmem:[%s1 + $0xc] sm:$0xf]
      %v988 = vld [vmem:[%s1 + $0x10] sm:$0xf]
      %v989 = vld [vmem:[%s1 + $0x14] sm:$0xf]
      %v990 = vld [vmem:[%s1 + $0x18] sm:$0xf]
      %v991 = vld [vmem:[%s1 + $0x1c] sm:$0xf]
      %v992 = vld [vmem:[%s1 + $0x20] sm:$0xf]
      %v993 = vld [vmem:[%s1 + $0x24] sm:$0xf]
      %v994 = vld [vmem:[%s1 + $0x28] sm:$0xf]
      %v995 = vld [vmem:[%s1 + $0x2c] sm:$0xf]
      %v996 = vld [vmem:[%s1 + $0x30] sm:$0xf]
      %v997 = vld [vmem:[%s1 + $0x34] sm:$0xf]
      %v998 = vld [vmem:[%s1 + $0x38] sm:$0xf]
      %v999 = vld [vmem:[%s1 + $0x3c] sm:$0xf]
      %v1000 = vld [vmem:[%s219] sm:$0x8]
      %v1001 = vld [vmem:[%s1 + $0x40] sm:$0xf]
      %v1002 = vld [vmem:[%s1 + $0x44] sm:$0xf]
      %v1003 = vld [vmem:[%s1 + $0x48] sm:$0xf]
      %v1004 = vld [vmem:[%s1 + $0x4c] sm:$0xf]
      %v1005 = vld [vmem:[%s1 + $0x50] sm:$0xf]
      %v1006 = vld [vmem:[%s1 + $0x54] sm:$0xf]
      %v1007 = vld [vmem:[%s1 + $0x58] sm:$0xf]
      %v1008 = vld [vmem:[%s1 + $0x5c] sm:$0xf]
      %v1009 = vld [vmem:[%s1 + $0x60] sm:$0xf]
      %v1010 = vld [vmem:[%s1 + $0x64] sm:$0xf]
      %v1011 = vld [vmem:[%s1 + $0x68] sm:$0xf]
      %v1012 = vld [vmem:[%s1 + $0x6c] sm:$0xf]
      %v1013 = vld [vmem:[%s1 + $0x70] sm:$0xf]
      %v1014 = vld [vmem:[%s1 + $0x74] sm:$0xf]
      %v1015 = vld [vmem:[%s1 + $0x78] sm:$0xf]
      %v1016 = vld [vmem:[%s1 + $0x7c] sm:$0xf]
      %v1054 = vunpack.c.l.b16 %v1000
      %v1055 = vunpack.c.l.b16 %v948
      %v1056 = vunpack.c.l.b16 %v949
      %v1057 = vunpack.c.l.b16 %v950
      %v1058 = vunpack.c.l.b16 %v951
      %v1059 = vunpack.c.l.b16 %v952
      %v1060 = vunpack.c.l.b16 %v953
      %v1061 = vunpack.c.l.b16 %v954
      %v1062 = vunpack.c.l.b16 %v955
      %v1063 = vunpack.c.l.b16 %v956
      %v1064 = vunpack.c.l.b16 %v957
      %v1065 = vunpack.c.l.b16 %v958
      %v1066 = vunpack.c.l.b16 %v959
      %v1067 = vunpack.c.l.b16 %v960
      %v1068 = vunpack.c.l.b16 %v961
      %v1069 = vunpack.c.l.b16 %v962
      %v1070 = vunpack.c.l.b16 %v963
      %v1071 = vunpack.c.l.b16 %v964
      %v1072 = vunpack.c.l.b16 %v965
      %v1073 = vunpack.c.l.b16 %v966
      %v1074 = vunpack.c.l.b16 %v967
      %v1075 = vunpack.c.l.b16 %v968
      %v1076 = vunpack.c.l.b16 %v969
      %v1077 = vunpack.c.l.b16 %v970
      %v1078 = vunpack.c.l.b16 %v971
      %v1079 = vunpack.c.l.b16 %v972
      %v1080 = vunpack.c.l.b16 %v973
      %v1081 = vunpack.c.l.b16 %v974
      %v1082 = vunpack.c.l.b16 %v975
      %v1083 = vunpack.c.l.b16 %v976
      %v1084 = vunpack.c.l.b16 %v977
      %v1085 = vunpack.c.l.b16 %v978
      %v1086 = vunpack.c.l.b16 %v979
      %v1087 = vunpack.c.l.b16 %v980
      %v1088 = vunpack.c.l.b16 %v981
      %v1089 = vunpack.c.l.b16 %v982
      %v1090 = vunpack.c.l.b16 %v983
      %v1091 = vpack.c.b16 %v1055, %v1054
      %v1092 = vpack.c.b16 %v1057, %v1056
      %v1093 = vpack.c.b16 %v1059, %v1058
      %v1094 = vpack.c.b16 %v1061, %v1060
      %v1095 = vpack.c.b16 %v1063, %v1062
      %v1096 = vpack.c.b16 %v1065, %v1064
      %v1097 = vpack.c.b16 %v1067, %v1066
      %v1098 = vpack.c.b16 %v1069, %v1068
      %v1099 = vpack.c.b16 %v1071, %v1070
      %v1100 = vpack.c.b16 %v1073, %v1072
      %v1101 = vpack.c.b16 %v1075, %v1074
      %v1102 = vpack.c.b16 %v1077, %v1076
      %v1103 = vpack.c.b16 %v1079, %v1078
      %v1104 = vpack.c.b16 %v1081, %v1080
      %v1105 = vpack.c.b16 %v1083, %v1082
      %v1106 = vpack.c.b16 %v1085, %v1084
      %v1107 = vpack.c.b16 %v1087, %v1086
      %v1108 = vpack.c.b16 %v1089, %v1088
      %v1109 = vpack.c.b16 %v1090, %v1090
      %vm1110 = vcmask 1044480
      %v1111 = vrot.slane %v1091, 3
      %v1112 = vrot.slane %v1092, 3
      %v1113 = vsel %vm1110, %v1111, %v1112
      %v1114 = vrot.slane %v1093, 3
      %v1115 = vsel %vm1110, %v1112, %v1114
      %v1116 = vrot.slane %v1094, 3
      %v1117 = vsel %vm1110, %v1114, %v1116
      %v1118 = vrot.slane %v1095, 3
      %v1119 = vsel %vm1110, %v1116, %v1118
      %v1120 = vrot.slane %v1096, 3
      %v1121 = vsel %vm1110, %v1118, %v1120
      %v1122 = vrot.slane %v1097, 3
      %v1123 = vsel %vm1110, %v1120, %v1122
      %v1124 = vrot.slane %v1098, 3
      %v1125 = vsel %vm1110, %v1122, %v1124
      %v1126 = vrot.slane %v1099, 3
      %v1127 = vsel %vm1110, %v1124, %v1126
      %v1128 = vrot.slane %v1100, 3
      %v1129 = vsel %vm1110, %v1126, %v1128
      %v1130 = vrot.slane %v1101, 3
      %v1131 = vsel %vm1110, %v1128, %v1130
      %v1132 = vrot.slane %v1102, 3
      %v1133 = vsel %vm1110, %v1130, %v1132
      %v1134 = vrot.slane %v1103, 3
      %v1135 = vsel %vm1110, %v1132, %v1134
      %v1136 = vrot.slane %v1104, 3
      %v1137 = vsel %vm1110, %v1134, %v1136
      %v1138 = vrot.slane %v1105, 3
      %v1139 = vsel %vm1110, %v1136, %v1138
      %v1140 = vrot.slane %v1106, 3
      %v1141 = vsel %vm1110, %v1138, %v1140
      %v1142 = vrot.slane %v1107, 3
      %v1143 = vsel %vm1110, %v1140, %v1142
      %v1144 = vrot.slane %v1108, 3
      %v1145 = vsel %vm1110, %v1142, %v1144
      %v1146 = vrot.slane %v1109, 3
      %v1147 = vsel %vm1110, %v1144, %v1146
      %v1182 = vunpack.c.l.b16 %v1001
      %v1183 = vunpack.c.l.b16 %v1002
      %v1184 = vunpack.c.l.b16 %v1003
      %v1185 = vunpack.c.l.b16 %v1004
      %v1186 = vunpack.c.l.b16 %v1005
      %v1187 = vunpack.c.l.b16 %v1006
      %v1188 = vunpack.c.l.b16 %v1007
      %v1189 = vunpack.c.l.b16 %v1008
      %v1190 = vunpack.c.l.b16 %v1009
      %v1191 = vunpack.c.l.b16 %v1010
      %v1192 = vunpack.c.l.b16 %v1011
      %v1193 = vunpack.c.l.b16 %v1012
      %v1194 = vunpack.c.l.b16 %v1013
      %v1195 = vunpack.c.l.b16 %v1014
      %v1196 = vunpack.c.l.b16 %v1015
      %v1197 = vunpack.c.l.b16 %v1016
      %v1198 = vpack.c.b16 %v1183, %v1182
      %v1199 = vpack.c.b16 %v1185, %v1184
      %v1200 = vpack.c.b16 %v1187, %v1186
      %v1201 = vpack.c.b16 %v1189, %v1188
      %v1202 = vpack.c.b16 %v1191, %v1190
      %v1203 = vpack.c.b16 %v1193, %v1192
      %v1204 = vpack.c.b16 %v1195, %v1194
      %v1205 = vpack.c.b16 %v1197, %v1196
      %1214 = vmatprep.subr.bf16.mxu0 0
      %1215 = vmatpush1.bf16.msra.mxu0 %v1205
      %1216 = vmatprep.subr.bf16.mxu0 0
      %1217 = vmatpush1.bf16.msra.mxu0 %v1204
      %1218 = vmatprep.subr.bf16.mxu0 0
      %1219 = vmatpush1.bf16.msra.mxu0 %v1203
      %1220 = vmatprep.subr.bf16.mxu0 0
      %1221 = vmatpush1.bf16.msra.mxu0 %v1202
      %1222 = vmatprep.subr.bf16.mxu0 0
      %1223 = vmatpush1.bf16.msra.mxu0 %v1201
      %1224 = vmatprep.subr.bf16.mxu0 0
      %1225 = vmatpush1.bf16.msra.mxu0 %v1200
      %1226 = vmatprep.subr.bf16.mxu0 0
      %1227 = vmatpush1.bf16.msra.mxu0 %v1199
      %1228 = vmatprep.subr.bf16.mxu0 0
      %1229 = vmatpush1.bf16.msra.mxu0 %v1198
      %1230 = vmatprep.subr.bf16.mxu0 0
      %1231 = vmatpush2.bf16.msra.mxu0 0
      %1232 = vmatprep.subr.bf16.mxu0 0
      %1233 = vmatpush2.bf16.msra.mxu0 0
      %1234 = vmatprep.subr.bf16.mxu0 0
      %1235 = vmatpush2.bf16.msra.mxu0 0
      %1236 = vmatprep.subr.bf16.mxu0 0
      %1237 = vmatpush2.bf16.msra.mxu0 0
      %1238 = vmatprep.subr.bf16.mxu0 0
      %1239 = vmatpush2.bf16.msra.mxu0 0
      %1240 = vmatprep.subr.bf16.mxu0 0
      %1241 = vmatpush2.bf16.msra.mxu0 0
      %1242 = vmatprep.subr.bf16.mxu0 0
      %1243 = vmatpush2.bf16.msra.mxu0 0
      %1244 = vmatprep.subr.bf16.mxu0 0
      %1245 = vmatpush2.bf16.msra.mxu0 0
      %1246 = vmatprep.mubr.bf16.mxu0 0
      %1247 = vmatmul.mubr.bf16.gmra.mxu0 %v1113
      %v1248 = vpop.f32.mrf.mxu0
      %v1249 = vadd.f32 0.0, %v1248
      %v1250 = vpop.f32.mrf.mxu0
      %v1251 = vpop.f32.mrf.mxu0
      %v1252 = vadd.f32 0.0, %v1251
      %v1253 = vpop.f32.mrf.mxu0
      %1254 = vmatprep.mubr.bf16.mxu0 0
      %1255 = vmatmul.mubr.bf16.gmra.mxu0 %v1115
      %v1256 = vpop.f32.mrf.mxu0
      %v1257 = vadd.f32 0.0, %v1256
      %v1258 = vpop.f32.mrf.mxu0
      %v1259 = vpop.f32.mrf.mxu0
      %v1260 = vadd.f32 0.0, %v1259
      %v1261 = vpop.f32.mrf.mxu0
      %1262 = vmatprep.mubr.bf16.mxu0 0
      %1263 = vmatmul.mubr.bf16.gmra.mxu0 %v1117
      %v1264 = vpop.f32.mrf.mxu0
      %v1265 = vadd.f32 0.0, %v1264
      %v1266 = vpop.f32.mrf.mxu0
      %v1267 = vpop.f32.mrf.mxu0
      %v1268 = vadd.f32 0.0, %v1267
      %v1269 = vpop.f32.mrf.mxu0
      %1270 = vmatprep.mubr.bf16.mxu0 0
      %1271 = vmatmul.mubr.bf16.gmra.mxu0 %v1119
      %v1272 = vpop.f32.mrf.mxu0
      %v1273 = vadd.f32 0.0, %v1272
      %v1274 = vpop.f32.mrf.mxu0
      %v1275 = vpop.f32.mrf.mxu0
      %v1276 = vadd.f32 0.0, %v1275
      %v1277 = vpop.f32.mrf.mxu0
      %1278 = vmatprep.mubr.bf16.mxu0 0
      %1279 = vmatmul.mubr.bf16.gmra.mxu0 %v1121
      %v1280 = vpop.f32.mrf.mxu0
      %v1281 = vadd.f32 0.0, %v1280
      %v1282 = vpop.f32.mrf.mxu0
      %v1283 = vpop.f32.mrf.mxu0
      %v1284 = vadd.f32 0.0, %v1283
      %v1285 = vpop.f32.mrf.mxu0
      %1286 = vmatprep.mubr.bf16.mxu0 0
      %1287 = vmatmul.mubr.bf16.gmra.mxu0 %v1123
      %v1288 = vpop.f32.mrf.mxu0
      %v1289 = vadd.f32 0.0, %v1288
      %v1290 = vpop.f32.mrf.mxu0
      %v1291 = vpop.f32.mrf.mxu0
      %v1292 = vadd.f32 0.0, %v1291
      %v1293 = vpop.f32.mrf.mxu0
      %1294 = vmatprep.mubr.bf16.mxu0 0
      %1295 = vmatmul.mubr.bf16.gmra.mxu0 %v1125
      %v1296 = vpop.f32.mrf.mxu0
      %v1297 = vadd.f32 0.0, %v1296
      %v1298 = vpop.f32.mrf.mxu0
      %v1299 = vpop.f32.mrf.mxu0
      %v1300 = vadd.f32 0.0, %v1299
      %v1301 = vpop.f32.mrf.mxu0
      %1302 = vmatprep.mubr.bf16.mxu0 0
      %1303 = vmatmul.mubr.bf16.gmra.mxu0 %v1127
      %v1304 = vpop.f32.mrf.mxu0
      %v1305 = vadd.f32 0.0, %v1304
      %v1306 = vpop.f32.mrf.mxu0
      %v1307 = vpop.f32.mrf.mxu0
      %v1308 = vadd.f32 0.0, %v1307
      %v1309 = vpop.f32.mrf.mxu0
      %1310 = vmatprep.mubr.bf16.mxu0 0
      %1311 = vmatmul.mubr.bf16.gmra.mxu0 %v1129
      %v1312 = vpop.f32.mrf.mxu0
      %v1313 = vadd.f32 0.0, %v1312
      %v1314 = vpop.f32.mrf.mxu0
      %v1315 = vpop.f32.mrf.mxu0
      %v1316 = vadd.f32 0.0, %v1315
      %v1317 = vpop.f32.mrf.mxu0
      %1318 = vmatprep.mubr.bf16.mxu0 0
      %1319 = vmatmul.mubr.bf16.gmra.mxu0 %v1131
      %v1320 = vpop.f32.mrf.mxu0
      %v1321 = vadd.f32 0.0, %v1320
      %v1322 = vpop.f32.mrf.mxu0
      %v1323 = vpop.f32.mrf.mxu0
      %v1324 = vadd.f32 0.0, %v1323
      %v1325 = vpop.f32.mrf.mxu0
      %1326 = vmatprep.mubr.bf16.mxu0 0
      %1327 = vmatmul.mubr.bf16.gmra.mxu0 %v1133
      %v1328 = vpop.f32.mrf.mxu0
      %v1329 = vadd.f32 0.0, %v1328
      %v1330 = vpop.f32.mrf.mxu0
      %v1331 = vpop.f32.mrf.mxu0
      %v1332 = vadd.f32 0.0, %v1331
      %v1333 = vpop.f32.mrf.mxu0
      %1334 = vmatprep.mubr.bf16.mxu0 0
      %1335 = vmatmul.mubr.bf16.gmra.mxu0 %v1135
      %v1336 = vpop.f32.mrf.mxu0
      %v1337 = vadd.f32 0.0, %v1336
      %v1338 = vpop.f32.mrf.mxu0
      %v1339 = vpop.f32.mrf.mxu0
      %v1340 = vadd.f32 0.0, %v1339
      %v1341 = vpop.f32.mrf.mxu0
      %1342 = vmatprep.mubr.bf16.mxu0 0
      %1343 = vmatmul.mubr.bf16.gmra.mxu0 %v1137
      %v1344 = vpop.f32.mrf.mxu0
      %v1345 = vadd.f32 0.0, %v1344
      %v1346 = vpop.f32.mrf.mxu0
      %v1347 = vpop.f32.mrf.mxu0
      %v1348 = vadd.f32 0.0, %v1347
      %v1349 = vpop.f32.mrf.mxu0
      %1350 = vmatprep.mubr.bf16.mxu0 0
      %1351 = vmatmul.mubr.bf16.gmra.mxu0 %v1139
      %v1352 = vpop.f32.mrf.mxu0
      %v1353 = vadd.f32 0.0, %v1352
      %v1354 = vpop.f32.mrf.mxu0
      %v1355 = vpop.f32.mrf.mxu0
      %v1356 = vadd.f32 0.0, %v1355
      %v1357 = vpop.f32.mrf.mxu0
      %1358 = vmatprep.mubr.bf16.mxu0 0
      %1359 = vmatmul.mubr.bf16.gmra.mxu0 %v1141
      %v1360 = vpop.f32.mrf.mxu0
      %v1361 = vadd.f32 0.0, %v1360
      %v1362 = vpop.f32.mrf.mxu0
      %v1363 = vpop.f32.mrf.mxu0
      %v1364 = vadd.f32 0.0, %v1363
      %v1365 = vpop.f32.mrf.mxu0
      %1366 = vmatprep.mubr.bf16.mxu0 0
      %1367 = vmatmul.mubr.bf16.gmra.mxu0 %v1143
      %v1368 = vpop.f32.mrf.mxu0
      %v1369 = vadd.f32 0.0, %v1368
      %v1370 = vpop.f32.mrf.mxu0
      %v1371 = vpop.f32.mrf.mxu0
      %v1372 = vadd.f32 0.0, %v1371
      %v1373 = vpop.f32.mrf.mxu0
      %1374 = vmatprep.mubr.bf16.mxu0 0
      %1375 = vmatmul.mubr.bf16.gmra.mxu0 %v1145
      %v1376 = vpop.f32.mrf.mxu0
      %v1377 = vadd.f32 0.0, %v1376
      %v1378 = vpop.f32.mrf.mxu0
      %v1379 = vpop.f32.mrf.mxu0
      %v1380 = vadd.f32 0.0, %v1379
      %v1381 = vpop.f32.mrf.mxu0
      %1382 = vmatprep.mubr.bf16.mxu0 0
      %1383 = vmatmul.mubr.bf16.gmra.mxu0 %v1147
      %v1384 = vpop.f32.mrf.mxu0
      %v1385 = vadd.f32 0.0, %v1384
      %v1386 = vpop.f32.mrf.mxu0
      %v1387 = vpop.f32.mrf.mxu0
      %v1388 = vadd.f32 0.0, %v1387
      %v1389 = vpop.f32.mrf.mxu0
      %1390 = vdwg.mxu0
      %v1392 = vunpack.c.l.b16 %v947
      %v1393 = vpack.c.b16 %v1055, %v1392
      %vm1394 = vsmask.f32 5376
      %v1396 = vshrl.u32 %v1393, 16
      %v1398 = vrot.slane %v1396, 2
      %v1399 = vshll.u32 %v1393, 16
      %v1401 = vrot.slane %v1399, 3
      %v1402 = vor.u32 %v1398, %v1401
      %v1404 = vshrl.u32 %v1092, 16
      %v1406 = vrot.slane %v1404, 2
      %v1407 = vshll.u32 %v1092, 16
      %v1409 = vrot.slane %v1407, 3
      %v1410 = vor.u32 %v1406, %v1409
      %v1411 = vsel %vm1394, %v1402, %v1410
      %v1413 = vshrl.u32 %v1093, 16
      %v1415 = vrot.slane %v1413, 2
      %v1416 = vshll.u32 %v1093, 16
      %v1418 = vrot.slane %v1416, 3
      %v1419 = vor.u32 %v1415, %v1418
      %v1420 = vsel %vm1394, %v1410, %v1419
      %v1422 = vshrl.u32 %v1094, 16
      %v1424 = vrot.slane %v1422, 2
      %v1425 = vshll.u32 %v1094, 16
      %v1427 = vrot.slane %v1425, 3
      %v1428 = vor.u32 %v1424, %v1427
      %v1429 = vsel %vm1394, %v1419, %v1428
      %v1431 = vshrl.u32 %v1095, 16
      %v1433 = vrot.slane %v1431, 2
      %v1434 = vshll.u32 %v1095, 16
      %v1436 = vrot.slane %v1434, 3
      %v1437 = vor.u32 %v1433, %v1436
      %v1438 = vsel %vm1394, %v1428, %v1437
      %v1440 = vshrl.u32 %v1096, 16
      %v1442 = vrot.slane %v1440, 2
      %v1443 = vshll.u32 %v1096, 16
      %v1445 = vrot.slane %v1443, 3
      %v1446 = vor.u32 %v1442, %v1445
      %v1447 = vsel %vm1394, %v1437, %v1446
      %v1449 = vshrl.u32 %v1097, 16
      %v1451 = vrot.slane %v1449, 2
      %v1452 = vshll.u32 %v1097, 16
      %v1454 = vrot.slane %v1452, 3
      %v1455 = vor.u32 %v1451, %v1454
      %v1456 = vsel %vm1394, %v1446, %v1455
      %v1458 = vshrl.u32 %v1098, 16
      %v1460 = vrot.slane %v1458, 2
      %v1461 = vshll.u32 %v1098, 16
      %v1463 = vrot.slane %v1461, 3
      %v1464 = vor.u32 %v1460, %v1463
      %v1465 = vsel %vm1394, %v1455, %v1464
      %v1467 = vshrl.u32 %v1099, 16
      %v1469 = vrot.slane %v1467, 2
      %v1470 = vshll.u32 %v1099, 16
      %v1472 = vrot.slane %v1470, 3
      %v1473 = vor.u32 %v1469, %v1472
      %v1474 = vsel %vm1394, %v1464, %v1473
      %v1476 = vshrl.u32 %v1100, 16
      %v1478 = vrot.slane %v1476, 2
      %v1479 = vshll.u32 %v1100, 16
      %v1481 = vrot.slane %v1479, 3
      %v1482 = vor.u32 %v1478, %v1481
      %v1483 = vsel %vm1394, %v1473, %v1482
      %v1485 = vshrl.u32 %v1101, 16
      %v1487 = vrot.slane %v1485, 2
      %v1488 = vshll.u32 %v1101, 16
      %v1490 = vrot.slane %v1488, 3
      %v1491 = vor.u32 %v1487, %v1490
      %v1492 = vsel %vm1394, %v1482, %v1491
      %v1494 = vshrl.u32 %v1102, 16
      %v1496 = vrot.slane %v1494, 2
      %v1497 = vshll.u32 %v1102, 16
      %v1499 = vrot.slane %v1497, 3
      %v1500 = vor.u32 %v1496, %v1499
      %v1501 = vsel %vm1394, %v1491, %v1500
      %v1503 = vshrl.u32 %v1103, 16
      %v1505 = vrot.slane %v1503, 2
      %v1506 = vshll.u32 %v1103, 16
      %v1508 = vrot.slane %v1506, 3
      %v1509 = vor.u32 %v1505, %v1508
      %v1510 = vsel %vm1394, %v1500, %v1509
      %v1512 = vshrl.u32 %v1104, 16
      %v1514 = vrot.slane %v1512, 2
      %v1515 = vshll.u32 %v1104, 16
      %v1517 = vrot.slane %v1515, 3
      %v1518 = vor.u32 %v1514, %v1517
      %v1519 = vsel %vm1394, %v1509, %v1518
      %v1521 = vshrl.u32 %v1105, 16
      %v1523 = vrot.slane %v1521, 2
      %v1524 = vshll.u32 %v1105, 16
      %v1526 = vrot.slane %v1524, 3
      %v1527 = vor.u32 %v1523, %v1526
      %v1528 = vsel %vm1394, %v1518, %v1527
      %v1530 = vshrl.u32 %v1106, 16
      %v1532 = vrot.slane %v1530, 2
      %v1533 = vshll.u32 %v1106, 16
      %v1535 = vrot.slane %v1533, 3
      %v1536 = vor.u32 %v1532, %v1535
      %v1537 = vsel %vm1394, %v1527, %v1536
      %v1539 = vshrl.u32 %v1107, 16
      %v1541 = vrot.slane %v1539, 2
      %v1542 = vshll.u32 %v1107, 16
      %v1544 = vrot.slane %v1542, 3
      %v1545 = vor.u32 %v1541, %v1544
      %v1546 = vsel %vm1394, %v1536, %v1545
      %v1548 = vshrl.u32 %v1108, 16
      %v1550 = vrot.slane %v1548, 2
      %v1551 = vshll.u32 %v1108, 16
      %v1553 = vrot.slane %v1551, 3
      %v1554 = vor.u32 %v1550, %v1553
      %v1555 = vsel %vm1394, %v1545, %v1554
      %v1557 = vshrl.u32 %v1109, 16
      %v1559 = vrot.slane %v1557, 2
      %v1560 = vshll.u32 %v1109, 16
      %v1562 = vrot.slane %v1560, 3
      %v1563 = vor.u32 %v1559, %v1562
      %v1564 = vsel %vm1394, %v1554, %v1563
      %v1599 = vunpack.c.l.b16 %v984
      %v1600 = vunpack.c.l.b16 %v985
      %v1601 = vunpack.c.l.b16 %v986
      %v1602 = vunpack.c.l.b16 %v987
      %v1603 = vunpack.c.l.b16 %v988
      %v1604 = vunpack.c.l.b16 %v989
      %v1605 = vunpack.c.l.b16 %v990
      %v1606 = vunpack.c.l.b16 %v991
      %v1607 = vunpack.c.l.b16 %v992
      %v1608 = vunpack.c.l.b16 %v993
      %v1609 = vunpack.c.l.b16 %v994
      %v1610 = vunpack.c.l.b16 %v995
      %v1611 = vunpack.c.l.b16 %v996
      %v1612 = vunpack.c.l.b16 %v997
      %v1613 = vunpack.c.l.b16 %v998
      %v1614 = vunpack.c.l.b16 %v999
      %v1615 = vpack.c.b16 %v1600, %v1599
      %v1616 = vpack.c.b16 %v1602, %v1601
      %v1617 = vpack.c.b16 %v1604, %v1603
      %v1618 = vpack.c.b16 %v1606, %v1605
      %v1619 = vpack.c.b16 %v1608, %v1607
      %v1620 = vpack.c.b16 %v1610, %v1609
      %v1621 = vpack.c.b16 %v1612, %v1611
      %v1622 = vpack.c.b16 %v1614, %v1613
      %1631 = vmatprep.subr.bf16.mxu0 0
      %1632 = vmatpush1.bf16.msra.mxu0 %v1622
      %1633 = vmatprep.subr.bf16.mxu0 0
      %1634 = vmatpush1.bf16.msra.mxu0 %v1621
      %1635 = vmatprep.subr.bf16.mxu0 0
      %1636 = vmatpush1.bf16.msra.mxu0 %v1620
      %1637 = vmatprep.subr.bf16.mxu0 0
      %1638 = vmatpush1.bf16.msra.mxu0 %v1619
      %1639 = vmatprep.subr.bf16.mxu0 0
      %1640 = vmatpush1.bf16.msra.mxu0 %v1618
      %1641 = vmatprep.subr.bf16.mxu0 0
      %1642 = vmatpush1.bf16.msra.mxu0 %v1617
      %1643 = vmatprep.subr.bf16.mxu0 0
      %1644 = vmatpush1.bf16.msra.mxu0 %v1616
      %1645 = vmatprep.subr.bf16.mxu0 0
      %1646 = vmatpush1.bf16.msra.mxu0 %v1615
      %1647 = vmatprep.subr.bf16.mxu0 0
      %1648 = vmatpush2.bf16.msra.mxu0 0
      %1649 = vmatprep.subr.bf16.mxu0 0
      %1650 = vmatpush2.bf16.msra.mxu0 0
      %1651 = vmatprep.subr.bf16.mxu0 0
      %1652 = vmatpush2.bf16.msra.mxu0 0
      %1653 = vmatprep.subr.bf16.mxu0 0
      %1654 = vmatpush2.bf16.msra.mxu0 0
      %1655 = vmatprep.subr.bf16.mxu0 0
      %1656 = vmatpush2.bf16.msra.mxu0 0
      %1657 = vmatprep.subr.bf16.mxu0 0
      %1658 = vmatpush2.bf16.msra.mxu0 0
      %1659 = vmatprep.subr.bf16.mxu0 0
      %1660 = vmatpush2.bf16.msra.mxu0 0
      %1661 = vmatprep.subr.bf16.mxu0 0
      %1662 = vmatpush2.bf16.msra.mxu0 0
      %1663 = vmatprep.mubr.bf16.mxu0 0
      %1664 = vmatmul.mubr.bf16.gmra.mxu0 %v1411
      %v1665 = vpop.f32.mrf.mxu0
      %v1666 = vadd.f32 %v1249, %v1665
      %v1667 = vpop.f32.mrf.mxu0
      %v1668 = vpop.f32.mrf.mxu0
      %v1669 = vadd.f32 %v1252, %v1668
      %v1670 = vpop.f32.mrf.mxu0
      %1671 = vmatprep.mubr.bf16.mxu0 0
      %1672 = vmatmul.mubr.bf16.gmra.mxu0 %v1420
      %v1673 = vpop.f32.mrf.mxu0
      %v1674 = vadd.f32 %v1257, %v1673
      %v1675 = vpop.f32.mrf.mxu0
      %v1676 = vpop.f32.mrf.mxu0
      %v1677 = vadd.f32 %v1260, %v1676
      %v1678 = vpop.f32.mrf.mxu0
      %1679 = vmatprep.mubr.bf16.mxu0 0
      %1680 = vmatmul.mubr.bf16.gmra.mxu0 %v1429
      %v1681 = vpop.f32.mrf.mxu0
      %v1682 = vadd.f32 %v1265, %v1681
      %v1683 = vpop.f32.mrf.mxu0
      %v1684 = vpop.f32.mrf.mxu0
      %v1685 = vadd.f32 %v1268, %v1684
      %v1686 = vpop.f32.mrf.mxu0
      %1687 = vmatprep.mubr.bf16.mxu0 0
      %1688 = vmatmul.mubr.bf16.gmra.mxu0 %v1438
      %v1689 = vpop.f32.mrf.mxu0
      %v1690 = vadd.f32 %v1273, %v1689
      %v1691 = vpop.f32.mrf.mxu0
      %v1692 = vpop.f32.mrf.mxu0
      %v1693 = vadd.f32 %v1276, %v1692
      %v1694 = vpop.f32.mrf.mxu0
      %1695 = vmatprep.mubr.bf16.mxu0 0
      %1696 = vmatmul.mubr.bf16.gmra.mxu0 %v1447
      %v1697 = vpop.f32.mrf.mxu0
      %v1698 = vadd.f32 %v1281, %v1697
      %v1699 = vpop.f32.mrf.mxu0
      %v1700 = vpop.f32.mrf.mxu0
      %v1701 = vadd.f32 %v1284, %v1700
      %v1702 = vpop.f32.mrf.mxu0
      %1703 = vmatprep.mubr.bf16.mxu0 0
      %1704 = vmatmul.mubr.bf16.gmra.mxu0 %v1456
      %v1705 = vpop.f32.mrf.mxu0
      %v1706 = vadd.f32 %v1289, %v1705
      %v1707 = vpop.f32.mrf.mxu0
      %v1708 = vpop.f32.mrf.mxu0
      %v1709 = vadd.f32 %v1292, %v1708
      %v1710 = vpop.f32.mrf.mxu0
      %1711 = vmatprep.mubr.bf16.mxu0 0
      %1712 = vmatmul.mubr.bf16.gmra.mxu0 %v1465
      %v1713 = vpop.f32.mrf.mxu0
      %v1714 = vadd.f32 %v1297, %v1713
      %v1715 = vpop.f32.mrf.mxu0
      %v1716 = vpop.f32.mrf.mxu0
      %v1717 = vadd.f32 %v1300, %v1716
      %v1718 = vpop.f32.mrf.mxu0
      %1719 = vmatprep.mubr.bf16.mxu0 0
      %1720 = vmatmul.mubr.bf16.gmra.mxu0 %v1474
      %v1721 = vpop.f32.mrf.mxu0
      %v1722 = vadd.f32 %v1305, %v1721
      %v1723 = vpop.f32.mrf.mxu0
      %v1724 = vpop.f32.mrf.mxu0
      %v1725 = vadd.f32 %v1308, %v1724
      %v1726 = vpop.f32.mrf.mxu0
      %1727 = vmatprep.mubr.bf16.mxu0 0
      %1728 = vmatmul.mubr.bf16.gmra.mxu0 %v1483
      %v1729 = vpop.f32.mrf.mxu0
      %v1730 = vadd.f32 %v1313, %v1729
      %v1731 = vpop.f32.mrf.mxu0
      %v1732 = vpop.f32.mrf.mxu0
      %v1733 = vadd.f32 %v1316, %v1732
      %v1734 = vpop.f32.mrf.mxu0
      %1735 = vmatprep.mubr.bf16.mxu0 0
      %1736 = vmatmul.mubr.bf16.gmra.mxu0 %v1492
      %v1737 = vpop.f32.mrf.mxu0
      %v1738 = vadd.f32 %v1321, %v1737
      %v1739 = vpop.f32.mrf.mxu0
      %v1740 = vpop.f32.mrf.mxu0
      %v1741 = vadd.f32 %v1324, %v1740
      %v1742 = vpop.f32.mrf.mxu0
      %1743 = vmatprep.mubr.bf16.mxu0 0
      %1744 = vmatmul.mubr.bf16.gmra.mxu0 %v1501
      %v1745 = vpop.f32.mrf.mxu0
      %v1746 = vadd.f32 %v1329, %v1745
      %v1747 = vpop.f32.mrf.mxu0
      %v1748 = vpop.f32.mrf.mxu0
      %v1749 = vadd.f32 %v1332, %v1748
      %v1750 = vpop.f32.mrf.mxu0
      %1751 = vmatprep.mubr.bf16.mxu0 0
      %1752 = vmatmul.mubr.bf16.gmra.mxu0 %v1510
      %v1753 = vpop.f32.mrf.mxu0
      %v1754 = vadd.f32 %v1337, %v1753
      %v1755 = vpop.f32.mrf.mxu0
      %v1756 = vpop.f32.mrf.mxu0
      %v1757 = vadd.f32 %v1340, %v1756
      %v1758 = vpop.f32.mrf.mxu0
      %1759 = vmatprep.mubr.bf16.mxu0 0
      %1760 = vmatmul.mubr.bf16.gmra.mxu0 %v1519
      %v1761 = vpop.f32.mrf.mxu0
      %v1762 = vadd.f32 %v1345, %v1761
      %v1763 = vpop.f32.mrf.mxu0
      %v1764 = vpop.f32.mrf.mxu0
      %v1765 = vadd.f32 %v1348, %v1764
      %v1766 = vpop.f32.mrf.mxu0
      %1767 = vmatprep.mubr.bf16.mxu0 0
      %1768 = vmatmul.mubr.bf16.gmra.mxu0 %v1528
      %v1769 = vpop.f32.mrf.mxu0
      %v1770 = vadd.f32 %v1353, %v1769
      %v1771 = vpop.f32.mrf.mxu0
      %v1772 = vpop.f32.mrf.mxu0
      %v1773 = vadd.f32 %v1356, %v1772
      %v1774 = vpop.f32.mrf.mxu0
      %1775 = vmatprep.mubr.bf16.mxu0 0
      %1776 = vmatmul.mubr.bf16.gmra.mxu0 %v1537
      %v1777 = vpop.f32.mrf.mxu0
      %v1778 = vadd.f32 %v1361, %v1777
      %v1779 = vpop.f32.mrf.mxu0
      %v1780 = vpop.f32.mrf.mxu0
      %v1781 = vadd.f32 %v1364, %v1780
      %v1782 = vpop.f32.mrf.mxu0
      %1783 = vmatprep.mubr.bf16.mxu0 0
      %1784 = vmatmul.mubr.bf16.gmra.mxu0 %v1546
      %v1785 = vpop.f32.mrf.mxu0
      %v1786 = vadd.f32 %v1369, %v1785
      %v1787 = vpop.f32.mrf.mxu0
      %v1788 = vpop.f32.mrf.mxu0
      %v1789 = vadd.f32 %v1372, %v1788
      %v1790 = vpop.f32.mrf.mxu0
      %1791 = vmatprep.mubr.bf16.mxu0 0
      %1792 = vmatmul.mubr.bf16.gmra.mxu0 %v1555
      %v1793 = vpop.f32.mrf.mxu0
      %v1794 = vadd.f32 %v1377, %v1793
      %v1795 = vpop.f32.mrf.mxu0
      %v1796 = vpop.f32.mrf.mxu0
      %v1797 = vadd.f32 %v1380, %v1796
      %v1798 = vpop.f32.mrf.mxu0
      %1799 = vmatprep.mubr.bf16.mxu0 0
      %1800 = vmatmul.mubr.bf16.gmra.mxu0 %v1564
      %v1801 = vpop.f32.mrf.mxu0
      %v1802 = vadd.f32 %v1385, %v1801
      %v1803 = vpop.f32.mrf.mxu0
      %v1804 = vpop.f32.mrf.mxu0
      %v1805 = vadd.f32 %v1388, %v1804
      %v1806 = vpop.f32.mrf.mxu0
      %1807 = vdwg.mxu0
      %v1808 = vld [vmem:[%s219 + $0x90] sm:$0xf]
      %v1809 = vld [vmem:[%s1 + $0x80] sm:$0xf]
      %v1810 = vld [vmem:[%s1 + $0x84] sm:$0xf]
      %v1811 = vld [vmem:[%s1 + $0x88] sm:$0xf]
      %v1812 = vld [vmem:[%s1 + $0x8c] sm:$0xf]
      %v1813 = vld [vmem:[%s1 + $0x90] sm:$0xf]
      %v1814 = vld [vmem:[%s1 + $0x94] sm:$0xf]
      %v1815 = vld [vmem:[%s1 + $0x98] sm:$0xf]
      %v1816 = vld [vmem:[%s1 + $0x9c] sm:$0xf]
      %v1817 = vld [vmem:[%s1 + $0xa0] sm:$0xf]
      %v1818 = vld [vmem:[%s1 + $0xa4] sm:$0xf]
      %v1819 = vld [vmem:[%s1 + $0xa8] sm:$0xf]
      %v1820 = vld [vmem:[%s1 + $0xac] sm:$0xf]
      %v1821 = vld [vmem:[%s1 + $0xb0] sm:$0xf]
      %v1822 = vld [vmem:[%s1 + $0xb4] sm:$0xf]
      %v1823 = vld [vmem:[%s1 + $0xb8] sm:$0xf]
      %v1824 = vld [vmem:[%s1 + $0xbc] sm:$0xf]
      %v1826 = vunpack.c.l.b16 %v1808
      %v1827 = vpack.c.b16 %v1826, %v1826
      %vm1828 = vsmask.f32 4352
      %v1830 = vshrl.u32 %v1091, 16
      %v1832 = vrot.slane %v1830, 3
      %v1833 = vshll.u32 %v1091, 16
      %v1835 = vrot.slane %v1833, 4
      %v1836 = vor.u32 %v1832, %v1835
      %v1837 = vrot.slane %v1404, 3
      %v1838 = vrot.slane %v1407, 4
      %v1839 = vor.u32 %v1837, %v1838
      %v1840 = vsel %vm1828, %v1836, %v1839
      %v1841 = vrot.slane %v1413, 3
      %v1842 = vrot.slane %v1416, 4
      %v1843 = vor.u32 %v1841, %v1842
      %v1844 = vsel %vm1828, %v1839, %v1843
      %v1845 = vrot.slane %v1422, 3
      %v1846 = vrot.slane %v1425, 4
      %v1847 = vor.u32 %v1845, %v1846
      %v1848 = vsel %vm1828, %v1843, %v1847
      %v1849 = vrot.slane %v1431, 3
      %v1850 = vrot.slane %v1434, 4
      %v1851 = vor.u32 %v1849, %v1850
      %v1852 = vsel %vm1828, %v1847, %v1851
      %v1853 = vrot.slane %v1440, 3
      %v1854 = vrot.slane %v1443, 4
      %v1855 = vor.u32 %v1853, %v1854
      %v1856 = vsel %vm1828, %v1851, %v1855
      %v1857 = vrot.slane %v1449, 3
      %v1858 = vrot.slane %v1452, 4
      %v1859 = vor.u32 %v1857, %v1858
      %v1860 = vsel %vm1828, %v1855, %v1859
      %v1861 = vrot.slane %v1458, 3
      %v1862 = vrot.slane %v1461, 4
      %v1863 = vor.u32 %v1861, %v1862
      %v1864 = vsel %vm1828, %v1859, %v1863
      %v1865 = vrot.slane %v1467, 3
      %v1866 = vrot.slane %v1470, 4
      %v1867 = vor.u32 %v1865, %v1866
      %v1868 = vsel %vm1828, %v1863, %v1867
      %v1869 = vrot.slane %v1476, 3
      %v1870 = vrot.slane %v1479, 4
      %v1871 = vor.u32 %v1869, %v1870
      %v1872 = vsel %vm1828, %v1867, %v1871
      %v1873 = vrot.slane %v1485, 3
      %v1874 = vrot.slane %v1488, 4
      %v1875 = vor.u32 %v1873, %v1874
      %v1876 = vsel %vm1828, %v1871, %v1875
      %v1877 = vrot.slane %v1494, 3
      %v1878 = vrot.slane %v1497, 4
      %v1879 = vor.u32 %v1877, %v1878
      %v1880 = vsel %vm1828, %v1875, %v1879
      %v1881 = vrot.slane %v1503, 3
      %v1882 = vrot.slane %v1506, 4
      %v1883 = vor.u32 %v1881, %v1882
      %v1884 = vsel %vm1828, %v1879, %v1883
      %v1885 = vrot.slane %v1512, 3
      %v1886 = vrot.slane %v1515, 4
      %v1887 = vor.u32 %v1885, %v1886
      %v1888 = vsel %vm1828, %v1883, %v1887
      %v1889 = vrot.slane %v1521, 3
      %v1890 = vrot.slane %v1524, 4
      %v1891 = vor.u32 %v1889, %v1890
      %v1892 = vsel %vm1828, %v1887, %v1891
      %v1893 = vrot.slane %v1530, 3
      %v1894 = vrot.slane %v1533, 4
      %v1895 = vor.u32 %v1893, %v1894
      %v1896 = vsel %vm1828, %v1891, %v1895
      %v1897 = vrot.slane %v1539, 3
      %v1898 = vrot.slane %v1542, 4
      %v1899 = vor.u32 %v1897, %v1898
      %v1900 = vsel %vm1828, %v1895, %v1899
      %v1901 = vrot.slane %v1548, 3
      %v1902 = vrot.slane %v1551, 4
      %v1903 = vor.u32 %v1901, %v1902
      %v1904 = vsel %vm1828, %v1899, %v1903
      %v1906 = vshrl.u32 %v1827, 16
      %v1908 = vrot.slane %v1906, 3
      %v1909 = vshll.u32 %v1827, 16
      %v1911 = vrot.slane %v1909, 4
      %v1912 = vor.u32 %v1908, %v1911
      %v1913 = vsel %vm1828, %v1903, %v1912
      %v1948 = vunpack.c.l.b16 %v1809
      %v1949 = vunpack.c.l.b16 %v1810
      %v1950 = vunpack.c.l.b16 %v1811
      %v1951 = vunpack.c.l.b16 %v1812
      %v1952 = vunpack.c.l.b16 %v1813
      %v1953 = vunpack.c.l.b16 %v1814
      %v1954 = vunpack.c.l.b16 %v1815
      %v1955 = vunpack.c.l.b16 %v1816
      %v1956 = vunpack.c.l.b16 %v1817
      %v1957 = vunpack.c.l.b16 %v1818
      %v1958 = vunpack.c.l.b16 %v1819
      %v1959 = vunpack.c.l.b16 %v1820
      %v1960 = vunpack.c.l.b16 %v1821
      %v1961 = vunpack.c.l.b16 %v1822
      %v1962 = vunpack.c.l.b16 %v1823
      %v1963 = vunpack.c.l.b16 %v1824
      %v1964 = vpack.c.b16 %v1949, %v1948
      %v1965 = vpack.c.b16 %v1951, %v1950
      %v1966 = vpack.c.b16 %v1953, %v1952
      %v1967 = vpack.c.b16 %v1955, %v1954
      %v1968 = vpack.c.b16 %v1957, %v1956
      %v1969 = vpack.c.b16 %v1959, %v1958
      %v1970 = vpack.c.b16 %v1961, %v1960
      %v1971 = vpack.c.b16 %v1963, %v1962
      %1980 = vmatprep.subr.bf16.mxu0 0
      %1981 = vmatpush1.bf16.msra.mxu0 %v1971
      %1982 = vmatprep.subr.bf16.mxu0 0
      %1983 = vmatpush1.bf16.msra.mxu0 %v1970
      %1984 = vmatprep.subr.bf16.mxu0 0
      %1985 = vmatpush1.bf16.msra.mxu0 %v1969
      %1986 = vmatprep.subr.bf16.mxu0 0
      %1987 = vmatpush1.bf16.msra.mxu0 %v1968
      %1988 = vmatprep.subr.bf16.mxu0 0
      %1989 = vmatpush1.bf16.msra.mxu0 %v1967
      %1990 = vmatprep.subr.bf16.mxu0 0
      %1991 = vmatpush1.bf16.msra.mxu0 %v1966
      %1992 = vmatprep.subr.bf16.mxu0 0
      %1993 = vmatpush1.bf16.msra.mxu0 %v1965
      %1994 = vmatprep.subr.bf16.mxu0 0
      %1995 = vmatpush1.bf16.msra.mxu0 %v1964
      %1996 = vmatprep.subr.bf16.mxu0 0
      %1997 = vmatpush2.bf16.msra.mxu0 0
      %1998 = vmatprep.subr.bf16.mxu0 0
      %1999 = vmatpush2.bf16.msra.mxu0 0
      %2000 = vmatprep.subr.bf16.mxu0 0
      %2001 = vmatpush2.bf16.msra.mxu0 0
      %2002 = vmatprep.subr.bf16.mxu0 0
      %2003 = vmatpush2.bf16.msra.mxu0 0
      %2004 = vmatprep.subr.bf16.mxu0 0
      %2005 = vmatpush2.bf16.msra.mxu0 0
      %2006 = vmatprep.subr.bf16.mxu0 0
      %2007 = vmatpush2.bf16.msra.mxu0 0
      %2008 = vmatprep.subr.bf16.mxu0 0
      %2009 = vmatpush2.bf16.msra.mxu0 0
      %2010 = vmatprep.subr.bf16.mxu0 0
      %2011 = vmatpush2.bf16.msra.mxu0 0
      %2012 = vmatprep.mubr.bf16.mxu0 0
      %2013 = vmatmul.mubr.bf16.gmra.mxu0 %v1840
      %v2014 = vpop.f32.mrf.mxu0
      %v2015 = vadd.f32 0.0, %v2014
      %v2016 = vpop.f32.mrf.mxu0
      %v2017 = vpop.f32.mrf.mxu0
      %v2018 = vadd.f32 0.0, %v2017
      %v2019 = vpop.f32.mrf.mxu0
      %2020 = vmatprep.mubr.bf16.mxu0 0
      %2021 = vmatmul.mubr.bf16.gmra.mxu0 %v1844
      %v2022 = vpop.f32.mrf.mxu0
      %v2023 = vadd.f32 0.0, %v2022
      %v2024 = vpop.f32.mrf.mxu0
      %v2025 = vpop.f32.mrf.mxu0
      %v2026 = vadd.f32 0.0, %v2025
      %v2027 = vpop.f32.mrf.mxu0
      %2028 = vmatprep.mubr.bf16.mxu0 0
      %2029 = vmatmul.mubr.bf16.gmra.mxu0 %v1848
      %v2030 = vpop.f32.mrf.mxu0
      %v2031 = vadd.f32 0.0, %v2030
      %v2032 = vpop.f32.mrf.mxu0
      %v2033 = vpop.f32.mrf.mxu0
      %v2034 = vadd.f32 0.0, %v2033
      %v2035 = vpop.f32.mrf.mxu0
      %2036 = vmatprep.mubr.bf16.mxu0 0
      %2037 = vmatmul.mubr.bf16.gmra.mxu0 %v1852
      %v2038 = vpop.f32.mrf.mxu0
      %v2039 = vadd.f32 0.0, %v2038
      %v2040 = vpop.f32.mrf.mxu0
      %v2041 = vpop.f32.mrf.mxu0
      %v2042 = vadd.f32 0.0, %v2041
      %v2043 = vpop.f32.mrf.mxu0
      %2044 = vmatprep.mubr.bf16.mxu0 0
      %2045 = vmatmul.mubr.bf16.gmra.mxu0 %v1856
      %v2046 = vpop.f32.mrf.mxu0
      %v2047 = vadd.f32 0.0, %v2046
      %v2048 = vpop.f32.mrf.mxu0
      %v2049 = vpop.f32.mrf.mxu0
      %v2050 = vadd.f32 0.0, %v2049
      %v2051 = vpop.f32.mrf.mxu0
      %2052 = vmatprep.mubr.bf16.mxu0 0
      %2053 = vmatmul.mubr.bf16.gmra.mxu0 %v1860
      %v2054 = vpop.f32.mrf.mxu0
      %v2055 = vadd.f32 0.0, %v2054
      %v2056 = vpop.f32.mrf.mxu0
      %v2057 = vpop.f32.mrf.mxu0
      %v2058 = vadd.f32 0.0, %v2057
      %v2059 = vpop.f32.mrf.mxu0
      %2060 = vmatprep.mubr.bf16.mxu0 0
      %2061 = vmatmul.mubr.bf16.gmra.mxu0 %v1864
      %v2062 = vpop.f32.mrf.mxu0
      %v2063 = vadd.f32 0.0, %v2062
      %v2064 = vpop.f32.mrf.mxu0
      %v2065 = vpop.f32.mrf.mxu0
      %v2066 = vadd.f32 0.0, %v2065
      %v2067 = vpop.f32.mrf.mxu0
      %2068 = vmatprep.mubr.bf16.mxu0 0
      %2069 = vmatmul.mubr.bf16.gmra.mxu0 %v1868
      %v2070 = vpop.f32.mrf.mxu0
      %v2071 = vadd.f32 0.0, %v2070
      %v2072 = vpop.f32.mrf.mxu0
      %v2073 = vpop.f32.mrf.mxu0
      %v2074 = vadd.f32 0.0, %v2073
      %v2075 = vpop.f32.mrf.mxu0
      %2076 = vmatprep.mubr.bf16.mxu0 0
      %2077 = vmatmul.mubr.bf16.gmra.mxu0 %v1872
      %v2078 = vpop.f32.mrf.mxu0
      %v2079 = vadd.f32 0.0, %v2078
      %v2080 = vpop.f32.mrf.mxu0
      %v2081 = vpop.f32.mrf.mxu0
      %v2082 = vadd.f32 0.0, %v2081
      %v2083 = vpop.f32.mrf.mxu0
      %2084 = vmatprep.mubr.bf16.mxu0 0
      %2085 = vmatmul.mubr.bf16.gmra.mxu0 %v1876
      %v2086 = vpop.f32.mrf.mxu0
      %v2087 = vadd.f32 0.0, %v2086
      %v2088 = vpop.f32.mrf.mxu0
      %v2089 = vpop.f32.mrf.mxu0
      %v2090 = vadd.f32 0.0, %v2089
      %v2091 = vpop.f32.mrf.mxu0
      %2092 = vmatprep.mubr.bf16.mxu0 0
      %2093 = vmatmul.mubr.bf16.gmra.mxu0 %v1880
      %v2094 = vpop.f32.mrf.mxu0
      %v2095 = vadd.f32 0.0, %v2094
      %v2096 = vpop.f32.mrf.mxu0
      %v2097 = vpop.f32.mrf.mxu0
      %v2098 = vadd.f32 0.0, %v2097
      %v2099 = vpop.f32.mrf.mxu0
      %2100 = vmatprep.mubr.bf16.mxu0 0
      %2101 = vmatmul.mubr.bf16.gmra.mxu0 %v1884
      %v2102 = vpop.f32.mrf.mxu0
      %v2103 = vadd.f32 0.0, %v2102
      %v2104 = vpop.f32.mrf.mxu0
      %v2105 = vpop.f32.mrf.mxu0
      %v2106 = vadd.f32 0.0, %v2105
      %v2107 = vpop.f32.mrf.mxu0
      %2108 = vmatprep.mubr.bf16.mxu0 0
      %2109 = vmatmul.mubr.bf16.gmra.mxu0 %v1888
      %v2110 = vpop.f32.mrf.mxu0
      %v2111 = vadd.f32 0.0, %v2110
      %v2112 = vpop.f32.mrf.mxu0
      %v2113 = vpop.f32.mrf.mxu0
      %v2114 = vadd.f32 0.0, %v2113
      %v2115 = vpop.f32.mrf.mxu0
      %2116 = vmatprep.mubr.bf16.mxu0 0
      %2117 = vmatmul.mubr.bf16.gmra.mxu0 %v1892
      %v2118 = vpop.f32.mrf.mxu0
      %v2119 = vadd.f32 0.0, %v2118
      %v2120 = vpop.f32.mrf.mxu0
      %v2121 = vpop.f32.mrf.mxu0
      %v2122 = vadd.f32 0.0, %v2121
      %v2123 = vpop.f32.mrf.mxu0
      %2124 = vmatprep.mubr.bf16.mxu0 0
      %2125 = vmatmul.mubr.bf16.gmra.mxu0 %v1896
      %v2126 = vpop.f32.mrf.mxu0
      %v2127 = vadd.f32 0.0, %v2126
      %v2128 = vpop.f32.mrf.mxu0
      %v2129 = vpop.f32.mrf.mxu0
      %v2130 = vadd.f32 0.0, %v2129
      %v2131 = vpop.f32.mrf.mxu0
      %2132 = vmatprep.mubr.bf16.mxu0 0
      %2133 = vmatmul.mubr.bf16.gmra.mxu0 %v1900
      %v2134 = vpop.f32.mrf.mxu0
      %v2135 = vadd.f32 0.0, %v2134
      %v2136 = vpop.f32.mrf.mxu0
      %v2137 = vpop.f32.mrf.mxu0
      %v2138 = vadd.f32 0.0, %v2137
      %v2139 = vpop.f32.mrf.mxu0
      %2140 = vmatprep.mubr.bf16.mxu0 0
      %2141 = vmatmul.mubr.bf16.gmra.mxu0 %v1904
      %v2142 = vpop.f32.mrf.mxu0
      %v2143 = vadd.f32 0.0, %v2142
      %v2144 = vpop.f32.mrf.mxu0
      %v2145 = vpop.f32.mrf.mxu0
      %v2146 = vadd.f32 0.0, %v2145
      %v2147 = vpop.f32.mrf.mxu0
      %2148 = vmatprep.mubr.bf16.mxu0 0
      %2149 = vmatmul.mubr.bf16.gmra.mxu0 %v1913
      %v2150 = vpop.f32.mrf.mxu0
      %v2151 = vadd.f32 0.0, %v2150
      %v2152 = vpop.f32.mrf.mxu0
      %v2153 = vpop.f32.mrf.mxu0
      %v2154 = vadd.f32 0.0, %v2153
      %v2155 = vpop.f32.mrf.mxu0
      %2156 = vdwg.mxu0
      %v2157 = vadd.f32 %v1666, %v2015
      %v2158 = vadd.f32 %v1669, %v2018
      %v2159 = vadd.f32 %v1674, %v2023
      %v2160 = vadd.f32 %v1677, %v2026
      %v2161 = vadd.f32 %v1682, %v2031
      %v2162 = vadd.f32 %v1685, %v2034
      %v2163 = vadd.f32 %v1690, %v2039
      %v2164 = vadd.f32 %v1693, %v2042
      %v2165 = vadd.f32 %v1698, %v2047
      %v2166 = vadd.f32 %v1701, %v2050
      %v2167 = vadd.f32 %v1706, %v2055
      %v2168 = vadd.f32 %v1709, %v2058
      %v2169 = vadd.f32 %v1714, %v2063
      %v2170 = vadd.f32 %v1717, %v2066
      %v2171 = vadd.f32 %v1722, %v2071
      %v2172 = vadd.f32 %v1725, %v2074
      %v2173 = vadd.f32 %v1730, %v2079
      %v2174 = vadd.f32 %v1733, %v2082
      %v2175 = vadd.f32 %v1738, %v2087
      %v2176 = vadd.f32 %v1741, %v2090
      %v2177 = vadd.f32 %v1746, %v2095
      %v2178 = vadd.f32 %v1749, %v2098
      %v2179 = vadd.f32 %v1754, %v2103
      %v2180 = vadd.f32 %v1757, %v2106
      %v2181 = vadd.f32 %v1762, %v2111
      %v2182 = vadd.f32 %v1765, %v2114
      %v2183 = vadd.f32 %v1770, %v2119
      %v2184 = vadd.f32 %v1773, %v2122
      %v2185 = vadd.f32 %v1778, %v2127
      %v2186 = vadd.f32 %v1781, %v2130
      %v2187 = vadd.f32 %v1786, %v2135
      %v2188 = vadd.f32 %v1789, %v2138
      %v2189 = vadd.f32 %v1794, %v2143
      %v2190 = vadd.f32 %v1797, %v2146
      %v2191 = vadd.f32 %v1802, %v2151
      %v2192 = vadd.f32 %v1805, %v2154
      %v2193 = vld [vmem:[%s219 + $0x8] sm:$0x8]
      %v2194 = vld [vmem:[%s219 + $0xc] sm:$0xf]
      %v2195 = vld [vmem:[%s219 + $0x10] sm:$0xf]
      %v2196 = vld [vmem:[%s219 + $0x14] sm:$0xf]
      %v2197 = vld [vmem:[%s219 + $0x18] sm:$0xf]
      %v2198 = vld [vmem:[%s219 + $0x1c] sm:$0xf]
      %v2199 = vld [vmem:[%s219 + $0x20] sm:$0xf]
      %v2200 = vld [vmem:[%s219 + $0x24] sm:$0xf]
      %v2201 = vld [vmem:[%s219 + $0x28] sm:$0xf]
      %v2202 = vld [vmem:[%s219 + $0x2c] sm:$0xf]
      %v2203 = vld [vmem:[%s219 + $0x30] sm:$0xf]
      %v2204 = vld [vmem:[%s219 + $0x34] sm:$0xf]
      %v2205 = vld [vmem:[%s219 + $0x38] sm:$0xf]
      %v2206 = vld [vmem:[%s219 + $0x3c] sm:$0xf]
      %v2207 = vld [vmem:[%s219 + $0x40] sm:$0xf]
      %v2208 = vld [vmem:[%s219 + $0x44] sm:$0xf]
      %v2209 = vld [vmem:[%s219 + $0x48] sm:$0xf]
      %v2210 = vld [vmem:[%s219 + $0x4c] sm:$0xf]
      %v2211 = vld [vmem:[%s219 + $0x50] sm:$0xf]
      %v2212 = vld [vmem:[%s219 + $0x54] sm:$0xf]
      %v2213 = vld [vmem:[%s219 + $0x58] sm:$0xf]
      %v2214 = vld [vmem:[%s219 + $0x5c] sm:$0xf]
      %v2215 = vld [vmem:[%s219 + $0x60] sm:$0xf]
      %v2216 = vld [vmem:[%s219 + $0x64] sm:$0xf]
      %v2217 = vld [vmem:[%s219 + $0x68] sm:$0xf]
      %v2218 = vld [vmem:[%s219 + $0x6c] sm:$0xf]
      %v2219 = vld [vmem:[%s219 + $0x70] sm:$0xf]
      %v2220 = vld [vmem:[%s219 + $0x74] sm:$0xf]
      %v2221 = vld [vmem:[%s219 + $0x78] sm:$0xf]
      %v2222 = vld [vmem:[%s219 + $0x7c] sm:$0xf]
      %v2223 = vld [vmem:[%s219 + $0x80] sm:$0xf]
      %v2224 = vld [vmem:[%s219 + $0x84] sm:$0xf]
      %v2225 = vld [vmem:[%s219 + $0x88] sm:$0xf]
      %v2226 = vld [vmem:[%s219 + $0x8c] sm:$0xf]
      %v2227 = vld [vmem:[%s219 + $0x90] sm:$0xf]
      %v2228 = vld [vmem:[%s219 + $0x94] sm:$0xf]
      %v2229 = vld [vmem:[%s219 + $0x98] sm:$0xf]
      %v2230 = vld [vmem:[%s1 + $0xc0] sm:$0xf]
      %v2231 = vld [vmem:[%s1 + $0xc4] sm:$0xf]
      %v2232 = vld [vmem:[%s1 + $0xc8] sm:$0xf]
      %v2233 = vld [vmem:[%s1 + $0xcc] sm:$0xf]
      %v2234 = vld [vmem:[%s1 + $0xd0] sm:$0xf]
      %v2235 = vld [vmem:[%s1 + $0xd4] sm:$0xf]
      %v2236 = vld [vmem:[%s1 + $0xd8] sm:$0xf]
      %v2237 = vld [vmem:[%s1 + $0xdc] sm:$0xf]
      %v2238 = vld [vmem:[%s1 + $0xe0] sm:$0xf]
      %v2239 = vld [vmem:[%s1 + $0xe4] sm:$0xf]
      %v2240 = vld [vmem:[%s1 + $0xe8] sm:$0xf]
      %v2241 = vld [vmem:[%s1 + $0xec] sm:$0xf]
      %v2242 = vld [vmem:[%s1 + $0xf0] sm:$0xf]
      %v2243 = vld [vmem:[%s1 + $0xf4] sm:$0xf]
      %v2244 = vld [vmem:[%s1 + $0xf8] sm:$0xf]
      %v2245 = vld [vmem:[%s1 + $0xfc] sm:$0xf]
      %v2283 = vunpack.c.l.b16 %v2193
      %v2284 = vunpack.c.l.b16 %v2194
      %v2285 = vunpack.c.l.b16 %v2195
      %v2286 = vunpack.c.l.b16 %v2196
      %v2287 = vunpack.c.l.b16 %v2197
      %v2288 = vunpack.c.l.b16 %v2198
      %v2289 = vunpack.c.l.b16 %v2199
      %v2290 = vunpack.c.l.b16 %v2200
      %v2291 = vunpack.c.l.b16 %v2201
      %v2292 = vunpack.c.l.b16 %v2202
      %v2293 = vunpack.c.l.b16 %v2203
      %v2294 = vunpack.c.l.b16 %v2204
      %v2295 = vunpack.c.l.b16 %v2205
      %v2296 = vunpack.c.l.b16 %v2206
      %v2297 = vunpack.c.l.b16 %v2207
      %v2298 = vunpack.c.l.b16 %v2208
      %v2299 = vunpack.c.l.b16 %v2209
      %v2300 = vunpack.c.l.b16 %v2210
      %v2301 = vunpack.c.l.b16 %v2211
      %v2302 = vunpack.c.l.b16 %v2212
      %v2303 = vunpack.c.l.b16 %v2213
      %v2304 = vunpack.c.l.b16 %v2214
      %v2305 = vunpack.c.l.b16 %v2215
      %v2306 = vunpack.c.l.b16 %v2216
      %v2307 = vunpack.c.l.b16 %v2217
      %v2308 = vunpack.c.l.b16 %v2218
      %v2309 = vunpack.c.l.b16 %v2219
      %v2310 = vunpack.c.l.b16 %v2220
      %v2311 = vunpack.c.l.b16 %v2221
      %v2312 = vunpack.c.l.b16 %v2222
      %v2313 = vunpack.c.l.b16 %v2223
      %v2314 = vunpack.c.l.b16 %v2224
      %v2315 = vunpack.c.l.b16 %v2225
      %v2316 = vunpack.c.l.b16 %v2226
      %v2317 = vunpack.c.l.b16 %v2227
      %v2318 = vunpack.c.l.b16 %v2228
      %v2319 = vunpack.c.l.b16 %v2229
      %v2320 = vpack.c.b16 %v2284, %v2283
      %v2321 = vpack.c.b16 %v2286, %v2285
      %v2322 = vpack.c.b16 %v2288, %v2287
      %v2323 = vpack.c.b16 %v2290, %v2289
      %v2324 = vpack.c.b16 %v2292, %v2291
      %v2325 = vpack.c.b16 %v2294, %v2293
      %v2326 = vpack.c.b16 %v2296, %v2295
      %v2327 = vpack.c.b16 %v2298, %v2297
      %v2328 = vpack.c.b16 %v2300, %v2299
      %v2329 = vpack.c.b16 %v2302, %v2301
      %v2330 = vpack.c.b16 %v2304, %v2303
      %v2331 = vpack.c.b16 %v2306, %v2305
      %v2332 = vpack.c.b16 %v2308, %v2307
      %v2333 = vpack.c.b16 %v2310, %v2309
      %v2334 = vpack.c.b16 %v2312, %v2311
      %v2335 = vpack.c.b16 %v2314, %v2313
      %v2336 = vpack.c.b16 %v2316, %v2315
      %v2337 = vpack.c.b16 %v2318, %v2317
      %v2338 = vpack.c.b16 %v2319, %v2319
      %v2340 = vshrl.u32 %v2320, 16
      %v2342 = vrot.slane %v2340, 3
      %v2343 = vshll.u32 %v2320, 16
      %v2345 = vrot.slane %v2343, 4
      %v2346 = vor.u32 %v2342, %v2345
      %v2348 = vshrl.u32 %v2321, 16
      %v2350 = vrot.slane %v2348, 3
      %v2351 = vshll.u32 %v2321, 16
      %v2353 = vrot.slane %v2351, 4
      %v2354 = vor.u32 %v2350, %v2353
      %v2355 = vsel %vm1828, %v2346, %v2354
      %v2357 = vshrl.u32 %v2322, 16
      %v2359 = vrot.slane %v2357, 3
      %v2360 = vshll.u32 %v2322, 16
      %v2362 = vrot.slane %v2360, 4
      %v2363 = vor.u32 %v2359, %v2362
      %v2364 = vsel %vm1828, %v2354, %v2363
      %v2366 = vshrl.u32 %v2323, 16
      %v2368 = vrot.slane %v2366, 3
      %v2369 = vshll.u32 %v2323, 16
      %v2371 = vrot.slane %v2369, 4
      %v2372 = vor.u32 %v2368, %v2371
      %v2373 = vsel %vm1828, %v2363, %v2372
      %v2375 = vshrl.u32 %v2324, 16
      %v2377 = vrot.slane %v2375, 3
      %v2378 = vshll.u32 %v2324, 16
      %v2380 = vrot.slane %v2378, 4
      %v2381 = vor.u32 %v2377, %v2380
      %v2382 = vsel %vm1828, %v2372, %v2381
      %v2384 = vshrl.u32 %v2325, 16
      %v2386 = vrot.slane %v2384, 3
      %v2387 = vshll.u32 %v2325, 16
      %v2389 = vrot.slane %v2387, 4
      %v2390 = vor.u32 %v2386, %v2389
      %v2391 = vsel %vm1828, %v2381, %v2390
      %v2393 = vshrl.u32 %v2326, 16
      %v2395 = vrot.slane %v2393, 3
      %v2396 = vshll.u32 %v2326, 16
      %v2398 = vrot.slane %v2396, 4
      %v2399 = vor.u32 %v2395, %v2398
      %v2400 = vsel %vm1828, %v2390, %v2399
      %v2402 = vshrl.u32 %v2327, 16
      %v2404 = vrot.slane %v2402, 3
      %v2405 = vshll.u32 %v2327, 16
      %v2407 = vrot.slane %v2405, 4
      %v2408 = vor.u32 %v2404, %v2407
      %v2409 = vsel %vm1828, %v2399, %v2408
      %v2411 = vshrl.u32 %v2328, 16
      %v2413 = vrot.slane %v2411, 3
      %v2414 = vshll.u32 %v2328, 16
      %v2416 = vrot.slane %v2414, 4
      %v2417 = vor.u32 %v2413, %v2416
      %v2418 = vsel %vm1828, %v2408, %v2417
      %v2420 = vshrl.u32 %v2329, 16
      %v2422 = vrot.slane %v2420, 3
      %v2423 = vshll.u32 %v2329, 16
      %v2425 = vrot.slane %v2423, 4
      %v2426 = vor.u32 %v2422, %v2425
      %v2427 = vsel %vm1828, %v2417, %v2426
      %v2429 = vshrl.u32 %v2330, 16
      %v2431 = vrot.slane %v2429, 3
      %v2432 = vshll.u32 %v2330, 16
      %v2434 = vrot.slane %v2432, 4
      %v2435 = vor.u32 %v2431, %v2434
      %v2436 = vsel %vm1828, %v2426, %v2435
      %v2438 = vshrl.u32 %v2331, 16
      %v2440 = vrot.slane %v2438, 3
      %v2441 = vshll.u32 %v2331, 16
      %v2443 = vrot.slane %v2441, 4
      %v2444 = vor.u32 %v2440, %v2443
      %v2445 = vsel %vm1828, %v2435, %v2444
      %v2447 = vshrl.u32 %v2332, 16
      %v2449 = vrot.slane %v2447, 3
      %v2450 = vshll.u32 %v2332, 16
      %v2452 = vrot.slane %v2450, 4
      %v2453 = vor.u32 %v2449, %v2452
      %v2454 = vsel %vm1828, %v2444, %v2453
      %v2456 = vshrl.u32 %v2333, 16
      %v2458 = vrot.slane %v2456, 3
      %v2459 = vshll.u32 %v2333, 16
      %v2461 = vrot.slane %v2459, 4
      %v2462 = vor.u32 %v2458, %v2461
      %v2463 = vsel %vm1828, %v2453, %v2462
      %v2465 = vshrl.u32 %v2334, 16
      %v2467 = vrot.slane %v2465, 3
      %v2468 = vshll.u32 %v2334, 16
      %v2470 = vrot.slane %v2468, 4
      %v2471 = vor.u32 %v2467, %v2470
      %v2472 = vsel %vm1828, %v2462, %v2471
      %v2474 = vshrl.u32 %v2335, 16
      %v2476 = vrot.slane %v2474, 3
      %v2477 = vshll.u32 %v2335, 16
      %v2479 = vrot.slane %v2477, 4
      %v2480 = vor.u32 %v2476, %v2479
      %v2481 = vsel %vm1828, %v2471, %v2480
      %v2483 = vshrl.u32 %v2336, 16
      %v2485 = vrot.slane %v2483, 3
      %v2486 = vshll.u32 %v2336, 16
      %v2488 = vrot.slane %v2486, 4
      %v2489 = vor.u32 %v2485, %v2488
      %v2490 = vsel %vm1828, %v2480, %v2489
      %v2492 = vshrl.u32 %v2337, 16
      %v2494 = vrot.slane %v2492, 3
      %v2495 = vshll.u32 %v2337, 16
      %v2497 = vrot.slane %v2495, 4
      %v2498 = vor.u32 %v2494, %v2497
      %v2499 = vsel %vm1828, %v2489, %v2498
      %v2501 = vshrl.u32 %v2338, 16
      %v2503 = vrot.slane %v2501, 3
      %v2504 = vshll.u32 %v2338, 16
      %v2506 = vrot.slane %v2504, 4
      %v2507 = vor.u32 %v2503, %v2506
      %v2508 = vsel %vm1828, %v2498, %v2507
      %v2543 = vunpack.c.l.b16 %v2230
      %v2544 = vunpack.c.l.b16 %v2231
      %v2545 = vunpack.c.l.b16 %v2232
      %v2546 = vunpack.c.l.b16 %v2233
      %v2547 = vunpack.c.l.b16 %v2234
      %v2548 = vunpack.c.l.b16 %v2235
      %v2549 = vunpack.c.l.b16 %v2236
      %v2550 = vunpack.c.l.b16 %v2237
      %v2551 = vunpack.c.l.b16 %v2238
      %v2552 = vunpack.c.l.b16 %v2239
      %v2553 = vunpack.c.l.b16 %v2240
      %v2554 = vunpack.c.l.b16 %v2241
      %v2555 = vunpack.c.l.b16 %v2242
      %v2556 = vunpack.c.l.b16 %v2243
      %v2557 = vunpack.c.l.b16 %v2244
      %v2558 = vunpack.c.l.b16 %v2245
      %v2559 = vpack.c.b16 %v2544, %v2543
      %v2560 = vpack.c.b16 %v2546, %v2545
      %v2561 = vpack.c.b16 %v2548, %v2547
      %v2562 = vpack.c.b16 %v2550, %v2549
      %v2563 = vpack.c.b16 %v2552, %v2551
      %v2564 = vpack.c.b16 %v2554, %v2553
      %v2565 = vpack.c.b16 %v2556, %v2555
      %v2566 = vpack.c.b16 %v2558, %v2557
      %2575 = vmatprep.subr.bf16.mxu0 0
      %2576 = vmatpush1.bf16.msra.mxu0 %v2566
      %2577 = vmatprep.subr.bf16.mxu0 0
      %2578 = vmatpush1.bf16.msra.mxu0 %v2565
      %2579 = vmatprep.subr.bf16.mxu0 0
      %2580 = vmatpush1.bf16.msra.mxu0 %v2564
      %2581 = vmatprep.subr.bf16.mxu0 0
      %2582 = vmatpush1.bf16.msra.mxu0 %v2563
      %2583 = vmatprep.subr.bf16.mxu0 0
      %2584 = vmatpush1.bf16.msra.mxu0 %v2562
      %2585 = vmatprep.subr.bf16.mxu0 0
      %2586 = vmatpush1.bf16.msra.mxu0 %v2561
      %2587 = vmatprep.subr.bf16.mxu0 0
      %2588 = vmatpush1.bf16.msra.mxu0 %v2560
      %2589 = vmatprep.subr.bf16.mxu0 0
      %2590 = vmatpush1.bf16.msra.mxu0 %v2559
      %2591 = vmatprep.subr.bf16.mxu0 0
      %2592 = vmatpush2.bf16.msra.mxu0 0
      %2593 = vmatprep.subr.bf16.mxu0 0
      %2594 = vmatpush2.bf16.msra.mxu0 0
      %2595 = vmatprep.subr.bf16.mxu0 0
      %2596 = vmatpush2.bf16.msra.mxu0 0
      %2597 = vmatprep.subr.bf16.mxu0 0
      %2598 = vmatpush2.bf16.msra.mxu0 0
      %2599 = vmatprep.subr.bf16.mxu0 0
      %2600 = vmatpush2.bf16.msra.mxu0 0
      %2601 = vmatprep.subr.bf16.mxu0 0
      %2602 = vmatpush2.bf16.msra.mxu0 0
      %2603 = vmatprep.subr.bf16.mxu0 0
      %2604 = vmatpush2.bf16.msra.mxu0 0
      %2605 = vmatprep.subr.bf16.mxu0 0
      %2606 = vmatpush2.bf16.msra.mxu0 0
      %2607 = vmatprep.mubr.bf16.mxu0 0
      %2608 = vmatmul.mubr.bf16.gmra.mxu0 %v2355
      %v2609 = vpop.f32.mrf.mxu0
      %v2610 = vadd.f32 0.0, %v2609
      %v2611 = vpop.f32.mrf.mxu0
      %v2612 = vpop.f32.mrf.mxu0
      %v2613 = vadd.f32 0.0, %v2612
      %v2614 = vpop.f32.mrf.mxu0
      %2615 = vmatprep.mubr.bf16.mxu0 0
      %2616 = vmatmul.mubr.bf16.gmra.mxu0 %v2364
      %v2617 = vpop.f32.mrf.mxu0
      %v2618 = vadd.f32 0.0, %v2617
      %v2619 = vpop.f32.mrf.mxu0
      %v2620 = vpop.f32.mrf.mxu0
      %v2621 = vadd.f32 0.0, %v2620
      %v2622 = vpop.f32.mrf.mxu0
      %2623 = vmatprep.mubr.bf16.mxu0 0
      %2624 = vmatmul.mubr.bf16.gmra.mxu0 %v2373
      %v2625 = vpop.f32.mrf.mxu0
      %v2626 = vadd.f32 0.0, %v2625
      %v2627 = vpop.f32.mrf.mxu0
      %v2628 = vpop.f32.mrf.mxu0
      %v2629 = vadd.f32 0.0, %v2628
      %v2630 = vpop.f32.mrf.mxu0
      %2631 = vmatprep.mubr.bf16.mxu0 0
      %2632 = vmatmul.mubr.bf16.gmra.mxu0 %v2382
      %v2633 = vpop.f32.mrf.mxu0
      %v2634 = vadd.f32 0.0, %v2633
      %v2635 = vpop.f32.mrf.mxu0
      %v2636 = vpop.f32.mrf.mxu0
      %v2637 = vadd.f32 0.0, %v2636
      %v2638 = vpop.f32.mrf.mxu0
      %2639 = vmatprep.mubr.bf16.mxu0 0
      %2640 = vmatmul.mubr.bf16.gmra.mxu0 %v2391
      %v2641 = vpop.f32.mrf.mxu0
      %v2642 = vadd.f32 0.0, %v2641
      %v2643 = vpop.f32.mrf.mxu0
      %v2644 = vpop.f32.mrf.mxu0
      %v2645 = vadd.f32 0.0, %v2644
      %v2646 = vpop.f32.mrf.mxu0
      %2647 = vmatprep.mubr.bf16.mxu0 0
      %2648 = vmatmul.mubr.bf16.gmra.mxu0 %v2400
      %v2649 = vpop.f32.mrf.mxu0
      %v2650 = vadd.f32 0.0, %v2649
      %v2651 = vpop.f32.mrf.mxu0
      %v2652 = vpop.f32.mrf.mxu0
      %v2653 = vadd.f32 0.0, %v2652
      %v2654 = vpop.f32.mrf.mxu0
      %2655 = vmatprep.mubr.bf16.mxu0 0
      %2656 = vmatmul.mubr.bf16.gmra.mxu0 %v2409
      %v2657 = vpop.f32.mrf.mxu0
      %v2658 = vadd.f32 0.0, %v2657
      %v2659 = vpop.f32.mrf.mxu0
      %v2660 = vpop.f32.mrf.mxu0
      %v2661 = vadd.f32 0.0, %v2660
      %v2662 = vpop.f32.mrf.mxu0
      %2663 = vmatprep.mubr.bf16.mxu0 0
      %2664 = vmatmul.mubr.bf16.gmra.mxu0 %v2418
      %v2665 = vpop.f32.mrf.mxu0
      %v2666 = vadd.f32 0.0, %v2665
      %v2667 = vpop.f32.mrf.mxu0
      %v2668 = vpop.f32.mrf.mxu0
      %v2669 = vadd.f32 0.0, %v2668
      %v2670 = vpop.f32.mrf.mxu0
      %2671 = vmatprep.mubr.bf16.mxu0 0
      %2672 = vmatmul.mubr.bf16.gmra.mxu0 %v2427
      %v2673 = vpop.f32.mrf.mxu0
      %v2674 = vadd.f32 0.0, %v2673
      %v2675 = vpop.f32.mrf.mxu0
      %v2676 = vpop.f32.mrf.mxu0
      %v2677 = vadd.f32 0.0, %v2676
      %v2678 = vpop.f32.mrf.mxu0
      %2679 = vmatprep.mubr.bf16.mxu0 0
      %2680 = vmatmul.mubr.bf16.gmra.mxu0 %v2436
      %v2681 = vpop.f32.mrf.mxu0
      %v2682 = vadd.f32 0.0, %v2681
      %v2683 = vpop.f32.mrf.mxu0
      %v2684 = vpop.f32.mrf.mxu0
      %v2685 = vadd.f32 0.0, %v2684
      %v2686 = vpop.f32.mrf.mxu0
      %2687 = vmatprep.mubr.bf16.mxu0 0
      %2688 = vmatmul.mubr.bf16.gmra.mxu0 %v2445
      %v2689 = vpop.f32.mrf.mxu0
      %v2690 = vadd.f32 0.0, %v2689
      %v2691 = vpop.f32.mrf.mxu0
      %v2692 = vpop.f32.mrf.mxu0
      %v2693 = vadd.f32 0.0, %v2692
      %v2694 = vpop.f32.mrf.mxu0
      %2695 = vmatprep.mubr.bf16.mxu0 0
      %2696 = vmatmul.mubr.bf16.gmra.mxu0 %v2454
      %v2697 = vpop.f32.mrf.mxu0
      %v2698 = vadd.f32 0.0, %v2697
      %v2699 = vpop.f32.mrf.mxu0
      %v2700 = vpop.f32.mrf.mxu0
      %v2701 = vadd.f32 0.0, %v2700
      %v2702 = vpop.f32.mrf.mxu0
      %2703 = vmatprep.mubr.bf16.mxu0 0
      %2704 = vmatmul.mubr.bf16.gmra.mxu0 %v2463
      %v2705 = vpop.f32.mrf.mxu0
      %v2706 = vadd.f32 0.0, %v2705
      %v2707 = vpop.f32.mrf.mxu0
      %v2708 = vpop.f32.mrf.mxu0
      %v2709 = vadd.f32 0.0, %v2708
      %v2710 = vpop.f32.mrf.mxu0
      %2711 = vmatprep.mubr.bf16.mxu0 0
      %2712 = vmatmul.mubr.bf16.gmra.mxu0 %v2472
      %v2713 = vpop.f32.mrf.mxu0
      %v2714 = vadd.f32 0.0, %v2713
      %v2715 = vpop.f32.mrf.mxu0
      %v2716 = vpop.f32.mrf.mxu0
      %v2717 = vadd.f32 0.0, %v2716
      %v2718 = vpop.f32.mrf.mxu0
      %2719 = vmatprep.mubr.bf16.mxu0 0
      %2720 = vmatmul.mubr.bf16.gmra.mxu0 %v2481
      %v2721 = vpop.f32.mrf.mxu0
      %v2722 = vadd.f32 0.0, %v2721
      %v2723 = vpop.f32.mrf.mxu0
      %v2724 = vpop.f32.mrf.mxu0
      %v2725 = vadd.f32 0.0, %v2724
      %v2726 = vpop.f32.mrf.mxu0
      %2727 = vmatprep.mubr.bf16.mxu0 0
      %2728 = vmatmul.mubr.bf16.gmra.mxu0 %v2490
      %v2729 = vpop.f32.mrf.mxu0
      %v2730 = vadd.f32 0.0, %v2729
      %v2731 = vpop.f32.mrf.mxu0
      %v2732 = vpop.f32.mrf.mxu0
      %v2733 = vadd.f32 0.0, %v2732
      %v2734 = vpop.f32.mrf.mxu0
      %2735 = vmatprep.mubr.bf16.mxu0 0
      %2736 = vmatmul.mubr.bf16.gmra.mxu0 %v2499
      %v2737 = vpop.f32.mrf.mxu0
      %v2738 = vadd.f32 0.0, %v2737
      %v2739 = vpop.f32.mrf.mxu0
      %v2740 = vpop.f32.mrf.mxu0
      %v2741 = vadd.f32 0.0, %v2740
      %v2742 = vpop.f32.mrf.mxu0
      %2743 = vmatprep.mubr.bf16.mxu0 0
      %2744 = vmatmul.mubr.bf16.gmra.mxu0 %v2508
      %v2745 = vpop.f32.mrf.mxu0
      %v2746 = vadd.f32 0.0, %v2745
      %v2747 = vpop.f32.mrf.mxu0
      %v2748 = vpop.f32.mrf.mxu0
      %v2749 = vadd.f32 0.0, %v2748
      %v2750 = vpop.f32.mrf.mxu0
      %2751 = vdwg.mxu0
      %v2752 = vadd.f32 %v2157, %v2610
      %v2753 = vadd.f32 %v2158, %v2613
      %v2754 = vadd.f32 %v2159, %v2618
      %v2755 = vadd.f32 %v2160, %v2621
      %v2756 = vadd.f32 %v2161, %v2626
      %v2757 = vadd.f32 %v2162, %v2629
      %v2758 = vadd.f32 %v2163, %v2634
      %v2759 = vadd.f32 %v2164, %v2637
      %v2760 = vadd.f32 %v2165, %v2642
      %v2761 = vadd.f32 %v2166, %v2645
      %v2762 = vadd.f32 %v2167, %v2650
      %v2763 = vadd.f32 %v2168, %v2653
      %v2764 = vadd.f32 %v2169, %v2658
      %v2765 = vadd.f32 %v2170, %v2661
      %v2766 = vadd.f32 %v2171, %v2666
      %v2767 = vadd.f32 %v2172, %v2669
      %v2768 = vadd.f32 %v2173, %v2674
      %v2769 = vadd.f32 %v2174, %v2677
      %v2770 = vadd.f32 %v2175, %v2682
      %v2771 = vadd.f32 %v2176, %v2685
      %v2772 = vadd.f32 %v2177, %v2690
      %v2773 = vadd.f32 %v2178, %v2693
      %v2774 = vadd.f32 %v2179, %v2698
      %v2775 = vadd.f32 %v2180, %v2701
      %v2776 = vadd.f32 %v2181, %v2706
      %v2777 = vadd.f32 %v2182, %v2709
      %v2778 = vadd.f32 %v2183, %v2714
      %v2779 = vadd.f32 %v2184, %v2717
      %v2780 = vadd.f32 %v2185, %v2722
      %v2781 = vadd.f32 %v2186, %v2725
      %v2782 = vadd.f32 %v2187, %v2730
      %v2783 = vadd.f32 %v2188, %v2733
      %v2784 = vadd.f32 %v2189, %v2738
      %v2785 = vadd.f32 %v2190, %v2741
      %v2786 = vadd.f32 %v2191, %v2746
      %v2787 = vadd.f32 %v2192, %v2749
      %v2788 = vld [vmem:[%s1 + $0x100] sm:$0xf]
      %v2789 = vld [vmem:[%s1 + $0x104] sm:$0xf]
      %v2790 = vld [vmem:[%s1 + $0x108] sm:$0xf]
      %v2791 = vld [vmem:[%s1 + $0x10c] sm:$0xf]
      %v2792 = vld [vmem:[%s1 + $0x110] sm:$0xf]
      %v2793 = vld [vmem:[%s1 + $0x114] sm:$0xf]
      %v2794 = vld [vmem:[%s1 + $0x118] sm:$0xf]
      %v2795 = vld [vmem:[%s1 + $0x11c] sm:$0xf]
      %v2796 = vld [vmem:[%s1 + $0x120] sm:$0xf]
      %v2797 = vld [vmem:[%s1 + $0x124] sm:$0xf]
      %v2798 = vld [vmem:[%s1 + $0x128] sm:$0xf]
      %v2799 = vld [vmem:[%s1 + $0x12c] sm:$0xf]
      %v2800 = vld [vmem:[%s1 + $0x130] sm:$0xf]
      %v2801 = vld [vmem:[%s1 + $0x134] sm:$0xf]
      %v2802 = vld [vmem:[%s1 + $0x138] sm:$0xf]
      %v2803 = vld [vmem:[%s1 + $0x13c] sm:$0xf]
      %v2804 = vpack.c.b16 %v2285, %v2284
      %v2805 = vpack.c.b16 %v2287, %v2286
      %v2806 = vpack.c.b16 %v2289, %v2288
      %v2807 = vpack.c.b16 %v2291, %v2290
      %v2808 = vpack.c.b16 %v2293, %v2292
      %v2809 = vpack.c.b16 %v2295, %v2294
      %v2810 = vpack.c.b16 %v2297, %v2296
      %v2811 = vpack.c.b16 %v2299, %v2298
      %v2812 = vpack.c.b16 %v2301, %v2300
      %v2813 = vpack.c.b16 %v2303, %v2302
      %v2814 = vpack.c.b16 %v2305, %v2304
      %v2815 = vpack.c.b16 %v2307, %v2306
      %v2816 = vpack.c.b16 %v2309, %v2308
      %v2817 = vpack.c.b16 %v2311, %v2310
      %v2818 = vpack.c.b16 %v2313, %v2312
      %v2819 = vpack.c.b16 %v2315, %v2314
      %v2820 = vpack.c.b16 %v2317, %v2316
      %v2821 = vpack.c.b16 %v2319, %v2318
      %v2856 = vunpack.c.l.b16 %v2788
      %v2857 = vunpack.c.l.b16 %v2789
      %v2858 = vunpack.c.l.b16 %v2790
      %v2859 = vunpack.c.l.b16 %v2791
      %v2860 = vunpack.c.l.b16 %v2792
      %v2861 = vunpack.c.l.b16 %v2793
      %v2862 = vunpack.c.l.b16 %v2794
      %v2863 = vunpack.c.l.b16 %v2795
      %v2864 = vunpack.c.l.b16 %v2796
      %v2865 = vunpack.c.l.b16 %v2797
      %v2866 = vunpack.c.l.b16 %v2798
      %v2867 = vunpack.c.l.b16 %v2799
      %v2868 = vunpack.c.l.b16 %v2800
      %v2869 = vunpack.c.l.b16 %v2801
      %v2870 = vunpack.c.l.b16 %v2802
      %v2871 = vunpack.c.l.b16 %v2803
      %v2872 = vpack.c.b16 %v2857, %v2856
      %v2873 = vpack.c.b16 %v2859, %v2858
      %v2874 = vpack.c.b16 %v2861, %v2860
      %v2875 = vpack.c.b16 %v2863, %v2862
      %v2876 = vpack.c.b16 %v2865, %v2864
      %v2877 = vpack.c.b16 %v2867, %v2866
      %v2878 = vpack.c.b16 %v2869, %v2868
      %v2879 = vpack.c.b16 %v2871, %v2870
      %2888 = vmatprep.subr.bf16.mxu0 0
      %2889 = vmatpush1.bf16.msra.mxu0 %v2879
      %2890 = vmatprep.subr.bf16.mxu0 0
      %2891 = vmatpush1.bf16.msra.mxu0 %v2878
      %2892 = vmatprep.subr.bf16.mxu0 0
      %2893 = vmatpush1.bf16.msra.mxu0 %v2877
      %2894 = vmatprep.subr.bf16.mxu0 0
      %2895 = vmatpush1.bf16.msra.mxu0 %v2876
      %2896 = vmatprep.subr.bf16.mxu0 0
      %2897 = vmatpush1.bf16.msra.mxu0 %v2875
      %2898 = vmatprep.subr.bf16.mxu0 0
      %2899 = vmatpush1.bf16.msra.mxu0 %v2874
      %2900 = vmatprep.subr.bf16.mxu0 0
      %2901 = vmatpush1.bf16.msra.mxu0 %v2873
      %2902 = vmatprep.subr.bf16.mxu0 0
      %2903 = vmatpush1.bf16.msra.mxu0 %v2872
      %2904 = vmatprep.subr.bf16.mxu0 0
      %2905 = vmatpush2.bf16.msra.mxu0 0
      %2906 = vmatprep.subr.bf16.mxu0 0
      %2907 = vmatpush2.bf16.msra.mxu0 0
      %2908 = vmatprep.subr.bf16.mxu0 0
      %2909 = vmatpush2.bf16.msra.mxu0 0
      %2910 = vmatprep.subr.bf16.mxu0 0
      %2911 = vmatpush2.bf16.msra.mxu0 0
      %2912 = vmatprep.subr.bf16.mxu0 0
      %2913 = vmatpush2.bf16.msra.mxu0 0
      %2914 = vmatprep.subr.bf16.mxu0 0
      %2915 = vmatpush2.bf16.msra.mxu0 0
      %2916 = vmatprep.subr.bf16.mxu0 0
      %2917 = vmatpush2.bf16.msra.mxu0 0
      %2918 = vmatprep.subr.bf16.mxu0 0
      %2919 = vmatpush2.bf16.msra.mxu0 0
      %2920 = vmatprep.mubr.bf16.mxu0 0
      %2921 = vmatmul.mubr.bf16.gmra.mxu0 %v2804
      %v2922 = vpop.f32.mrf.mxu0
      %v2923 = vadd.f32 0.0, %v2922
      %v2924 = vpop.f32.mrf.mxu0
      %v2925 = vpop.f32.mrf.mxu0
      %v2926 = vadd.f32 0.0, %v2925
      %v2927 = vpop.f32.mrf.mxu0
      %2928 = vmatprep.mubr.bf16.mxu0 0
      %2929 = vmatmul.mubr.bf16.gmra.mxu0 %v2805
      %v2930 = vpop.f32.mrf.mxu0
      %v2931 = vadd.f32 0.0, %v2930
      %v2932 = vpop.f32.mrf.mxu0
      %v2933 = vpop.f32.mrf.mxu0
      %v2934 = vadd.f32 0.0, %v2933
      %v2935 = vpop.f32.mrf.mxu0
      %2936 = vmatprep.mubr.bf16.mxu0 0
      %2937 = vmatmul.mubr.bf16.gmra.mxu0 %v2806
      %v2938 = vpop.f32.mrf.mxu0
      %v2939 = vadd.f32 0.0, %v2938
      %v2940 = vpop.f32.mrf.mxu0
      %v2941 = vpop.f32.mrf.mxu0
      %v2942 = vadd.f32 0.0, %v2941
      %v2943 = vpop.f32.mrf.mxu0
      %2944 = vmatprep.mubr.bf16.mxu0 0
      %2945 = vmatmul.mubr.bf16.gmra.mxu0 %v2807
      %v2946 = vpop.f32.mrf.mxu0
      %v2947 = vadd.f32 0.0, %v2946
      %v2948 = vpop.f32.mrf.mxu0
      %v2949 = vpop.f32.mrf.mxu0
      %v2950 = vadd.f32 0.0, %v2949
      %v2951 = vpop.f32.mrf.mxu0
      %2952 = vmatprep.mubr.bf16.mxu0 0
      %2953 = vmatmul.mubr.bf16.gmra.mxu0 %v2808
      %v2954 = vpop.f32.mrf.mxu0
      %v2955 = vadd.f32 0.0, %v2954
      %v2956 = vpop.f32.mrf.mxu0
      %v2957 = vpop.f32.mrf.mxu0
      %v2958 = vadd.f32 0.0, %v2957
      %v2959 = vpop.f32.mrf.mxu0
      %2960 = vmatprep.mubr.bf16.mxu0 0
      %2961 = vmatmul.mubr.bf16.gmra.mxu0 %v2809
      %v2962 = vpop.f32.mrf.mxu0
      %v2963 = vadd.f32 0.0, %v2962
      %v2964 = vpop.f32.mrf.mxu0
      %v2965 = vpop.f32.mrf.mxu0
      %v2966 = vadd.f32 0.0, %v2965
      %v2967 = vpop.f32.mrf.mxu0
      %2968 = vmatprep.mubr.bf16.mxu0 0
      %2969 = vmatmul.mubr.bf16.gmra.mxu0 %v2810
      %v2970 = vpop.f32.mrf.mxu0
      %v2971 = vadd.f32 0.0, %v2970
      %v2972 = vpop.f32.mrf.mxu0
      %v2973 = vpop.f32.mrf.mxu0
      %v2974 = vadd.f32 0.0, %v2973
      %v2975 = vpop.f32.mrf.mxu0
      %2976 = vmatprep.mubr.bf16.mxu0 0
      %2977 = vmatmul.mubr.bf16.gmra.mxu0 %v2811
      %v2978 = vpop.f32.mrf.mxu0
      %v2979 = vadd.f32 0.0, %v2978
      %v2980 = vpop.f32.mrf.mxu0
      %v2981 = vpop.f32.mrf.mxu0
      %v2982 = vadd.f32 0.0, %v2981
      %v2983 = vpop.f32.mrf.mxu0
      %2984 = vmatprep.mubr.bf16.mxu0 0
      %2985 = vmatmul.mubr.bf16.gmra.mxu0 %v2812
      %v2986 = vpop.f32.mrf.mxu0
      %v2987 = vadd.f32 0.0, %v2986
      %v2988 = vpop.f32.mrf.mxu0
      %v2989 = vpop.f32.mrf.mxu0
      %v2990 = vadd.f32 0.0, %v2989
      %v2991 = vpop.f32.mrf.mxu0
      %2992 = vmatprep.mubr.bf16.mxu0 0
      %2993 = vmatmul.mubr.bf16.gmra.mxu0 %v2813
      %v2994 = vpop.f32.mrf.mxu0
      %v2995 = vadd.f32 0.0, %v2994
      %v2996 = vpop.f32.mrf.mxu0
      %v2997 = vpop.f32.mrf.mxu0
      %v2998 = vadd.f32 0.0, %v2997
      %v2999 = vpop.f32.mrf.mxu0
      %3000 = vmatprep.mubr.bf16.mxu0 0
      %3001 = vmatmul.mubr.bf16.gmra.mxu0 %v2814
      %v3002 = vpop.f32.mrf.mxu0
      %v3003 = vadd.f32 0.0, %v3002
      %v3004 = vpop.f32.mrf.mxu0
      %v3005 = vpop.f32.mrf.mxu0
      %v3006 = vadd.f32 0.0, %v3005
      %v3007 = vpop.f32.mrf.mxu0
      %3008 = vmatprep.mubr.bf16.mxu0 0
      %3009 = vmatmul.mubr.bf16.gmra.mxu0 %v2815
      %v3010 = vpop.f32.mrf.mxu0
      %v3011 = vadd.f32 0.0, %v3010
      %v3012 = vpop.f32.mrf.mxu0
      %v3013 = vpop.f32.mrf.mxu0
      %v3014 = vadd.f32 0.0, %v3013
      %v3015 = vpop.f32.mrf.mxu0
      %3016 = vmatprep.mubr.bf16.mxu0 0
      %3017 = vmatmul.mubr.bf16.gmra.mxu0 %v2816
      %v3018 = vpop.f32.mrf.mxu0
      %v3019 = vadd.f32 0.0, %v3018
      %v3020 = vpop.f32.mrf.mxu0
      %v3021 = vpop.f32.mrf.mxu0
      %v3022 = vadd.f32 0.0, %v3021
      %v3023 = vpop.f32.mrf.mxu0
      %3024 = vmatprep.mubr.bf16.mxu0 0
      %3025 = vmatmul.mubr.bf16.gmra.mxu0 %v2817
      %v3026 = vpop.f32.mrf.mxu0
      %v3027 = vadd.f32 0.0, %v3026
      %v3028 = vpop.f32.mrf.mxu0
      %v3029 = vpop.f32.mrf.mxu0
      %v3030 = vadd.f32 0.0, %v3029
      %v3031 = vpop.f32.mrf.mxu0
      %3032 = vmatprep.mubr.bf16.mxu0 0
      %3033 = vmatmul.mubr.bf16.gmra.mxu0 %v2818
      %v3034 = vpop.f32.mrf.mxu0
      %v3035 = vadd.f32 0.0, %v3034
      %v3036 = vpop.f32.mrf.mxu0
      %v3037 = vpop.f32.mrf.mxu0
      %v3038 = vadd.f32 0.0, %v3037
      %v3039 = vpop.f32.mrf.mxu0
      %3040 = vmatprep.mubr.bf16.mxu0 0
      %3041 = vmatmul.mubr.bf16.gmra.mxu0 %v2819
      %v3042 = vpop.f32.mrf.mxu0
      %v3043 = vadd.f32 0.0, %v3042
      %v3044 = vpop.f32.mrf.mxu0
      %v3045 = vpop.f32.mrf.mxu0
      %v3046 = vadd.f32 0.0, %v3045
      %v3047 = vpop.f32.mrf.mxu0
      %3048 = vmatprep.mubr.bf16.mxu0 0
      %3049 = vmatmul.mubr.bf16.gmra.mxu0 %v2820
      %v3050 = vpop.f32.mrf.mxu0
      %v3051 = vadd.f32 0.0, %v3050
      %v3052 = vpop.f32.mrf.mxu0
      %v3053 = vpop.f32.mrf.mxu0
      %v3054 = vadd.f32 0.0, %v3053
      %v3055 = vpop.f32.mrf.mxu0
      %3056 = vmatprep.mubr.bf16.mxu0 0
      %3057 = vmatmul.mubr.bf16.gmra.mxu0 %v2821
      %v3058 = vpop.f32.mrf.mxu0
      %v3059 = vadd.f32 0.0, %v3058
      %v3060 = vpop.f32.mrf.mxu0
      %v3061 = vpop.f32.mrf.mxu0
      %v3062 = vadd.f32 0.0, %v3061
      %v3063 = vpop.f32.mrf.mxu0
      %3064 = vdwg.mxu0
      %v3065 = vadd.f32 %v2752, %v2923
      %v3066 = vadd.f32 %v2753, %v2926
      %v3067 = vadd.f32 %v2754, %v2931
      %v3068 = vadd.f32 %v2755, %v2934
      %v3069 = vadd.f32 %v2756, %v2939
      %v3070 = vadd.f32 %v2757, %v2942
      %v3071 = vadd.f32 %v2758, %v2947
      %v3072 = vadd.f32 %v2759, %v2950
      %v3073 = vadd.f32 %v2760, %v2955
      %v3074 = vadd.f32 %v2761, %v2958
      %v3075 = vadd.f32 %v2762, %v2963
      %v3076 = vadd.f32 %v2763, %v2966
      %v3077 = vadd.f32 %v2764, %v2971
      %v3078 = vadd.f32 %v2765, %v2974
      %v3079 = vadd.f32 %v2766, %v2979
      %v3080 = vadd.f32 %v2767, %v2982
      %v3081 = vadd.f32 %v2768, %v2987
      %v3082 = vadd.f32 %v2769, %v2990
      %v3083 = vadd.f32 %v2770, %v2995
      %v3084 = vadd.f32 %v2771, %v2998
      %v3085 = vadd.f32 %v2772, %v3003
      %v3086 = vadd.f32 %v2773, %v3006
      %v3087 = vadd.f32 %v2774, %v3011
      %v3088 = vadd.f32 %v2775, %v3014
      %v3089 = vadd.f32 %v2776, %v3019
      %v3090 = vadd.f32 %v2777, %v3022
      %v3091 = vadd.f32 %v2778, %v3027
      %v3092 = vadd.f32 %v2779, %v3030
      %v3093 = vadd.f32 %v2780, %v3035
      %v3094 = vadd.f32 %v2781, %v3038
      %v3095 = vadd.f32 %v2782, %v3043
      %v3096 = vadd.f32 %v2783, %v3046
      %v3097 = vadd.f32 %v2784, %v3051
      %v3098 = vadd.f32 %v2785, %v3054
      %v3099 = vadd.f32 %v2786, %v3059
      %v3100 = vadd.f32 %v2787, %v3062
      %v3101 = vld [vmem:[%s219 + $0xc] sm:$0xf]
      %v3102 = vld [vmem:[%s219 + $0x10] sm:$0xf]
      %v3103 = vld [vmem:[%s219 + $0x14] sm:$0xf]
      %v3104 = vld [vmem:[%s219 + $0x18] sm:$0xf]
      %v3105 = vld [vmem:[%s219 + $0x1c] sm:$0xf]
      %v3106 = vld [vmem:[%s219 + $0x20] sm:$0xf]
      %v3107 = vld [vmem:[%s219 + $0x24] sm:$0xf]
      %v3108 = vld [vmem:[%s219 + $0x28] sm:$0xf]
      %v3109 = vld [vmem:[%s219 + $0x2c] sm:$0xf]
      %v3110 = vld [vmem:[%s219 + $0x30] sm:$0xf]
      %v3111 = vld [vmem:[%s219 + $0x34] sm:$0xf]
      %v3112 = vld [vmem:[%s219 + $0x38] sm:$0xf]
      %v3113 = vld [vmem:[%s219 + $0x3c] sm:$0xf]
      %v3114 = vld [vmem:[%s219 + $0x40] sm:$0xf]
      %v3115 = vld [vmem:[%s219 + $0x44] sm:$0xf]
      %v3116 = vld [vmem:[%s219 + $0x48] sm:$0xf]
      %v3117 = vld [vmem:[%s219 + $0x4c] sm:$0xf]
      %v3118 = vld [vmem:[%s219 + $0x50] sm:$0xf]
      %v3119 = vld [vmem:[%s219 + $0x54] sm:$0xf]
      %v3120 = vld [vmem:[%s219 + $0x58] sm:$0xf]
      %v3121 = vld [vmem:[%s219 + $0x5c] sm:$0xf]
      %v3122 = vld [vmem:[%s219 + $0x60] sm:$0xf]
      %v3123 = vld [vmem:[%s219 + $0x64] sm:$0xf]
      %v3124 = vld [vmem:[%s219 + $0x68] sm:$0xf]
      %v3125 = vld [vmem:[%s219 + $0x6c] sm:$0xf]
      %v3126 = vld [vmem:[%s219 + $0x70] sm:$0xf]
      %v3127 = vld [vmem:[%s219 + $0x74] sm:$0xf]
      %v3128 = vld [vmem:[%s219 + $0x78] sm:$0xf]
      %v3129 = vld [vmem:[%s219 + $0x7c] sm:$0xf]
      %v3130 = vld [vmem:[%s219 + $0x80] sm:$0xf]
      %v3131 = vld [vmem:[%s219 + $0x84] sm:$0xf]
      %v3132 = vld [vmem:[%s219 + $0x88] sm:$0xf]
      %v3133 = vld [vmem:[%s219 + $0x8c] sm:$0xf]
      %v3134 = vld [vmem:[%s219 + $0x90] sm:$0xf]
      %v3135 = vld [vmem:[%s219 + $0x94] sm:$0xf]
      %v3136 = vld [vmem:[%s219 + $0x98] sm:$0xf]
      %v3137 = vld [vmem:[%s219 + $0x9c] sm:$0x1]
      %v3138 = vld [vmem:[%s1 + $0x140] sm:$0xf]
      %v3139 = vld [vmem:[%s1 + $0x144] sm:$0xf]
      %v3140 = vld [vmem:[%s1 + $0x148] sm:$0xf]
      %v3141 = vld [vmem:[%s1 + $0x14c] sm:$0xf]
      %v3142 = vld [vmem:[%s1 + $0x150] sm:$0xf]
      %v3143 = vld [vmem:[%s1 + $0x154] sm:$0xf]
      %v3144 = vld [vmem:[%s1 + $0x158] sm:$0xf]
      %v3145 = vld [vmem:[%s1 + $0x15c] sm:$0xf]
      %v3146 = vld [vmem:[%s1 + $0x160] sm:$0xf]
      %v3147 = vld [vmem:[%s1 + $0x164] sm:$0xf]
      %v3148 = vld [vmem:[%s1 + $0x168] sm:$0xf]
      %v3149 = vld [vmem:[%s1 + $0x16c] sm:$0xf]
      %v3150 = vld [vmem:[%s1 + $0x170] sm:$0xf]
      %v3151 = vld [vmem:[%s1 + $0x174] sm:$0xf]
      %v3152 = vld [vmem:[%s1 + $0x178] sm:$0xf]
      %v3153 = vld [vmem:[%s1 + $0x17c] sm:$0xf]
      %v3191 = vunpack.c.l.b16 %v3101
      %v3192 = vunpack.c.l.b16 %v3102
      %v3193 = vunpack.c.l.b16 %v3103
      %v3194 = vunpack.c.l.b16 %v3104
      %v3195 = vunpack.c.l.b16 %v3105
      %v3196 = vunpack.c.l.b16 %v3106
      %v3197 = vunpack.c.l.b16 %v3107
      %v3198 = vunpack.c.l.b16 %v3108
      %v3199 = vunpack.c.l.b16 %v3109
      %v3200 = vunpack.c.l.b16 %v3110
      %v3201 = vunpack.c.l.b16 %v3111
      %v3202 = vunpack.c.l.b16 %v3112
      %v3203 = vunpack.c.l.b16 %v3113
      %v3204 = vunpack.c.l.b16 %v3114
      %v3205 = vunpack.c.l.b16 %v3115
      %v3206 = vunpack.c.l.b16 %v3116
      %v3207 = vunpack.c.l.b16 %v3117
      %v3208 = vunpack.c.l.b16 %v3118
      %v3209 = vunpack.c.l.b16 %v3119
      %v3210 = vunpack.c.l.b16 %v3120
      %v3211 = vunpack.c.l.b16 %v3121
      %v3212 = vunpack.c.l.b16 %v3122
      %v3213 = vunpack.c.l.b16 %v3123
      %v3214 = vunpack.c.l.b16 %v3124
      %v3215 = vunpack.c.l.b16 %v3125
      %v3216 = vunpack.c.l.b16 %v3126
      %v3217 = vunpack.c.l.b16 %v3127
      %v3218 = vunpack.c.l.b16 %v3128
      %v3219 = vunpack.c.l.b16 %v3129
      %v3220 = vunpack.c.l.b16 %v3130
      %v3221 = vunpack.c.l.b16 %v3131
      %v3222 = vunpack.c.l.b16 %v3132
      %v3223 = vunpack.c.l.b16 %v3133
      %v3224 = vunpack.c.l.b16 %v3134
      %v3225 = vunpack.c.l.b16 %v3135
      %v3226 = vunpack.c.l.b16 %v3136
      %v3227 = vunpack.c.l.b16 %v3137
      %v3228 = vpack.c.b16 %v3192, %v3191
      %v3229 = vpack.c.b16 %v3194, %v3193
      %v3230 = vpack.c.b16 %v3196, %v3195
      %v3231 = vpack.c.b16 %v3198, %v3197
      %v3232 = vpack.c.b16 %v3200, %v3199
      %v3233 = vpack.c.b16 %v3202, %v3201
      %v3234 = vpack.c.b16 %v3204, %v3203
      %v3235 = vpack.c.b16 %v3206, %v3205
      %v3236 = vpack.c.b16 %v3208, %v3207
      %v3237 = vpack.c.b16 %v3210, %v3209
      %v3238 = vpack.c.b16 %v3212, %v3211
      %v3239 = vpack.c.b16 %v3214, %v3213
      %v3240 = vpack.c.b16 %v3216, %v3215
      %v3241 = vpack.c.b16 %v3218, %v3217
      %v3242 = vpack.c.b16 %v3220, %v3219
      %v3243 = vpack.c.b16 %v3222, %v3221
      %v3244 = vpack.c.b16 %v3224, %v3223
      %v3245 = vpack.c.b16 %v3226, %v3225
      %v3246 = vpack.c.b16 %v3227, %v3227
      %vm3247 = vsmask.f32 7424
      %v3249 = vshrl.u32 %v3228, 16
      %v3251 = vshll.u32 %v3228, 16
      %v3253 = vrot.slane %v3251, 1
      %v3254 = vor.u32 %v3249, %v3253
      %v3256 = vshll.u32 %v3229, 16
      %v3258 = vrot.slane %v3256, 1
      %v3259 = vsel %vm3247, %v3254, %v3258
      %v3260 = vshrl.u32 %v3229, 16
      %v3262 = vor.u32 %v3260, %v3258
      %v3264 = vshll.u32 %v3230, 16
      %v3266 = vrot.slane %v3264, 1
      %v3267 = vsel %vm3247, %v3262, %v3266
      %v3268 = vshrl.u32 %v3230, 16
      %v3270 = vor.u32 %v3268, %v3266
      %v3272 = vshll.u32 %v3231, 16
      %v3274 = vrot.slane %v3272, 1
      %v3275 = vsel %vm3247, %v3270, %v3274
      %v3276 = vshrl.u32 %v3231, 16
      %v3278 = vor.u32 %v3276, %v3274
      %v3280 = vshll.u32 %v3232, 16
      %v3282 = vrot.slane %v3280, 1
      %v3283 = vsel %vm3247, %v3278, %v3282
      %v3284 = vshrl.u32 %v3232, 16
      %v3286 = vor.u32 %v3284, %v3282
      %v3288 = vshll.u32 %v3233, 16
      %v3290 = vrot.slane %v3288, 1
      %v3291 = vsel %vm3247, %v3286, %v3290
      %v3292 = vshrl.u32 %v3233, 16
      %v3294 = vor.u32 %v3292, %v3290
      %v3296 = vshll.u32 %v3234, 16
      %v3298 = vrot.slane %v3296, 1
      %v3299 = vsel %vm3247, %v3294, %v3298
      %v3300 = vshrl.u32 %v3234, 16
      %v3302 = vor.u32 %v3300, %v3298
      %v3304 = vshll.u32 %v3235, 16
      %v3306 = vrot.slane %v3304, 1
      %v3307 = vsel %vm3247, %v3302, %v3306
      %v3308 = vshrl.u32 %v3235, 16
      %v3310 = vor.u32 %v3308, %v3306
      %v3312 = vshll.u32 %v3236, 16
      %v3314 = vrot.slane %v3312, 1
      %v3315 = vsel %vm3247, %v3310, %v3314
      %v3316 = vshrl.u32 %v3236, 16
      %v3318 = vor.u32 %v3316, %v3314
      %v3320 = vshll.u32 %v3237, 16
      %v3322 = vrot.slane %v3320, 1
      %v3323 = vsel %vm3247, %v3318, %v3322
      %v3324 = vshrl.u32 %v3237, 16
      %v3326 = vor.u32 %v3324, %v3322
      %v3328 = vshll.u32 %v3238, 16
      %v3330 = vrot.slane %v3328, 1
      %v3331 = vsel %vm3247, %v3326, %v3330
      %v3332 = vshrl.u32 %v3238, 16
      %v3334 = vor.u32 %v3332, %v3330
      %v3336 = vshll.u32 %v3239, 16
      %v3338 = vrot.slane %v3336, 1
      %v3339 = vsel %vm3247, %v3334, %v3338
      %v3340 = vshrl.u32 %v3239, 16
      %v3342 = vor.u32 %v3340, %v3338
      %v3344 = vshll.u32 %v3240, 16
      %v3346 = vrot.slane %v3344, 1
      %v3347 = vsel %vm3247, %v3342, %v3346
      %v3348 = vshrl.u32 %v3240, 16
      %v3350 = vor.u32 %v3348, %v3346
      %v3352 = vshll.u32 %v3241, 16
      %v3354 = vrot.slane %v3352, 1
      %v3355 = vsel %vm3247, %v3350, %v3354
      %v3356 = vshrl.u32 %v3241, 16
      %v3358 = vor.u32 %v3356, %v3354
      %v3360 = vshll.u32 %v3242, 16
      %v3362 = vrot.slane %v3360, 1
      %v3363 = vsel %vm3247, %v3358, %v3362
      %v3364 = vshrl.u32 %v3242, 16
      %v3366 = vor.u32 %v3364, %v3362
      %v3368 = vshll.u32 %v3243, 16
      %v3370 = vrot.slane %v3368, 1
      %v3371 = vsel %vm3247, %v3366, %v3370
      %v3372 = vshrl.u32 %v3243, 16
      %v3374 = vor.u32 %v3372, %v3370
      %v3376 = vshll.u32 %v3244, 16
      %v3378 = vrot.slane %v3376, 1
      %v3379 = vsel %vm3247, %v3374, %v3378
      %v3380 = vshrl.u32 %v3244, 16
      %v3382 = vor.u32 %v3380, %v3378
      %v3384 = vshll.u32 %v3245, 16
      %v3386 = vrot.slane %v3384, 1
      %v3387 = vsel %vm3247, %v3382, %v3386
      %v3388 = vshrl.u32 %v3245, 16
      %v3390 = vor.u32 %v3388, %v3386
      %v3392 = vshll.u32 %v3246, 16
      %v3394 = vrot.slane %v3392, 1
      %v3395 = vsel %vm3247, %v3390, %v3394
      %v3430 = vunpack.c.l.b16 %v3138
      %v3431 = vunpack.c.l.b16 %v3139
      %v3432 = vunpack.c.l.b16 %v3140
      %v3433 = vunpack.c.l.b16 %v3141
      %v3434 = vunpack.c.l.b16 %v3142
      %v3435 = vunpack.c.l.b16 %v3143
      %v3436 = vunpack.c.l.b16 %v3144
      %v3437 = vunpack.c.l.b16 %v3145
      %v3438 = vunpack.c.l.b16 %v3146
      %v3439 = vunpack.c.l.b16 %v3147
      %v3440 = vunpack.c.l.b16 %v3148
      %v3441 = vunpack.c.l.b16 %v3149
      %v3442 = vunpack.c.l.b16 %v3150
      %v3443 = vunpack.c.l.b16 %v3151
      %v3444 = vunpack.c.l.b16 %v3152
      %v3445 = vunpack.c.l.b16 %v3153
      %v3446 = vpack.c.b16 %v3431, %v3430
      %v3447 = vpack.c.b16 %v3433, %v3432
      %v3448 = vpack.c.b16 %v3435, %v3434
      %v3449 = vpack.c.b16 %v3437, %v3436
      %v3450 = vpack.c.b16 %v3439, %v3438
      %v3451 = vpack.c.b16 %v3441, %v3440
      %v3452 = vpack.c.b16 %v3443, %v3442
      %v3453 = vpack.c.b16 %v3445, %v3444
      %3462 = vmatprep.subr.bf16.mxu0 0
      %3463 = vmatpush1.bf16.msra.mxu0 %v3453
      %3464 = vmatprep.subr.bf16.mxu0 0
      %3465 = vmatpush1.bf16.msra.mxu0 %v3452
      %3466 = vmatprep.subr.bf16.mxu0 0
      %3467 = vmatpush1.bf16.msra.mxu0 %v3451
      %3468 = vmatprep.subr.bf16.mxu0 0
      %3469 = vmatpush1.bf16.msra.mxu0 %v3450
      %3470 = vmatprep.subr.bf16.mxu0 0
      %3471 = vmatpush1.bf16.msra.mxu0 %v3449
      %3472 = vmatprep.subr.bf16.mxu0 0
      %3473 = vmatpush1.bf16.msra.mxu0 %v3448
      %3474 = vmatprep.subr.bf16.mxu0 0
      %3475 = vmatpush1.bf16.msra.mxu0 %v3447
      %3476 = vmatprep.subr.bf16.mxu0 0
      %3477 = vmatpush1.bf16.msra.mxu0 %v3446
      %3478 = vmatprep.subr.bf16.mxu0 0
      %3479 = vmatpush2.bf16.msra.mxu0 0
      %3480 = vmatprep.subr.bf16.mxu0 0
      %3481 = vmatpush2.bf16.msra.mxu0 0
      %3482 = vmatprep.subr.bf16.mxu0 0
      %3483 = vmatpush2.bf16.msra.mxu0 0
      %3484 = vmatprep.subr.bf16.mxu0 0
      %3485 = vmatpush2.bf16.msra.mxu0 0
      %3486 = vmatprep.subr.bf16.mxu0 0
      %3487 = vmatpush2.bf16.msra.mxu0 0
      %3488 = vmatprep.subr.bf16.mxu0 0
      %3489 = vmatpush2.bf16.msra.mxu0 0
      %3490 = vmatprep.subr.bf16.mxu0 0
      %3491 = vmatpush2.bf16.msra.mxu0 0
      %3492 = vmatprep.subr.bf16.mxu0 0
      %3493 = vmatpush2.bf16.msra.mxu0 0
      %3494 = vmatprep.mubr.bf16.mxu0 0
      %3495 = vmatmul.mubr.bf16.gmra.mxu0 %v3259
      %v3496 = vpop.f32.mrf.mxu0
      %v3497 = vadd.f32 0.0, %v3496
      %v3498 = vpop.f32.mrf.mxu0
      %v3499 = vpop.f32.mrf.mxu0
      %v3500 = vadd.f32 0.0, %v3499
      %v3501 = vpop.f32.mrf.mxu0
      %3502 = vmatprep.mubr.bf16.mxu0 0
      %3503 = vmatmul.mubr.bf16.gmra.mxu0 %v3267
      %v3504 = vpop.f32.mrf.mxu0
      %v3505 = vadd.f32 0.0, %v3504
      %v3506 = vpop.f32.mrf.mxu0
      %v3507 = vpop.f32.mrf.mxu0
      %v3508 = vadd.f32 0.0, %v3507
      %v3509 = vpop.f32.mrf.mxu0
      %3510 = vmatprep.mubr.bf16.mxu0 0
      %3511 = vmatmul.mubr.bf16.gmra.mxu0 %v3275
      %v3512 = vpop.f32.mrf.mxu0
      %v3513 = vadd.f32 0.0, %v3512
      %v3514 = vpop.f32.mrf.mxu0
      %v3515 = vpop.f32.mrf.mxu0
      %v3516 = vadd.f32 0.0, %v3515
      %v3517 = vpop.f32.mrf.mxu0
      %3518 = vmatprep.mubr.bf16.mxu0 0
      %3519 = vmatmul.mubr.bf16.gmra.mxu0 %v3283
      %v3520 = vpop.f32.mrf.mxu0
      %v3521 = vadd.f32 0.0, %v3520
      %v3522 = vpop.f32.mrf.mxu0
      %v3523 = vpop.f32.mrf.mxu0
      %v3524 = vadd.f32 0.0, %v3523
      %v3525 = vpop.f32.mrf.mxu0
      %3526 = vmatprep.mubr.bf16.mxu0 0
      %3527 = vmatmul.mubr.bf16.gmra.mxu0 %v3291
      %v3528 = vpop.f32.mrf.mxu0
      %v3529 = vadd.f32 0.0, %v3528
      %v3530 = vpop.f32.mrf.mxu0
      %v3531 = vpop.f32.mrf.mxu0
      %v3532 = vadd.f32 0.0, %v3531
      %v3533 = vpop.f32.mrf.mxu0
      %3534 = vmatprep.mubr.bf16.mxu0 0
      %3535 = vmatmul.mubr.bf16.gmra.mxu0 %v3299
      %v3536 = vpop.f32.mrf.mxu0
      %v3537 = vadd.f32 0.0, %v3536
      %v3538 = vpop.f32.mrf.mxu0
      %v3539 = vpop.f32.mrf.mxu0
      %v3540 = vadd.f32 0.0, %v3539
      %v3541 = vpop.f32.mrf.mxu0
      %3542 = vmatprep.mubr.bf16.mxu0 0
      %3543 = vmatmul.mubr.bf16.gmra.mxu0 %v3307
      %v3544 = vpop.f32.mrf.mxu0
      %v3545 = vadd.f32 0.0, %v3544
      %v3546 = vpop.f32.mrf.mxu0
      %v3547 = vpop.f32.mrf.mxu0
      %v3548 = vadd.f32 0.0, %v3547
      %v3549 = vpop.f32.mrf.mxu0
      %3550 = vmatprep.mubr.bf16.mxu0 0
      %3551 = vmatmul.mubr.bf16.gmra.mxu0 %v3315
      %v3552 = vpop.f32.mrf.mxu0
      %v3553 = vadd.f32 0.0, %v3552
      %v3554 = vpop.f32.mrf.mxu0
      %v3555 = vpop.f32.mrf.mxu0
      %v3556 = vadd.f32 0.0, %v3555
      %v3557 = vpop.f32.mrf.mxu0
      %3558 = vmatprep.mubr.bf16.mxu0 0
      %3559 = vmatmul.mubr.bf16.gmra.mxu0 %v3323
      %v3560 = vpop.f32.mrf.mxu0
      %v3561 = vadd.f32 0.0, %v3560
      %v3562 = vpop.f32.mrf.mxu0
      %v3563 = vpop.f32.mrf.mxu0
      %v3564 = vadd.f32 0.0, %v3563
      %v3565 = vpop.f32.mrf.mxu0
      %3566 = vmatprep.mubr.bf16.mxu0 0
      %3567 = vmatmul.mubr.bf16.gmra.mxu0 %v3331
      %v3568 = vpop.f32.mrf.mxu0
      %v3569 = vadd.f32 0.0, %v3568
      %v3570 = vpop.f32.mrf.mxu0
      %v3571 = vpop.f32.mrf.mxu0
      %v3572 = vadd.f32 0.0, %v3571
      %v3573 = vpop.f32.mrf.mxu0
      %3574 = vmatprep.mubr.bf16.mxu0 0
      %3575 = vmatmul.mubr.bf16.gmra.mxu0 %v3339
      %v3576 = vpop.f32.mrf.mxu0
      %v3577 = vadd.f32 0.0, %v3576
      %v3578 = vpop.f32.mrf.mxu0
      %v3579 = vpop.f32.mrf.mxu0
      %v3580 = vadd.f32 0.0, %v3579
      %v3581 = vpop.f32.mrf.mxu0
      %3582 = vmatprep.mubr.bf16.mxu0 0
      %3583 = vmatmul.mubr.bf16.gmra.mxu0 %v3347
      %v3584 = vpop.f32.mrf.mxu0
      %v3585 = vadd.f32 0.0, %v3584
      %v3586 = vpop.f32.mrf.mxu0
      %v3587 = vpop.f32.mrf.mxu0
      %v3588 = vadd.f32 0.0, %v3587
      %v3589 = vpop.f32.mrf.mxu0
      %3590 = vmatprep.mubr.bf16.mxu0 0
      %3591 = vmatmul.mubr.bf16.gmra.mxu0 %v3355
      %v3592 = vpop.f32.mrf.mxu0
      %v3593 = vadd.f32 0.0, %v3592
      %v3594 = vpop.f32.mrf.mxu0
      %v3595 = vpop.f32.mrf.mxu0
      %v3596 = vadd.f32 0.0, %v3595
      %v3597 = vpop.f32.mrf.mxu0
      %3598 = vmatprep.mubr.bf16.mxu0 0
      %3599 = vmatmul.mubr.bf16.gmra.mxu0 %v3363
      %v3600 = vpop.f32.mrf.mxu0
      %v3601 = vadd.f32 0.0, %v3600
      %v3602 = vpop.f32.mrf.mxu0
      %v3603 = vpop.f32.mrf.mxu0
      %v3604 = vadd.f32 0.0, %v3603
      %v3605 = vpop.f32.mrf.mxu0
      %3606 = vmatprep.mubr.bf16.mxu0 0
      %3607 = vmatmul.mubr.bf16.gmra.mxu0 %v3371
      %v3608 = vpop.f32.mrf.mxu0
      %v3609 = vadd.f32 0.0, %v3608
      %v3610 = vpop.f32.mrf.mxu0
      %v3611 = vpop.f32.mrf.mxu0
      %v3612 = vadd.f32 0.0, %v3611
      %v3613 = vpop.f32.mrf.mxu0
      %3614 = vmatprep.mubr.bf16.mxu0 0
      %3615 = vmatmul.mubr.bf16.gmra.mxu0 %v3379
      %v3616 = vpop.f32.mrf.mxu0
      %v3617 = vadd.f32 0.0, %v3616
      %v3618 = vpop.f32.mrf.mxu0
      %v3619 = vpop.f32.mrf.mxu0
      %v3620 = vadd.f32 0.0, %v3619
      %v3621 = vpop.f32.mrf.mxu0
      %3622 = vmatprep.mubr.bf16.mxu0 0
      %3623 = vmatmul.mubr.bf16.gmra.mxu0 %v3387
      %v3624 = vpop.f32.mrf.mxu0
      %v3625 = vadd.f32 0.0, %v3624
      %v3626 = vpop.f32.mrf.mxu0
      %v3627 = vpop.f32.mrf.mxu0
      %v3628 = vadd.f32 0.0, %v3627
      %v3629 = vpop.f32.mrf.mxu0
      %3630 = vmatprep.mubr.bf16.mxu0 0
      %3631 = vmatmul.mubr.bf16.gmra.mxu0 %v3395
      %v3632 = vpop.f32.mrf.mxu0
      %v3633 = vadd.f32 0.0, %v3632
      %v3634 = vpop.f32.mrf.mxu0
      %v3635 = vpop.f32.mrf.mxu0
      %v3636 = vadd.f32 0.0, %v3635
      %v3637 = vpop.f32.mrf.mxu0
      %3638 = vdwg.mxu0
      %v3639 = vadd.f32 %v3065, %v3497
      %v3640 = vadd.f32 %v3066, %v3500
      %v3641 = vadd.f32 %v3067, %v3505
      %v3642 = vadd.f32 %v3068, %v3508
      %v3643 = vadd.f32 %v3069, %v3513
      %v3644 = vadd.f32 %v3070, %v3516
      %v3645 = vadd.f32 %v3071, %v3521
      %v3646 = vadd.f32 %v3072, %v3524
      %v3647 = vadd.f32 %v3073, %v3529
      %v3648 = vadd.f32 %v3074, %v3532
      %v3649 = vadd.f32 %v3075, %v3537
      %v3650 = vadd.f32 %v3076, %v3540
      %v3651 = vadd.f32 %v3077, %v3545
      %v3652 = vadd.f32 %v3078, %v3548
      %v3653 = vadd.f32 %v3079, %v3553
      %v3654 = vadd.f32 %v3080, %v3556
      %v3655 = vadd.f32 %v3081, %v3561
      %v3656 = vadd.f32 %v3082, %v3564
      %v3657 = vadd.f32 %v3083, %v3569
      %v3658 = vadd.f32 %v3084, %v3572
      %v3659 = vadd.f32 %v3085, %v3577
      %v3660 = vadd.f32 %v3086, %v3580
      %v3661 = vadd.f32 %v3087, %v3585
      %v3662 = vadd.f32 %v3088, %v3588
      %v3663 = vadd.f32 %v3089, %v3593
      %v3664 = vadd.f32 %v3090, %v3596
      %v3665 = vadd.f32 %v3091, %v3601
      %v3666 = vadd.f32 %v3092, %v3604
      %v3667 = vadd.f32 %v3093, %v3609
      %v3668 = vadd.f32 %v3094, %v3612
      %v3669 = vadd.f32 %v3095, %v3617
      %v3670 = vadd.f32 %v3096, %v3620
      %v3671 = vadd.f32 %v3097, %v3625
      %v3672 = vadd.f32 %v3098, %v3628
      %v3673 = vadd.f32 %v3099, %v3633
      %v3674 = vadd.f32 %v3100, %v3636
      %v3675 = vld [vmem:[%s219 + $0x14] sm:$0xf]
      %v3676 = vld [vmem:[%s219 + $0x18] sm:$0xf]
      %v3677 = vld [vmem:[%s219 + $0x1c] sm:$0xf]
      %v3678 = vld [vmem:[%s219 + $0x20] sm:$0xf]
      %v3679 = vld [vmem:[%s219 + $0x24] sm:$0xf]
      %v3680 = vld [vmem:[%s219 + $0x28] sm:$0xf]
      %v3681 = vld [vmem:[%s219 + $0x2c] sm:$0xf]
      %v3682 = vld [vmem:[%s219 + $0x30] sm:$0xf]
      %v3683 = vld [vmem:[%s219 + $0x34] sm:$0xf]
      %v3684 = vld [vmem:[%s219 + $0x38] sm:$0xf]
      %v3685 = vld [vmem:[%s219 + $0x3c] sm:$0xf]
      %v3686 = vld [vmem:[%s219 + $0x40] sm:$0xf]
      %v3687 = vld [vmem:[%s219 + $0x44] sm:$0xf]
      %v3688 = vld [vmem:[%s219 + $0x48] sm:$0xf]
      %v3689 = vld [vmem:[%s219 + $0x4c] sm:$0xf]
      %v3690 = vld [vmem:[%s219 + $0x50] sm:$0xf]
      %v3691 = vld [vmem:[%s219 + $0x54] sm:$0xf]
      %v3692 = vld [vmem:[%s219 + $0x58] sm:$0xf]
      %v3693 = vld [vmem:[%s219 + $0x5c] sm:$0xf]
      %v3694 = vld [vmem:[%s219 + $0x60] sm:$0xf]
      %v3695 = vld [vmem:[%s219 + $0x64] sm:$0xf]
      %v3696 = vld [vmem:[%s219 + $0x68] sm:$0xf]
      %v3697 = vld [vmem:[%s219 + $0x6c] sm:$0xf]
      %v3698 = vld [vmem:[%s219 + $0x70] sm:$0xf]
      %v3699 = vld [vmem:[%s219 + $0x74] sm:$0xf]
      %v3700 = vld [vmem:[%s219 + $0x78] sm:$0xf]
      %v3701 = vld [vmem:[%s219 + $0x7c] sm:$0xf]
      %v3702 = vld [vmem:[%s219 + $0x80] sm:$0xf]
      %v3703 = vld [vmem:[%s219 + $0x84] sm:$0xf]
      %v3704 = vld [vmem:[%s219 + $0x88] sm:$0xf]
      %v3705 = vld [vmem:[%s219 + $0x8c] sm:$0xf]
      %v3706 = vld [vmem:[%s219 + $0x90] sm:$0xf]
      %v3707 = vld [vmem:[%s219 + $0x94] sm:$0xf]
      %v3708 = vld [vmem:[%s219 + $0x98] sm:$0xf]
      %v3709 = vld [vmem:[%s219 + $0x9c] sm:$0xf]
      %v3710 = vld [vmem:[%s219 + $0xa0] sm:$0xf]
      %v3711 = vld [vmem:[%s219 + $0xa4] sm:$0x1]
      %v3712 = vld [vmem:[%s1 + $0x180] sm:$0xf]
      %v3713 = vld [vmem:[%s1 + $0x184] sm:$0xf]
      %v3714 = vld [vmem:[%s1 + $0x188] sm:$0xf]
      %v3715 = vld [vmem:[%s1 + $0x18c] sm:$0xf]
      %v3716 = vld [vmem:[%s1 + $0x190] sm:$0xf]
      %v3717 = vld [vmem:[%s1 + $0x194] sm:$0xf]
      %v3718 = vld [vmem:[%s1 + $0x198] sm:$0xf]
      %v3719 = vld [vmem:[%s1 + $0x19c] sm:$0xf]
      %v3720 = vld [vmem:[%s1 + $0x1a0] sm:$0xf]
      %v3721 = vld [vmem:[%s1 + $0x1a4] sm:$0xf]
      %v3722 = vld [vmem:[%s1 + $0x1a8] sm:$0xf]
      %v3723 = vld [vmem:[%s1 + $0x1ac] sm:$0xf]
      %v3724 = vld [vmem:[%s1 + $0x1b0] sm:$0xf]
      %v3725 = vld [vmem:[%s1 + $0x1b4] sm:$0xf]
      %v3726 = vld [vmem:[%s1 + $0x1b8] sm:$0xf]
      %v3727 = vld [vmem:[%s1 + $0x1bc] sm:$0xf]
      %v3765 = vunpack.c.l.b16 %v3675
      %v3766 = vunpack.c.l.b16 %v3676
      %v3767 = vunpack.c.l.b16 %v3677
      %v3768 = vunpack.c.l.b16 %v3678
      %v3769 = vunpack.c.l.b16 %v3679
      %v3770 = vunpack.c.l.b16 %v3680
      %v3771 = vunpack.c.l.b16 %v3681
      %v3772 = vunpack.c.l.b16 %v3682
      %v3773 = vunpack.c.l.b16 %v3683
      %v3774 = vunpack.c.l.b16 %v3684
      %v3775 = vunpack.c.l.b16 %v3685
      %v3776 = vunpack.c.l.b16 %v3686
      %v3777 = vunpack.c.l.b16 %v3687
      %v3778 = vunpack.c.l.b16 %v3688
      %v3779 = vunpack.c.l.b16 %v3689
      %v3780 = vunpack.c.l.b16 %v3690
      %v3781 = vunpack.c.l.b16 %v3691
      %v3782 = vunpack.c.l.b16 %v3692
      %v3783 = vunpack.c.l.b16 %v3693
      %v3784 = vunpack.c.l.b16 %v3694
      %v3785 = vunpack.c.l.b16 %v3695
      %v3786 = vunpack.c.l.b16 %v3696
      %v3787 = vunpack.c.l.b16 %v3697
      %v3788 = vunpack.c.l.b16 %v3698
      %v3789 = vunpack.c.l.b16 %v3699
      %v3790 = vunpack.c.l.b16 %v3700
      %v3791 = vunpack.c.l.b16 %v3701
      %v3792 = vunpack.c.l.b16 %v3702
      %v3793 = vunpack.c.l.b16 %v3703
      %v3794 = vunpack.c.l.b16 %v3704
      %v3795 = vunpack.c.l.b16 %v3705
      %v3796 = vunpack.c.l.b16 %v3706
      %v3797 = vunpack.c.l.b16 %v3707
      %v3798 = vunpack.c.l.b16 %v3708
      %v3799 = vunpack.c.l.b16 %v3709
      %v3800 = vunpack.c.l.b16 %v3710
      %v3801 = vunpack.c.l.b16 %v3711
      %v3802 = vpack.c.b16 %v3766, %v3765
      %v3803 = vpack.c.b16 %v3768, %v3767
      %v3804 = vpack.c.b16 %v3770, %v3769
      %v3805 = vpack.c.b16 %v3772, %v3771
      %v3806 = vpack.c.b16 %v3774, %v3773
      %v3807 = vpack.c.b16 %v3776, %v3775
      %v3808 = vpack.c.b16 %v3778, %v3777
      %v3809 = vpack.c.b16 %v3780, %v3779
      %v3810 = vpack.c.b16 %v3782, %v3781
      %v3811 = vpack.c.b16 %v3784, %v3783
      %v3812 = vpack.c.b16 %v3786, %v3785
      %v3813 = vpack.c.b16 %v3788, %v3787
      %v3814 = vpack.c.b16 %v3790, %v3789
      %v3815 = vpack.c.b16 %v3792, %v3791
      %v3816 = vpack.c.b16 %v3794, %v3793
      %v3817 = vpack.c.b16 %v3796, %v3795
      %v3818 = vpack.c.b16 %v3798, %v3797
      %v3819 = vpack.c.b16 %v3800, %v3799
      %v3820 = vpack.c.b16 %v3801, %v3801
      %v3822 = vshrl.u32 %v3802, 16
      %v3824 = vshll.u32 %v3802, 16
      %v3826 = vrot.slane %v3824, 1
      %v3827 = vor.u32 %v3822, %v3826
      %v3829 = vshll.u32 %v3803, 16
      %v3831 = vrot.slane %v3829, 1
      %v3832 = vsel %vm3247, %v3827, %v3831
      %v3833 = vshrl.u32 %v3803, 16
      %v3835 = vor.u32 %v3833, %v3831
      %v3837 = vshll.u32 %v3804, 16
      %v3839 = vrot.slane %v3837, 1
      %v3840 = vsel %vm3247, %v3835, %v3839
      %v3841 = vshrl.u32 %v3804, 16
      %v3843 = vor.u32 %v3841, %v3839
      %v3845 = vshll.u32 %v3805, 16
      %v3847 = vrot.slane %v3845, 1
      %v3848 = vsel %vm3247, %v3843, %v3847
      %v3849 = vshrl.u32 %v3805, 16
      %v3851 = vor.u32 %v3849, %v3847
      %v3853 = vshll.u32 %v3806, 16
      %v3855 = vrot.slane %v3853, 1
      %v3856 = vsel %vm3247, %v3851, %v3855
      %v3857 = vshrl.u32 %v3806, 16
      %v3859 = vor.u32 %v3857, %v3855
      %v3861 = vshll.u32 %v3807, 16
      %v3863 = vrot.slane %v3861, 1
      %v3864 = vsel %vm3247, %v3859, %v3863
      %v3865 = vshrl.u32 %v3807, 16
      %v3867 = vor.u32 %v3865, %v3863
      %v3869 = vshll.u32 %v3808, 16
      %v3871 = vrot.slane %v3869, 1
      %v3872 = vsel %vm3247, %v3867, %v3871
      %v3873 = vshrl.u32 %v3808, 16
      %v3875 = vor.u32 %v3873, %v3871
      %v3877 = vshll.u32 %v3809, 16
      %v3879 = vrot.slane %v3877, 1
      %v3880 = vsel %vm3247, %v3875, %v3879
      %v3881 = vshrl.u32 %v3809, 16
      %v3883 = vor.u32 %v3881, %v3879
      %v3885 = vshll.u32 %v3810, 16
      %v3887 = vrot.slane %v3885, 1
      %v3888 = vsel %vm3247, %v3883, %v3887
      %v3889 = vshrl.u32 %v3810, 16
      %v3891 = vor.u32 %v3889, %v3887
      %v3893 = vshll.u32 %v3811, 16
      %v3895 = vrot.slane %v3893, 1
      %v3896 = vsel %vm3247, %v3891, %v3895
      %v3897 = vshrl.u32 %v3811, 16
      %v3899 = vor.u32 %v3897, %v3895
      %v3901 = vshll.u32 %v3812, 16
      %v3903 = vrot.slane %v3901, 1
      %v3904 = vsel %vm3247, %v3899, %v3903
      %v3905 = vshrl.u32 %v3812, 16
      %v3907 = vor.u32 %v3905, %v3903
      %v3909 = vshll.u32 %v3813, 16
      %v3911 = vrot.slane %v3909, 1
      %v3912 = vsel %vm3247, %v3907, %v3911
      %v3913 = vshrl.u32 %v3813, 16
      %v3915 = vor.u32 %v3913, %v3911
      %v3917 = vshll.u32 %v3814, 16
      %v3919 = vrot.slane %v3917, 1
      %v3920 = vsel %vm3247, %v3915, %v3919
      %v3921 = vshrl.u32 %v3814, 16
      %v3923 = vor.u32 %v3921, %v3919
      %v3925 = vshll.u32 %v3815, 16
      %v3927 = vrot.slane %v3925, 1
      %v3928 = vsel %vm3247, %v3923, %v3927
      %v3929 = vshrl.u32 %v3815, 16
      %v3931 = vor.u32 %v3929, %v3927
      %v3933 = vshll.u32 %v3816, 16
      %v3935 = vrot.slane %v3933, 1
      %v3936 = vsel %vm3247, %v3931, %v3935
      %v3937 = vshrl.u32 %v3816, 16
      %v3939 = vor.u32 %v3937, %v3935
      %v3941 = vshll.u32 %v3817, 16
      %v3943 = vrot.slane %v3941, 1
      %v3944 = vsel %vm3247, %v3939, %v3943
      %v3945 = vshrl.u32 %v3817, 16
      %v3947 = vor.u32 %v3945, %v3943
      %v3949 = vshll.u32 %v3818, 16
      %v3951 = vrot.slane %v3949, 1
      %v3952 = vsel %vm3247, %v3947, %v3951
      %v3953 = vshrl.u32 %v3818, 16
      %v3955 = vor.u32 %v3953, %v3951
      %v3957 = vshll.u32 %v3819, 16
      %v3959 = vrot.slane %v3957, 1
      %v3960 = vsel %vm3247, %v3955, %v3959
      %v3961 = vshrl.u32 %v3819, 16
      %v3963 = vor.u32 %v3961, %v3959
      %v3965 = vshll.u32 %v3820, 16
      %v3967 = vrot.slane %v3965, 1
      %v3968 = vsel %vm3247, %v3963, %v3967
      %v4003 = vunpack.c.l.b16 %v3712
      %v4004 = vunpack.c.l.b16 %v3713
      %v4005 = vunpack.c.l.b16 %v3714
      %v4006 = vunpack.c.l.b16 %v3715
      %v4007 = vunpack.c.l.b16 %v3716
      %v4008 = vunpack.c.l.b16 %v3717
      %v4009 = vunpack.c.l.b16 %v3718
      %v4010 = vunpack.c.l.b16 %v3719
      %v4011 = vunpack.c.l.b16 %v3720
      %v4012 = vunpack.c.l.b16 %v3721
      %v4013 = vunpack.c.l.b16 %v3722
      %v4014 = vunpack.c.l.b16 %v3723
      %v4015 = vunpack.c.l.b16 %v3724
      %v4016 = vunpack.c.l.b16 %v3725
      %v4017 = vunpack.c.l.b16 %v3726
      %v4018 = vunpack.c.l.b16 %v3727
      %v4019 = vpack.c.b16 %v4004, %v4003
      %v4020 = vpack.c.b16 %v4006, %v4005
      %v4021 = vpack.c.b16 %v4008, %v4007
      %v4022 = vpack.c.b16 %v4010, %v4009
      %v4023 = vpack.c.b16 %v4012, %v4011
      %v4024 = vpack.c.b16 %v4014, %v4013
      %v4025 = vpack.c.b16 %v4016, %v4015
      %v4026 = vpack.c.b16 %v4018, %v4017
      %4035 = vmatprep.subr.bf16.mxu0 0
      %4036 = vmatpush1.bf16.msra.mxu0 %v4026
      %4037 = vmatprep.subr.bf16.mxu0 0
      %4038 = vmatpush1.bf16.msra.mxu0 %v4025
      %4039 = vmatprep.subr.bf16.mxu0 0
      %4040 = vmatpush1.bf16.msra.mxu0 %v4024
      %4041 = vmatprep.subr.bf16.mxu0 0
      %4042 = vmatpush1.bf16.msra.mxu0 %v4023
      %4043 = vmatprep.subr.bf16.mxu0 0
      %4044 = vmatpush1.bf16.msra.mxu0 %v4022
      %4045 = vmatprep.subr.bf16.mxu0 0
      %4046 = vmatpush1.bf16.msra.mxu0 %v4021
      %4047 = vmatprep.subr.bf16.mxu0 0
      %4048 = vmatpush1.bf16.msra.mxu0 %v4020
      %4049 = vmatprep.subr.bf16.mxu0 0
      %4050 = vmatpush1.bf16.msra.mxu0 %v4019
      %4051 = vmatprep.subr.bf16.mxu0 0
      %4052 = vmatpush2.bf16.msra.mxu0 0
      %4053 = vmatprep.subr.bf16.mxu0 0
      %4054 = vmatpush2.bf16.msra.mxu0 0
      %4055 = vmatprep.subr.bf16.mxu0 0
      %4056 = vmatpush2.bf16.msra.mxu0 0
      %4057 = vmatprep.subr.bf16.mxu0 0
      %4058 = vmatpush2.bf16.msra.mxu0 0
      %4059 = vmatprep.subr.bf16.mxu0 0
      %4060 = vmatpush2.bf16.msra.mxu0 0
      %4061 = vmatprep.subr.bf16.mxu0 0
      %4062 = vmatpush2.bf16.msra.mxu0 0
      %4063 = vmatprep.subr.bf16.mxu0 0
      %4064 = vmatpush2.bf16.msra.mxu0 0
      %4065 = vmatprep.subr.bf16.mxu0 0
      %4066 = vmatpush2.bf16.msra.mxu0 0
      %4067 = vmatprep.mubr.bf16.mxu0 0
      %4068 = vmatmul.mubr.bf16.gmra.mxu0 %v3832
      %v4069 = vpop.f32.mrf.mxu0
      %v4070 = vadd.f32 0.0, %v4069
      %v4071 = vpop.f32.mrf.mxu0
      %v4072 = vpop.f32.mrf.mxu0
      %v4073 = vadd.f32 0.0, %v4072
      %v4074 = vpop.f32.mrf.mxu0
      %4075 = vmatprep.mubr.bf16.mxu0 0
      %4076 = vmatmul.mubr.bf16.gmra.mxu0 %v3840
      %v4077 = vpop.f32.mrf.mxu0
      %v4078 = vadd.f32 0.0, %v4077
      %v4079 = vpop.f32.mrf.mxu0
      %v4080 = vpop.f32.mrf.mxu0
      %v4081 = vadd.f32 0.0, %v4080
      %v4082 = vpop.f32.mrf.mxu0
      %4083 = vmatprep.mubr.bf16.mxu0 0
      %4084 = vmatmul.mubr.bf16.gmra.mxu0 %v3848
      %v4085 = vpop.f32.mrf.mxu0
      %v4086 = vadd.f32 0.0, %v4085
      %v4087 = vpop.f32.mrf.mxu0
      %v4088 = vpop.f32.mrf.mxu0
      %v4089 = vadd.f32 0.0, %v4088
      %v4090 = vpop.f32.mrf.mxu0
      %4091 = vmatprep.mubr.bf16.mxu0 0
      %4092 = vmatmul.mubr.bf16.gmra.mxu0 %v3856
      %v4093 = vpop.f32.mrf.mxu0
      %v4094 = vadd.f32 0.0, %v4093
      %v4095 = vpop.f32.mrf.mxu0
      %v4096 = vpop.f32.mrf.mxu0
      %v4097 = vadd.f32 0.0, %v4096
      %v4098 = vpop.f32.mrf.mxu0
      %4099 = vmatprep.mubr.bf16.mxu0 0
      %4100 = vmatmul.mubr.bf16.gmra.mxu0 %v3864
      %v4101 = vpop.f32.mrf.mxu0
      %v4102 = vadd.f32 0.0, %v4101
      %v4103 = vpop.f32.mrf.mxu0
      %v4104 = vpop.f32.mrf.mxu0
      %v4105 = vadd.f32 0.0, %v4104
      %v4106 = vpop.f32.mrf.mxu0
      %4107 = vmatprep.mubr.bf16.mxu0 0
      %4108 = vmatmul.mubr.bf16.gmra.mxu0 %v3872
      %v4109 = vpop.f32.mrf.mxu0
      %v4110 = vadd.f32 0.0, %v4109
      %v4111 = vpop.f32.mrf.mxu0
      %v4112 = vpop.f32.mrf.mxu0
      %v4113 = vadd.f32 0.0, %v4112
      %v4114 = vpop.f32.mrf.mxu0
      %4115 = vmatprep.mubr.bf16.mxu0 0
      %4116 = vmatmul.mubr.bf16.gmra.mxu0 %v3880
      %v4117 = vpop.f32.mrf.mxu0
      %v4118 = vadd.f32 0.0, %v4117
      %v4119 = vpop.f32.mrf.mxu0
      %v4120 = vpop.f32.mrf.mxu0
      %v4121 = vadd.f32 0.0, %v4120
      %v4122 = vpop.f32.mrf.mxu0
      %4123 = vmatprep.mubr.bf16.mxu0 0
      %4124 = vmatmul.mubr.bf16.gmra.mxu0 %v3888
      %v4125 = vpop.f32.mrf.mxu0
      %v4126 = vadd.f32 0.0, %v4125
      %v4127 = vpop.f32.mrf.mxu0
      %v4128 = vpop.f32.mrf.mxu0
      %v4129 = vadd.f32 0.0, %v4128
      %v4130 = vpop.f32.mrf.mxu0
      %4131 = vmatprep.mubr.bf16.mxu0 0
      %4132 = vmatmul.mubr.bf16.gmra.mxu0 %v3896
      %v4133 = vpop.f32.mrf.mxu0
      %v4134 = vadd.f32 0.0, %v4133
      %v4135 = vpop.f32.mrf.mxu0
      %v4136 = vpop.f32.mrf.mxu0
      %v4137 = vadd.f32 0.0, %v4136
      %v4138 = vpop.f32.mrf.mxu0
      %4139 = vmatprep.mubr.bf16.mxu0 0
      %4140 = vmatmul.mubr.bf16.gmra.mxu0 %v3904
      %v4141 = vpop.f32.mrf.mxu0
      %v4142 = vadd.f32 0.0, %v4141
      %v4143 = vpop.f32.mrf.mxu0
      %v4144 = vpop.f32.mrf.mxu0
      %v4145 = vadd.f32 0.0, %v4144
      %v4146 = vpop.f32.mrf.mxu0
      %4147 = vmatprep.mubr.bf16.mxu0 0
      %4148 = vmatmul.mubr.bf16.gmra.mxu0 %v3912
      %v4149 = vpop.f32.mrf.mxu0
      %v4150 = vadd.f32 0.0, %v4149
      %v4151 = vpop.f32.mrf.mxu0
      %v4152 = vpop.f32.mrf.mxu0
      %v4153 = vadd.f32 0.0, %v4152
      %v4154 = vpop.f32.mrf.mxu0
      %4155 = vmatprep.mubr.bf16.mxu0 0
      %4156 = vmatmul.mubr.bf16.gmra.mxu0 %v3920
      %v4157 = vpop.f32.mrf.mxu0
      %v4158 = vadd.f32 0.0, %v4157
      %v4159 = vpop.f32.mrf.mxu0
      %v4160 = vpop.f32.mrf.mxu0
      %v4161 = vadd.f32 0.0, %v4160
      %v4162 = vpop.f32.mrf.mxu0
      %4163 = vmatprep.mubr.bf16.mxu0 0
      %4164 = vmatmul.mubr.bf16.gmra.mxu0 %v3928
      %v4165 = vpop.f32.mrf.mxu0
      %v4166 = vadd.f32 0.0, %v4165
      %v4167 = vpop.f32.mrf.mxu0
      %v4168 = vpop.f32.mrf.mxu0
      %v4169 = vadd.f32 0.0, %v4168
      %v4170 = vpop.f32.mrf.mxu0
      %4171 = vmatprep.mubr.bf16.mxu0 0
      %4172 = vmatmul.mubr.bf16.gmra.mxu0 %v3936
      %v4173 = vpop.f32.mrf.mxu0
      %v4174 = vadd.f32 0.0, %v4173
      %v4175 = vpop.f32.mrf.mxu0
      %v4176 = vpop.f32.mrf.mxu0
      %v4177 = vadd.f32 0.0, %v4176
      %v4178 = vpop.f32.mrf.mxu0
      %4179 = vmatprep.mubr.bf16.mxu0 0
      %4180 = vmatmul.mubr.bf16.gmra.mxu0 %v3944
      %v4181 = vpop.f32.mrf.mxu0
      %v4182 = vadd.f32 0.0, %v4181
      %v4183 = vpop.f32.mrf.mxu0
      %v4184 = vpop.f32.mrf.mxu0
      %v4185 = vadd.f32 0.0, %v4184
      %v4186 = vpop.f32.mrf.mxu0
      %4187 = vmatprep.mubr.bf16.mxu0 0
      %4188 = vmatmul.mubr.bf16.gmra.mxu0 %v3952
      %v4189 = vpop.f32.mrf.mxu0
      %v4190 = vadd.f32 0.0, %v4189
      %v4191 = vpop.f32.mrf.mxu0
      %v4192 = vpop.f32.mrf.mxu0
      %v4193 = vadd.f32 0.0, %v4192
      %v4194 = vpop.f32.mrf.mxu0
      %4195 = vmatprep.mubr.bf16.mxu0 0
      %4196 = vmatmul.mubr.bf16.gmra.mxu0 %v3960
      %v4197 = vpop.f32.mrf.mxu0
      %v4198 = vadd.f32 0.0, %v4197
      %v4199 = vpop.f32.mrf.mxu0
      %v4200 = vpop.f32.mrf.mxu0
      %v4201 = vadd.f32 0.0, %v4200
      %v4202 = vpop.f32.mrf.mxu0
      %4203 = vmatprep.mubr.bf16.mxu0 0
      %4204 = vmatmul.mubr.bf16.gmra.mxu0 %v3968
      %v4205 = vpop.f32.mrf.mxu0
      %v4206 = vadd.f32 0.0, %v4205
      %v4207 = vpop.f32.mrf.mxu0
      %v4208 = vpop.f32.mrf.mxu0
      %v4209 = vadd.f32 0.0, %v4208
      %v4210 = vpop.f32.mrf.mxu0
      %4211 = vdwg.mxu0
      %v4212 = vadd.f32 %v3639, %v4070
      %v4213 = vadd.f32 %v3640, %v4073
      %v4214 = vadd.f32 %v3641, %v4078
      %v4215 = vadd.f32 %v3642, %v4081
      %v4216 = vadd.f32 %v3643, %v4086
      %v4217 = vadd.f32 %v3644, %v4089
      %v4218 = vadd.f32 %v3645, %v4094
      %v4219 = vadd.f32 %v3646, %v4097
      %v4220 = vadd.f32 %v3647, %v4102
      %v4221 = vadd.f32 %v3648, %v4105
      %v4222 = vadd.f32 %v3649, %v4110
      %v4223 = vadd.f32 %v3650, %v4113
      %v4224 = vadd.f32 %v3651, %v4118
      %v4225 = vadd.f32 %v3652, %v4121
      %v4226 = vadd.f32 %v3653, %v4126
      %v4227 = vadd.f32 %v3654, %v4129
      %v4228 = vadd.f32 %v3655, %v4134
      %v4229 = vadd.f32 %v3656, %v4137
      %v4230 = vadd.f32 %v3657, %v4142
      %v4231 = vadd.f32 %v3658, %v4145
      %v4232 = vadd.f32 %v3659, %v4150
      %v4233 = vadd.f32 %v3660, %v4153
      %v4234 = vadd.f32 %v3661, %v4158
      %v4235 = vadd.f32 %v3662, %v4161
      %v4236 = vadd.f32 %v3663, %v4166
      %v4237 = vadd.f32 %v3664, %v4169
      %v4238 = vadd.f32 %v3665, %v4174
      %v4239 = vadd.f32 %v3666, %v4177
      %v4240 = vadd.f32 %v3667, %v4182
      %v4241 = vadd.f32 %v3668, %v4185
      %v4242 = vadd.f32 %v3669, %v4190
      %v4243 = vadd.f32 %v3670, %v4193
      %v4244 = vadd.f32 %v3671, %v4198
      %v4245 = vadd.f32 %v3672, %v4201
      %v4246 = vadd.f32 %v3673, %v4206
      %v4247 = vadd.f32 %v3674, %v4209
      %v4248 = vld [vmem:[%s219 + $0x14] sm:$0xe]
      %v4249 = vld [vmem:[%s1 + $0x1c0] sm:$0xf]
      %v4250 = vld [vmem:[%s1 + $0x1c4] sm:$0xf]
      %v4251 = vld [vmem:[%s1 + $0x1c8] sm:$0xf]
      %v4252 = vld [vmem:[%s1 + $0x1cc] sm:$0xf]
      %v4253 = vld [vmem:[%s1 + $0x1d0] sm:$0xf]
      %v4254 = vld [vmem:[%s1 + $0x1d4] sm:$0xf]
      %v4255 = vld [vmem:[%s1 + $0x1d8] sm:$0xf]
      %v4256 = vld [vmem:[%s1 + $0x1dc] sm:$0xf]
      %v4257 = vld [vmem:[%s1 + $0x1e0] sm:$0xf]
      %v4258 = vld [vmem:[%s1 + $0x1e4] sm:$0xf]
      %v4259 = vld [vmem:[%s1 + $0x1e8] sm:$0xf]
      %v4260 = vld [vmem:[%s1 + $0x1ec] sm:$0xf]
      %v4261 = vld [vmem:[%s1 + $0x1f0] sm:$0xf]
      %v4262 = vld [vmem:[%s1 + $0x1f4] sm:$0xf]
      %v4263 = vld [vmem:[%s1 + $0x1f8] sm:$0xf]
      %v4264 = vld [vmem:[%s1 + $0x1fc] sm:$0xf]
      %v4266 = vunpack.c.l.b16 %v4248
      %v4267 = vpack.c.b16 %v3766, %v4266
      %vm4268 = vcmask 1046528
      %v4269 = vrot.slane %v4267, 1
      %v4270 = vrot.slane %v3803, 1
      %v4271 = vsel %vm4268, %v4269, %v4270
      %v4272 = vrot.slane %v3804, 1
      %v4273 = vsel %vm4268, %v4270, %v4272
      %v4274 = vrot.slane %v3805, 1
      %v4275 = vsel %vm4268, %v4272, %v4274
      %v4276 = vrot.slane %v3806, 1
      %v4277 = vsel %vm4268, %v4274, %v4276
      %v4278 = vrot.slane %v3807, 1
      %v4279 = vsel %vm4268, %v4276, %v4278
      %v4280 = vrot.slane %v3808, 1
      %v4281 = vsel %vm4268, %v4278, %v4280
      %v4282 = vrot.slane %v3809, 1
      %v4283 = vsel %vm4268, %v4280, %v4282
      %v4284 = vrot.slane %v3810, 1
      %v4285 = vsel %vm4268, %v4282, %v4284
      %v4286 = vrot.slane %v3811, 1
      %v4287 = vsel %vm4268, %v4284, %v4286
      %v4288 = vrot.slane %v3812, 1
      %v4289 = vsel %vm4268, %v4286, %v4288
      %v4290 = vrot.slane %v3813, 1
      %v4291 = vsel %vm4268, %v4288, %v4290
      %v4292 = vrot.slane %v3814, 1
      %v4293 = vsel %vm4268, %v4290, %v4292
      %v4294 = vrot.slane %v3815, 1
      %v4295 = vsel %vm4268, %v4292, %v4294
      %v4296 = vrot.slane %v3816, 1
      %v4297 = vsel %vm4268, %v4294, %v4296
      %v4298 = vrot.slane %v3817, 1
      %v4299 = vsel %vm4268, %v4296, %v4298
      %v4300 = vrot.slane %v3818, 1
      %v4301 = vsel %vm4268, %v4298, %v4300
      %v4302 = vrot.slane %v3819, 1
      %v4303 = vsel %vm4268, %v4300, %v4302
      %v4304 = vrot.slane %v3820, 1
      %v4305 = vsel %vm4268, %v4302, %v4304
      %v4340 = vunpack.c.l.b16 %v4249
      %v4341 = vunpack.c.l.b16 %v4250
      %v4342 = vunpack.c.l.b16 %v4251
      %v4343 = vunpack.c.l.b16 %v4252
      %v4344 = vunpack.c.l.b16 %v4253
      %v4345 = vunpack.c.l.b16 %v4254
      %v4346 = vunpack.c.l.b16 %v4255
      %v4347 = vunpack.c.l.b16 %v4256
      %v4348 = vunpack.c.l.b16 %v4257
      %v4349 = vunpack.c.l.b16 %v4258
      %v4350 = vunpack.c.l.b16 %v4259
      %v4351 = vunpack.c.l.b16 %v4260
      %v4352 = vunpack.c.l.b16 %v4261
      %v4353 = vunpack.c.l.b16 %v4262
      %v4354 = vunpack.c.l.b16 %v4263
      %v4355 = vunpack.c.l.b16 %v4264
      %v4356 = vpack.c.b16 %v4341, %v4340
      %v4357 = vpack.c.b16 %v4343, %v4342
      %v4358 = vpack.c.b16 %v4345, %v4344
      %v4359 = vpack.c.b16 %v4347, %v4346
      %v4360 = vpack.c.b16 %v4349, %v4348
      %v4361 = vpack.c.b16 %v4351, %v4350
      %v4362 = vpack.c.b16 %v4353, %v4352
      %v4363 = vpack.c.b16 %v4355, %v4354
      %4372 = vmatprep.subr.bf16.mxu0 0
      %4373 = vmatpush1.bf16.msra.mxu0 %v4363
      %4374 = vmatprep.subr.bf16.mxu0 0
      %4375 = vmatpush1.bf16.msra.mxu0 %v4362
      %4376 = vmatprep.subr.bf16.mxu0 0
      %4377 = vmatpush1.bf16.msra.mxu0 %v4361
      %4378 = vmatprep.subr.bf16.mxu0 0
      %4379 = vmatpush1.bf16.msra.mxu0 %v4360
      %4380 = vmatprep.subr.bf16.mxu0 0
      %4381 = vmatpush1.bf16.msra.mxu0 %v4359
      %4382 = vmatprep.subr.bf16.mxu0 0
      %4383 = vmatpush1.bf16.msra.mxu0 %v4358
      %4384 = vmatprep.subr.bf16.mxu0 0
      %4385 = vmatpush1.bf16.msra.mxu0 %v4357
      %4386 = vmatprep.subr.bf16.mxu0 0
      %4387 = vmatpush1.bf16.msra.mxu0 %v4356
      %4388 = vmatprep.subr.bf16.mxu0 0
      %4389 = vmatpush2.bf16.msra.mxu0 0
      %4390 = vmatprep.subr.bf16.mxu0 0
      %4391 = vmatpush2.bf16.msra.mxu0 0
      %4392 = vmatprep.subr.bf16.mxu0 0
      %4393 = vmatpush2.bf16.msra.mxu0 0
      %4394 = vmatprep.subr.bf16.mxu0 0
      %4395 = vmatpush2.bf16.msra.mxu0 0
      %4396 = vmatprep.subr.bf16.mxu0 0
      %4397 = vmatpush2.bf16.msra.mxu0 0
      %4398 = vmatprep.subr.bf16.mxu0 0
      %4399 = vmatpush2.bf16.msra.mxu0 0
      %4400 = vmatprep.subr.bf16.mxu0 0
      %4401 = vmatpush2.bf16.msra.mxu0 0
      %4402 = vmatprep.subr.bf16.mxu0 0
      %4403 = vmatpush2.bf16.msra.mxu0 0
      %4404 = vmatprep.mubr.bf16.mxu0 0
      %4405 = vmatmul.mubr.bf16.gmra.mxu0 %v4271
      %v4406 = vpop.f32.mrf.mxu0
      %v4407 = vadd.f32 0.0, %v4406
      %v4408 = vpop.f32.mrf.mxu0
      %v4409 = vpop.f32.mrf.mxu0
      %v4410 = vadd.f32 0.0, %v4409
      %v4411 = vpop.f32.mrf.mxu0
      %4412 = vmatprep.mubr.bf16.mxu0 0
      %4413 = vmatmul.mubr.bf16.gmra.mxu0 %v4273
      %v4414 = vpop.f32.mrf.mxu0
      %v4415 = vadd.f32 0.0, %v4414
      %v4416 = vpop.f32.mrf.mxu0
      %v4417 = vpop.f32.mrf.mxu0
      %v4418 = vadd.f32 0.0, %v4417
      %v4419 = vpop.f32.mrf.mxu0
      %4420 = vmatprep.mubr.bf16.mxu0 0
      %4421 = vmatmul.mubr.bf16.gmra.mxu0 %v4275
      %v4422 = vpop.f32.mrf.mxu0
      %v4423 = vadd.f32 0.0, %v4422
      %v4424 = vpop.f32.mrf.mxu0
      %v4425 = vpop.f32.mrf.mxu0
      %v4426 = vadd.f32 0.0, %v4425
      %v4427 = vpop.f32.mrf.mxu0
      %4428 = vmatprep.mubr.bf16.mxu0 0
      %4429 = vmatmul.mubr.bf16.gmra.mxu0 %v4277
      %v4430 = vpop.f32.mrf.mxu0
      %v4431 = vadd.f32 0.0, %v4430
      %v4432 = vpop.f32.mrf.mxu0
      %v4433 = vpop.f32.mrf.mxu0
      %v4434 = vadd.f32 0.0, %v4433
      %v4435 = vpop.f32.mrf.mxu0
      %4436 = vmatprep.mubr.bf16.mxu0 0
      %4437 = vmatmul.mubr.bf16.gmra.mxu0 %v4279
      %v4438 = vpop.f32.mrf.mxu0
      %v4439 = vadd.f32 0.0, %v4438
      %v4440 = vpop.f32.mrf.mxu0
      %v4441 = vpop.f32.mrf.mxu0
      %v4442 = vadd.f32 0.0, %v4441
      %v4443 = vpop.f32.mrf.mxu0
      %4444 = vmatprep.mubr.bf16.mxu0 0
      %4445 = vmatmul.mubr.bf16.gmra.mxu0 %v4281
      %v4446 = vpop.f32.mrf.mxu0
      %v4447 = vadd.f32 0.0, %v4446
      %v4448 = vpop.f32.mrf.mxu0
      %v4449 = vpop.f32.mrf.mxu0
      %v4450 = vadd.f32 0.0, %v4449
      %v4451 = vpop.f32.mrf.mxu0
      %4452 = vmatprep.mubr.bf16.mxu0 0
      %4453 = vmatmul.mubr.bf16.gmra.mxu0 %v4283
      %v4454 = vpop.f32.mrf.mxu0
      %v4455 = vadd.f32 0.0, %v4454
      %v4456 = vpop.f32.mrf.mxu0
      %v4457 = vpop.f32.mrf.mxu0
      %v4458 = vadd.f32 0.0, %v4457
      %v4459 = vpop.f32.mrf.mxu0
      %4460 = vmatprep.mubr.bf16.mxu0 0
      %4461 = vmatmul.mubr.bf16.gmra.mxu0 %v4285
      %v4462 = vpop.f32.mrf.mxu0
      %v4463 = vadd.f32 0.0, %v4462
      %v4464 = vpop.f32.mrf.mxu0
      %v4465 = vpop.f32.mrf.mxu0
      %v4466 = vadd.f32 0.0, %v4465
      %v4467 = vpop.f32.mrf.mxu0
      %4468 = vmatprep.mubr.bf16.mxu0 0
      %4469 = vmatmul.mubr.bf16.gmra.mxu0 %v4287
      %v4470 = vpop.f32.mrf.mxu0
      %v4471 = vadd.f32 0.0, %v4470
      %v4472 = vpop.f32.mrf.mxu0
      %v4473 = vpop.f32.mrf.mxu0
      %v4474 = vadd.f32 0.0, %v4473
      %v4475 = vpop.f32.mrf.mxu0
      %4476 = vmatprep.mubr.bf16.mxu0 0
      %4477 = vmatmul.mubr.bf16.gmra.mxu0 %v4289
      %v4478 = vpop.f32.mrf.mxu0
      %v4479 = vadd.f32 0.0, %v4478
      %v4480 = vpop.f32.mrf.mxu0
      %v4481 = vpop.f32.mrf.mxu0
      %v4482 = vadd.f32 0.0, %v4481
      %v4483 = vpop.f32.mrf.mxu0
      %4484 = vmatprep.mubr.bf16.mxu0 0
      %4485 = vmatmul.mubr.bf16.gmra.mxu0 %v4291
      %v4486 = vpop.f32.mrf.mxu0
      %v4487 = vadd.f32 0.0, %v4486
      %v4488 = vpop.f32.mrf.mxu0
      %v4489 = vpop.f32.mrf.mxu0
      %v4490 = vadd.f32 0.0, %v4489
      %v4491 = vpop.f32.mrf.mxu0
      %4492 = vmatprep.mubr.bf16.mxu0 0
      %4493 = vmatmul.mubr.bf16.gmra.mxu0 %v4293
      %v4494 = vpop.f32.mrf.mxu0
      %v4495 = vadd.f32 0.0, %v4494
      %v4496 = vpop.f32.mrf.mxu0
      %v4497 = vpop.f32.mrf.mxu0
      %v4498 = vadd.f32 0.0, %v4497
      %v4499 = vpop.f32.mrf.mxu0
      %4500 = vmatprep.mubr.bf16.mxu0 0
      %4501 = vmatmul.mubr.bf16.gmra.mxu0 %v4295
      %v4502 = vpop.f32.mrf.mxu0
      %v4503 = vadd.f32 0.0, %v4502
      %v4504 = vpop.f32.mrf.mxu0
      %v4505 = vpop.f32.mrf.mxu0
      %v4506 = vadd.f32 0.0, %v4505
      %v4507 = vpop.f32.mrf.mxu0
      %4508 = vmatprep.mubr.bf16.mxu0 0
      %4509 = vmatmul.mubr.bf16.gmra.mxu0 %v4297
      %v4510 = vpop.f32.mrf.mxu0
      %v4511 = vadd.f32 0.0, %v4510
      %v4512 = vpop.f32.mrf.mxu0
      %v4513 = vpop.f32.mrf.mxu0
      %v4514 = vadd.f32 0.0, %v4513
      %v4515 = vpop.f32.mrf.mxu0
      %4516 = vmatprep.mubr.bf16.mxu0 0
      %4517 = vmatmul.mubr.bf16.gmra.mxu0 %v4299
      %v4518 = vpop.f32.mrf.mxu0
      %v4519 = vadd.f32 0.0, %v4518
      %v4520 = vpop.f32.mrf.mxu0
      %v4521 = vpop.f32.mrf.mxu0
      %v4522 = vadd.f32 0.0, %v4521
      %v4523 = vpop.f32.mrf.mxu0
      %4524 = vmatprep.mubr.bf16.mxu0 0
      %4525 = vmatmul.mubr.bf16.gmra.mxu0 %v4301
      %v4526 = vpop.f32.mrf.mxu0
      %v4527 = vadd.f32 0.0, %v4526
      %v4528 = vpop.f32.mrf.mxu0
      %v4529 = vpop.f32.mrf.mxu0
      %v4530 = vadd.f32 0.0, %v4529
      %v4531 = vpop.f32.mrf.mxu0
      %4532 = vmatprep.mubr.bf16.mxu0 0
      %4533 = vmatmul.mubr.bf16.gmra.mxu0 %v4303
      %v4534 = vpop.f32.mrf.mxu0
      %v4535 = vadd.f32 0.0, %v4534
      %v4536 = vpop.f32.mrf.mxu0
      %v4537 = vpop.f32.mrf.mxu0
      %v4538 = vadd.f32 0.0, %v4537
      %v4539 = vpop.f32.mrf.mxu0
      %4540 = vmatprep.mubr.bf16.mxu0 0
      %4541 = vmatmul.mubr.bf16.gmra.mxu0 %v4305
      %v4542 = vpop.f32.mrf.mxu0
      %v4543 = vadd.f32 0.0, %v4542
      %v4544 = vpop.f32.mrf.mxu0
      %v4545 = vpop.f32.mrf.mxu0
      %v4546 = vadd.f32 0.0, %v4545
      %v4547 = vpop.f32.mrf.mxu0
      %4548 = vdwg.mxu0
      %v4549 = vadd.f32 %v4212, %v4407
      %v4550 = vadd.f32 %v4213, %v4410
      %v4551 = vadd.f32 %v4214, %v4415
      %v4552 = vadd.f32 %v4215, %v4418
      %v4553 = vadd.f32 %v4216, %v4423
      %v4554 = vadd.f32 %v4217, %v4426
      %v4555 = vadd.f32 %v4218, %v4431
      %v4556 = vadd.f32 %v4219, %v4434
      %v4557 = vadd.f32 %v4220, %v4439
      %v4558 = vadd.f32 %v4221, %v4442
      %v4559 = vadd.f32 %v4222, %v4447
      %v4560 = vadd.f32 %v4223, %v4450
      %v4561 = vadd.f32 %v4224, %v4455
      %v4562 = vadd.f32 %v4225, %v4458
      %v4563 = vadd.f32 %v4226, %v4463
      %v4564 = vadd.f32 %v4227, %v4466
      %v4565 = vadd.f32 %v4228, %v4471
      %v4566 = vadd.f32 %v4229, %v4474
      %v4567 = vadd.f32 %v4230, %v4479
      %v4568 = vadd.f32 %v4231, %v4482
      %v4569 = vadd.f32 %v4232, %v4487
      %v4570 = vadd.f32 %v4233, %v4490
      %v4571 = vadd.f32 %v4234, %v4495
      %v4572 = vadd.f32 %v4235, %v4498
      %v4573 = vadd.f32 %v4236, %v4503
      %v4574 = vadd.f32 %v4237, %v4506
      %v4575 = vadd.f32 %v4238, %v4511
      %v4576 = vadd.f32 %v4239, %v4514
      %v4577 = vadd.f32 %v4240, %v4519
      %v4578 = vadd.f32 %v4241, %v4522
      %v4579 = vadd.f32 %v4242, %v4527
      %v4580 = vadd.f32 %v4243, %v4530
      %v4581 = vadd.f32 %v4244, %v4535
      %v4582 = vadd.f32 %v4245, %v4538
      %v4583 = vadd.f32 %v4246, %v4543
      %v4584 = vadd.f32 %v4247, %v4546
      %v4585 = vld [vmem:[%s219 + $0xa4] sm:$0x3]
      %v4586 = vld [vmem:[%s1 + $0x200] sm:$0xf]
      %v4587 = vld [vmem:[%s1 + $0x204] sm:$0xf]
      %v4588 = vld [vmem:[%s1 + $0x208] sm:$0xf]
      %v4589 = vld [vmem:[%s1 + $0x20c] sm:$0xf]
      %v4590 = vld [vmem:[%s1 + $0x210] sm:$0xf]
      %v4591 = vld [vmem:[%s1 + $0x214] sm:$0xf]
      %v4592 = vld [vmem:[%s1 + $0x218] sm:$0xf]
      %v4593 = vld [vmem:[%s1 + $0x21c] sm:$0xf]
      %v4594 = vld [vmem:[%s1 + $0x220] sm:$0xf]
      %v4595 = vld [vmem:[%s1 + $0x224] sm:$0xf]
      %v4596 = vld [vmem:[%s1 + $0x228] sm:$0xf]
      %v4597 = vld [vmem:[%s1 + $0x22c] sm:$0xf]
      %v4598 = vld [vmem:[%s1 + $0x230] sm:$0xf]
      %v4599 = vld [vmem:[%s1 + $0x234] sm:$0xf]
      %v4600 = vld [vmem:[%s1 + $0x238] sm:$0xf]
      %v4601 = vld [vmem:[%s1 + $0x23c] sm:$0xf]
      %v4603 = vunpack.c.l.b16 %v4585
      %v4604 = vpack.c.b16 %v4603, %v4603
      %vm4605 = vsmask.f32 6400
      %v4607 = vshrl.u32 %v4267, 16
      %v4609 = vrot.slane %v4607, 1
      %v4610 = vshll.u32 %v4267, 16
      %v4612 = vrot.slane %v4610, 2
      %v4613 = vor.u32 %v4609, %v4612
      %v4614 = vrot.slane %v3833, 1
      %v4615 = vrot.slane %v3829, 2
      %v4616 = vor.u32 %v4614, %v4615
      %v4617 = vsel %vm4605, %v4613, %v4616
      %v4618 = vrot.slane %v3841, 1
      %v4619 = vrot.slane %v3837, 2
      %v4620 = vor.u32 %v4618, %v4619
      %v4621 = vsel %vm4605, %v4616, %v4620
      %v4622 = vrot.slane %v3849, 1
      %v4623 = vrot.slane %v3845, 2
      %v4624 = vor.u32 %v4622, %v4623
      %v4625 = vsel %vm4605, %v4620, %v4624
      %v4626 = vrot.slane %v3857, 1
      %v4627 = vrot.slane %v3853, 2
      %v4628 = vor.u32 %v4626, %v4627
      %v4629 = vsel %vm4605, %v4624, %v4628
      %v4630 = vrot.slane %v3865, 1
      %v4631 = vrot.slane %v3861, 2
      %v4632 = vor.u32 %v4630, %v4631
      %v4633 = vsel %vm4605, %v4628, %v4632
      %v4634 = vrot.slane %v3873, 1
      %v4635 = vrot.slane %v3869, 2
      %v4636 = vor.u32 %v4634, %v4635
      %v4637 = vsel %vm4605, %v4632, %v4636
      %v4638 = vrot.slane %v3881, 1
      %v4639 = vrot.slane %v3877, 2
      %v4640 = vor.u32 %v4638, %v4639
      %v4641 = vsel %vm4605, %v4636, %v4640
      %v4642 = vrot.slane %v3889, 1
      %v4643 = vrot.slane %v3885, 2
      %v4644 = vor.u32 %v4642, %v4643
      %v4645 = vsel %vm4605, %v4640, %v4644
      %v4646 = vrot.slane %v3897, 1
      %v4647 = vrot.slane %v3893, 2
      %v4648 = vor.u32 %v4646, %v4647
      %v4649 = vsel %vm4605, %v4644, %v4648
      %v4650 = vrot.slane %v3905, 1
      %v4651 = vrot.slane %v3901, 2
      %v4652 = vor.u32 %v4650, %v4651
      %v4653 = vsel %vm4605, %v4648, %v4652
      %v4654 = vrot.slane %v3913, 1
      %v4655 = vrot.slane %v3909, 2
      %v4656 = vor.u32 %v4654, %v4655
      %v4657 = vsel %vm4605, %v4652, %v4656
      %v4658 = vrot.slane %v3921, 1
      %v4659 = vrot.slane %v3917, 2
      %v4660 = vor.u32 %v4658, %v4659
      %v4661 = vsel %vm4605, %v4656, %v4660
      %v4662 = vrot.slane %v3929, 1
      %v4663 = vrot.slane %v3925, 2
      %v4664 = vor.u32 %v4662, %v4663
      %v4665 = vsel %vm4605, %v4660, %v4664
      %v4666 = vrot.slane %v3937, 1
      %v4667 = vrot.slane %v3933, 2
      %v4668 = vor.u32 %v4666, %v4667
      %v4669 = vsel %vm4605, %v4664, %v4668
      %v4670 = vrot.slane %v3945, 1
      %v4671 = vrot.slane %v3941, 2
      %v4672 = vor.u32 %v4670, %v4671
      %v4673 = vsel %vm4605, %v4668, %v4672
      %v4674 = vrot.slane %v3953, 1
      %v4675 = vrot.slane %v3949, 2
      %v4676 = vor.u32 %v4674, %v4675
      %v4677 = vsel %vm4605, %v4672, %v4676
      %v4678 = vrot.slane %v3961, 1
      %v4679 = vrot.slane %v3957, 2
      %v4680 = vor.u32 %v4678, %v4679
      %v4681 = vsel %vm4605, %v4676, %v4680
      %v4683 = vshrl.u32 %v4604, 16
      %v4685 = vrot.slane %v4683, 1
      %v4686 = vshll.u32 %v4604, 16
      %v4688 = vrot.slane %v4686, 2
      %v4689 = vor.u32 %v4685, %v4688
      %v4690 = vsel %vm4605, %v4680, %v4689
      %v4725 = vunpack.c.l.b16 %v4586
      %v4726 = vunpack.c.l.b16 %v4587
      %v4727 = vunpack.c.l.b16 %v4588
      %v4728 = vunpack.c.l.b16 %v4589
      %v4729 = vunpack.c.l.b16 %v4590
      %v4730 = vunpack.c.l.b16 %v4591
      %v4731 = vunpack.c.l.b16 %v4592
      %v4732 = vunpack.c.l.b16 %v4593
      %v4733 = vunpack.c.l.b16 %v4594
      %v4734 = vunpack.c.l.b16 %v4595
      %v4735 = vunpack.c.l.b16 %v4596
      %v4736 = vunpack.c.l.b16 %v4597
      %v4737 = vunpack.c.l.b16 %v4598
      %v4738 = vunpack.c.l.b16 %v4599
      %v4739 = vunpack.c.l.b16 %v4600
      %v4740 = vunpack.c.l.b16 %v4601
      %v4741 = vpack.c.b16 %v4726, %v4725
      %v4742 = vpack.c.b16 %v4728, %v4727
      %v4743 = vpack.c.b16 %v4730, %v4729
      %v4744 = vpack.c.b16 %v4732, %v4731
      %v4745 = vpack.c.b16 %v4734, %v4733
      %v4746 = vpack.c.b16 %v4736, %v4735
      %v4747 = vpack.c.b16 %v4738, %v4737
      %v4748 = vpack.c.b16 %v4740, %v4739
      %4757 = vmatprep.subr.bf16.mxu0 0
      %4758 = vmatpush1.bf16.msra.mxu0 %v4748
      %4759 = vmatprep.subr.bf16.mxu0 0
      %4760 = vmatpush1.bf16.msra.mxu0 %v4747
      %4761 = vmatprep.subr.bf16.mxu0 0
      %4762 = vmatpush1.bf16.msra.mxu0 %v4746
      %4763 = vmatprep.subr.bf16.mxu0 0
      %4764 = vmatpush1.bf16.msra.mxu0 %v4745
      %4765 = vmatprep.subr.bf16.mxu0 0
      %4766 = vmatpush1.bf16.msra.mxu0 %v4744
      %4767 = vmatprep.subr.bf16.mxu0 0
      %4768 = vmatpush1.bf16.msra.mxu0 %v4743
      %4769 = vmatprep.subr.bf16.mxu0 0
      %4770 = vmatpush1.bf16.msra.mxu0 %v4742
      %4771 = vmatprep.subr.bf16.mxu0 0
      %4772 = vmatpush1.bf16.msra.mxu0 %v4741
      %4773 = vmatprep.subr.bf16.mxu0 0
      %4774 = vmatpush2.bf16.msra.mxu0 0
      %4775 = vmatprep.subr.bf16.mxu0 0
      %4776 = vmatpush2.bf16.msra.mxu0 0
      %4777 = vmatprep.subr.bf16.mxu0 0
      %4778 = vmatpush2.bf16.msra.mxu0 0
      %4779 = vmatprep.subr.bf16.mxu0 0
      %4780 = vmatpush2.bf16.msra.mxu0 0
      %4781 = vmatprep.subr.bf16.mxu0 0
      %4782 = vmatpush2.bf16.msra.mxu0 0
      %4783 = vmatprep.subr.bf16.mxu0 0
      %4784 = vmatpush2.bf16.msra.mxu0 0
      %4785 = vmatprep.subr.bf16.mxu0 0
      %4786 = vmatpush2.bf16.msra.mxu0 0
      %4787 = vmatprep.subr.bf16.mxu0 0
      %4788 = vmatpush2.bf16.msra.mxu0 0
      %4789 = vmatprep.mubr.bf16.mxu0 0
      %4790 = vmatmul.mubr.bf16.gmra.mxu0 %v4617
      %v4791 = vpop.f32.mrf.mxu0
      %v4792 = vadd.f32 0.0, %v4791
      %v4793 = vpop.f32.mrf.mxu0
      %v4794 = vpop.f32.mrf.mxu0
      %v4795 = vadd.f32 0.0, %v4794
      %v4796 = vpop.f32.mrf.mxu0
      %4797 = vmatprep.mubr.bf16.mxu0 0
      %4798 = vmatmul.mubr.bf16.gmra.mxu0 %v4621
      %v4799 = vpop.f32.mrf.mxu0
      %v4800 = vadd.f32 0.0, %v4799
      %v4801 = vpop.f32.mrf.mxu0
      %v4802 = vpop.f32.mrf.mxu0
      %v4803 = vadd.f32 0.0, %v4802
      %v4804 = vpop.f32.mrf.mxu0
      %4805 = vmatprep.mubr.bf16.mxu0 0
      %4806 = vmatmul.mubr.bf16.gmra.mxu0 %v4625
      %v4807 = vpop.f32.mrf.mxu0
      %v4808 = vadd.f32 0.0, %v4807
      %v4809 = vpop.f32.mrf.mxu0
      %v4810 = vpop.f32.mrf.mxu0
      %v4811 = vadd.f32 0.0, %v4810
      %v4812 = vpop.f32.mrf.mxu0
      %4813 = vmatprep.mubr.bf16.mxu0 0
      %4814 = vmatmul.mubr.bf16.gmra.mxu0 %v4629
      %v4815 = vpop.f32.mrf.mxu0
      %v4816 = vadd.f32 0.0, %v4815
      %v4817 = vpop.f32.mrf.mxu0
      %v4818 = vpop.f32.mrf.mxu0
      %v4819 = vadd.f32 0.0, %v4818
      %v4820 = vpop.f32.mrf.mxu0
      %4821 = vmatprep.mubr.bf16.mxu0 0
      %4822 = vmatmul.mubr.bf16.gmra.mxu0 %v4633
      %v4823 = vpop.f32.mrf.mxu0
      %v4824 = vadd.f32 0.0, %v4823
      %v4825 = vpop.f32.mrf.mxu0
      %v4826 = vpop.f32.mrf.mxu0
      %v4827 = vadd.f32 0.0, %v4826
      %v4828 = vpop.f32.mrf.mxu0
      %4829 = vmatprep.mubr.bf16.mxu0 0
      %4830 = vmatmul.mubr.bf16.gmra.mxu0 %v4637
      %v4831 = vpop.f32.mrf.mxu0
      %v4832 = vadd.f32 0.0, %v4831
      %v4833 = vpop.f32.mrf.mxu0
      %v4834 = vpop.f32.mrf.mxu0
      %v4835 = vadd.f32 0.0, %v4834
      %v4836 = vpop.f32.mrf.mxu0
      %4837 = vmatprep.mubr.bf16.mxu0 0
      %4838 = vmatmul.mubr.bf16.gmra.mxu0 %v4641
      %v4839 = vpop.f32.mrf.mxu0
      %v4840 = vadd.f32 0.0, %v4839
      %v4841 = vpop.f32.mrf.mxu0
      %v4842 = vpop.f32.mrf.mxu0
      %v4843 = vadd.f32 0.0, %v4842
      %v4844 = vpop.f32.mrf.mxu0
      %4845 = vmatprep.mubr.bf16.mxu0 0
      %4846 = vmatmul.mubr.bf16.gmra.mxu0 %v4645
      %v4847 = vpop.f32.mrf.mxu0
      %v4848 = vadd.f32 0.0, %v4847
      %v4849 = vpop.f32.mrf.mxu0
      %v4850 = vpop.f32.mrf.mxu0
      %v4851 = vadd.f32 0.0, %v4850
      %v4852 = vpop.f32.mrf.mxu0
      %4853 = vmatprep.mubr.bf16.mxu0 0
      %4854 = vmatmul.mubr.bf16.gmra.mxu0 %v4649
      %v4855 = vpop.f32.mrf.mxu0
      %v4856 = vadd.f32 0.0, %v4855
      %v4857 = vpop.f32.mrf.mxu0
      %v4858 = vpop.f32.mrf.mxu0
      %v4859 = vadd.f32 0.0, %v4858
      %v4860 = vpop.f32.mrf.mxu0
      %4861 = vmatprep.mubr.bf16.mxu0 0
      %4862 = vmatmul.mubr.bf16.gmra.mxu0 %v4653
      %v4863 = vpop.f32.mrf.mxu0
      %v4864 = vadd.f32 0.0, %v4863
      %v4865 = vpop.f32.mrf.mxu0
      %v4866 = vpop.f32.mrf.mxu0
      %v4867 = vadd.f32 0.0, %v4866
      %v4868 = vpop.f32.mrf.mxu0
      %4869 = vmatprep.mubr.bf16.mxu0 0
      %4870 = vmatmul.mubr.bf16.gmra.mxu0 %v4657
      %v4871 = vpop.f32.mrf.mxu0
      %v4872 = vadd.f32 0.0, %v4871
      %v4873 = vpop.f32.mrf.mxu0
      %v4874 = vpop.f32.mrf.mxu0
      %v4875 = vadd.f32 0.0, %v4874
      %v4876 = vpop.f32.mrf.mxu0
      %4877 = vmatprep.mubr.bf16.mxu0 0
      %4878 = vmatmul.mubr.bf16.gmra.mxu0 %v4661
      %v4879 = vpop.f32.mrf.mxu0
      %v4880 = vadd.f32 0.0, %v4879
      %v4881 = vpop.f32.mrf.mxu0
      %v4882 = vpop.f32.mrf.mxu0
      %v4883 = vadd.f32 0.0, %v4882
      %v4884 = vpop.f32.mrf.mxu0
      %4885 = vmatprep.mubr.bf16.mxu0 0
      %4886 = vmatmul.mubr.bf16.gmra.mxu0 %v4665
      %v4887 = vpop.f32.mrf.mxu0
      %v4888 = vadd.f32 0.0, %v4887
      %v4889 = vpop.f32.mrf.mxu0
      %v4890 = vpop.f32.mrf.mxu0
      %v4891 = vadd.f32 0.0, %v4890
      %v4892 = vpop.f32.mrf.mxu0
      %4893 = vmatprep.mubr.bf16.mxu0 0
      %4894 = vmatmul.mubr.bf16.gmra.mxu0 %v4669
      %v4895 = vpop.f32.mrf.mxu0
      %v4896 = vadd.f32 0.0, %v4895
      %v4897 = vpop.f32.mrf.mxu0
      %v4898 = vpop.f32.mrf.mxu0
      %v4899 = vadd.f32 0.0, %v4898
      %v4900 = vpop.f32.mrf.mxu0
      %4901 = vmatprep.mubr.bf16.mxu0 0
      %4902 = vmatmul.mubr.bf16.gmra.mxu0 %v4673
      %v4903 = vpop.f32.mrf.mxu0
      %v4904 = vadd.f32 0.0, %v4903
      %v4905 = vpop.f32.mrf.mxu0
      %v4906 = vpop.f32.mrf.mxu0
      %v4907 = vadd.f32 0.0, %v4906
      %v4908 = vpop.f32.mrf.mxu0
      %4909 = vmatprep.mubr.bf16.mxu0 0
      %4910 = vmatmul.mubr.bf16.gmra.mxu0 %v4677
      %v4911 = vpop.f32.mrf.mxu0
      %v4912 = vadd.f32 0.0, %v4911
      %v4913 = vpop.f32.mrf.mxu0
      %v4914 = vpop.f32.mrf.mxu0
      %v4915 = vadd.f32 0.0, %v4914
      %v4916 = vpop.f32.mrf.mxu0
      %4917 = vmatprep.mubr.bf16.mxu0 0
      %4918 = vmatmul.mubr.bf16.gmra.mxu0 %v4681
      %v4919 = vpop.f32.mrf.mxu0
      %v4920 = vadd.f32 0.0, %v4919
      %v4921 = vpop.f32.mrf.mxu0
      %v4922 = vpop.f32.mrf.mxu0
      %v4923 = vadd.f32 0.0, %v4922
      %v4924 = vpop.f32.mrf.mxu0
      %4925 = vmatprep.mubr.bf16.mxu0 0
      %4926 = vmatmul.mubr.bf16.gmra.mxu0 %v4690
      %v4927 = vpop.f32.mrf.mxu0
      %v4928 = vadd.f32 0.0, %v4927
      %v4929 = vpop.f32.mrf.mxu0
      %v4930 = vpop.f32.mrf.mxu0
      %v4931 = vadd.f32 0.0, %v4930
      %v4932 = vpop.f32.mrf.mxu0
      %4933 = vdwg.mxu0
      %v4934 = vadd.f32 %v4549, %v4792
      %v4935 = vadd.f32 %v4550, %v4795
      %v4936 = vadd.f32 %v4551, %v4800
      %v4937 = vadd.f32 %v4552, %v4803
      %v4938 = vadd.f32 %v4553, %v4808
      %v4939 = vadd.f32 %v4554, %v4811
      %v4940 = vadd.f32 %v4555, %v4816
      %v4941 = vadd.f32 %v4556, %v4819
      %v4942 = vadd.f32 %v4557, %v4824
      %v4943 = vadd.f32 %v4558, %v4827
      %v4944 = vadd.f32 %v4559, %v4832
      %v4945 = vadd.f32 %v4560, %v4835
      %v4946 = vadd.f32 %v4561, %v4840
      %v4947 = vadd.f32 %v4562, %v4843
      %v4948 = vadd.f32 %v4563, %v4848
      %v4949 = vadd.f32 %v4564, %v4851
      %v4950 = vadd.f32 %v4565, %v4856
      %v4951 = vadd.f32 %v4566, %v4859
      %v4952 = vadd.f32 %v4567, %v4864
      %v4953 = vadd.f32 %v4568, %v4867
      %v4954 = vadd.f32 %v4569, %v4872
      %v4955 = vadd.f32 %v4570, %v4875
      %v4956 = vadd.f32 %v4571, %v4880
      %v4957 = vadd.f32 %v4572, %v4883
      %v4958 = vadd.f32 %v4573, %v4888
      %v4959 = vadd.f32 %v4574, %v4891
      %v4960 = vadd.f32 %v4575, %v4896
      %v4961 = vadd.f32 %v4576, %v4899
      %v4962 = vadd.f32 %v4577, %v4904
      %v4963 = vadd.f32 %v4578, %v4907
      %v4964 = vadd.f32 %v4579, %v4912
      %v4965 = vadd.f32 %v4580, %v4915
      %v4966 = vadd.f32 %v4581, %v4920
      %v4967 = vadd.f32 %v4582, %v4923
      %v4968 = vadd.f32 %v4583, %v4928
      %v4969 = vadd.f32 %v4584, %v4931
      %v4970 = vld [vmem:[%s2] sm:$0x1]
      %v4972 = vlaneseq
      %v4973 = vshrl.u32 %v4972, 7
      %v4974 = vsub.s32 0, %v4973
      %v4975 = vrot.slane %v4970, %v4974
      %v4977 = vadd.f32 %v4934, %v4975
      %v4978 = vadd.f32 %v4935, %v4975
      %v4979 = vadd.f32 %v4936, %v4975
      %v4980 = vadd.f32 %v4937, %v4975
      %v4981 = vadd.f32 %v4938, %v4975
      %v4982 = vadd.f32 %v4939, %v4975
      %v4983 = vadd.f32 %v4940, %v4975
      %v4984 = vadd.f32 %v4941, %v4975
      %v4985 = vadd.f32 %v4942, %v4975
      %v4986 = vadd.f32 %v4943, %v4975
      %v4987 = vadd.f32 %v4944, %v4975
      %v4988 = vadd.f32 %v4945, %v4975
      %v4989 = vadd.f32 %v4946, %v4975
      %v4990 = vadd.f32 %v4947, %v4975
      %v4991 = vadd.f32 %v4948, %v4975
      %v4992 = vadd.f32 %v4949, %v4975
      %v4993 = vadd.f32 %v4950, %v4975
      %v4994 = vadd.f32 %v4951, %v4975
      %v4995 = vadd.f32 %v4952, %v4975
      %v4996 = vadd.f32 %v4953, %v4975
      %v4997 = vadd.f32 %v4954, %v4975
      %v4998 = vadd.f32 %v4955, %v4975
      %v4999 = vadd.f32 %v4956, %v4975
      %v5000 = vadd.f32 %v4957, %v4975
      %v5001 = vadd.f32 %v4958, %v4975
      %v5002 = vadd.f32 %v4959, %v4975
      %v5003 = vadd.f32 %v4960, %v4975
      %v5004 = vadd.f32 %v4961, %v4975
      %v5005 = vadd.f32 %v4962, %v4975
      %v5006 = vadd.f32 %v4963, %v4975
      %v5007 = vadd.f32 %v4964, %v4975
      %v5008 = vadd.f32 %v4965, %v4975
      %v5009 = vadd.f32 %v4966, %v4975
      %v5010 = vadd.f32 %v4967, %v4975
      %v5011 = vadd.f32 %v4968, %v4975
      %v5012 = vadd.f32 %v4969, %v4975
      %v5013 = vmax.f32 %v4977, 0.0
      %v5014 = vmax.f32 %v4978, 0.0
      %v5015 = vmax.f32 %v4979, 0.0
      %v5016 = vmax.f32 %v4980, 0.0
      %v5017 = vmax.f32 %v4981, 0.0
      %v5018 = vmax.f32 %v4982, 0.0
      %v5019 = vmax.f32 %v4983, 0.0
      %v5020 = vmax.f32 %v4984, 0.0
      %v5021 = vmax.f32 %v4985, 0.0
      %v5022 = vmax.f32 %v4986, 0.0
      %v5023 = vmax.f32 %v4987, 0.0
      %v5024 = vmax.f32 %v4988, 0.0
      %v5025 = vmax.f32 %v4989, 0.0
      %v5026 = vmax.f32 %v4990, 0.0
      %v5027 = vmax.f32 %v4991, 0.0
      %v5028 = vmax.f32 %v4992, 0.0
      %v5029 = vmax.f32 %v4993, 0.0
      %v5030 = vmax.f32 %v4994, 0.0
      %v5031 = vmax.f32 %v4995, 0.0
      %v5032 = vmax.f32 %v4996, 0.0
      %v5033 = vmax.f32 %v4997, 0.0
      %v5034 = vmax.f32 %v4998, 0.0
      %v5035 = vmax.f32 %v4999, 0.0
      %v5036 = vmax.f32 %v5000, 0.0
      %v5037 = vmax.f32 %v5001, 0.0
      %v5038 = vmax.f32 %v5002, 0.0
      %v5039 = vmax.f32 %v5003, 0.0
      %v5040 = vmax.f32 %v5004, 0.0
      %v5041 = vmax.f32 %v5005, 0.0
      %v5042 = vmax.f32 %v5006, 0.0
      %v5043 = vmax.f32 %v5007, 0.0
      %v5044 = vmax.f32 %v5008, 0.0
      %v5045 = vmax.f32 %v5009, 0.0
      %v5046 = vmax.f32 %v5010, 0.0
      %v5047 = vmax.f32 %v5011, 0.0
      %v5048 = vmax.f32 %v5012, 0.0
      %v5049 = vsel %vm911, 1, 0
      %v5050 = vsel %vm912, 1, 0
      %v5051 = vsel %vm913, 1, 0
      %v5052 = vsel %vm914, 1, 0
      %v5053 = vsel %vm915, 1, 0
      %v5054 = vsel %vm916, 1, 0
      %v5055 = vsel %vm917, 1, 0
      %v5056 = vsel %vm918, 1, 0
      %v5057 = vsel %vm919, 1, 0
      %v5058 = vsel %vm920, 1, 0
      %v5059 = vsel %vm921, 1, 0
      %v5060 = vsel %vm922, 1, 0
      %v5061 = vsel %vm923, 1, 0
      %v5062 = vsel %vm924, 1, 0
      %v5063 = vsel %vm925, 1, 0
      %v5064 = vsel %vm926, 1, 0
      %v5065 = vsel %vm927, 1, 0
      %v5066 = vsel %vm928, 1, 0
      %v5067 = vsel %vm929, 1, 0
      %v5068 = vsel %vm930, 1, 0
      %v5069 = vsel %vm931, 1, 0
      %v5070 = vsel %vm932, 1, 0
      %v5071 = vsel %vm933, 1, 0
      %v5072 = vsel %vm934, 1, 0
      %v5073 = vsel %vm935, 1, 0
      %v5074 = vsel %vm936, 1, 0
      %v5075 = vsel %vm937, 1, 0
      %v5076 = vsel %vm938, 1, 0
      %v5077 = vsel %vm939, 1, 0
      %v5078 = vsel %vm940, 1, 0
      %v5079 = vsel %vm941, 1, 0
      %v5080 = vsel %vm942, 1, 0
      %v5081 = vsel %vm943, 1, 0
      %v5082 = vsel %vm944, 1, 0
      %v5083 = vsel %vm945, 1, 0
      %v5084 = vsel %vm946, 1, 0
      %vm5085 = vcmp.eq.s32.totalorder %v5049, 1
      %vm5086 = vcmp.eq.s32.totalorder %v5050, 1
      %vm5087 = vcmp.eq.s32.totalorder %v5051, 1
      %vm5088 = vcmp.eq.s32.totalorder %v5052, 1
      %vm5089 = vcmp.eq.s32.totalorder %v5053, 1
      %vm5090 = vcmp.eq.s32.totalorder %v5054, 1
      %vm5091 = vcmp.eq.s32.totalorder %v5055, 1
      %vm5092 = vcmp.eq.s32.totalorder %v5056, 1
      %vm5093 = vcmp.eq.s32.totalorder %v5057, 1
      %vm5094 = vcmp.eq.s32.totalorder %v5058, 1
      %vm5095 = vcmp.eq.s32.totalorder %v5059, 1
      %vm5096 = vcmp.eq.s32.totalorder %v5060, 1
      %vm5097 = vcmp.eq.s32.totalorder %v5061, 1
      %vm5098 = vcmp.eq.s32.totalorder %v5062, 1
      %vm5099 = vcmp.eq.s32.totalorder %v5063, 1
      %vm5100 = vcmp.eq.s32.totalorder %v5064, 1
      %vm5101 = vcmp.eq.s32.totalorder %v5065, 1
      %vm5102 = vcmp.eq.s32.totalorder %v5066, 1
      %vm5103 = vcmp.eq.s32.totalorder %v5067, 1
      %vm5104 = vcmp.eq.s32.totalorder %v5068, 1
      %vm5105 = vcmp.eq.s32.totalorder %v5069, 1
      %vm5106 = vcmp.eq.s32.totalorder %v5070, 1
      %vm5107 = vcmp.eq.s32.totalorder %v5071, 1
      %vm5108 = vcmp.eq.s32.totalorder %v5072, 1
      %vm5109 = vcmp.eq.s32.totalorder %v5073, 1
      %vm5110 = vcmp.eq.s32.totalorder %v5074, 1
      %vm5111 = vcmp.eq.s32.totalorder %v5075, 1
      %vm5112 = vcmp.eq.s32.totalorder %v5076, 1
      %vm5113 = vcmp.eq.s32.totalorder %v5077, 1
      %vm5114 = vcmp.eq.s32.totalorder %v5078, 1
      %vm5115 = vcmp.eq.s32.totalorder %v5079, 1
      %vm5116 = vcmp.eq.s32.totalorder %v5080, 1
      %vm5117 = vcmp.eq.s32.totalorder %v5081, 1
      %vm5118 = vcmp.eq.s32.totalorder %v5082, 1
      %vm5119 = vcmp.eq.s32.totalorder %v5083, 1
      %vm5120 = vcmp.eq.s32.totalorder %v5084, 1
      %v5121 = vsel %vm5085, %v5013, 0.0
      %v5122 = vsel %vm5086, %v5014, 0.0
      %v5123 = vsel %vm5087, %v5015, 0.0
      %v5124 = vsel %vm5088, %v5016, 0.0
      %v5125 = vsel %vm5089, %v5017, 0.0
      %v5126 = vsel %vm5090, %v5018, 0.0
      %v5127 = vsel %vm5091, %v5019, 0.0
      %v5128 = vsel %vm5092, %v5020, 0.0
      %v5129 = vsel %vm5093, %v5021, 0.0
      %v5130 = vsel %vm5094, %v5022, 0.0
      %v5131 = vsel %vm5095, %v5023, 0.0
      %v5132 = vsel %vm5096, %v5024, 0.0
      %v5133 = vsel %vm5097, %v5025, 0.0
      %v5134 = vsel %vm5098, %v5026, 0.0
      %v5135 = vsel %vm5099, %v5027, 0.0
      %v5136 = vsel %vm5100, %v5028, 0.0
      %v5137 = vsel %vm5101, %v5029, 0.0
      %v5138 = vsel %vm5102, %v5030, 0.0
      %v5139 = vsel %vm5103, %v5031, 0.0
      %v5140 = vsel %vm5104, %v5032, 0.0
      %v5141 = vsel %vm5105, %v5033, 0.0
      %v5142 = vsel %vm5106, %v5034, 0.0
      %v5143 = vsel %vm5107, %v5035, 0.0
      %v5144 = vsel %vm5108, %v5036, 0.0
      %v5145 = vsel %vm5109, %v5037, 0.0
      %v5146 = vsel %vm5110, %v5038, 0.0
      %v5147 = vsel %vm5111, %v5039, 0.0
      %v5148 = vsel %vm5112, %v5040, 0.0
      %v5149 = vsel %vm5113, %v5041, 0.0
      %v5150 = vsel %vm5114, %v5042, 0.0
      %v5151 = vsel %vm5115, %v5043, 0.0
      %v5152 = vsel %vm5116, %v5044, 0.0
      %v5153 = vsel %vm5117, %v5045, 0.0
      %v5154 = vsel %vm5118, %v5046, 0.0
      %v5155 = vsel %vm5119, %v5047, 0.0
      %v5156 = vsel %vm5120, %v5048, 0.0
      %5157 = vst [vmem:[#allocation2] sm:$0xf] 0
      %5158 = vst [vmem:[#allocation2 + $0x4] sm:$0xf] 0
      %5159 = vst [vmem:[#allocation2 + $0x8] sm:$0xf] 0
      %5160 = vst [vmem:[#allocation2 + $0x9c] sm:$0xf] 0
      %5161 = vst [vmem:[#allocation2 + $0xa0] sm:$0xf] 0
      %5162 = vst [vmem:[#allocation2 + $0xa4] sm:$0xf] 0
      %v5163 = vpack.c.bf16 %v5122, %v5121
      %v5164 = vpack.c.bf16 %v5124, %v5123
      %v5165 = vpack.c.bf16 %v5126, %v5125
      %v5166 = vpack.c.bf16 %v5128, %v5127
      %v5167 = vpack.c.bf16 %v5130, %v5129
      %v5168 = vpack.c.bf16 %v5132, %v5131
      %v5169 = vpack.c.bf16 %v5134, %v5133
      %v5170 = vpack.c.bf16 %v5136, %v5135
      %v5171 = vpack.c.bf16 %v5138, %v5137
      %v5172 = vpack.c.bf16 %v5140, %v5139
      %v5173 = vpack.c.bf16 %v5142, %v5141
      %v5174 = vpack.c.bf16 %v5144, %v5143
      %v5175 = vpack.c.bf16 %v5146, %v5145
      %v5176 = vpack.c.bf16 %v5148, %v5147
      %v5177 = vpack.c.bf16 %v5150, %v5149
      %v5178 = vpack.c.bf16 %v5152, %v5151
      %v5179 = vpack.c.bf16 %v5154, %v5153
      %v5180 = vpack.c.bf16 %v5156, %v5155
      %v5199 = vunpack.c.l.b16 %v5163
      %v5200 = vunpack.c.h.b16 %v5163
      %v5201 = vunpack.c.l.b16 %v5164
      %v5202 = vunpack.c.h.b16 %v5164
      %v5203 = vunpack.c.l.b16 %v5165
      %v5204 = vunpack.c.h.b16 %v5165
      %v5205 = vunpack.c.l.b16 %v5166
      %v5206 = vunpack.c.h.b16 %v5166
      %v5207 = vunpack.c.l.b16 %v5167
      %v5208 = vunpack.c.h.b16 %v5167
      %v5209 = vunpack.c.l.b16 %v5168
      %v5210 = vunpack.c.h.b16 %v5168
      %v5211 = vunpack.c.l.b16 %v5169
      %v5212 = vunpack.c.h.b16 %v5169
      %v5213 = vunpack.c.l.b16 %v5170
      %v5214 = vunpack.c.h.b16 %v5170
      %v5215 = vunpack.c.l.b16 %v5171
      %v5216 = vunpack.c.h.b16 %v5171
      %v5217 = vunpack.c.l.b16 %v5172
      %v5218 = vunpack.c.h.b16 %v5172
      %v5219 = vunpack.c.l.b16 %v5173
      %v5220 = vunpack.c.h.b16 %v5173
      %v5221 = vunpack.c.l.b16 %v5174
      %v5222 = vunpack.c.h.b16 %v5174
      %v5223 = vunpack.c.l.b16 %v5175
      %v5224 = vunpack.c.h.b16 %v5175
      %v5225 = vunpack.c.l.b16 %v5176
      %v5226 = vunpack.c.h.b16 %v5176
      %v5227 = vunpack.c.l.b16 %v5177
      %v5228 = vunpack.c.h.b16 %v5177
      %v5229 = vunpack.c.l.b16 %v5178
      %v5230 = vunpack.c.h.b16 %v5178
      %v5231 = vunpack.c.l.b16 %v5179
      %v5232 = vunpack.c.h.b16 %v5179
      %v5233 = vunpack.c.l.b16 %v5180
      %v5234 = vunpack.c.h.b16 %v5180
      %v5235 = vpack.c.b16 %v5199, %v5199
      %v5236 = vpack.c.b16 %v5200, %v5200
      %v5237 = vpack.c.b16 %v5201, %v5201
      %v5238 = vpack.c.b16 %v5202, %v5202
      %v5239 = vpack.c.b16 %v5203, %v5203
      %v5240 = vpack.c.b16 %v5204, %v5204
      %v5241 = vpack.c.b16 %v5205, %v5205
      %v5242 = vpack.c.b16 %v5206, %v5206
      %v5243 = vpack.c.b16 %v5207, %v5207
      %v5244 = vpack.c.b16 %v5208, %v5208
      %v5245 = vpack.c.b16 %v5209, %v5209
      %v5246 = vpack.c.b16 %v5210, %v5210
      %v5247 = vpack.c.b16 %v5211, %v5211
      %v5248 = vpack.c.b16 %v5212, %v5212
      %v5249 = vpack.c.b16 %v5213, %v5213
      %v5250 = vpack.c.b16 %v5214, %v5214
      %v5251 = vpack.c.b16 %v5215, %v5215
      %v5252 = vpack.c.b16 %v5216, %v5216
      %v5253 = vpack.c.b16 %v5217, %v5217
      %v5254 = vpack.c.b16 %v5218, %v5218
      %v5255 = vpack.c.b16 %v5219, %v5219
      %v5256 = vpack.c.b16 %v5220, %v5220
      %v5257 = vpack.c.b16 %v5221, %v5221
      %v5258 = vpack.c.b16 %v5222, %v5222
      %v5259 = vpack.c.b16 %v5223, %v5223
      %v5260 = vpack.c.b16 %v5224, %v5224
      %v5261 = vpack.c.b16 %v5225, %v5225
      %v5262 = vpack.c.b16 %v5226, %v5226
      %v5263 = vpack.c.b16 %v5227, %v5227
      %v5264 = vpack.c.b16 %v5228, %v5228
      %v5265 = vpack.c.b16 %v5229, %v5229
      %v5266 = vpack.c.b16 %v5230, %v5230
      %v5267 = vpack.c.b16 %v5231, %v5231
      %v5268 = vpack.c.b16 %v5232, %v5232
      %v5269 = vpack.c.b16 %v5233, %v5233
      %v5270 = vpack.c.b16 %v5234, %v5234
      %5307 = vst [vmem:[#allocation2 + $0xc] sm:$0xf] %v5235
      %5308 = vst [vmem:[#allocation2 + $0x10] sm:$0xf] %v5236
      %5309 = vst [vmem:[#allocation2 + $0x14] sm:$0xf] %v5237
      %5310 = vst [vmem:[#allocation2 + $0x18] sm:$0xf] %v5238
      %5311 = vst [vmem:[#allocation2 + $0x1c] sm:$0xf] %v5239
      %5312 = vst [vmem:[#allocation2 + $0x20] sm:$0xf] %v5240
      %5313 = vst [vmem:[#allocation2 + $0x24] sm:$0xf] %v5241
      %5314 = vst [vmem:[#allocation2 + $0x28] sm:$0xf] %v5242
      %5315 = vst [vmem:[#allocation2 + $0x2c] sm:$0xf] %v5243
      %5316 = vst [vmem:[#allocation2 + $0x30] sm:$0xf] %v5244
      %5317 = vst [vmem:[#allocation2 + $0x34] sm:$0xf] %v5245
      %5318 = vst [vmem:[#allocation2 + $0x38] sm:$0xf] %v5246
      %5319 = vst [vmem:[#allocation2 + $0x3c] sm:$0xf] %v5247
      %5320 = vst [vmem:[#allocation2 + $0x40] sm:$0xf] %v5248
      %5321 = vst [vmem:[#allocation2 + $0x44] sm:$0xf] %v5249
      %5322 = vst [vmem:[#allocation2 + $0x48] sm:$0xf] %v5250
      %5323 = vst [vmem:[#allocation2 + $0x4c] sm:$0xf] %v5251
      %5324 = vst [vmem:[#allocation2 + $0x50] sm:$0xf] %v5252
      %5325 = vst [vmem:[#allocation2 + $0x54] sm:$0xf] %v5253
      %5326 = vst [vmem:[#allocation2 + $0x58] sm:$0xf] %v5254
      %5327 = vst [vmem:[#allocation2 + $0x5c] sm:$0xf] %v5255
      %5328 = vst [vmem:[#allocation2 + $0x60] sm:$0xf] %v5256
      %5329 = vst [vmem:[#allocation2 + $0x64] sm:$0xf] %v5257
      %5330 = vst [vmem:[#allocation2 + $0x68] sm:$0xf] %v5258
      %5331 = vst [vmem:[#allocation2 + $0x6c] sm:$0xf] %v5259
      %5332 = vst [vmem:[#allocation2 + $0x70] sm:$0xf] %v5260
      %5333 = vst [vmem:[#allocation2 + $0x74] sm:$0xf] %v5261
      %5334 = vst [vmem:[#allocation2 + $0x78] sm:$0xf] %v5262
      %5335 = vst [vmem:[#allocation2 + $0x7c] sm:$0xf] %v5263
      %5336 = vst [vmem:[#allocation2 + $0x80] sm:$0xf] %v5264
      %5337 = vst [vmem:[#allocation2 + $0x84] sm:$0xf] %v5265
      %5338 = vst [vmem:[#allocation2 + $0x88] sm:$0xf] %v5266
      %5339 = vst [vmem:[#allocation2 + $0x8c] sm:$0xf] %v5267
      %5340 = vst [vmem:[#allocation2 + $0x90] sm:$0xf] %v5268
      %5341 = vst [vmem:[#allocation2 + $0x94] sm:$0xf] %v5269
      %5342 = vst [vmem:[#allocation2 + $0x98] sm:$0xf] %v5270
      %v5343 = vld [vmem:[#allocation2] sm:$0xc]
      %v5344 = vld [vmem:[#allocation2 + $0x4] sm:$0xf]
      %v5345 = vld [vmem:[#allocation2 + $0x8] sm:$0xf]
      %v5346 = vld [vmem:[#allocation2 + $0xc] sm:$0xf]
      %v5347 = vld [vmem:[#allocation2 + $0x10] sm:$0xf]
      %v5348 = vld [vmem:[#allocation2 + $0x14] sm:$0xf]
      %v5349 = vld [vmem:[#allocation2 + $0x18] sm:$0xf]
      %v5350 = vld [vmem:[#allocation2 + $0x1c] sm:$0xf]
      %v5351 = vld [vmem:[#allocation2 + $0x20] sm:$0xf]
      %v5352 = vld [vmem:[#allocation2 + $0x24] sm:$0xf]
      %v5353 = vld [vmem:[#allocation2 + $0x28] sm:$0xf]
      %v5354 = vld [vmem:[#allocation2 + $0x2c] sm:$0xf]
      %v5355 = vld [vmem:[#allocation2 + $0x30] sm:$0xf]
      %v5356 = vld [vmem:[#allocation2 + $0x34] sm:$0xf]
      %v5357 = vld [vmem:[#allocation2 + $0x38] sm:$0xf]
      %v5358 = vld [vmem:[#allocation2 + $0x3c] sm:$0xf]
      %v5359 = vld [vmem:[#allocation2 + $0x40] sm:$0xf]
      %v5360 = vld [vmem:[#allocation2 + $0x44] sm:$0xf]
      %v5361 = vld [vmem:[#allocation2 + $0x48] sm:$0xf]
      %v5362 = vld [vmem:[#allocation2 + $0x4c] sm:$0xf]
      %v5363 = vld [vmem:[#allocation2 + $0x50] sm:$0xf]
      %v5364 = vld [vmem:[#allocation2 + $0x54] sm:$0xf]
      %v5365 = vld [vmem:[#allocation2 + $0x58] sm:$0xf]
      %v5366 = vld [vmem:[#allocation2 + $0x5c] sm:$0xf]
      %v5367 = vld [vmem:[#allocation2 + $0x60] sm:$0xf]
      %v5368 = vld [vmem:[#allocation2 + $0x64] sm:$0xf]
      %v5369 = vld [vmem:[#allocation2 + $0x68] sm:$0xf]
      %v5370 = vld [vmem:[#allocation2 + $0x6c] sm:$0xf]
      %v5371 = vld [vmem:[#allocation2 + $0x70] sm:$0xf]
      %v5372 = vld [vmem:[#allocation2 + $0x74] sm:$0xf]
      %v5373 = vld [vmem:[#allocation2 + $0x78] sm:$0xf]
      %v5374 = vld [vmem:[#allocation2 + $0x7c] sm:$0xf]
      %v5375 = vld [vmem:[#allocation2 + $0x80] sm:$0xf]
      %v5376 = vld [vmem:[#allocation2 + $0x84] sm:$0xf]
      %v5377 = vld [vmem:[#allocation2 + $0x88] sm:$0xf]
      %v5378 = vld [vmem:[#allocation2 + $0x8c] sm:$0xf]
      %v5379 = vld [vmem:[#allocation2 + $0x90] sm:$0x7]
      %v5380 = vld [vmem:[%s3] sm:$0xf]
      %v5381 = vld [vmem:[%s3 + $0x4] sm:$0xf]
      %v5382 = vld [vmem:[%s3 + $0x8] sm:$0xf]
      %v5383 = vld [vmem:[%s3 + $0xc] sm:$0xf]
      %v5384 = vld [vmem:[%s3 + $0x10] sm:$0xf]
      %v5385 = vld [vmem:[%s3 + $0x14] sm:$0xf]
      %v5386 = vld [vmem:[%s3 + $0x18] sm:$0xf]
      %v5387 = vld [vmem:[%s3 + $0x1c] sm:$0xf]
      %v5388 = vld [vmem:[%s3 + $0x20] sm:$0xf]
      %v5389 = vld [vmem:[%s3 + $0x24] sm:$0xf]
      %v5390 = vld [vmem:[%s3 + $0x28] sm:$0xf]
      %v5391 = vld [vmem:[%s3 + $0x2c] sm:$0xf]
      %v5392 = vld [vmem:[%s3 + $0x30] sm:$0xf]
      %v5393 = vld [vmem:[%s3 + $0x34] sm:$0xf]
      %v5394 = vld [vmem:[%s3 + $0x38] sm:$0xf]
      %v5395 = vld [vmem:[%s3 + $0x3c] sm:$0xf]
      %v5396 = vld [vmem:[#allocation2] sm:$0x8]
      %v5397 = vld [vmem:[%s3 + $0x40] sm:$0xf]
      %v5398 = vld [vmem:[%s3 + $0x44] sm:$0xf]
      %v5399 = vld [vmem:[%s3 + $0x48] sm:$0xf]
      %v5400 = vld [vmem:[%s3 + $0x4c] sm:$0xf]
      %v5401 = vld [vmem:[%s3 + $0x50] sm:$0xf]
      %v5402 = vld [vmem:[%s3 + $0x54] sm:$0xf]
      %v5403 = vld [vmem:[%s3 + $0x58] sm:$0xf]
      %v5404 = vld [vmem:[%s3 + $0x5c] sm:$0xf]
      %v5405 = vld [vmem:[%s3 + $0x60] sm:$0xf]
      %v5406 = vld [vmem:[%s3 + $0x64] sm:$0xf]
      %v5407 = vld [vmem:[%s3 + $0x68] sm:$0xf]
      %v5408 = vld [vmem:[%s3 + $0x6c] sm:$0xf]
      %v5409 = vld [vmem:[%s3 + $0x70] sm:$0xf]
      %v5410 = vld [vmem:[%s3 + $0x74] sm:$0xf]
      %v5411 = vld [vmem:[%s3 + $0x78] sm:$0xf]
      %v5412 = vld [vmem:[%s3 + $0x7c] sm:$0xf]
      %v5450 = vunpack.c.l.b16 %v5396
      %v5451 = vunpack.c.l.b16 %v5344
      %v5452 = vunpack.c.l.b16 %v5345
      %v5453 = vunpack.c.l.b16 %v5346
      %v5454 = vunpack.c.l.b16 %v5347
      %v5455 = vunpack.c.l.b16 %v5348
      %v5456 = vunpack.c.l.b16 %v5349
      %v5457 = vunpack.c.l.b16 %v5350
      %v5458 = vunpack.c.l.b16 %v5351
      %v5459 = vunpack.c.l.b16 %v5352
      %v5460 = vunpack.c.l.b16 %v5353
      %v5461 = vunpack.c.l.b16 %v5354
      %v5462 = vunpack.c.l.b16 %v5355
      %v5463 = vunpack.c.l.b16 %v5356
      %v5464 = vunpack.c.l.b16 %v5357
      %v5465 = vunpack.c.l.b16 %v5358
      %v5466 = vunpack.c.l.b16 %v5359
      %v5467 = vunpack.c.l.b16 %v5360
      %v5468 = vunpack.c.l.b16 %v5361
      %v5469 = vunpack.c.l.b16 %v5362
      %v5470 = vunpack.c.l.b16 %v5363
      %v5471 = vunpack.c.l.b16 %v5364
      %v5472 = vunpack.c.l.b16 %v5365
      %v5473 = vunpack.c.l.b16 %v5366
      %v5474 = vunpack.c.l.b16 %v5367
      %v5475 = vunpack.c.l.b16 %v5368
      %v5476 = vunpack.c.l.b16 %v5369
      %v5477 = vunpack.c.l.b16 %v5370
      %v5478 = vunpack.c.l.b16 %v5371
      %v5479 = vunpack.c.l.b16 %v5372
      %v5480 = vunpack.c.l.b16 %v5373
      %v5481 = vunpack.c.l.b16 %v5374
      %v5482 = vunpack.c.l.b16 %v5375
      %v5483 = vunpack.c.l.b16 %v5376
      %v5484 = vunpack.c.l.b16 %v5377
      %v5485 = vunpack.c.l.b16 %v5378
      %v5486 = vunpack.c.l.b16 %v5379
      %v5487 = vpack.c.b16 %v5451, %v5450
      %v5488 = vpack.c.b16 %v5453, %v5452
      %v5489 = vpack.c.b16 %v5455, %v5454
      %v5490 = vpack.c.b16 %v5457, %v5456
      %v5491 = vpack.c.b16 %v5459, %v5458
      %v5492 = vpack.c.b16 %v5461, %v5460
      %v5493 = vpack.c.b16 %v5463, %v5462
      %v5494 = vpack.c.b16 %v5465, %v5464
      %v5495 = vpack.c.b16 %v5467, %v5466
      %v5496 = vpack.c.b16 %v5469, %v5468
      %v5497 = vpack.c.b16 %v5471, %v5470
      %v5498 = vpack.c.b16 %v5473, %v5472
      %v5499 = vpack.c.b16 %v5475, %v5474
      %v5500 = vpack.c.b16 %v5477, %v5476
      %v5501 = vpack.c.b16 %v5479, %v5478
      %v5502 = vpack.c.b16 %v5481, %v5480
      %v5503 = vpack.c.b16 %v5483, %v5482
      %v5504 = vpack.c.b16 %v5485, %v5484
      %v5505 = vpack.c.b16 %v5486, %v5486
      %v5506 = vrot.slane %v5487, 3
      %v5507 = vrot.slane %v5488, 3
      %v5508 = vsel %vm1110, %v5506, %v5507
      %v5509 = vrot.slane %v5489, 3
      %v5510 = vsel %vm1110, %v5507, %v5509
      %v5511 = vrot.slane %v5490, 3
      %v5512 = vsel %vm1110, %v5509, %v5511
      %v5513 = vrot.slane %v5491, 3
      %v5514 = vsel %vm1110, %v5511, %v5513
      %v5515 = vrot.slane %v5492, 3
      %v5516 = vsel %vm1110, %v5513, %v5515
      %v5517 = vrot.slane %v5493, 3
      %v5518 = vsel %vm1110, %v5515, %v5517
      %v5519 = vrot.slane %v5494, 3
      %v5520 = vsel %vm1110, %v5517, %v5519
      %v5521 = vrot.slane %v5495, 3
      %v5522 = vsel %vm1110, %v5519, %v5521
      %v5523 = vrot.slane %v5496, 3
      %v5524 = vsel %vm1110, %v5521, %v5523
      %v5525 = vrot.slane %v5497, 3
      %v5526 = vsel %vm1110, %v5523, %v5525
      %v5527 = vrot.slane %v5498, 3
      %v5528 = vsel %vm1110, %v5525, %v5527
      %v5529 = vrot.slane %v5499, 3
      %v5530 = vsel %vm1110, %v5527, %v5529
      %v5531 = vrot.slane %v5500, 3
      %v5532 = vsel %vm1110, %v5529, %v5531
      %v5533 = vrot.slane %v5501, 3
      %v5534 = vsel %vm1110, %v5531, %v5533
      %v5535 = vrot.slane %v5502, 3
      %v5536 = vsel %vm1110, %v5533, %v5535
      %v5537 = vrot.slane %v5503, 3
      %v5538 = vsel %vm1110, %v5535, %v5537
      %v5539 = vrot.slane %v5504, 3
      %v5540 = vsel %vm1110, %v5537, %v5539
      %v5541 = vrot.slane %v5505, 3
      %v5542 = vsel %vm1110, %v5539, %v5541
      %v5577 = vunpack.c.l.b16 %v5397
      %v5578 = vunpack.c.l.b16 %v5398
      %v5579 = vunpack.c.l.b16 %v5399
      %v5580 = vunpack.c.l.b16 %v5400
      %v5581 = vunpack.c.l.b16 %v5401
      %v5582 = vunpack.c.l.b16 %v5402
      %v5583 = vunpack.c.l.b16 %v5403
      %v5584 = vunpack.c.l.b16 %v5404
      %v5585 = vunpack.c.l.b16 %v5405
      %v5586 = vunpack.c.l.b16 %v5406
      %v5587 = vunpack.c.l.b16 %v5407
      %v5588 = vunpack.c.l.b16 %v5408
      %v5589 = vunpack.c.l.b16 %v5409
      %v5590 = vunpack.c.l.b16 %v5410
      %v5591 = vunpack.c.l.b16 %v5411
      %v5592 = vunpack.c.l.b16 %v5412
      %v5593 = vpack.c.b16 %v5578, %v5577
      %v5594 = vpack.c.b16 %v5580, %v5579
      %v5595 = vpack.c.b16 %v5582, %v5581
      %v5596 = vpack.c.b16 %v5584, %v5583
      %v5597 = vpack.c.b16 %v5586, %v5585
      %v5598 = vpack.c.b16 %v5588, %v5587
      %v5599 = vpack.c.b16 %v5590, %v5589
      %v5600 = vpack.c.b16 %v5592, %v5591
      %5609 = vmatprep.subr.bf16.mxu0 0
      %5610 = vmatpush1.bf16.msra.mxu0 %v5600
      %5611 = vmatprep.subr.bf16.mxu0 0
      %5612 = vmatpush1.bf16.msra.mxu0 %v5599
      %5613 = vmatprep.subr.bf16.mxu0 0
      %5614 = vmatpush1.bf16.msra.mxu0 %v5598
      %5615 = vmatprep.subr.bf16.mxu0 0
      %5616 = vmatpush1.bf16.msra.mxu0 %v5597
      %5617 = vmatprep.subr.bf16.mxu0 0
      %5618 = vmatpush1.bf16.msra.mxu0 %v5596
      %5619 = vmatprep.subr.bf16.mxu0 0
      %5620 = vmatpush1.bf16.msra.mxu0 %v5595
      %5621 = vmatprep.subr.bf16.mxu0 0
      %5622 = vmatpush1.bf16.msra.mxu0 %v5594
      %5623 = vmatprep.subr.bf16.mxu0 0
      %5624 = vmatpush1.bf16.msra.mxu0 %v5593
      %5625 = vmatprep.subr.bf16.mxu0 0
      %5626 = vmatpush2.bf16.msra.mxu0 0
      %5627 = vmatprep.subr.bf16.mxu0 0
      %5628 = vmatpush2.bf16.msra.mxu0 0
      %5629 = vmatprep.subr.bf16.mxu0 0
      %5630 = vmatpush2.bf16.msra.mxu0 0
      %5631 = vmatprep.subr.bf16.mxu0 0
      %5632 = vmatpush2.bf16.msra.mxu0 0
      %5633 = vmatprep.subr.bf16.mxu0 0
      %5634 = vmatpush2.bf16.msra.mxu0 0
      %5635 = vmatprep.subr.bf16.mxu0 0
      %5636 = vmatpush2.bf16.msra.mxu0 0
      %5637 = vmatprep.subr.bf16.mxu0 0
      %5638 = vmatpush2.bf16.msra.mxu0 0
      %5639 = vmatprep.subr.bf16.mxu0 0
      %5640 = vmatpush2.bf16.msra.mxu0 0
      %5641 = vmatprep.mubr.bf16.mxu0 0
      %5642 = vmatmul.mubr.bf16.gmra.mxu0 %v5508
      %v5643 = vpop.f32.mrf.mxu0
      %v5644 = vadd.f32 0.0, %v5643
      %v5645 = vpop.f32.mrf.mxu0
      %v5646 = vpop.f32.mrf.mxu0
      %v5647 = vadd.f32 0.0, %v5646
      %v5648 = vpop.f32.mrf.mxu0
      %5649 = vmatprep.mubr.bf16.mxu0 0
      %5650 = vmatmul.mubr.bf16.gmra.mxu0 %v5510
      %v5651 = vpop.f32.mrf.mxu0
      %v5652 = vadd.f32 0.0, %v5651
      %v5653 = vpop.f32.mrf.mxu0
      %v5654 = vpop.f32.mrf.mxu0
      %v5655 = vadd.f32 0.0, %v5654
      %v5656 = vpop.f32.mrf.mxu0
      %5657 = vmatprep.mubr.bf16.mxu0 0
      %5658 = vmatmul.mubr.bf16.gmra.mxu0 %v5512
      %v5659 = vpop.f32.mrf.mxu0
      %v5660 = vadd.f32 0.0, %v5659
      %v5661 = vpop.f32.mrf.mxu0
      %v5662 = vpop.f32.mrf.mxu0
      %v5663 = vadd.f32 0.0, %v5662
      %v5664 = vpop.f32.mrf.mxu0
      %5665 = vmatprep.mubr.bf16.mxu0 0
      %5666 = vmatmul.mubr.bf16.gmra.mxu0 %v5514
      %v5667 = vpop.f32.mrf.mxu0
      %v5668 = vadd.f32 0.0, %v5667
      %v5669 = vpop.f32.mrf.mxu0
      %v5670 = vpop.f32.mrf.mxu0
      %v5671 = vadd.f32 0.0, %v5670
      %v5672 = vpop.f32.mrf.mxu0
      %5673 = vmatprep.mubr.bf16.mxu0 0
      %5674 = vmatmul.mubr.bf16.gmra.mxu0 %v5516
      %v5675 = vpop.f32.mrf.mxu0
      %v5676 = vadd.f32 0.0, %v5675
      %v5677 = vpop.f32.mrf.mxu0
      %v5678 = vpop.f32.mrf.mxu0
      %v5679 = vadd.f32 0.0, %v5678
      %v5680 = vpop.f32.mrf.mxu0
      %5681 = vmatprep.mubr.bf16.mxu0 0
      %5682 = vmatmul.mubr.bf16.gmra.mxu0 %v5518
      %v5683 = vpop.f32.mrf.mxu0
      %v5684 = vadd.f32 0.0, %v5683
      %v5685 = vpop.f32.mrf.mxu0
      %v5686 = vpop.f32.mrf.mxu0
      %v5687 = vadd.f32 0.0, %v5686
      %v5688 = vpop.f32.mrf.mxu0
      %5689 = vmatprep.mubr.bf16.mxu0 0
      %5690 = vmatmul.mubr.bf16.gmra.mxu0 %v5520
      %v5691 = vpop.f32.mrf.mxu0
      %v5692 = vadd.f32 0.0, %v5691
      %v5693 = vpop.f32.mrf.mxu0
      %v5694 = vpop.f32.mrf.mxu0
      %v5695 = vadd.f32 0.0, %v5694
      %v5696 = vpop.f32.mrf.mxu0
      %5697 = vmatprep.mubr.bf16.mxu0 0
      %5698 = vmatmul.mubr.bf16.gmra.mxu0 %v5522
      %v5699 = vpop.f32.mrf.mxu0
      %v5700 = vadd.f32 0.0, %v5699
      %v5701 = vpop.f32.mrf.mxu0
      %v5702 = vpop.f32.mrf.mxu0
      %v5703 = vadd.f32 0.0, %v5702
      %v5704 = vpop.f32.mrf.mxu0
      %5705 = vmatprep.mubr.bf16.mxu0 0
      %5706 = vmatmul.mubr.bf16.gmra.mxu0 %v5524
      %v5707 = vpop.f32.mrf.mxu0
      %v5708 = vadd.f32 0.0, %v5707
      %v5709 = vpop.f32.mrf.mxu0
      %v5710 = vpop.f32.mrf.mxu0
      %v5711 = vadd.f32 0.0, %v5710
      %v5712 = vpop.f32.mrf.mxu0
      %5713 = vmatprep.mubr.bf16.mxu0 0
      %5714 = vmatmul.mubr.bf16.gmra.mxu0 %v5526
      %v5715 = vpop.f32.mrf.mxu0
      %v5716 = vadd.f32 0.0, %v5715
      %v5717 = vpop.f32.mrf.mxu0
      %v5718 = vpop.f32.mrf.mxu0
      %v5719 = vadd.f32 0.0, %v5718
      %v5720 = vpop.f32.mrf.mxu0
      %5721 = vmatprep.mubr.bf16.mxu0 0
      %5722 = vmatmul.mubr.bf16.gmra.mxu0 %v5528
      %v5723 = vpop.f32.mrf.mxu0
      %v5724 = vadd.f32 0.0, %v5723
      %v5725 = vpop.f32.mrf.mxu0
      %v5726 = vpop.f32.mrf.mxu0
      %v5727 = vadd.f32 0.0, %v5726
      %v5728 = vpop.f32.mrf.mxu0
      %5729 = vmatprep.mubr.bf16.mxu0 0
      %5730 = vmatmul.mubr.bf16.gmra.mxu0 %v5530
      %v5731 = vpop.f32.mrf.mxu0
      %v5732 = vadd.f32 0.0, %v5731
      %v5733 = vpop.f32.mrf.mxu0
      %v5734 = vpop.f32.mrf.mxu0
      %v5735 = vadd.f32 0.0, %v5734
      %v5736 = vpop.f32.mrf.mxu0
      %5737 = vmatprep.mubr.bf16.mxu0 0
      %5738 = vmatmul.mubr.bf16.gmra.mxu0 %v5532
      %v5739 = vpop.f32.mrf.mxu0
      %v5740 = vadd.f32 0.0, %v5739
      %v5741 = vpop.f32.mrf.mxu0
      %v5742 = vpop.f32.mrf.mxu0
      %v5743 = vadd.f32 0.0, %v5742
      %v5744 = vpop.f32.mrf.mxu0
      %5745 = vmatprep.mubr.bf16.mxu0 0
      %5746 = vmatmul.mubr.bf16.gmra.mxu0 %v5534
      %v5747 = vpop.f32.mrf.mxu0
      %v5748 = vadd.f32 0.0, %v5747
      %v5749 = vpop.f32.mrf.mxu0
      %v5750 = vpop.f32.mrf.mxu0
      %v5751 = vadd.f32 0.0, %v5750
      %v5752 = vpop.f32.mrf.mxu0
      %5753 = vmatprep.mubr.bf16.mxu0 0
      %5754 = vmatmul.mubr.bf16.gmra.mxu0 %v5536
      %v5755 = vpop.f32.mrf.mxu0
      %v5756 = vadd.f32 0.0, %v5755
      %v5757 = vpop.f32.mrf.mxu0
      %v5758 = vpop.f32.mrf.mxu0
      %v5759 = vadd.f32 0.0, %v5758
      %v5760 = vpop.f32.mrf.mxu0
      %5761 = vmatprep.mubr.bf16.mxu0 0
      %5762 = vmatmul.mubr.bf16.gmra.mxu0 %v5538
      %v5763 = vpop.f32.mrf.mxu0
      %v5764 = vadd.f32 0.0, %v5763
      %v5765 = vpop.f32.mrf.mxu0
      %v5766 = vpop.f32.mrf.mxu0
      %v5767 = vadd.f32 0.0, %v5766
      %v5768 = vpop.f32.mrf.mxu0
      %5769 = vmatprep.mubr.bf16.mxu0 0
      %5770 = vmatmul.mubr.bf16.gmra.mxu0 %v5540
      %v5771 = vpop.f32.mrf.mxu0
      %v5772 = vadd.f32 0.0, %v5771
      %v5773 = vpop.f32.mrf.mxu0
      %v5774 = vpop.f32.mrf.mxu0
      %v5775 = vadd.f32 0.0, %v5774
      %v5776 = vpop.f32.mrf.mxu0
      %5777 = vmatprep.mubr.bf16.mxu0 0
      %5778 = vmatmul.mubr.bf16.gmra.mxu0 %v5542
      %v5779 = vpop.f32.mrf.mxu0
      %v5780 = vadd.f32 0.0, %v5779
      %v5781 = vpop.f32.mrf.mxu0
      %v5782 = vpop.f32.mrf.mxu0
      %v5783 = vadd.f32 0.0, %v5782
      %v5784 = vpop.f32.mrf.mxu0
      %5785 = vdwg.mxu0
      %v5787 = vunpack.c.l.b16 %v5343
      %v5788 = vpack.c.b16 %v5451, %v5787
      %v5790 = vshrl.u32 %v5788, 16
      %v5792 = vrot.slane %v5790, 2
      %v5793 = vshll.u32 %v5788, 16
      %v5795 = vrot.slane %v5793, 3
      %v5796 = vor.u32 %v5792, %v5795
      %v5798 = vshrl.u32 %v5488, 16
      %v5800 = vrot.slane %v5798, 2
      %v5801 = vshll.u32 %v5488, 16
      %v5803 = vrot.slane %v5801, 3
      %v5804 = vor.u32 %v5800, %v5803
      %v5805 = vsel %vm1394, %v5796, %v5804
      %v5807 = vshrl.u32 %v5489, 16
      %v5809 = vrot.slane %v5807, 2
      %v5810 = vshll.u32 %v5489, 16
      %v5812 = vrot.slane %v5810, 3
      %v5813 = vor.u32 %v5809, %v5812
      %v5814 = vsel %vm1394, %v5804, %v5813
      %v5816 = vshrl.u32 %v5490, 16
      %v5818 = vrot.slane %v5816, 2
      %v5819 = vshll.u32 %v5490, 16
      %v5821 = vrot.slane %v5819, 3
      %v5822 = vor.u32 %v5818, %v5821
      %v5823 = vsel %vm1394, %v5813, %v5822
      %v5825 = vshrl.u32 %v5491, 16
      %v5827 = vrot.slane %v5825, 2
      %v5828 = vshll.u32 %v5491, 16
      %v5830 = vrot.slane %v5828, 3
      %v5831 = vor.u32 %v5827, %v5830
      %v5832 = vsel %vm1394, %v5822, %v5831
      %v5834 = vshrl.u32 %v5492, 16
      %v5836 = vrot.slane %v5834, 2
      %v5837 = vshll.u32 %v5492, 16
      %v5839 = vrot.slane %v5837, 3
      %v5840 = vor.u32 %v5836, %v5839
      %v5841 = vsel %vm1394, %v5831, %v5840
      %v5843 = vshrl.u32 %v5493, 16
      %v5845 = vrot.slane %v5843, 2
      %v5846 = vshll.u32 %v5493, 16
      %v5848 = vrot.slane %v5846, 3
      %v5849 = vor.u32 %v5845, %v5848
      %v5850 = vsel %vm1394, %v5840, %v5849
      %v5852 = vshrl.u32 %v5494, 16
      %v5854 = vrot.slane %v5852, 2
      %v5855 = vshll.u32 %v5494, 16
      %v5857 = vrot.slane %v5855, 3
      %v5858 = vor.u32 %v5854, %v5857
      %v5859 = vsel %vm1394, %v5849, %v5858
      %v5861 = vshrl.u32 %v5495, 16
      %v5863 = vrot.slane %v5861, 2
      %v5864 = vshll.u32 %v5495, 16
      %v5866 = vrot.slane %v5864, 3
      %v5867 = vor.u32 %v5863, %v5866
      %v5868 = vsel %vm1394, %v5858, %v5867
      %v5870 = vshrl.u32 %v5496, 16
      %v5872 = vrot.slane %v5870, 2
      %v5873 = vshll.u32 %v5496, 16
      %v5875 = vrot.slane %v5873, 3
      %v5876 = vor.u32 %v5872, %v5875
      %v5877 = vsel %vm1394, %v5867, %v5876
      %v5879 = vshrl.u32 %v5497, 16
      %v5881 = vrot.slane %v5879, 2
      %v5882 = vshll.u32 %v5497, 16
      %v5884 = vrot.slane %v5882, 3
      %v5885 = vor.u32 %v5881, %v5884
      %v5886 = vsel %vm1394, %v5876, %v5885
      %v5888 = vshrl.u32 %v5498, 16
      %v5890 = vrot.slane %v5888, 2
      %v5891 = vshll.u32 %v5498, 16
      %v5893 = vrot.slane %v5891, 3
      %v5894 = vor.u32 %v5890, %v5893
      %v5895 = vsel %vm1394, %v5885, %v5894
      %v5897 = vshrl.u32 %v5499, 16
      %v5899 = vrot.slane %v5897, 2
      %v5900 = vshll.u32 %v5499, 16
      %v5902 = vrot.slane %v5900, 3
      %v5903 = vor.u32 %v5899, %v5902
      %v5904 = vsel %vm1394, %v5894, %v5903
      %v5906 = vshrl.u32 %v5500, 16
      %v5908 = vrot.slane %v5906, 2
      %v5909 = vshll.u32 %v5500, 16
      %v5911 = vrot.slane %v5909, 3
      %v5912 = vor.u32 %v5908, %v5911
      %v5913 = vsel %vm1394, %v5903, %v5912
      %v5915 = vshrl.u32 %v5501, 16
      %v5917 = vrot.slane %v5915, 2
      %v5918 = vshll.u32 %v5501, 16
      %v5920 = vrot.slane %v5918, 3
      %v5921 = vor.u32 %v5917, %v5920
      %v5922 = vsel %vm1394, %v5912, %v5921
      %v5924 = vshrl.u32 %v5502, 16
      %v5926 = vrot.slane %v5924, 2
      %v5927 = vshll.u32 %v5502, 16
      %v5929 = vrot.slane %v5927, 3
      %v5930 = vor.u32 %v5926, %v5929
      %v5931 = vsel %vm1394, %v5921, %v5930
      %v5933 = vshrl.u32 %v5503, 16
      %v5935 = vrot.slane %v5933, 2
      %v5936 = vshll.u32 %v5503, 16
      %v5938 = vrot.slane %v5936, 3
      %v5939 = vor.u32 %v5935, %v5938
      %v5940 = vsel %vm1394, %v5930, %v5939
      %v5942 = vshrl.u32 %v5504, 16
      %v5944 = vrot.slane %v5942, 2
      %v5945 = vshll.u32 %v5504, 16
      %v5947 = vrot.slane %v5945, 3
      %v5948 = vor.u32 %v5944, %v5947
      %v5949 = vsel %vm1394, %v5939, %v5948
      %v5951 = vshrl.u32 %v5505, 16
      %v5953 = vrot.slane %v5951, 2
      %v5954 = vshll.u32 %v5505, 16
      %v5956 = vrot.slane %v5954, 3
      %v5957 = vor.u32 %v5953, %v5956
      %v5958 = vsel %vm1394, %v5948, %v5957
      %v5993 = vunpack.c.l.b16 %v5380
      %v5994 = vunpack.c.l.b16 %v5381
      %v5995 = vunpack.c.l.b16 %v5382
      %v5996 = vunpack.c.l.b16 %v5383
      %v5997 = vunpack.c.l.b16 %v5384
      %v5998 = vunpack.c.l.b16 %v5385
      %v5999 = vunpack.c.l.b16 %v5386
      %v6000 = vunpack.c.l.b16 %v5387
      %v6001 = vunpack.c.l.b16 %v5388
      %v6002 = vunpack.c.l.b16 %v5389
      %v6003 = vunpack.c.l.b16 %v5390
      %v6004 = vunpack.c.l.b16 %v5391
      %v6005 = vunpack.c.l.b16 %v5392
      %v6006 = vunpack.c.l.b16 %v5393
      %v6007 = vunpack.c.l.b16 %v5394
      %v6008 = vunpack.c.l.b16 %v5395
      %v6009 = vpack.c.b16 %v5994, %v5993
      %v6010 = vpack.c.b16 %v5996, %v5995
      %v6011 = vpack.c.b16 %v5998, %v5997
      %v6012 = vpack.c.b16 %v6000, %v5999
      %v6013 = vpack.c.b16 %v6002, %v6001
      %v6014 = vpack.c.b16 %v6004, %v6003
      %v6015 = vpack.c.b16 %v6006, %v6005
      %v6016 = vpack.c.b16 %v6008, %v6007
      %6025 = vmatprep.subr.bf16.mxu0 0
      %6026 = vmatpush1.bf16.msra.mxu0 %v6016
      %6027 = vmatprep.subr.bf16.mxu0 0
      %6028 = vmatpush1.bf16.msra.mxu0 %v6015
      %6029 = vmatprep.subr.bf16.mxu0 0
      %6030 = vmatpush1.bf16.msra.mxu0 %v6014
      %6031 = vmatprep.subr.bf16.mxu0 0
      %6032 = vmatpush1.bf16.msra.mxu0 %v6013
      %6033 = vmatprep.subr.bf16.mxu0 0
      %6034 = vmatpush1.bf16.msra.mxu0 %v6012
      %6035 = vmatprep.subr.bf16.mxu0 0
      %6036 = vmatpush1.bf16.msra.mxu0 %v6011
      %6037 = vmatprep.subr.bf16.mxu0 0
      %6038 = vmatpush1.bf16.msra.mxu0 %v6010
      %6039 = vmatprep.subr.bf16.mxu0 0
      %6040 = vmatpush1.bf16.msra.mxu0 %v6009
      %6041 = vmatprep.subr.bf16.mxu0 0
      %6042 = vmatpush2.bf16.msra.mxu0 0
      %6043 = vmatprep.subr.bf16.mxu0 0
      %6044 = vmatpush2.bf16.msra.mxu0 0
      %6045 = vmatprep.subr.bf16.mxu0 0
      %6046 = vmatpush2.bf16.msra.mxu0 0
      %6047 = vmatprep.subr.bf16.mxu0 0
      %6048 = vmatpush2.bf16.msra.mxu0 0
      %6049 = vmatprep.subr.bf16.mxu0 0
      %6050 = vmatpush2.bf16.msra.mxu0 0
      %6051 = vmatprep.subr.bf16.mxu0 0
      %6052 = vmatpush2.bf16.msra.mxu0 0
      %6053 = vmatprep.subr.bf16.mxu0 0
      %6054 = vmatpush2.bf16.msra.mxu0 0
      %6055 = vmatprep.subr.bf16.mxu0 0
      %6056 = vmatpush2.bf16.msra.mxu0 0
      %6057 = vmatprep.mubr.bf16.mxu0 0
      %6058 = vmatmul.mubr.bf16.gmra.mxu0 %v5805
      %v6059 = vpop.f32.mrf.mxu0
      %v6060 = vadd.f32 %v5644, %v6059
      %v6061 = vpop.f32.mrf.mxu0
      %v6062 = vpop.f32.mrf.mxu0
      %v6063 = vadd.f32 %v5647, %v6062
      %v6064 = vpop.f32.mrf.mxu0
      %6065 = vmatprep.mubr.bf16.mxu0 0
      %6066 = vmatmul.mubr.bf16.gmra.mxu0 %v5814
      %v6067 = vpop.f32.mrf.mxu0
      %v6068 = vadd.f32 %v5652, %v6067
      %v6069 = vpop.f32.mrf.mxu0
      %v6070 = vpop.f32.mrf.mxu0
      %v6071 = vadd.f32 %v5655, %v6070
      %v6072 = vpop.f32.mrf.mxu0
      %6073 = vmatprep.mubr.bf16.mxu0 0
      %6074 = vmatmul.mubr.bf16.gmra.mxu0 %v5823
      %v6075 = vpop.f32.mrf.mxu0
      %v6076 = vadd.f32 %v5660, %v6075
      %v6077 = vpop.f32.mrf.mxu0
      %v6078 = vpop.f32.mrf.mxu0
      %v6079 = vadd.f32 %v5663, %v6078
      %v6080 = vpop.f32.mrf.mxu0
      %6081 = vmatprep.mubr.bf16.mxu0 0
      %6082 = vmatmul.mubr.bf16.gmra.mxu0 %v5832
      %v6083 = vpop.f32.mrf.mxu0
      %v6084 = vadd.f32 %v5668, %v6083
      %v6085 = vpop.f32.mrf.mxu0
      %v6086 = vpop.f32.mrf.mxu0
      %v6087 = vadd.f32 %v5671, %v6086
      %v6088 = vpop.f32.mrf.mxu0
      %6089 = vmatprep.mubr.bf16.mxu0 0
      %6090 = vmatmul.mubr.bf16.gmra.mxu0 %v5841
      %v6091 = vpop.f32.mrf.mxu0
      %v6092 = vadd.f32 %v5676, %v6091
      %v6093 = vpop.f32.mrf.mxu0
      %v6094 = vpop.f32.mrf.mxu0
      %v6095 = vadd.f32 %v5679, %v6094
      %v6096 = vpop.f32.mrf.mxu0
      %6097 = vmatprep.mubr.bf16.mxu0 0
      %6098 = vmatmul.mubr.bf16.gmra.mxu0 %v5850
      %v6099 = vpop.f32.mrf.mxu0
      %v6100 = vadd.f32 %v5684, %v6099
      %v6101 = vpop.f32.mrf.mxu0
      %v6102 = vpop.f32.mrf.mxu0
      %v6103 = vadd.f32 %v5687, %v6102
      %v6104 = vpop.f32.mrf.mxu0
      %6105 = vmatprep.mubr.bf16.mxu0 0
      %6106 = vmatmul.mubr.bf16.gmra.mxu0 %v5859
      %v6107 = vpop.f32.mrf.mxu0
      %v6108 = vadd.f32 %v5692, %v6107
      %v6109 = vpop.f32.mrf.mxu0
      %v6110 = vpop.f32.mrf.mxu0
      %v6111 = vadd.f32 %v5695, %v6110
      %v6112 = vpop.f32.mrf.mxu0
      %6113 = vmatprep.mubr.bf16.mxu0 0
      %6114 = vmatmul.mubr.bf16.gmra.mxu0 %v5868
      %v6115 = vpop.f32.mrf.mxu0
      %v6116 = vadd.f32 %v5700, %v6115
      %v6117 = vpop.f32.mrf.mxu0
      %v6118 = vpop.f32.mrf.mxu0
      %v6119 = vadd.f32 %v5703, %v6118
      %v6120 = vpop.f32.mrf.mxu0
      %6121 = vmatprep.mubr.bf16.mxu0 0
      %6122 = vmatmul.mubr.bf16.gmra.mxu0 %v5877
      %v6123 = vpop.f32.mrf.mxu0
      %v6124 = vadd.f32 %v5708, %v6123
      %v6125 = vpop.f32.mrf.mxu0
      %v6126 = vpop.f32.mrf.mxu0
      %v6127 = vadd.f32 %v5711, %v6126
      %v6128 = vpop.f32.mrf.mxu0
      %6129 = vmatprep.mubr.bf16.mxu0 0
      %6130 = vmatmul.mubr.bf16.gmra.mxu0 %v5886
      %v6131 = vpop.f32.mrf.mxu0
      %v6132 = vadd.f32 %v5716, %v6131
      %v6133 = vpop.f32.mrf.mxu0
      %v6134 = vpop.f32.mrf.mxu0
      %v6135 = vadd.f32 %v5719, %v6134
      %v6136 = vpop.f32.mrf.mxu0
      %6137 = vmatprep.mubr.bf16.mxu0 0
      %6138 = vmatmul.mubr.bf16.gmra.mxu0 %v5895
      %v6139 = vpop.f32.mrf.mxu0
      %v6140 = vadd.f32 %v5724, %v6139
      %v6141 = vpop.f32.mrf.mxu0
      %v6142 = vpop.f32.mrf.mxu0
      %v6143 = vadd.f32 %v5727, %v6142
      %v6144 = vpop.f32.mrf.mxu0
      %6145 = vmatprep.mubr.bf16.mxu0 0
      %6146 = vmatmul.mubr.bf16.gmra.mxu0 %v5904
      %v6147 = vpop.f32.mrf.mxu0
      %v6148 = vadd.f32 %v5732, %v6147
      %v6149 = vpop.f32.mrf.mxu0
      %v6150 = vpop.f32.mrf.mxu0
      %v6151 = vadd.f32 %v5735, %v6150
      %v6152 = vpop.f32.mrf.mxu0
      %6153 = vmatprep.mubr.bf16.mxu0 0
      %6154 = vmatmul.mubr.bf16.gmra.mxu0 %v5913
      %v6155 = vpop.f32.mrf.mxu0
      %v6156 = vadd.f32 %v5740, %v6155
      %v6157 = vpop.f32.mrf.mxu0
      %v6158 = vpop.f32.mrf.mxu0
      %v6159 = vadd.f32 %v5743, %v6158
      %v6160 = vpop.f32.mrf.mxu0
      %6161 = vmatprep.mubr.bf16.mxu0 0
      %6162 = vmatmul.mubr.bf16.gmra.mxu0 %v5922
      %v6163 = vpop.f32.mrf.mxu0
      %v6164 = vadd.f32 %v5748, %v6163
      %v6165 = vpop.f32.mrf.mxu0
      %v6166 = vpop.f32.mrf.mxu0
      %v6167 = vadd.f32 %v5751, %v6166
      %v6168 = vpop.f32.mrf.mxu0
      %6169 = vmatprep.mubr.bf16.mxu0 0
      %6170 = vmatmul.mubr.bf16.gmra.mxu0 %v5931
      %v6171 = vpop.f32.mrf.mxu0
      %v6172 = vadd.f32 %v5756, %v6171
      %v6173 = vpop.f32.mrf.mxu0
      %v6174 = vpop.f32.mrf.mxu0
      %v6175 = vadd.f32 %v5759, %v6174
      %v6176 = vpop.f32.mrf.mxu0
      %6177 = vmatprep.mubr.bf16.mxu0 0
      %6178 = vmatmul.mubr.bf16.gmra.mxu0 %v5940
      %v6179 = vpop.f32.mrf.mxu0
      %v6180 = vadd.f32 %v5764, %v6179
      %v6181 = vpop.f32.mrf.mxu0
      %v6182 = vpop.f32.mrf.mxu0
      %v6183 = vadd.f32 %v5767, %v6182
      %v6184 = vpop.f32.mrf.mxu0
      %6185 = vmatprep.mubr.bf16.mxu0 0
      %6186 = vmatmul.mubr.bf16.gmra.mxu0 %v5949
      %v6187 = vpop.f32.mrf.mxu0
      %v6188 = vadd.f32 %v5772, %v6187
      %v6189 = vpop.f32.mrf.mxu0
      %v6190 = vpop.f32.mrf.mxu0
      %v6191 = vadd.f32 %v5775, %v6190
      %v6192 = vpop.f32.mrf.mxu0
      %6193 = vmatprep.mubr.bf16.mxu0 0
      %6194 = vmatmul.mubr.bf16.gmra.mxu0 %v5958
      %v6195 = vpop.f32.mrf.mxu0
      %v6196 = vadd.f32 %v5780, %v6195
      %v6197 = vpop.f32.mrf.mxu0
      %v6198 = vpop.f32.mrf.mxu0
      %v6199 = vadd.f32 %v5783, %v6198
      %v6200 = vpop.f32.mrf.mxu0
      %6201 = vdwg.mxu0
      %v6202 = vld [vmem:[#allocation2 + $0x90] sm:$0xf]
      %v6203 = vld [vmem:[%s3 + $0x80] sm:$0xf]
      %v6204 = vld [vmem:[%s3 + $0x84] sm:$0xf]
      %v6205 = vld [vmem:[%s3 + $0x88] sm:$0xf]
      %v6206 = vld [vmem:[%s3 + $0x8c] sm:$0xf]
      %v6207 = vld [vmem:[%s3 + $0x90] sm:$0xf]
      %v6208 = vld [vmem:[%s3 + $0x94] sm:$0xf]
      %v6209 = vld [vmem:[%s3 + $0x98] sm:$0xf]
      %v6210 = vld [vmem:[%s3 + $0x9c] sm:$0xf]
      %v6211 = vld [vmem:[%s3 + $0xa0] sm:$0xf]
      %v6212 = vld [vmem:[%s3 + $0xa4] sm:$0xf]
      %v6213 = vld [vmem:[%s3 + $0xa8] sm:$0xf]
      %v6214 = vld [vmem:[%s3 + $0xac] sm:$0xf]
      %v6215 = vld [vmem:[%s3 + $0xb0] sm:$0xf]
      %v6216 = vld [vmem:[%s3 + $0xb4] sm:$0xf]
      %v6217 = vld [vmem:[%s3 + $0xb8] sm:$0xf]
      %v6218 = vld [vmem:[%s3 + $0xbc] sm:$0xf]
      %v6220 = vunpack.c.l.b16 %v6202
      %v6221 = vpack.c.b16 %v6220, %v6220
      %v6223 = vshrl.u32 %v5487, 16
      %v6225 = vrot.slane %v6223, 3
      %v6226 = vshll.u32 %v5487, 16
      %v6228 = vrot.slane %v6226, 4
      %v6229 = vor.u32 %v6225, %v6228
      %v6230 = vrot.slane %v5798, 3
      %v6231 = vrot.slane %v5801, 4
      %v6232 = vor.u32 %v6230, %v6231
      %v6233 = vsel %vm1828, %v6229, %v6232
      %v6234 = vrot.slane %v5807, 3
      %v6235 = vrot.slane %v5810, 4
      %v6236 = vor.u32 %v6234, %v6235
      %v6237 = vsel %vm1828, %v6232, %v6236
      %v6238 = vrot.slane %v5816, 3
      %v6239 = vrot.slane %v5819, 4
      %v6240 = vor.u32 %v6238, %v6239
      %v6241 = vsel %vm1828, %v6236, %v6240
      %v6242 = vrot.slane %v5825, 3
      %v6243 = vrot.slane %v5828, 4
      %v6244 = vor.u32 %v6242, %v6243
      %v6245 = vsel %vm1828, %v6240, %v6244
      %v6246 = vrot.slane %v5834, 3
      %v6247 = vrot.slane %v5837, 4
      %v6248 = vor.u32 %v6246, %v6247
      %v6249 = vsel %vm1828, %v6244, %v6248
      %v6250 = vrot.slane %v5843, 3
      %v6251 = vrot.slane %v5846, 4
      %v6252 = vor.u32 %v6250, %v6251
      %v6253 = vsel %vm1828, %v6248, %v6252
      %v6254 = vrot.slane %v5852, 3
      %v6255 = vrot.slane %v5855, 4
      %v6256 = vor.u32 %v6254, %v6255
      %v6257 = vsel %vm1828, %v6252, %v6256
      %v6258 = vrot.slane %v5861, 3
      %v6259 = vrot.slane %v5864, 4
      %v6260 = vor.u32 %v6258, %v6259
      %v6261 = vsel %vm1828, %v6256, %v6260
      %v6262 = vrot.slane %v5870, 3
      %v6263 = vrot.slane %v5873, 4
      %v6264 = vor.u32 %v6262, %v6263
      %v6265 = vsel %vm1828, %v6260, %v6264
      %v6266 = vrot.slane %v5879, 3
      %v6267 = vrot.slane %v5882, 4
      %v6268 = vor.u32 %v6266, %v6267
      %v6269 = vsel %vm1828, %v6264, %v6268
      %v6270 = vrot.slane %v5888, 3
      %v6271 = vrot.slane %v5891, 4
      %v6272 = vor.u32 %v6270, %v6271
      %v6273 = vsel %vm1828, %v6268, %v6272
      %v6274 = vrot.slane %v5897, 3
      %v6275 = vrot.slane %v5900, 4
      %v6276 = vor.u32 %v6274, %v6275
      %v6277 = vsel %vm1828, %v6272, %v6276
      %v6278 = vrot.slane %v5906, 3
      %v6279 = vrot.slane %v5909, 4
      %v6280 = vor.u32 %v6278, %v6279
      %v6281 = vsel %vm1828, %v6276, %v6280
      %v6282 = vrot.slane %v5915, 3
      %v6283 = vrot.slane %v5918, 4
      %v6284 = vor.u32 %v6282, %v6283
      %v6285 = vsel %vm1828, %v6280, %v6284
      %v6286 = vrot.slane %v5924, 3
      %v6287 = vrot.slane %v5927, 4
      %v6288 = vor.u32 %v6286, %v6287
      %v6289 = vsel %vm1828, %v6284, %v6288
      %v6290 = vrot.slane %v5933, 3
      %v6291 = vrot.slane %v5936, 4
      %v6292 = vor.u32 %v6290, %v6291
      %v6293 = vsel %vm1828, %v6288, %v6292
      %v6294 = vrot.slane %v5942, 3
      %v6295 = vrot.slane %v5945, 4
      %v6296 = vor.u32 %v6294, %v6295
      %v6297 = vsel %vm1828, %v6292, %v6296
      %v6299 = vshrl.u32 %v6221, 16
      %v6301 = vrot.slane %v6299, 3
      %v6302 = vshll.u32 %v6221, 16
      %v6304 = vrot.slane %v6302, 4
      %v6305 = vor.u32 %v6301, %v6304
      %v6306 = vsel %vm1828, %v6296, %v6305
      %v6341 = vunpack.c.l.b16 %v6203
      %v6342 = vunpack.c.l.b16 %v6204
      %v6343 = vunpack.c.l.b16 %v6205
      %v6344 = vunpack.c.l.b16 %v6206
      %v6345 = vunpack.c.l.b16 %v6207
      %v6346 = vunpack.c.l.b16 %v6208
      %v6347 = vunpack.c.l.b16 %v6209
      %v6348 = vunpack.c.l.b16 %v6210
      %v6349 = vunpack.c.l.b16 %v6211
      %v6350 = vunpack.c.l.b16 %v6212
      %v6351 = vunpack.c.l.b16 %v6213
      %v6352 = vunpack.c.l.b16 %v6214
      %v6353 = vunpack.c.l.b16 %v6215
      %v6354 = vunpack.c.l.b16 %v6216
      %v6355 = vunpack.c.l.b16 %v6217
      %v6356 = vunpack.c.l.b16 %v6218
      %v6357 = vpack.c.b16 %v6342, %v6341
      %v6358 = vpack.c.b16 %v6344, %v6343
      %v6359 = vpack.c.b16 %v6346, %v6345
      %v6360 = vpack.c.b16 %v6348, %v6347
      %v6361 = vpack.c.b16 %v6350, %v6349
      %v6362 = vpack.c.b16 %v6352, %v6351
      %v6363 = vpack.c.b16 %v6354, %v6353
      %v6364 = vpack.c.b16 %v6356, %v6355
      %6373 = vmatprep.subr.bf16.mxu0 0
      %6374 = vmatpush1.bf16.msra.mxu0 %v6364
      %6375 = vmatprep.subr.bf16.mxu0 0
      %6376 = vmatpush1.bf16.msra.mxu0 %v6363
      %6377 = vmatprep.subr.bf16.mxu0 0
      %6378 = vmatpush1.bf16.msra.mxu0 %v6362
      %6379 = vmatprep.subr.bf16.mxu0 0
      %6380 = vmatpush1.bf16.msra.mxu0 %v6361
      %6381 = vmatprep.subr.bf16.mxu0 0
      %6382 = vmatpush1.bf16.msra.mxu0 %v6360
      %6383 = vmatprep.subr.bf16.mxu0 0
      %6384 = vmatpush1.bf16.msra.mxu0 %v6359
      %6385 = vmatprep.subr.bf16.mxu0 0
      %6386 = vmatpush1.bf16.msra.mxu0 %v6358
      %6387 = vmatprep.subr.bf16.mxu0 0
      %6388 = vmatpush1.bf16.msra.mxu0 %v6357
      %6389 = vmatprep.subr.bf16.mxu0 0
      %6390 = vmatpush2.bf16.msra.mxu0 0
      %6391 = vmatprep.subr.bf16.mxu0 0
      %6392 = vmatpush2.bf16.msra.mxu0 0
      %6393 = vmatprep.subr.bf16.mxu0 0
      %6394 = vmatpush2.bf16.msra.mxu0 0
      %6395 = vmatprep.subr.bf16.mxu0 0
      %6396 = vmatpush2.bf16.msra.mxu0 0
      %6397 = vmatprep.subr.bf16.mxu0 0
      %6398 = vmatpush2.bf16.msra.mxu0 0
      %6399 = vmatprep.subr.bf16.mxu0 0
      %6400 = vmatpush2.bf16.msra.mxu0 0
      %6401 = vmatprep.subr.bf16.mxu0 0
      %6402 = vmatpush2.bf16.msra.mxu0 0
      %6403 = vmatprep.subr.bf16.mxu0 0
      %6404 = vmatpush2.bf16.msra.mxu0 0
      %6405 = vmatprep.mubr.bf16.mxu0 0
      %6406 = vmatmul.mubr.bf16.gmra.mxu0 %v6233
      %v6407 = vpop.f32.mrf.mxu0
      %v6408 = vadd.f32 0.0, %v6407
      %v6409 = vpop.f32.mrf.mxu0
      %v6410 = vpop.f32.mrf.mxu0
      %v6411 = vadd.f32 0.0, %v6410
      %v6412 = vpop.f32.mrf.mxu0
      %6413 = vmatprep.mubr.bf16.mxu0 0
      %6414 = vmatmul.mubr.bf16.gmra.mxu0 %v6237
      %v6415 = vpop.f32.mrf.mxu0
      %v6416 = vadd.f32 0.0, %v6415
      %v6417 = vpop.f32.mrf.mxu0
      %v6418 = vpop.f32.mrf.mxu0
      %v6419 = vadd.f32 0.0, %v6418
      %v6420 = vpop.f32.mrf.mxu0
      %6421 = vmatprep.mubr.bf16.mxu0 0
      %6422 = vmatmul.mubr.bf16.gmra.mxu0 %v6241
      %v6423 = vpop.f32.mrf.mxu0
      %v6424 = vadd.f32 0.0, %v6423
      %v6425 = vpop.f32.mrf.mxu0
      %v6426 = vpop.f32.mrf.mxu0
      %v6427 = vadd.f32 0.0, %v6426
      %v6428 = vpop.f32.mrf.mxu0
      %6429 = vmatprep.mubr.bf16.mxu0 0
      %6430 = vmatmul.mubr.bf16.gmra.mxu0 %v6245
      %v6431 = vpop.f32.mrf.mxu0
      %v6432 = vadd.f32 0.0, %v6431
      %v6433 = vpop.f32.mrf.mxu0
      %v6434 = vpop.f32.mrf.mxu0
      %v6435 = vadd.f32 0.0, %v6434
      %v6436 = vpop.f32.mrf.mxu0
      %6437 = vmatprep.mubr.bf16.mxu0 0
      %6438 = vmatmul.mubr.bf16.gmra.mxu0 %v6249
      %v6439 = vpop.f32.mrf.mxu0
      %v6440 = vadd.f32 0.0, %v6439
      %v6441 = vpop.f32.mrf.mxu0
      %v6442 = vpop.f32.mrf.mxu0
      %v6443 = vadd.f32 0.0, %v6442
      %v6444 = vpop.f32.mrf.mxu0
      %6445 = vmatprep.mubr.bf16.mxu0 0
      %6446 = vmatmul.mubr.bf16.gmra.mxu0 %v6253
      %v6447 = vpop.f32.mrf.mxu0
      %v6448 = vadd.f32 0.0, %v6447
      %v6449 = vpop.f32.mrf.mxu0
      %v6450 = vpop.f32.mrf.mxu0
      %v6451 = vadd.f32 0.0, %v6450
      %v6452 = vpop.f32.mrf.mxu0
      %6453 = vmatprep.mubr.bf16.mxu0 0
      %6454 = vmatmul.mubr.bf16.gmra.mxu0 %v6257
      %v6455 = vpop.f32.mrf.mxu0
      %v6456 = vadd.f32 0.0, %v6455
      %v6457 = vpop.f32.mrf.mxu0
      %v6458 = vpop.f32.mrf.mxu0
      %v6459 = vadd.f32 0.0, %v6458
      %v6460 = vpop.f32.mrf.mxu0
      %6461 = vmatprep.mubr.bf16.mxu0 0
      %6462 = vmatmul.mubr.bf16.gmra.mxu0 %v6261
      %v6463 = vpop.f32.mrf.mxu0
      %v6464 = vadd.f32 0.0, %v6463
      %v6465 = vpop.f32.mrf.mxu0
      %v6466 = vpop.f32.mrf.mxu0
      %v6467 = vadd.f32 0.0, %v6466
      %v6468 = vpop.f32.mrf.mxu0
      %6469 = vmatprep.mubr.bf16.mxu0 0
      %6470 = vmatmul.mubr.bf16.gmra.mxu0 %v6265
      %v6471 = vpop.f32.mrf.mxu0
      %v6472 = vadd.f32 0.0, %v6471
      %v6473 = vpop.f32.mrf.mxu0
      %v6474 = vpop.f32.mrf.mxu0
      %v6475 = vadd.f32 0.0, %v6474
      %v6476 = vpop.f32.mrf.mxu0
      %6477 = vmatprep.mubr.bf16.mxu0 0
      %6478 = vmatmul.mubr.bf16.gmra.mxu0 %v6269
      %v6479 = vpop.f32.mrf.mxu0
      %v6480 = vadd.f32 0.0, %v6479
      %v6481 = vpop.f32.mrf.mxu0
      %v6482 = vpop.f32.mrf.mxu0
      %v6483 = vadd.f32 0.0, %v6482
      %v6484 = vpop.f32.mrf.mxu0
      %6485 = vmatprep.mubr.bf16.mxu0 0
      %6486 = vmatmul.mubr.bf16.gmra.mxu0 %v6273
      %v6487 = vpop.f32.mrf.mxu0
      %v6488 = vadd.f32 0.0, %v6487
      %v6489 = vpop.f32.mrf.mxu0
      %v6490 = vpop.f32.mrf.mxu0
      %v6491 = vadd.f32 0.0, %v6490
      %v6492 = vpop.f32.mrf.mxu0
      %6493 = vmatprep.mubr.bf16.mxu0 0
      %6494 = vmatmul.mubr.bf16.gmra.mxu0 %v6277
      %v6495 = vpop.f32.mrf.mxu0
      %v6496 = vadd.f32 0.0, %v6495
      %v6497 = vpop.f32.mrf.mxu0
      %v6498 = vpop.f32.mrf.mxu0
      %v6499 = vadd.f32 0.0, %v6498
      %v6500 = vpop.f32.mrf.mxu0
      %6501 = vmatprep.mubr.bf16.mxu0 0
      %6502 = vmatmul.mubr.bf16.gmra.mxu0 %v6281
      %v6503 = vpop.f32.mrf.mxu0
      %v6504 = vadd.f32 0.0, %v6503
      %v6505 = vpop.f32.mrf.mxu0
      %v6506 = vpop.f32.mrf.mxu0
      %v6507 = vadd.f32 0.0, %v6506
      %v6508 = vpop.f32.mrf.mxu0
      %6509 = vmatprep.mubr.bf16.mxu0 0
      %6510 = vmatmul.mubr.bf16.gmra.mxu0 %v6285
      %v6511 = vpop.f32.mrf.mxu0
      %v6512 = vadd.f32 0.0, %v6511
      %v6513 = vpop.f32.mrf.mxu0
      %v6514 = vpop.f32.mrf.mxu0
      %v6515 = vadd.f32 0.0, %v6514
      %v6516 = vpop.f32.mrf.mxu0
      %6517 = vmatprep.mubr.bf16.mxu0 0
      %6518 = vmatmul.mubr.bf16.gmra.mxu0 %v6289
      %v6519 = vpop.f32.mrf.mxu0
      %v6520 = vadd.f32 0.0, %v6519
      %v6521 = vpop.f32.mrf.mxu0
      %v6522 = vpop.f32.mrf.mxu0
      %v6523 = vadd.f32 0.0, %v6522
      %v6524 = vpop.f32.mrf.mxu0
      %6525 = vmatprep.mubr.bf16.mxu0 0
      %6526 = vmatmul.mubr.bf16.gmra.mxu0 %v6293
      %v6527 = vpop.f32.mrf.mxu0
      %v6528 = vadd.f32 0.0, %v6527
      %v6529 = vpop.f32.mrf.mxu0
      %v6530 = vpop.f32.mrf.mxu0
      %v6531 = vadd.f32 0.0, %v6530
      %v6532 = vpop.f32.mrf.mxu0
      %6533 = vmatprep.mubr.bf16.mxu0 0
      %6534 = vmatmul.mubr.bf16.gmra.mxu0 %v6297
      %v6535 = vpop.f32.mrf.mxu0
      %v6536 = vadd.f32 0.0, %v6535
      %v6537 = vpop.f32.mrf.mxu0
      %v6538 = vpop.f32.mrf.mxu0
      %v6539 = vadd.f32 0.0, %v6538
      %v6540 = vpop.f32.mrf.mxu0
      %6541 = vmatprep.mubr.bf16.mxu0 0
      %6542 = vmatmul.mubr.bf16.gmra.mxu0 %v6306
      %v6543 = vpop.f32.mrf.mxu0
      %v6544 = vadd.f32 0.0, %v6543
      %v6545 = vpop.f32.mrf.mxu0
      %v6546 = vpop.f32.mrf.mxu0
      %v6547 = vadd.f32 0.0, %v6546
      %v6548 = vpop.f32.mrf.mxu0
      %6549 = vdwg.mxu0
      %v6550 = vadd.f32 %v6060, %v6408
      %v6551 = vadd.f32 %v6063, %v6411
      %v6552 = vadd.f32 %v6068, %v6416
      %v6553 = vadd.f32 %v6071, %v6419
      %v6554 = vadd.f32 %v6076, %v6424
      %v6555 = vadd.f32 %v6079, %v6427
      %v6556 = vadd.f32 %v6084, %v6432
      %v6557 = vadd.f32 %v6087, %v6435
      %v6558 = vadd.f32 %v6092, %v6440
      %v6559 = vadd.f32 %v6095, %v6443
      %v6560 = vadd.f32 %v6100, %v6448
      %v6561 = vadd.f32 %v6103, %v6451
      %v6562 = vadd.f32 %v6108, %v6456
      %v6563 = vadd.f32 %v6111, %v6459
      %v6564 = vadd.f32 %v6116, %v6464
      %v6565 = vadd.f32 %v6119, %v6467
      %v6566 = vadd.f32 %v6124, %v6472
      %v6567 = vadd.f32 %v6127, %v6475
      %v6568 = vadd.f32 %v6132, %v6480
      %v6569 = vadd.f32 %v6135, %v6483
      %v6570 = vadd.f32 %v6140, %v6488
      %v6571 = vadd.f32 %v6143, %v6491
      %v6572 = vadd.f32 %v6148, %v6496
      %v6573 = vadd.f32 %v6151, %v6499
      %v6574 = vadd.f32 %v6156, %v6504
      %v6575 = vadd.f32 %v6159, %v6507
      %v6576 = vadd.f32 %v6164, %v6512
      %v6577 = vadd.f32 %v6167, %v6515
      %v6578 = vadd.f32 %v6172, %v6520
      %v6579 = vadd.f32 %v6175, %v6523
      %v6580 = vadd.f32 %v6180, %v6528
      %v6581 = vadd.f32 %v6183, %v6531
      %v6582 = vadd.f32 %v6188, %v6536
      %v6583 = vadd.f32 %v6191, %v6539
      %v6584 = vadd.f32 %v6196, %v6544
      %v6585 = vadd.f32 %v6199, %v6547
      %v6586 = vld [vmem:[#allocation2 + $0x8] sm:$0x8]
      %v6587 = vld [vmem:[#allocation2 + $0xc] sm:$0xf]
      %v6588 = vld [vmem:[#allocation2 + $0x10] sm:$0xf]
      %v6589 = vld [vmem:[#allocation2 + $0x14] sm:$0xf]
      %v6590 = vld [vmem:[#allocation2 + $0x18] sm:$0xf]
      %v6591 = vld [vmem:[#allocation2 + $0x1c] sm:$0xf]
      %v6592 = vld [vmem:[#allocation2 + $0x20] sm:$0xf]
      %v6593 = vld [vmem:[#allocation2 + $0x24] sm:$0xf]
      %v6594 = vld [vmem:[#allocation2 + $0x28] sm:$0xf]
      %v6595 = vld [vmem:[#allocation2 + $0x2c] sm:$0xf]
      %v6596 = vld [vmem:[#allocation2 + $0x30] sm:$0xf]
      %v6597 = vld [vmem:[#allocation2 + $0x34] sm:$0xf]
      %v6598 = vld [vmem:[#allocation2 + $0x38] sm:$0xf]
      %v6599 = vld [vmem:[#allocation2 + $0x3c] sm:$0xf]
      %v6600 = vld [vmem:[#allocation2 + $0x40] sm:$0xf]
      %v6601 = vld [vmem:[#allocation2 + $0x44] sm:$0xf]
      %v6602 = vld [vmem:[#allocation2 + $0x48] sm:$0xf]
      %v6603 = vld [vmem:[#allocation2 + $0x4c] sm:$0xf]
      %v6604 = vld [vmem:[#allocation2 + $0x50] sm:$0xf]
      %v6605 = vld [vmem:[#allocation2 + $0x54] sm:$0xf]
      %v6606 = vld [vmem:[#allocation2 + $0x58] sm:$0xf]
      %v6607 = vld [vmem:[#allocation2 + $0x5c] sm:$0xf]
      %v6608 = vld [vmem:[#allocation2 + $0x60] sm:$0xf]
      %v6609 = vld [vmem:[#allocation2 + $0x64] sm:$0xf]
      %v6610 = vld [vmem:[#allocation2 + $0x68] sm:$0xf]
      %v6611 = vld [vmem:[#allocation2 + $0x6c] sm:$0xf]
      %v6612 = vld [vmem:[#allocation2 + $0x70] sm:$0xf]
      %v6613 = vld [vmem:[#allocation2 + $0x74] sm:$0xf]
      %v6614 = vld [vmem:[#allocation2 + $0x78] sm:$0xf]
      %v6615 = vld [vmem:[#allocation2 + $0x7c] sm:$0xf]
      %v6616 = vld [vmem:[#allocation2 + $0x80] sm:$0xf]
      %v6617 = vld [vmem:[#allocation2 + $0x84] sm:$0xf]
      %v6618 = vld [vmem:[#allocation2 + $0x88] sm:$0xf]
      %v6619 = vld [vmem:[#allocation2 + $0x8c] sm:$0xf]
      %v6620 = vld [vmem:[#allocation2 + $0x90] sm:$0xf]
      %v6621 = vld [vmem:[#allocation2 + $0x94] sm:$0xf]
      %v6622 = vld [vmem:[#allocation2 + $0x98] sm:$0xf]
      %v6623 = vld [vmem:[%s3 + $0xc0] sm:$0xf]
      %v6624 = vld [vmem:[%s3 + $0xc4] sm:$0xf]
      %v6625 = vld [vmem:[%s3 + $0xc8] sm:$0xf]
      %v6626 = vld [vmem:[%s3 + $0xcc] sm:$0xf]
      %v6627 = vld [vmem:[%s3 + $0xd0] sm:$0xf]
      %v6628 = vld [vmem:[%s3 + $0xd4] sm:$0xf]
      %v6629 = vld [vmem:[%s3 + $0xd8] sm:$0xf]
      %v6630 = vld [vmem:[%s3 + $0xdc] sm:$0xf]
      %v6631 = vld [vmem:[%s3 + $0xe0] sm:$0xf]
      %v6632 = vld [vmem:[%s3 + $0xe4] sm:$0xf]
      %v6633 = vld [vmem:[%s3 + $0xe8] sm:$0xf]
      %v6634 = vld [vmem:[%s3 + $0xec] sm:$0xf]
      %v6635 = vld [vmem:[%s3 + $0xf0] sm:$0xf]
      %v6636 = vld [vmem:[%s3 + $0xf4] sm:$0xf]
      %v6637 = vld [vmem:[%s3 + $0xf8] sm:$0xf]
      %v6638 = vld [vmem:[%s3 + $0xfc] sm:$0xf]
      %v6676 = vunpack.c.l.b16 %v6586
      %v6677 = vunpack.c.l.b16 %v6587
      %v6678 = vunpack.c.l.b16 %v6588
      %v6679 = vunpack.c.l.b16 %v6589
      %v6680 = vunpack.c.l.b16 %v6590
      %v6681 = vunpack.c.l.b16 %v6591
      %v6682 = vunpack.c.l.b16 %v6592
      %v6683 = vunpack.c.l.b16 %v6593
      %v6684 = vunpack.c.l.b16 %v6594
      %v6685 = vunpack.c.l.b16 %v6595
      %v6686 = vunpack.c.l.b16 %v6596
      %v6687 = vunpack.c.l.b16 %v6597
      %v6688 = vunpack.c.l.b16 %v6598
      %v6689 = vunpack.c.l.b16 %v6599
      %v6690 = vunpack.c.l.b16 %v6600
      %v6691 = vunpack.c.l.b16 %v6601
      %v6692 = vunpack.c.l.b16 %v6602
      %v6693 = vunpack.c.l.b16 %v6603
      %v6694 = vunpack.c.l.b16 %v6604
      %v6695 = vunpack.c.l.b16 %v6605
      %v6696 = vunpack.c.l.b16 %v6606
      %v6697 = vunpack.c.l.b16 %v6607
      %v6698 = vunpack.c.l.b16 %v6608
      %v6699 = vunpack.c.l.b16 %v6609
      %v6700 = vunpack.c.l.b16 %v6610
      %v6701 = vunpack.c.l.b16 %v6611
      %v6702 = vunpack.c.l.b16 %v6612
      %v6703 = vunpack.c.l.b16 %v6613
      %v6704 = vunpack.c.l.b16 %v6614
      %v6705 = vunpack.c.l.b16 %v6615
      %v6706 = vunpack.c.l.b16 %v6616
      %v6707 = vunpack.c.l.b16 %v6617
      %v6708 = vunpack.c.l.b16 %v6618
      %v6709 = vunpack.c.l.b16 %v6619
      %v6710 = vunpack.c.l.b16 %v6620
      %v6711 = vunpack.c.l.b16 %v6621
      %v6712 = vunpack.c.l.b16 %v6622
      %v6713 = vpack.c.b16 %v6677, %v6676
      %v6714 = vpack.c.b16 %v6679, %v6678
      %v6715 = vpack.c.b16 %v6681, %v6680
      %v6716 = vpack.c.b16 %v6683, %v6682
      %v6717 = vpack.c.b16 %v6685, %v6684
      %v6718 = vpack.c.b16 %v6687, %v6686
      %v6719 = vpack.c.b16 %v6689, %v6688
      %v6720 = vpack.c.b16 %v6691, %v6690
      %v6721 = vpack.c.b16 %v6693, %v6692
      %v6722 = vpack.c.b16 %v6695, %v6694
      %v6723 = vpack.c.b16 %v6697, %v6696
      %v6724 = vpack.c.b16 %v6699, %v6698
      %v6725 = vpack.c.b16 %v6701, %v6700
      %v6726 = vpack.c.b16 %v6703, %v6702
      %v6727 = vpack.c.b16 %v6705, %v6704
      %v6728 = vpack.c.b16 %v6707, %v6706
      %v6729 = vpack.c.b16 %v6709, %v6708
      %v6730 = vpack.c.b16 %v6711, %v6710
      %v6731 = vpack.c.b16 %v6712, %v6712
      %v6733 = vshrl.u32 %v6713, 16
      %v6735 = vrot.slane %v6733, 3
      %v6736 = vshll.u32 %v6713, 16
      %v6738 = vrot.slane %v6736, 4
      %v6739 = vor.u32 %v6735, %v6738
      %v6741 = vshrl.u32 %v6714, 16
      %v6743 = vrot.slane %v6741, 3
      %v6744 = vshll.u32 %v6714, 16
      %v6746 = vrot.slane %v6744, 4
      %v6747 = vor.u32 %v6743, %v6746
      %v6748 = vsel %vm1828, %v6739, %v6747
      %v6750 = vshrl.u32 %v6715, 16
      %v6752 = vrot.slane %v6750, 3
      %v6753 = vshll.u32 %v6715, 16
      %v6755 = vrot.slane %v6753, 4
      %v6756 = vor.u32 %v6752, %v6755
      %v6757 = vsel %vm1828, %v6747, %v6756
      %v6759 = vshrl.u32 %v6716, 16
      %v6761 = vrot.slane %v6759, 3
      %v6762 = vshll.u32 %v6716, 16
      %v6764 = vrot.slane %v6762, 4
      %v6765 = vor.u32 %v6761, %v6764
      %v6766 = vsel %vm1828, %v6756, %v6765
      %v6768 = vshrl.u32 %v6717, 16
      %v6770 = vrot.slane %v6768, 3
      %v6771 = vshll.u32 %v6717, 16
      %v6773 = vrot.slane %v6771, 4
      %v6774 = vor.u32 %v6770, %v6773
      %v6775 = vsel %vm1828, %v6765, %v6774
      %v6777 = vshrl.u32 %v6718, 16
      %v6779 = vrot.slane %v6777, 3
      %v6780 = vshll.u32 %v6718, 16
      %v6782 = vrot.slane %v6780, 4
      %v6783 = vor.u32 %v6779, %v6782
      %v6784 = vsel %vm1828, %v6774, %v6783
      %v6786 = vshrl.u32 %v6719, 16
      %v6788 = vrot.slane %v6786, 3
      %v6789 = vshll.u32 %v6719, 16
      %v6791 = vrot.slane %v6789, 4
      %v6792 = vor.u32 %v6788, %v6791
      %v6793 = vsel %vm1828, %v6783, %v6792
      %v6795 = vshrl.u32 %v6720, 16
      %v6797 = vrot.slane %v6795, 3
      %v6798 = vshll.u32 %v6720, 16
      %v6800 = vrot.slane %v6798, 4
      %v6801 = vor.u32 %v6797, %v6800
      %v6802 = vsel %vm1828, %v6792, %v6801
      %v6804 = vshrl.u32 %v6721, 16
      %v6806 = vrot.slane %v6804, 3
      %v6807 = vshll.u32 %v6721, 16
      %v6809 = vrot.slane %v6807, 4
      %v6810 = vor.u32 %v6806, %v6809
      %v6811 = vsel %vm1828, %v6801, %v6810
      %v6813 = vshrl.u32 %v6722, 16
      %v6815 = vrot.slane %v6813, 3
      %v6816 = vshll.u32 %v6722, 16
      %v6818 = vrot.slane %v6816, 4
      %v6819 = vor.u32 %v6815, %v6818
      %v6820 = vsel %vm1828, %v6810, %v6819
      %v6822 = vshrl.u32 %v6723, 16
      %v6824 = vrot.slane %v6822, 3
      %v6825 = vshll.u32 %v6723, 16
      %v6827 = vrot.slane %v6825, 4
      %v6828 = vor.u32 %v6824, %v6827
      %v6829 = vsel %vm1828, %v6819, %v6828
      %v6831 = vshrl.u32 %v6724, 16
      %v6833 = vrot.slane %v6831, 3
      %v6834 = vshll.u32 %v6724, 16
      %v6836 = vrot.slane %v6834, 4
      %v6837 = vor.u32 %v6833, %v6836
      %v6838 = vsel %vm1828, %v6828, %v6837
      %v6840 = vshrl.u32 %v6725, 16
      %v6842 = vrot.slane %v6840, 3
      %v6843 = vshll.u32 %v6725, 16
      %v6845 = vrot.slane %v6843, 4
      %v6846 = vor.u32 %v6842, %v6845
      %v6847 = vsel %vm1828, %v6837, %v6846
      %v6849 = vshrl.u32 %v6726, 16
      %v6851 = vrot.slane %v6849, 3
      %v6852 = vshll.u32 %v6726, 16
      %v6854 = vrot.slane %v6852, 4
      %v6855 = vor.u32 %v6851, %v6854
      %v6856 = vsel %vm1828, %v6846, %v6855
      %v6858 = vshrl.u32 %v6727, 16
      %v6860 = vrot.slane %v6858, 3
      %v6861 = vshll.u32 %v6727, 16
      %v6863 = vrot.slane %v6861, 4
      %v6864 = vor.u32 %v6860, %v6863
      %v6865 = vsel %vm1828, %v6855, %v6864
      %v6867 = vshrl.u32 %v6728, 16
      %v6869 = vrot.slane %v6867, 3
      %v6870 = vshll.u32 %v6728, 16
      %v6872 = vrot.slane %v6870, 4
      %v6873 = vor.u32 %v6869, %v6872
      %v6874 = vsel %vm1828, %v6864, %v6873
      %v6876 = vshrl.u32 %v6729, 16
      %v6878 = vrot.slane %v6876, 3
      %v6879 = vshll.u32 %v6729, 16
      %v6881 = vrot.slane %v6879, 4
      %v6882 = vor.u32 %v6878, %v6881
      %v6883 = vsel %vm1828, %v6873, %v6882
      %v6885 = vshrl.u32 %v6730, 16
      %v6887 = vrot.slane %v6885, 3
      %v6888 = vshll.u32 %v6730, 16
      %v6890 = vrot.slane %v6888, 4
      %v6891 = vor.u32 %v6887, %v6890
      %v6892 = vsel %vm1828, %v6882, %v6891
      %v6894 = vshrl.u32 %v6731, 16
      %v6896 = vrot.slane %v6894, 3
      %v6897 = vshll.u32 %v6731, 16
      %v6899 = vrot.slane %v6897, 4
      %v6900 = vor.u32 %v6896, %v6899
      %v6901 = vsel %vm1828, %v6891, %v6900
      %v6936 = vunpack.c.l.b16 %v6623
      %v6937 = vunpack.c.l.b16 %v6624
      %v6938 = vunpack.c.l.b16 %v6625
      %v6939 = vunpack.c.l.b16 %v6626
      %v6940 = vunpack.c.l.b16 %v6627
      %v6941 = vunpack.c.l.b16 %v6628
      %v6942 = vunpack.c.l.b16 %v6629
      %v6943 = vunpack.c.l.b16 %v6630
      %v6944 = vunpack.c.l.b16 %v6631
      %v6945 = vunpack.c.l.b16 %v6632
      %v6946 = vunpack.c.l.b16 %v6633
      %v6947 = vunpack.c.l.b16 %v6634
      %v6948 = vunpack.c.l.b16 %v6635
      %v6949 = vunpack.c.l.b16 %v6636
      %v6950 = vunpack.c.l.b16 %v6637
      %v6951 = vunpack.c.l.b16 %v6638
      %v6952 = vpack.c.b16 %v6937, %v6936
      %v6953 = vpack.c.b16 %v6939, %v6938
      %v6954 = vpack.c.b16 %v6941, %v6940
      %v6955 = vpack.c.b16 %v6943, %v6942
      %v6956 = vpack.c.b16 %v6945, %v6944
      %v6957 = vpack.c.b16 %v6947, %v6946
      %v6958 = vpack.c.b16 %v6949, %v6948
      %v6959 = vpack.c.b16 %v6951, %v6950
      %6968 = vmatprep.subr.bf16.mxu0 0
      %6969 = vmatpush1.bf16.msra.mxu0 %v6959
      %6970 = vmatprep.subr.bf16.mxu0 0
      %6971 = vmatpush1.bf16.msra.mxu0 %v6958
      %6972 = vmatprep.subr.bf16.mxu0 0
      %6973 = vmatpush1.bf16.msra.mxu0 %v6957
      %6974 = vmatprep.subr.bf16.mxu0 0
      %6975 = vmatpush1.bf16.msra.mxu0 %v6956
      %6976 = vmatprep.subr.bf16.mxu0 0
      %6977 = vmatpush1.bf16.msra.mxu0 %v6955
      %6978 = vmatprep.subr.bf16.mxu0 0
      %6979 = vmatpush1.bf16.msra.mxu0 %v6954
      %6980 = vmatprep.subr.bf16.mxu0 0
      %6981 = vmatpush1.bf16.msra.mxu0 %v6953
      %6982 = vmatprep.subr.bf16.mxu0 0
      %6983 = vmatpush1.bf16.msra.mxu0 %v6952
      %6984 = vmatprep.subr.bf16.mxu0 0
      %6985 = vmatpush2.bf16.msra.mxu0 0
      %6986 = vmatprep.subr.bf16.mxu0 0
      %6987 = vmatpush2.bf16.msra.mxu0 0
      %6988 = vmatprep.subr.bf16.mxu0 0
      %6989 = vmatpush2.bf16.msra.mxu0 0
      %6990 = vmatprep.subr.bf16.mxu0 0
      %6991 = vmatpush2.bf16.msra.mxu0 0
      %6992 = vmatprep.subr.bf16.mxu0 0
      %6993 = vmatpush2.bf16.msra.mxu0 0
      %6994 = vmatprep.subr.bf16.mxu0 0
      %6995 = vmatpush2.bf16.msra.mxu0 0
      %6996 = vmatprep.subr.bf16.mxu0 0
      %6997 = vmatpush2.bf16.msra.mxu0 0
      %6998 = vmatprep.subr.bf16.mxu0 0
      %6999 = vmatpush2.bf16.msra.mxu0 0
      %7000 = vmatprep.mubr.bf16.mxu0 0
      %7001 = vmatmul.mubr.bf16.gmra.mxu0 %v6748
      %v7002 = vpop.f32.mrf.mxu0
      %v7003 = vadd.f32 0.0, %v7002
      %v7004 = vpop.f32.mrf.mxu0
      %v7005 = vpop.f32.mrf.mxu0
      %v7006 = vadd.f32 0.0, %v7005
      %v7007 = vpop.f32.mrf.mxu0
      %7008 = vmatprep.mubr.bf16.mxu0 0
      %7009 = vmatmul.mubr.bf16.gmra.mxu0 %v6757
      %v7010 = vpop.f32.mrf.mxu0
      %v7011 = vadd.f32 0.0, %v7010
      %v7012 = vpop.f32.mrf.mxu0
      %v7013 = vpop.f32.mrf.mxu0
      %v7014 = vadd.f32 0.0, %v7013
      %v7015 = vpop.f32.mrf.mxu0
      %7016 = vmatprep.mubr.bf16.mxu0 0
      %7017 = vmatmul.mubr.bf16.gmra.mxu0 %v6766
      %v7018 = vpop.f32.mrf.mxu0
      %v7019 = vadd.f32 0.0, %v7018
      %v7020 = vpop.f32.mrf.mxu0
      %v7021 = vpop.f32.mrf.mxu0
      %v7022 = vadd.f32 0.0, %v7021
      %v7023 = vpop.f32.mrf.mxu0
      %7024 = vmatprep.mubr.bf16.mxu0 0
      %7025 = vmatmul.mubr.bf16.gmra.mxu0 %v6775
      %v7026 = vpop.f32.mrf.mxu0
      %v7027 = vadd.f32 0.0, %v7026
      %v7028 = vpop.f32.mrf.mxu0
      %v7029 = vpop.f32.mrf.mxu0
      %v7030 = vadd.f32 0.0, %v7029
      %v7031 = vpop.f32.mrf.mxu0
      %7032 = vmatprep.mubr.bf16.mxu0 0
      %7033 = vmatmul.mubr.bf16.gmra.mxu0 %v6784
      %v7034 = vpop.f32.mrf.mxu0
      %v7035 = vadd.f32 0.0, %v7034
      %v7036 = vpop.f32.mrf.mxu0
      %v7037 = vpop.f32.mrf.mxu0
      %v7038 = vadd.f32 0.0, %v7037
      %v7039 = vpop.f32.mrf.mxu0
      %7040 = vmatprep.mubr.bf16.mxu0 0
      %7041 = vmatmul.mubr.bf16.gmra.mxu0 %v6793
      %v7042 = vpop.f32.mrf.mxu0
      %v7043 = vadd.f32 0.0, %v7042
      %v7044 = vpop.f32.mrf.mxu0
      %v7045 = vpop.f32.mrf.mxu0
      %v7046 = vadd.f32 0.0, %v7045
      %v7047 = vpop.f32.mrf.mxu0
      %7048 = vmatprep.mubr.bf16.mxu0 0
      %7049 = vmatmul.mubr.bf16.gmra.mxu0 %v6802
      %v7050 = vpop.f32.mrf.mxu0
      %v7051 = vadd.f32 0.0, %v7050
      %v7052 = vpop.f32.mrf.mxu0
      %v7053 = vpop.f32.mrf.mxu0
      %v7054 = vadd.f32 0.0, %v7053
      %v7055 = vpop.f32.mrf.mxu0
      %7056 = vmatprep.mubr.bf16.mxu0 0
      %7057 = vmatmul.mubr.bf16.gmra.mxu0 %v6811
      %v7058 = vpop.f32.mrf.mxu0
      %v7059 = vadd.f32 0.0, %v7058
      %v7060 = vpop.f32.mrf.mxu0
      %v7061 = vpop.f32.mrf.mxu0
      %v7062 = vadd.f32 0.0, %v7061
      %v7063 = vpop.f32.mrf.mxu0
      %7064 = vmatprep.mubr.bf16.mxu0 0
      %7065 = vmatmul.mubr.bf16.gmra.mxu0 %v6820
      %v7066 = vpop.f32.mrf.mxu0
      %v7067 = vadd.f32 0.0, %v7066
      %v7068 = vpop.f32.mrf.mxu0
      %v7069 = vpop.f32.mrf.mxu0
      %v7070 = vadd.f32 0.0, %v7069
      %v7071 = vpop.f32.mrf.mxu0
      %7072 = vmatprep.mubr.bf16.mxu0 0
      %7073 = vmatmul.mubr.bf16.gmra.mxu0 %v6829
      %v7074 = vpop.f32.mrf.mxu0
      %v7075 = vadd.f32 0.0, %v7074
      %v7076 = vpop.f32.mrf.mxu0
      %v7077 = vpop.f32.mrf.mxu0
      %v7078 = vadd.f32 0.0, %v7077
      %v7079 = vpop.f32.mrf.mxu0
      %7080 = vmatprep.mubr.bf16.mxu0 0
      %7081 = vmatmul.mubr.bf16.gmra.mxu0 %v6838
      %v7082 = vpop.f32.mrf.mxu0
      %v7083 = vadd.f32 0.0, %v7082
      %v7084 = vpop.f32.mrf.mxu0
      %v7085 = vpop.f32.mrf.mxu0
      %v7086 = vadd.f32 0.0, %v7085
      %v7087 = vpop.f32.mrf.mxu0
      %7088 = vmatprep.mubr.bf16.mxu0 0
      %7089 = vmatmul.mubr.bf16.gmra.mxu0 %v6847
      %v7090 = vpop.f32.mrf.mxu0
      %v7091 = vadd.f32 0.0, %v7090
      %v7092 = vpop.f32.mrf.mxu0
      %v7093 = vpop.f32.mrf.mxu0
      %v7094 = vadd.f32 0.0, %v7093
      %v7095 = vpop.f32.mrf.mxu0
      %7096 = vmatprep.mubr.bf16.mxu0 0
      %7097 = vmatmul.mubr.bf16.gmra.mxu0 %v6856
      %v7098 = vpop.f32.mrf.mxu0
      %v7099 = vadd.f32 0.0, %v7098
      %v7100 = vpop.f32.mrf.mxu0
      %v7101 = vpop.f32.mrf.mxu0
      %v7102 = vadd.f32 0.0, %v7101
      %v7103 = vpop.f32.mrf.mxu0
      %7104 = vmatprep.mubr.bf16.mxu0 0
      %7105 = vmatmul.mubr.bf16.gmra.mxu0 %v6865
      %v7106 = vpop.f32.mrf.mxu0
      %v7107 = vadd.f32 0.0, %v7106
      %v7108 = vpop.f32.mrf.mxu0
      %v7109 = vpop.f32.mrf.mxu0
      %v7110 = vadd.f32 0.0, %v7109
      %v7111 = vpop.f32.mrf.mxu0
      %7112 = vmatprep.mubr.bf16.mxu0 0
      %7113 = vmatmul.mubr.bf16.gmra.mxu0 %v6874
      %v7114 = vpop.f32.mrf.mxu0
      %v7115 = vadd.f32 0.0, %v7114
      %v7116 = vpop.f32.mrf.mxu0
      %v7117 = vpop.f32.mrf.mxu0
      %v7118 = vadd.f32 0.0, %v7117
      %v7119 = vpop.f32.mrf.mxu0
      %7120 = vmatprep.mubr.bf16.mxu0 0
      %7121 = vmatmul.mubr.bf16.gmra.mxu0 %v6883
      %v7122 = vpop.f32.mrf.mxu0
      %v7123 = vadd.f32 0.0, %v7122
      %v7124 = vpop.f32.mrf.mxu0
      %v7125 = vpop.f32.mrf.mxu0
      %v7126 = vadd.f32 0.0, %v7125
      %v7127 = vpop.f32.mrf.mxu0
      %7128 = vmatprep.mubr.bf16.mxu0 0
      %7129 = vmatmul.mubr.bf16.gmra.mxu0 %v6892
      %v7130 = vpop.f32.mrf.mxu0
      %v7131 = vadd.f32 0.0, %v7130
      %v7132 = vpop.f32.mrf.mxu0
      %v7133 = vpop.f32.mrf.mxu0
      %v7134 = vadd.f32 0.0, %v7133
      %v7135 = vpop.f32.mrf.mxu0
      %7136 = vmatprep.mubr.bf16.mxu0 0
      %7137 = vmatmul.mubr.bf16.gmra.mxu0 %v6901
      %v7138 = vpop.f32.mrf.mxu0
      %v7139 = vadd.f32 0.0, %v7138
      %v7140 = vpop.f32.mrf.mxu0
      %v7141 = vpop.f32.mrf.mxu0
      %v7142 = vadd.f32 0.0, %v7141
      %v7143 = vpop.f32.mrf.mxu0
      %7144 = vdwg.mxu0
      %v7145 = vadd.f32 %v6550, %v7003
      %v7146 = vadd.f32 %v6551, %v7006
      %v7147 = vadd.f32 %v6552, %v7011
      %v7148 = vadd.f32 %v6553, %v7014
      %v7149 = vadd.f32 %v6554, %v7019
      %v7150 = vadd.f32 %v6555, %v7022
      %v7151 = vadd.f32 %v6556, %v7027
      %v7152 = vadd.f32 %v6557, %v7030
      %v7153 = vadd.f32 %v6558, %v7035
      %v7154 = vadd.f32 %v6559, %v7038
      %v7155 = vadd.f32 %v6560, %v7043
      %v7156 = vadd.f32 %v6561, %v7046
      %v7157 = vadd.f32 %v6562, %v7051
      %v7158 = vadd.f32 %v6563, %v7054
      %v7159 = vadd.f32 %v6564, %v7059
      %v7160 = vadd.f32 %v6565, %v7062
      %v7161 = vadd.f32 %v6566, %v7067
      %v7162 = vadd.f32 %v6567, %v7070
      %v7163 = vadd.f32 %v6568, %v7075
      %v7164 = vadd.f32 %v6569, %v7078
      %v7165 = vadd.f32 %v6570, %v7083
      %v7166 = vadd.f32 %v6571, %v7086
      %v7167 = vadd.f32 %v6572, %v7091
      %v7168 = vadd.f32 %v6573, %v7094
      %v7169 = vadd.f32 %v6574, %v7099
      %v7170 = vadd.f32 %v6575, %v7102
      %v7171 = vadd.f32 %v6576, %v7107
      %v7172 = vadd.f32 %v6577, %v7110
      %v7173 = vadd.f32 %v6578, %v7115
      %v7174 = vadd.f32 %v6579, %v7118
      %v7175 = vadd.f32 %v6580, %v7123
      %v7176 = vadd.f32 %v6581, %v7126
      %v7177 = vadd.f32 %v6582, %v7131
      %v7178 = vadd.f32 %v6583, %v7134
      %v7179 = vadd.f32 %v6584, %v7139
      %v7180 = vadd.f32 %v6585, %v7142
      %v7181 = vld [vmem:[%s3 + $0x100] sm:$0xf]
      %v7182 = vld [vmem:[%s3 + $0x104] sm:$0xf]
      %v7183 = vld [vmem:[%s3 + $0x108] sm:$0xf]
      %v7184 = vld [vmem:[%s3 + $0x10c] sm:$0xf]
      %v7185 = vld [vmem:[%s3 + $0x110] sm:$0xf]
      %v7186 = vld [vmem:[%s3 + $0x114] sm:$0xf]
      %v7187 = vld [vmem:[%s3 + $0x118] sm:$0xf]
      %v7188 = vld [vmem:[%s3 + $0x11c] sm:$0xf]
      %v7189 = vld [vmem:[%s3 + $0x120] sm:$0xf]
      %v7190 = vld [vmem:[%s3 + $0x124] sm:$0xf]
      %v7191 = vld [vmem:[%s3 + $0x128] sm:$0xf]
      %v7192 = vld [vmem:[%s3 + $0x12c] sm:$0xf]
      %v7193 = vld [vmem:[%s3 + $0x130] sm:$0xf]
      %v7194 = vld [vmem:[%s3 + $0x134] sm:$0xf]
      %v7195 = vld [vmem:[%s3 + $0x138] sm:$0xf]
      %v7196 = vld [vmem:[%s3 + $0x13c] sm:$0xf]
      %v7197 = vpack.c.b16 %v6678, %v6677
      %v7198 = vpack.c.b16 %v6680, %v6679
      %v7199 = vpack.c.b16 %v6682, %v6681
      %v7200 = vpack.c.b16 %v6684, %v6683
      %v7201 = vpack.c.b16 %v6686, %v6685
      %v7202 = vpack.c.b16 %v6688, %v6687
      %v7203 = vpack.c.b16 %v6690, %v6689
      %v7204 = vpack.c.b16 %v6692, %v6691
      %v7205 = vpack.c.b16 %v6694, %v6693
      %v7206 = vpack.c.b16 %v6696, %v6695
      %v7207 = vpack.c.b16 %v6698, %v6697
      %v7208 = vpack.c.b16 %v6700, %v6699
      %v7209 = vpack.c.b16 %v6702, %v6701
      %v7210 = vpack.c.b16 %v6704, %v6703
      %v7211 = vpack.c.b16 %v6706, %v6705
      %v7212 = vpack.c.b16 %v6708, %v6707
      %v7213 = vpack.c.b16 %v6710, %v6709
      %v7214 = vpack.c.b16 %v6712, %v6711
      %v7249 = vunpack.c.l.b16 %v7181
      %v7250 = vunpack.c.l.b16 %v7182
      %v7251 = vunpack.c.l.b16 %v7183
      %v7252 = vunpack.c.l.b16 %v7184
      %v7253 = vunpack.c.l.b16 %v7185
      %v7254 = vunpack.c.l.b16 %v7186
      %v7255 = vunpack.c.l.b16 %v7187
      %v7256 = vunpack.c.l.b16 %v7188
      %v7257 = vunpack.c.l.b16 %v7189
      %v7258 = vunpack.c.l.b16 %v7190
      %v7259 = vunpack.c.l.b16 %v7191
      %v7260 = vunpack.c.l.b16 %v7192
      %v7261 = vunpack.c.l.b16 %v7193
      %v7262 = vunpack.c.l.b16 %v7194
      %v7263 = vunpack.c.l.b16 %v7195
      %v7264 = vunpack.c.l.b16 %v7196
      %v7265 = vpack.c.b16 %v7250, %v7249
      %v7266 = vpack.c.b16 %v7252, %v7251
      %v7267 = vpack.c.b16 %v7254, %v7253
      %v7268 = vpack.c.b16 %v7256, %v7255
      %v7269 = vpack.c.b16 %v7258, %v7257
      %v7270 = vpack.c.b16 %v7260, %v7259
      %v7271 = vpack.c.b16 %v7262, %v7261
      %v7272 = vpack.c.b16 %v7264, %v7263
      %7281 = vmatprep.subr.bf16.mxu0 0
      %7282 = vmatpush1.bf16.msra.mxu0 %v7272
      %7283 = vmatprep.subr.bf16.mxu0 0
      %7284 = vmatpush1.bf16.msra.mxu0 %v7271
      %7285 = vmatprep.subr.bf16.mxu0 0
      %7286 = vmatpush1.bf16.msra.mxu0 %v7270
      %7287 = vmatprep.subr.bf16.mxu0 0
      %7288 = vmatpush1.bf16.msra.mxu0 %v7269
      %7289 = vmatprep.subr.bf16.mxu0 0
      %7290 = vmatpush1.bf16.msra.mxu0 %v7268
      %7291 = vmatprep.subr.bf16.mxu0 0
      %7292 = vmatpush1.bf16.msra.mxu0 %v7267
      %7293 = vmatprep.subr.bf16.mxu0 0
      %7294 = vmatpush1.bf16.msra.mxu0 %v7266
      %7295 = vmatprep.subr.bf16.mxu0 0
      %7296 = vmatpush1.bf16.msra.mxu0 %v7265
      %7297 = vmatprep.subr.bf16.mxu0 0
      %7298 = vmatpush2.bf16.msra.mxu0 0
      %7299 = vmatprep.subr.bf16.mxu0 0
      %7300 = vmatpush2.bf16.msra.mxu0 0
      %7301 = vmatprep.subr.bf16.mxu0 0
      %7302 = vmatpush2.bf16.msra.mxu0 0
      %7303 = vmatprep.subr.bf16.mxu0 0
      %7304 = vmatpush2.bf16.msra.mxu0 0
      %7305 = vmatprep.subr.bf16.mxu0 0
      %7306 = vmatpush2.bf16.msra.mxu0 0
      %7307 = vmatprep.subr.bf16.mxu0 0
      %7308 = vmatpush2.bf16.msra.mxu0 0
      %7309 = vmatprep.subr.bf16.mxu0 0
      %7310 = vmatpush2.bf16.msra.mxu0 0
      %7311 = vmatprep.subr.bf16.mxu0 0
      %7312 = vmatpush2.bf16.msra.mxu0 0
      %7313 = vmatprep.mubr.bf16.mxu0 0
      %7314 = vmatmul.mubr.bf16.gmra.mxu0 %v7197
      %v7315 = vpop.f32.mrf.mxu0
      %v7316 = vadd.f32 0.0, %v7315
      %v7317 = vpop.f32.mrf.mxu0
      %v7318 = vpop.f32.mrf.mxu0
      %v7319 = vadd.f32 0.0, %v7318
      %v7320 = vpop.f32.mrf.mxu0
      %7321 = vmatprep.mubr.bf16.mxu0 0
      %7322 = vmatmul.mubr.bf16.gmra.mxu0 %v7198
      %v7323 = vpop.f32.mrf.mxu0
      %v7324 = vadd.f32 0.0, %v7323
      %v7325 = vpop.f32.mrf.mxu0
      %v7326 = vpop.f32.mrf.mxu0
      %v7327 = vadd.f32 0.0, %v7326
      %v7328 = vpop.f32.mrf.mxu0
      %7329 = vmatprep.mubr.bf16.mxu0 0
      %7330 = vmatmul.mubr.bf16.gmra.mxu0 %v7199
      %v7331 = vpop.f32.mrf.mxu0
      %v7332 = vadd.f32 0.0, %v7331
      %v7333 = vpop.f32.mrf.mxu0
      %v7334 = vpop.f32.mrf.mxu0
      %v7335 = vadd.f32 0.0, %v7334
      %v7336 = vpop.f32.mrf.mxu0
      %7337 = vmatprep.mubr.bf16.mxu0 0
      %7338 = vmatmul.mubr.bf16.gmra.mxu0 %v7200
      %v7339 = vpop.f32.mrf.mxu0
      %v7340 = vadd.f32 0.0, %v7339
      %v7341 = vpop.f32.mrf.mxu0
      %v7342 = vpop.f32.mrf.mxu0
      %v7343 = vadd.f32 0.0, %v7342
      %v7344 = vpop.f32.mrf.mxu0
      %7345 = vmatprep.mubr.bf16.mxu0 0
      %7346 = vmatmul.mubr.bf16.gmra.mxu0 %v7201
      %v7347 = vpop.f32.mrf.mxu0
      %v7348 = vadd.f32 0.0, %v7347
      %v7349 = vpop.f32.mrf.mxu0
      %v7350 = vpop.f32.mrf.mxu0
      %v7351 = vadd.f32 0.0, %v7350
      %v7352 = vpop.f32.mrf.mxu0
      %7353 = vmatprep.mubr.bf16.mxu0 0
      %7354 = vmatmul.mubr.bf16.gmra.mxu0 %v7202
      %v7355 = vpop.f32.mrf.mxu0
      %v7356 = vadd.f32 0.0, %v7355
      %v7357 = vpop.f32.mrf.mxu0
      %v7358 = vpop.f32.mrf.mxu0
      %v7359 = vadd.f32 0.0, %v7358
      %v7360 = vpop.f32.mrf.mxu0
      %7361 = vmatprep.mubr.bf16.mxu0 0
      %7362 = vmatmul.mubr.bf16.gmra.mxu0 %v7203
      %v7363 = vpop.f32.mrf.mxu0
      %v7364 = vadd.f32 0.0, %v7363
      %v7365 = vpop.f32.mrf.mxu0
      %v7366 = vpop.f32.mrf.mxu0
      %v7367 = vadd.f32 0.0, %v7366
      %v7368 = vpop.f32.mrf.mxu0
      %7369 = vmatprep.mubr.bf16.mxu0 0
      %7370 = vmatmul.mubr.bf16.gmra.mxu0 %v7204
      %v7371 = vpop.f32.mrf.mxu0
      %v7372 = vadd.f32 0.0, %v7371
      %v7373 = vpop.f32.mrf.mxu0
      %v7374 = vpop.f32.mrf.mxu0
      %v7375 = vadd.f32 0.0, %v7374
      %v7376 = vpop.f32.mrf.mxu0
      %7377 = vmatprep.mubr.bf16.mxu0 0
      %7378 = vmatmul.mubr.bf16.gmra.mxu0 %v7205
      %v7379 = vpop.f32.mrf.mxu0
      %v7380 = vadd.f32 0.0, %v7379
      %v7381 = vpop.f32.mrf.mxu0
      %v7382 = vpop.f32.mrf.mxu0
      %v7383 = vadd.f32 0.0, %v7382
      %v7384 = vpop.f32.mrf.mxu0
      %7385 = vmatprep.mubr.bf16.mxu0 0
      %7386 = vmatmul.mubr.bf16.gmra.mxu0 %v7206
      %v7387 = vpop.f32.mrf.mxu0
      %v7388 = vadd.f32 0.0, %v7387
      %v7389 = vpop.f32.mrf.mxu0
      %v7390 = vpop.f32.mrf.mxu0
      %v7391 = vadd.f32 0.0, %v7390
      %v7392 = vpop.f32.mrf.mxu0
      %7393 = vmatprep.mubr.bf16.mxu0 0
      %7394 = vmatmul.mubr.bf16.gmra.mxu0 %v7207
      %v7395 = vpop.f32.mrf.mxu0
      %v7396 = vadd.f32 0.0, %v7395
      %v7397 = vpop.f32.mrf.mxu0
      %v7398 = vpop.f32.mrf.mxu0
      %v7399 = vadd.f32 0.0, %v7398
      %v7400 = vpop.f32.mrf.mxu0
      %7401 = vmatprep.mubr.bf16.mxu0 0
      %7402 = vmatmul.mubr.bf16.gmra.mxu0 %v7208
      %v7403 = vpop.f32.mrf.mxu0
      %v7404 = vadd.f32 0.0, %v7403
      %v7405 = vpop.f32.mrf.mxu0
      %v7406 = vpop.f32.mrf.mxu0
      %v7407 = vadd.f32 0.0, %v7406
      %v7408 = vpop.f32.mrf.mxu0
      %7409 = vmatprep.mubr.bf16.mxu0 0
      %7410 = vmatmul.mubr.bf16.gmra.mxu0 %v7209
      %v7411 = vpop.f32.mrf.mxu0
      %v7412 = vadd.f32 0.0, %v7411
      %v7413 = vpop.f32.mrf.mxu0
      %v7414 = vpop.f32.mrf.mxu0
      %v7415 = vadd.f32 0.0, %v7414
      %v7416 = vpop.f32.mrf.mxu0
      %7417 = vmatprep.mubr.bf16.mxu0 0
      %7418 = vmatmul.mubr.bf16.gmra.mxu0 %v7210
      %v7419 = vpop.f32.mrf.mxu0
      %v7420 = vadd.f32 0.0, %v7419
      %v7421 = vpop.f32.mrf.mxu0
      %v7422 = vpop.f32.mrf.mxu0
      %v7423 = vadd.f32 0.0, %v7422
      %v7424 = vpop.f32.mrf.mxu0
      %7425 = vmatprep.mubr.bf16.mxu0 0
      %7426 = vmatmul.mubr.bf16.gmra.mxu0 %v7211
      %v7427 = vpop.f32.mrf.mxu0
      %v7428 = vadd.f32 0.0, %v7427
      %v7429 = vpop.f32.mrf.mxu0
      %v7430 = vpop.f32.mrf.mxu0
      %v7431 = vadd.f32 0.0, %v7430
      %v7432 = vpop.f32.mrf.mxu0
      %7433 = vmatprep.mubr.bf16.mxu0 0
      %7434 = vmatmul.mubr.bf16.gmra.mxu0 %v7212
      %v7435 = vpop.f32.mrf.mxu0
      %v7436 = vadd.f32 0.0, %v7435
      %v7437 = vpop.f32.mrf.mxu0
      %v7438 = vpop.f32.mrf.mxu0
      %v7439 = vadd.f32 0.0, %v7438
      %v7440 = vpop.f32.mrf.mxu0
      %7441 = vmatprep.mubr.bf16.mxu0 0
      %7442 = vmatmul.mubr.bf16.gmra.mxu0 %v7213
      %v7443 = vpop.f32.mrf.mxu0
      %v7444 = vadd.f32 0.0, %v7443
      %v7445 = vpop.f32.mrf.mxu0
      %v7446 = vpop.f32.mrf.mxu0
      %v7447 = vadd.f32 0.0, %v7446
      %v7448 = vpop.f32.mrf.mxu0
      %7449 = vmatprep.mubr.bf16.mxu0 0
      %7450 = vmatmul.mubr.bf16.gmra.mxu0 %v7214
      %v7451 = vpop.f32.mrf.mxu0
      %v7452 = vadd.f32 0.0, %v7451
      %v7453 = vpop.f32.mrf.mxu0
      %v7454 = vpop.f32.mrf.mxu0
      %v7455 = vadd.f32 0.0, %v7454
      %v7456 = vpop.f32.mrf.mxu0
      %7457 = vdwg.mxu0
      %v7458 = vadd.f32 %v7145, %v7316
      %v7459 = vadd.f32 %v7146, %v7319
      %v7460 = vadd.f32 %v7147, %v7324
      %v7461 = vadd.f32 %v7148, %v7327
      %v7462 = vadd.f32 %v7149, %v7332
      %v7463 = vadd.f32 %v7150, %v7335
      %v7464 = vadd.f32 %v7151, %v7340
      %v7465 = vadd.f32 %v7152, %v7343
      %v7466 = vadd.f32 %v7153, %v7348
      %v7467 = vadd.f32 %v7154, %v7351
      %v7468 = vadd.f32 %v7155, %v7356
      %v7469 = vadd.f32 %v7156, %v7359
      %v7470 = vadd.f32 %v7157, %v7364
      %v7471 = vadd.f32 %v7158, %v7367
      %v7472 = vadd.f32 %v7159, %v7372
      %v7473 = vadd.f32 %v7160, %v7375
      %v7474 = vadd.f32 %v7161, %v7380
      %v7475 = vadd.f32 %v7162, %v7383
      %v7476 = vadd.f32 %v7163, %v7388
      %v7477 = vadd.f32 %v7164, %v7391
      %v7478 = vadd.f32 %v7165, %v7396
      %v7479 = vadd.f32 %v7166, %v7399
      %v7480 = vadd.f32 %v7167, %v7404
      %v7481 = vadd.f32 %v7168, %v7407
      %v7482 = vadd.f32 %v7169, %v7412
      %v7483 = vadd.f32 %v7170, %v7415
      %v7484 = vadd.f32 %v7171, %v7420
      %v7485 = vadd.f32 %v7172, %v7423
      %v7486 = vadd.f32 %v7173, %v7428
      %v7487 = vadd.f32 %v7174, %v7431
      %v7488 = vadd.f32 %v7175, %v7436
      %v7489 = vadd.f32 %v7176, %v7439
      %v7490 = vadd.f32 %v7177, %v7444
      %v7491 = vadd.f32 %v7178, %v7447
      %v7492 = vadd.f32 %v7179, %v7452
      %v7493 = vadd.f32 %v7180, %v7455
      %v7494 = vld [vmem:[#allocation2 + $0xc] sm:$0xf]
      %v7495 = vld [vmem:[#allocation2 + $0x10] sm:$0xf]
      %v7496 = vld [vmem:[#allocation2 + $0x14] sm:$0xf]
      %v7497 = vld [vmem:[#allocation2 + $0x18] sm:$0xf]
      %v7498 = vld [vmem:[#allocation2 + $0x1c] sm:$0xf]
      %v7499 = vld [vmem:[#allocation2 + $0x20] sm:$0xf]
      %v7500 = vld [vmem:[#allocation2 + $0x24] sm:$0xf]
      %v7501 = vld [vmem:[#allocation2 + $0x28] sm:$0xf]
      %v7502 = vld [vmem:[#allocation2 + $0x2c] sm:$0xf]
      %v7503 = vld [vmem:[#allocation2 + $0x30] sm:$0xf]
      %v7504 = vld [vmem:[#allocation2 + $0x34] sm:$0xf]
      %v7505 = vld [vmem:[#allocation2 + $0x38] sm:$0xf]
      %v7506 = vld [vmem:[#allocation2 + $0x3c] sm:$0xf]
      %v7507 = vld [vmem:[#allocation2 + $0x40] sm:$0xf]
      %v7508 = vld [vmem:[#allocation2 + $0x44] sm:$0xf]
      %v7509 = vld [vmem:[#allocation2 + $0x48] sm:$0xf]
      %v7510 = vld [vmem:[#allocation2 + $0x4c] sm:$0xf]
      %v7511 = vld [vmem:[#allocation2 + $0x50] sm:$0xf]
      %v7512 = vld [vmem:[#allocation2 + $0x54] sm:$0xf]
      %v7513 = vld [vmem:[#allocation2 + $0x58] sm:$0xf]
      %v7514 = vld [vmem:[#allocation2 + $0x5c] sm:$0xf]
      %v7515 = vld [vmem:[#allocation2 + $0x60] sm:$0xf]
      %v7516 = vld [vmem:[#allocation2 + $0x64] sm:$0xf]
      %v7517 = vld [vmem:[#allocation2 + $0x68] sm:$0xf]
      %v7518 = vld [vmem:[#allocation2 + $0x6c] sm:$0xf]
      %v7519 = vld [vmem:[#allocation2 + $0x70] sm:$0xf]
      %v7520 = vld [vmem:[#allocation2 + $0x74] sm:$0xf]
      %v7521 = vld [vmem:[#allocation2 + $0x78] sm:$0xf]
      %v7522 = vld [vmem:[#allocation2 + $0x7c] sm:$0xf]
      %v7523 = vld [vmem:[#allocation2 + $0x80] sm:$0xf]
      %v7524 = vld [vmem:[#allocation2 + $0x84] sm:$0xf]
      %v7525 = vld [vmem:[#allocation2 + $0x88] sm:$0xf]
      %v7526 = vld [vmem:[#allocation2 + $0x8c] sm:$0xf]
      %v7527 = vld [vmem:[#allocation2 + $0x90] sm:$0xf]
      %v7528 = vld [vmem:[#allocation2 + $0x94] sm:$0xf]
      %v7529 = vld [vmem:[#allocation2 + $0x98] sm:$0xf]
      %v7530 = vld [vmem:[#allocation2 + $0x9c] sm:$0x1]
      %v7531 = vld [vmem:[%s3 + $0x140] sm:$0xf]
      %v7532 = vld [vmem:[%s3 + $0x144] sm:$0xf]
      %v7533 = vld [vmem:[%s3 + $0x148] sm:$0xf]
      %v7534 = vld [vmem:[%s3 + $0x14c] sm:$0xf]
      %v7535 = vld [vmem:[%s3 + $0x150] sm:$0xf]
      %v7536 = vld [vmem:[%s3 + $0x154] sm:$0xf]
      %v7537 = vld [vmem:[%s3 + $0x158] sm:$0xf]
      %v7538 = vld [vmem:[%s3 + $0x15c] sm:$0xf]
      %v7539 = vld [vmem:[%s3 + $0x160] sm:$0xf]
      %v7540 = vld [vmem:[%s3 + $0x164] sm:$0xf]
      %v7541 = vld [vmem:[%s3 + $0x168] sm:$0xf]
      %v7542 = vld [vmem:[%s3 + $0x16c] sm:$0xf]
      %v7543 = vld [vmem:[%s3 + $0x170] sm:$0xf]
      %v7544 = vld [vmem:[%s3 + $0x174] sm:$0xf]
      %v7545 = vld [vmem:[%s3 + $0x178] sm:$0xf]
      %v7546 = vld [vmem:[%s3 + $0x17c] sm:$0xf]
      %v7584 = vunpack.c.l.b16 %v7494
      %v7585 = vunpack.c.l.b16 %v7495
      %v7586 = vunpack.c.l.b16 %v7496
      %v7587 = vunpack.c.l.b16 %v7497
      %v7588 = vunpack.c.l.b16 %v7498
      %v7589 = vunpack.c.l.b16 %v7499
      %v7590 = vunpack.c.l.b16 %v7500
      %v7591 = vunpack.c.l.b16 %v7501
      %v7592 = vunpack.c.l.b16 %v7502
      %v7593 = vunpack.c.l.b16 %v7503
      %v7594 = vunpack.c.l.b16 %v7504
      %v7595 = vunpack.c.l.b16 %v7505
      %v7596 = vunpack.c.l.b16 %v7506
      %v7597 = vunpack.c.l.b16 %v7507
      %v7598 = vunpack.c.l.b16 %v7508
      %v7599 = vunpack.c.l.b16 %v7509
      %v7600 = vunpack.c.l.b16 %v7510
      %v7601 = vunpack.c.l.b16 %v7511
      %v7602 = vunpack.c.l.b16 %v7512
      %v7603 = vunpack.c.l.b16 %v7513
      %v7604 = vunpack.c.l.b16 %v7514
      %v7605 = vunpack.c.l.b16 %v7515
      %v7606 = vunpack.c.l.b16 %v7516
      %v7607 = vunpack.c.l.b16 %v7517
      %v7608 = vunpack.c.l.b16 %v7518
      %v7609 = vunpack.c.l.b16 %v7519
      %v7610 = vunpack.c.l.b16 %v7520
      %v7611 = vunpack.c.l.b16 %v7521
      %v7612 = vunpack.c.l.b16 %v7522
      %v7613 = vunpack.c.l.b16 %v7523
      %v7614 = vunpack.c.l.b16 %v7524
      %v7615 = vunpack.c.l.b16 %v7525
      %v7616 = vunpack.c.l.b16 %v7526
      %v7617 = vunpack.c.l.b16 %v7527
      %v7618 = vunpack.c.l.b16 %v7528
      %v7619 = vunpack.c.l.b16 %v7529
      %v7620 = vunpack.c.l.b16 %v7530
      %v7621 = vpack.c.b16 %v7585, %v7584
      %v7622 = vpack.c.b16 %v7587, %v7586
      %v7623 = vpack.c.b16 %v7589, %v7588
      %v7624 = vpack.c.b16 %v7591, %v7590
      %v7625 = vpack.c.b16 %v7593, %v7592
      %v7626 = vpack.c.b16 %v7595, %v7594
      %v7627 = vpack.c.b16 %v7597, %v7596
      %v7628 = vpack.c.b16 %v7599, %v7598
      %v7629 = vpack.c.b16 %v7601, %v7600
      %v7630 = vpack.c.b16 %v7603, %v7602
      %v7631 = vpack.c.b16 %v7605, %v7604
      %v7632 = vpack.c.b16 %v7607, %v7606
      %v7633 = vpack.c.b16 %v7609, %v7608
      %v7634 = vpack.c.b16 %v7611, %v7610
      %v7635 = vpack.c.b16 %v7613, %v7612
      %v7636 = vpack.c.b16 %v7615, %v7614
      %v7637 = vpack.c.b16 %v7617, %v7616
      %v7638 = vpack.c.b16 %v7619, %v7618
      %v7639 = vpack.c.b16 %v7620, %v7620
      %v7641 = vshrl.u32 %v7621, 16
      %v7643 = vshll.u32 %v7621, 16
      %v7645 = vrot.slane %v7643, 1
      %v7646 = vor.u32 %v7641, %v7645
      %v7648 = vshll.u32 %v7622, 16
      %v7650 = vrot.slane %v7648, 1
      %v7651 = vsel %vm3247, %v7646, %v7650
      %v7652 = vshrl.u32 %v7622, 16
      %v7654 = vor.u32 %v7652, %v7650
      %v7656 = vshll.u32 %v7623, 16
      %v7658 = vrot.slane %v7656, 1
      %v7659 = vsel %vm3247, %v7654, %v7658
      %v7660 = vshrl.u32 %v7623, 16
      %v7662 = vor.u32 %v7660, %v7658
      %v7664 = vshll.u32 %v7624, 16
      %v7666 = vrot.slane %v7664, 1
      %v7667 = vsel %vm3247, %v7662, %v7666
      %v7668 = vshrl.u32 %v7624, 16
      %v7670 = vor.u32 %v7668, %v7666
      %v7672 = vshll.u32 %v7625, 16
      %v7674 = vrot.slane %v7672, 1
      %v7675 = vsel %vm3247, %v7670, %v7674
      %v7676 = vshrl.u32 %v7625, 16
      %v7678 = vor.u32 %v7676, %v7674
      %v7680 = vshll.u32 %v7626, 16
      %v7682 = vrot.slane %v7680, 1
      %v7683 = vsel %vm3247, %v7678, %v7682
      %v7684 = vshrl.u32 %v7626, 16
      %v7686 = vor.u32 %v7684, %v7682
      %v7688 = vshll.u32 %v7627, 16
      %v7690 = vrot.slane %v7688, 1
      %v7691 = vsel %vm3247, %v7686, %v7690
      %v7692 = vshrl.u32 %v7627, 16
      %v7694 = vor.u32 %v7692, %v7690
      %v7696 = vshll.u32 %v7628, 16
      %v7698 = vrot.slane %v7696, 1
      %v7699 = vsel %vm3247, %v7694, %v7698
      %v7700 = vshrl.u32 %v7628, 16
      %v7702 = vor.u32 %v7700, %v7698
      %v7704 = vshll.u32 %v7629, 16
      %v7706 = vrot.slane %v7704, 1
      %v7707 = vsel %vm3247, %v7702, %v7706
      %v7708 = vshrl.u32 %v7629, 16
      %v7710 = vor.u32 %v7708, %v7706
      %v7712 = vshll.u32 %v7630, 16
      %v7714 = vrot.slane %v7712, 1
      %v7715 = vsel %vm3247, %v7710, %v7714
      %v7716 = vshrl.u32 %v7630, 16
      %v7718 = vor.u32 %v7716, %v7714
      %v7720 = vshll.u32 %v7631, 16
      %v7722 = vrot.slane %v7720, 1
      %v7723 = vsel %vm3247, %v7718, %v7722
      %v7724 = vshrl.u32 %v7631, 16
      %v7726 = vor.u32 %v7724, %v7722
      %v7728 = vshll.u32 %v7632, 16
      %v7730 = vrot.slane %v7728, 1
      %v7731 = vsel %vm3247, %v7726, %v7730
      %v7732 = vshrl.u32 %v7632, 16
      %v7734 = vor.u32 %v7732, %v7730
      %v7736 = vshll.u32 %v7633, 16
      %v7738 = vrot.slane %v7736, 1
      %v7739 = vsel %vm3247, %v7734, %v7738
      %v7740 = vshrl.u32 %v7633, 16
      %v7742 = vor.u32 %v7740, %v7738
      %v7744 = vshll.u32 %v7634, 16
      %v7746 = vrot.slane %v7744, 1
      %v7747 = vsel %vm3247, %v7742, %v7746
      %v7748 = vshrl.u32 %v7634, 16
      %v7750 = vor.u32 %v7748, %v7746
      %v7752 = vshll.u32 %v7635, 16
      %v7754 = vrot.slane %v7752, 1
      %v7755 = vsel %vm3247, %v7750, %v7754
      %v7756 = vshrl.u32 %v7635, 16
      %v7758 = vor.u32 %v7756, %v7754
      %v7760 = vshll.u32 %v7636, 16
      %v7762 = vrot.slane %v7760, 1
      %v7763 = vsel %vm3247, %v7758, %v7762
      %v7764 = vshrl.u32 %v7636, 16
      %v7766 = vor.u32 %v7764, %v7762
      %v7768 = vshll.u32 %v7637, 16
      %v7770 = vrot.slane %v7768, 1
      %v7771 = vsel %vm3247, %v7766, %v7770
      %v7772 = vshrl.u32 %v7637, 16
      %v7774 = vor.u32 %v7772, %v7770
      %v7776 = vshll.u32 %v7638, 16
      %v7778 = vrot.slane %v7776, 1
      %v7779 = vsel %vm3247, %v7774, %v7778
      %v7780 = vshrl.u32 %v7638, 16
      %v7782 = vor.u32 %v7780, %v7778
      %v7784 = vshll.u32 %v7639, 16
      %v7786 = vrot.slane %v7784, 1
      %v7787 = vsel %vm3247, %v7782, %v7786
      %v7822 = vunpack.c.l.b16 %v7531
      %v7823 = vunpack.c.l.b16 %v7532
      %v7824 = vunpack.c.l.b16 %v7533
      %v7825 = vunpack.c.l.b16 %v7534
      %v7826 = vunpack.c.l.b16 %v7535
      %v7827 = vunpack.c.l.b16 %v7536
      %v7828 = vunpack.c.l.b16 %v7537
      %v7829 = vunpack.c.l.b16 %v7538
      %v7830 = vunpack.c.l.b16 %v7539
      %v7831 = vunpack.c.l.b16 %v7540
      %v7832 = vunpack.c.l.b16 %v7541
      %v7833 = vunpack.c.l.b16 %v7542
      %v7834 = vunpack.c.l.b16 %v7543
      %v7835 = vunpack.c.l.b16 %v7544
      %v7836 = vunpack.c.l.b16 %v7545
      %v7837 = vunpack.c.l.b16 %v7546
      %v7838 = vpack.c.b16 %v7823, %v7822
      %v7839 = vpack.c.b16 %v7825, %v7824
      %v7840 = vpack.c.b16 %v7827, %v7826
      %v7841 = vpack.c.b16 %v7829, %v7828
      %v7842 = vpack.c.b16 %v7831, %v7830
      %v7843 = vpack.c.b16 %v7833, %v7832
      %v7844 = vpack.c.b16 %v7835, %v7834
      %v7845 = vpack.c.b16 %v7837, %v7836
      %7854 = vmatprep.subr.bf16.mxu0 0
      %7855 = vmatpush1.bf16.msra.mxu0 %v7845
      %7856 = vmatprep.subr.bf16.mxu0 0
      %7857 = vmatpush1.bf16.msra.mxu0 %v7844
      %7858 = vmatprep.subr.bf16.mxu0 0
      %7859 = vmatpush1.bf16.msra.mxu0 %v7843
      %7860 = vmatprep.subr.bf16.mxu0 0
      %7861 = vmatpush1.bf16.msra.mxu0 %v7842
      %7862 = vmatprep.subr.bf16.mxu0 0
      %7863 = vmatpush1.bf16.msra.mxu0 %v7841
      %7864 = vmatprep.subr.bf16.mxu0 0
      %7865 = vmatpush1.bf16.msra.mxu0 %v7840
      %7866 = vmatprep.subr.bf16.mxu0 0
      %7867 = vmatpush1.bf16.msra.mxu0 %v7839
      %7868 = vmatprep.subr.bf16.mxu0 0
      %7869 = vmatpush1.bf16.msra.mxu0 %v7838
      %7870 = vmatprep.subr.bf16.mxu0 0
      %7871 = vmatpush2.bf16.msra.mxu0 0
      %7872 = vmatprep.subr.bf16.mxu0 0
      %7873 = vmatpush2.bf16.msra.mxu0 0
      %7874 = vmatprep.subr.bf16.mxu0 0
      %7875 = vmatpush2.bf16.msra.mxu0 0
      %7876 = vmatprep.subr.bf16.mxu0 0
      %7877 = vmatpush2.bf16.msra.mxu0 0
      %7878 = vmatprep.subr.bf16.mxu0 0
      %7879 = vmatpush2.bf16.msra.mxu0 0
      %7880 = vmatprep.subr.bf16.mxu0 0
      %7881 = vmatpush2.bf16.msra.mxu0 0
      %7882 = vmatprep.subr.bf16.mxu0 0
      %7883 = vmatpush2.bf16.msra.mxu0 0
      %7884 = vmatprep.subr.bf16.mxu0 0
      %7885 = vmatpush2.bf16.msra.mxu0 0
      %7886 = vmatprep.mubr.bf16.mxu0 0
      %7887 = vmatmul.mubr.bf16.gmra.mxu0 %v7651
      %v7888 = vpop.f32.mrf.mxu0
      %v7889 = vadd.f32 0.0, %v7888
      %v7890 = vpop.f32.mrf.mxu0
      %v7891 = vpop.f32.mrf.mxu0
      %v7892 = vadd.f32 0.0, %v7891
      %v7893 = vpop.f32.mrf.mxu0
      %7894 = vmatprep.mubr.bf16.mxu0 0
      %7895 = vmatmul.mubr.bf16.gmra.mxu0 %v7659
      %v7896 = vpop.f32.mrf.mxu0
      %v7897 = vadd.f32 0.0, %v7896
      %v7898 = vpop.f32.mrf.mxu0
      %v7899 = vpop.f32.mrf.mxu0
      %v7900 = vadd.f32 0.0, %v7899
      %v7901 = vpop.f32.mrf.mxu0
      %7902 = vmatprep.mubr.bf16.mxu0 0
      %7903 = vmatmul.mubr.bf16.gmra.mxu0 %v7667
      %v7904 = vpop.f32.mrf.mxu0
      %v7905 = vadd.f32 0.0, %v7904
      %v7906 = vpop.f32.mrf.mxu0
      %v7907 = vpop.f32.mrf.mxu0
      %v7908 = vadd.f32 0.0, %v7907
      %v7909 = vpop.f32.mrf.mxu0
      %7910 = vmatprep.mubr.bf16.mxu0 0
      %7911 = vmatmul.mubr.bf16.gmra.mxu0 %v7675
      %v7912 = vpop.f32.mrf.mxu0
      %v7913 = vadd.f32 0.0, %v7912
      %v7914 = vpop.f32.mrf.mxu0
      %v7915 = vpop.f32.mrf.mxu0
      %v7916 = vadd.f32 0.0, %v7915
      %v7917 = vpop.f32.mrf.mxu0
      %7918 = vmatprep.mubr.bf16.mxu0 0
      %7919 = vmatmul.mubr.bf16.gmra.mxu0 %v7683
      %v7920 = vpop.f32.mrf.mxu0
      %v7921 = vadd.f32 0.0, %v7920
      %v7922 = vpop.f32.mrf.mxu0
      %v7923 = vpop.f32.mrf.mxu0
      %v7924 = vadd.f32 0.0, %v7923
      %v7925 = vpop.f32.mrf.mxu0
      %7926 = vmatprep.mubr.bf16.mxu0 0
      %7927 = vmatmul.mubr.bf16.gmra.mxu0 %v7691
      %v7928 = vpop.f32.mrf.mxu0
      %v7929 = vadd.f32 0.0, %v7928
      %v7930 = vpop.f32.mrf.mxu0
      %v7931 = vpop.f32.mrf.mxu0
      %v7932 = vadd.f32 0.0, %v7931
      %v7933 = vpop.f32.mrf.mxu0
      %7934 = vmatprep.mubr.bf16.mxu0 0
      %7935 = vmatmul.mubr.bf16.gmra.mxu0 %v7699
      %v7936 = vpop.f32.mrf.mxu0
      %v7937 = vadd.f32 0.0, %v7936
      %v7938 = vpop.f32.mrf.mxu0
      %v7939 = vpop.f32.mrf.mxu0
      %v7940 = vadd.f32 0.0, %v7939
      %v7941 = vpop.f32.mrf.mxu0
      %7942 = vmatprep.mubr.bf16.mxu0 0
      %7943 = vmatmul.mubr.bf16.gmra.mxu0 %v7707
      %v7944 = vpop.f32.mrf.mxu0
      %v7945 = vadd.f32 0.0, %v7944
      %v7946 = vpop.f32.mrf.mxu0
      %v7947 = vpop.f32.mrf.mxu0
      %v7948 = vadd.f32 0.0, %v7947
      %v7949 = vpop.f32.mrf.mxu0
      %7950 = vmatprep.mubr.bf16.mxu0 0
      %7951 = vmatmul.mubr.bf16.gmra.mxu0 %v7715
      %v7952 = vpop.f32.mrf.mxu0
      %v7953 = vadd.f32 0.0, %v7952
      %v7954 = vpop.f32.mrf.mxu0
      %v7955 = vpop.f32.mrf.mxu0
      %v7956 = vadd.f32 0.0, %v7955
      %v7957 = vpop.f32.mrf.mxu0
      %7958 = vmatprep.mubr.bf16.mxu0 0
      %7959 = vmatmul.mubr.bf16.gmra.mxu0 %v7723
      %v7960 = vpop.f32.mrf.mxu0
      %v7961 = vadd.f32 0.0, %v7960
      %v7962 = vpop.f32.mrf.mxu0
      %v7963 = vpop.f32.mrf.mxu0
      %v7964 = vadd.f32 0.0, %v7963
      %v7965 = vpop.f32.mrf.mxu0
      %7966 = vmatprep.mubr.bf16.mxu0 0
      %7967 = vmatmul.mubr.bf16.gmra.mxu0 %v7731
      %v7968 = vpop.f32.mrf.mxu0
      %v7969 = vadd.f32 0.0, %v7968
      %v7970 = vpop.f32.mrf.mxu0
      %v7971 = vpop.f32.mrf.mxu0
      %v7972 = vadd.f32 0.0, %v7971
      %v7973 = vpop.f32.mrf.mxu0
      %7974 = vmatprep.mubr.bf16.mxu0 0
      %7975 = vmatmul.mubr.bf16.gmra.mxu0 %v7739
      %v7976 = vpop.f32.mrf.mxu0
      %v7977 = vadd.f32 0.0, %v7976
      %v7978 = vpop.f32.mrf.mxu0
      %v7979 = vpop.f32.mrf.mxu0
      %v7980 = vadd.f32 0.0, %v7979
      %v7981 = vpop.f32.mrf.mxu0
      %7982 = vmatprep.mubr.bf16.mxu0 0
      %7983 = vmatmul.mubr.bf16.gmra.mxu0 %v7747
      %v7984 = vpop.f32.mrf.mxu0
      %v7985 = vadd.f32 0.0, %v7984
      %v7986 = vpop.f32.mrf.mxu0
      %v7987 = vpop.f32.mrf.mxu0
      %v7988 = vadd.f32 0.0, %v7987
      %v7989 = vpop.f32.mrf.mxu0
      %7990 = vmatprep.mubr.bf16.mxu0 0
      %7991 = vmatmul.mubr.bf16.gmra.mxu0 %v7755
      %v7992 = vpop.f32.mrf.mxu0
      %v7993 = vadd.f32 0.0, %v7992
      %v7994 = vpop.f32.mrf.mxu0
      %v7995 = vpop.f32.mrf.mxu0
      %v7996 = vadd.f32 0.0, %v7995
      %v7997 = vpop.f32.mrf.mxu0
      %7998 = vmatprep.mubr.bf16.mxu0 0
      %7999 = vmatmul.mubr.bf16.gmra.mxu0 %v7763
      %v8000 = vpop.f32.mrf.mxu0
      %v8001 = vadd.f32 0.0, %v8000
      %v8002 = vpop.f32.mrf.mxu0
      %v8003 = vpop.f32.mrf.mxu0
      %v8004 = vadd.f32 0.0, %v8003
      %v8005 = vpop.f32.mrf.mxu0
      %8006 = vmatprep.mubr.bf16.mxu0 0
      %8007 = vmatmul.mubr.bf16.gmra.mxu0 %v7771
      %v8008 = vpop.f32.mrf.mxu0
      %v8009 = vadd.f32 0.0, %v8008
      %v8010 = vpop.f32.mrf.mxu0
      %v8011 = vpop.f32.mrf.mxu0
      %v8012 = vadd.f32 0.0, %v8011
      %v8013 = vpop.f32.mrf.mxu0
      %8014 = vmatprep.mubr.bf16.mxu0 0
      %8015 = vmatmul.mubr.bf16.gmra.mxu0 %v7779
      %v8016 = vpop.f32.mrf.mxu0
      %v8017 = vadd.f32 0.0, %v8016
      %v8018 = vpop.f32.mrf.mxu0
      %v8019 = vpop.f32.mrf.mxu0
      %v8020 = vadd.f32 0.0, %v8019
      %v8021 = vpop.f32.mrf.mxu0
      %8022 = vmatprep.mubr.bf16.mxu0 0
      %8023 = vmatmul.mubr.bf16.gmra.mxu0 %v7787
      %v8024 = vpop.f32.mrf.mxu0
      %v8025 = vadd.f32 0.0, %v8024
      %v8026 = vpop.f32.mrf.mxu0
      %v8027 = vpop.f32.mrf.mxu0
      %v8028 = vadd.f32 0.0, %v8027
      %v8029 = vpop.f32.mrf.mxu0
      %8030 = vdwg.mxu0
      %v8031 = vadd.f32 %v7458, %v7889
      %v8032 = vadd.f32 %v7459, %v7892
      %v8033 = vadd.f32 %v7460, %v7897
      %v8034 = vadd.f32 %v7461, %v7900
      %v8035 = vadd.f32 %v7462, %v7905
      %v8036 = vadd.f32 %v7463, %v7908
      %v8037 = vadd.f32 %v7464, %v7913
      %v8038 = vadd.f32 %v7465, %v7916
      %v8039 = vadd.f32 %v7466, %v7921
      %v8040 = vadd.f32 %v7467, %v7924
      %v8041 = vadd.f32 %v7468, %v7929
      %v8042 = vadd.f32 %v7469, %v7932
      %v8043 = vadd.f32 %v7470, %v7937
      %v8044 = vadd.f32 %v7471, %v7940
      %v8045 = vadd.f32 %v7472, %v7945
      %v8046 = vadd.f32 %v7473, %v7948
      %v8047 = vadd.f32 %v7474, %v7953
      %v8048 = vadd.f32 %v7475, %v7956
      %v8049 = vadd.f32 %v7476, %v7961
      %v8050 = vadd.f32 %v7477, %v7964
      %v8051 = vadd.f32 %v7478, %v7969
      %v8052 = vadd.f32 %v7479, %v7972
      %v8053 = vadd.f32 %v7480, %v7977
      %v8054 = vadd.f32 %v7481, %v7980
      %v8055 = vadd.f32 %v7482, %v7985
      %v8056 = vadd.f32 %v7483, %v7988
      %v8057 = vadd.f32 %v7484, %v7993
      %v8058 = vadd.f32 %v7485, %v7996
      %v8059 = vadd.f32 %v7486, %v8001
      %v8060 = vadd.f32 %v7487, %v8004
      %v8061 = vadd.f32 %v7488, %v8009
      %v8062 = vadd.f32 %v7489, %v8012
      %v8063 = vadd.f32 %v7490, %v8017
      %v8064 = vadd.f32 %v7491, %v8020
      %v8065 = vadd.f32 %v7492, %v8025
      %v8066 = vadd.f32 %v7493, %v8028
      %v8067 = vld [vmem:[#allocation2 + $0x14] sm:$0xf]
      %v8068 = vld [vmem:[#allocation2 + $0x18] sm:$0xf]
      %v8069 = vld [vmem:[#allocation2 + $0x1c] sm:$0xf]
      %v8070 = vld [vmem:[#allocation2 + $0x20] sm:$0xf]
      %v8071 = vld [vmem:[#allocation2 + $0x24] sm:$0xf]
      %v8072 = vld [vmem:[#allocation2 + $0x28] sm:$0xf]
      %v8073 = vld [vmem:[#allocation2 + $0x2c] sm:$0xf]
      %v8074 = vld [vmem:[#allocation2 + $0x30] sm:$0xf]
      %v8075 = vld [vmem:[#allocation2 + $0x34] sm:$0xf]
      %v8076 = vld [vmem:[#allocation2 + $0x38] sm:$0xf]
      %v8077 = vld [vmem:[#allocation2 + $0x3c] sm:$0xf]
      %v8078 = vld [vmem:[#allocation2 + $0x40] sm:$0xf]
      %v8079 = vld [vmem:[#allocation2 + $0x44] sm:$0xf]
      %v8080 = vld [vmem:[#allocation2 + $0x48] sm:$0xf]
      %v8081 = vld [vmem:[#allocation2 + $0x4c] sm:$0xf]
      %v8082 = vld [vmem:[#allocation2 + $0x50] sm:$0xf]
      %v8083 = vld [vmem:[#allocation2 + $0x54] sm:$0xf]
      %v8084 = vld [vmem:[#allocation2 + $0x58] sm:$0xf]
      %v8085 = vld [vmem:[#allocation2 + $0x5c] sm:$0xf]
      %v8086 = vld [vmem:[#allocation2 + $0x60] sm:$0xf]
      %v8087 = vld [vmem:[#allocation2 + $0x64] sm:$0xf]
      %v8088 = vld [vmem:[#allocation2 + $0x68] sm:$0xf]
      %v8089 = vld [vmem:[#allocation2 + $0x6c] sm:$0xf]
      %v8090 = vld [vmem:[#allocation2 + $0x70] sm:$0xf]
      %v8091 = vld [vmem:[#allocation2 + $0x74] sm:$0xf]
      %v8092 = vld [vmem:[#allocation2 + $0x78] sm:$0xf]
      %v8093 = vld [vmem:[#allocation2 + $0x7c] sm:$0xf]
      %v8094 = vld [vmem:[#allocation2 + $0x80] sm:$0xf]
      %v8095 = vld [vmem:[#allocation2 + $0x84] sm:$0xf]
      %v8096 = vld [vmem:[#allocation2 + $0x88] sm:$0xf]
      %v8097 = vld [vmem:[#allocation2 + $0x8c] sm:$0xf]
      %v8098 = vld [vmem:[#allocation2 + $0x90] sm:$0xf]
      %v8099 = vld [vmem:[#allocation2 + $0x94] sm:$0xf]
      %v8100 = vld [vmem:[#allocation2 + $0x98] sm:$0xf]
      %v8101 = vld [vmem:[#allocation2 + $0x9c] sm:$0xf]
      %v8102 = vld [vmem:[#allocation2 + $0xa0] sm:$0xf]
      %v8103 = vld [vmem:[#allocation2 + $0xa4] sm:$0x1]
      %v8104 = vld [vmem:[%s3 + $0x180] sm:$0xf]
      %v8105 = vld [vmem:[%s3 + $0x184] sm:$0xf]
      %v8106 = vld [vmem:[%s3 + $0x188] sm:$0xf]
      %v8107 = vld [vmem:[%s3 + $0x18c] sm:$0xf]
      %v8108 = vld [vmem:[%s3 + $0x190] sm:$0xf]
      %v8109 = vld [vmem:[%s3 + $0x194] sm:$0xf]
      %v8110 = vld [vmem:[%s3 + $0x198] sm:$0xf]
      %v8111 = vld [vmem:[%s3 + $0x19c] sm:$0xf]
      %v8112 = vld [vmem:[%s3 + $0x1a0] sm:$0xf]
      %v8113 = vld [vmem:[%s3 + $0x1a4] sm:$0xf]
      %v8114 = vld [vmem:[%s3 + $0x1a8] sm:$0xf]
      %v8115 = vld [vmem:[%s3 + $0x1ac] sm:$0xf]
      %v8116 = vld [vmem:[%s3 + $0x1b0] sm:$0xf]
      %v8117 = vld [vmem:[%s3 + $0x1b4] sm:$0xf]
      %v8118 = vld [vmem:[%s3 + $0x1b8] sm:$0xf]
      %v8119 = vld [vmem:[%s3 + $0x1bc] sm:$0xf]
      %v8157 = vunpack.c.l.b16 %v8067
      %v8158 = vunpack.c.l.b16 %v8068
      %v8159 = vunpack.c.l.b16 %v8069
      %v8160 = vunpack.c.l.b16 %v8070
      %v8161 = vunpack.c.l.b16 %v8071
      %v8162 = vunpack.c.l.b16 %v8072
      %v8163 = vunpack.c.l.b16 %v8073
      %v8164 = vunpack.c.l.b16 %v8074
      %v8165 = vunpack.c.l.b16 %v8075
      %v8166 = vunpack.c.l.b16 %v8076
      %v8167 = vunpack.c.l.b16 %v8077
      %v8168 = vunpack.c.l.b16 %v8078
      %v8169 = vunpack.c.l.b16 %v8079
      %v8170 = vunpack.c.l.b16 %v8080
      %v8171 = vunpack.c.l.b16 %v8081
      %v8172 = vunpack.c.l.b16 %v8082
      %v8173 = vunpack.c.l.b16 %v8083
      %v8174 = vunpack.c.l.b16 %v8084
      %v8175 = vunpack.c.l.b16 %v8085
      %v8176 = vunpack.c.l.b16 %v8086
      %v8177 = vunpack.c.l.b16 %v8087
      %v8178 = vunpack.c.l.b16 %v8088
      %v8179 = vunpack.c.l.b16 %v8089
      %v8180 = vunpack.c.l.b16 %v8090
      %v8181 = vunpack.c.l.b16 %v8091
      %v8182 = vunpack.c.l.b16 %v8092
      %v8183 = vunpack.c.l.b16 %v8093
      %v8184 = vunpack.c.l.b16 %v8094
      %v8185 = vunpack.c.l.b16 %v8095
      %v8186 = vunpack.c.l.b16 %v8096
      %v8187 = vunpack.c.l.b16 %v8097
      %v8188 = vunpack.c.l.b16 %v8098
      %v8189 = vunpack.c.l.b16 %v8099
      %v8190 = vunpack.c.l.b16 %v8100
      %v8191 = vunpack.c.l.b16 %v8101
      %v8192 = vunpack.c.l.b16 %v8102
      %v8193 = vunpack.c.l.b16 %v8103
      %v8194 = vpack.c.b16 %v8158, %v8157
      %v8195 = vpack.c.b16 %v8160, %v8159
      %v8196 = vpack.c.b16 %v8162, %v8161
      %v8197 = vpack.c.b16 %v8164, %v8163
      %v8198 = vpack.c.b16 %v8166, %v8165
      %v8199 = vpack.c.b16 %v8168, %v8167
      %v8200 = vpack.c.b16 %v8170, %v8169
      %v8201 = vpack.c.b16 %v8172, %v8171
      %v8202 = vpack.c.b16 %v8174, %v8173
      %v8203 = vpack.c.b16 %v8176, %v8175
      %v8204 = vpack.c.b16 %v8178, %v8177
      %v8205 = vpack.c.b16 %v8180, %v8179
      %v8206 = vpack.c.b16 %v8182, %v8181
      %v8207 = vpack.c.b16 %v8184, %v8183
      %v8208 = vpack.c.b16 %v8186, %v8185
      %v8209 = vpack.c.b16 %v8188, %v8187
      %v8210 = vpack.c.b16 %v8190, %v8189
      %v8211 = vpack.c.b16 %v8192, %v8191
      %v8212 = vpack.c.b16 %v8193, %v8193
      %v8214 = vshrl.u32 %v8194, 16
      %v8216 = vshll.u32 %v8194, 16
      %v8218 = vrot.slane %v8216, 1
      %v8219 = vor.u32 %v8214, %v8218
      %v8221 = vshll.u32 %v8195, 16
      %v8223 = vrot.slane %v8221, 1
      %v8224 = vsel %vm3247, %v8219, %v8223
      %v8225 = vshrl.u32 %v8195, 16
      %v8227 = vor.u32 %v8225, %v8223
      %v8229 = vshll.u32 %v8196, 16
      %v8231 = vrot.slane %v8229, 1
      %v8232 = vsel %vm3247, %v8227, %v8231
      %v8233 = vshrl.u32 %v8196, 16
      %v8235 = vor.u32 %v8233, %v8231
      %v8237 = vshll.u32 %v8197, 16
      %v8239 = vrot.slane %v8237, 1
      %v8240 = vsel %vm3247, %v8235, %v8239
      %v8241 = vshrl.u32 %v8197, 16
      %v8243 = vor.u32 %v8241, %v8239
      %v8245 = vshll.u32 %v8198, 16
      %v8247 = vrot.slane %v8245, 1
      %v8248 = vsel %vm3247, %v8243, %v8247
      %v8249 = vshrl.u32 %v8198, 16
      %v8251 = vor.u32 %v8249, %v8247
      %v8253 = vshll.u32 %v8199, 16
      %v8255 = vrot.slane %v8253, 1
      %v8256 = vsel %vm3247, %v8251, %v8255
      %v8257 = vshrl.u32 %v8199, 16
      %v8259 = vor.u32 %v8257, %v8255
      %v8261 = vshll.u32 %v8200, 16
      %v8263 = vrot.slane %v8261, 1
      %v8264 = vsel %vm3247, %v8259, %v8263
      %v8265 = vshrl.u32 %v8200, 16
      %v8267 = vor.u32 %v8265, %v8263
      %v8269 = vshll.u32 %v8201, 16
      %v8271 = vrot.slane %v8269, 1
      %v8272 = vsel %vm3247, %v8267, %v8271
      %v8273 = vshrl.u32 %v8201, 16
      %v8275 = vor.u32 %v8273, %v8271
      %v8277 = vshll.u32 %v8202, 16
      %v8279 = vrot.slane %v8277, 1
      %v8280 = vsel %vm3247, %v8275, %v8279
      %v8281 = vshrl.u32 %v8202, 16
      %v8283 = vor.u32 %v8281, %v8279
      %v8285 = vshll.u32 %v8203, 16
      %v8287 = vrot.slane %v8285, 1
      %v8288 = vsel %vm3247, %v8283, %v8287
      %v8289 = vshrl.u32 %v8203, 16
      %v8291 = vor.u32 %v8289, %v8287
      %v8293 = vshll.u32 %v8204, 16
      %v8295 = vrot.slane %v8293, 1
      %v8296 = vsel %vm3247, %v8291, %v8295
      %v8297 = vshrl.u32 %v8204, 16
      %v8299 = vor.u32 %v8297, %v8295
      %v8301 = vshll.u32 %v8205, 16
      %v8303 = vrot.slane %v8301, 1
      %v8304 = vsel %vm3247, %v8299, %v8303
      %v8305 = vshrl.u32 %v8205, 16
      %v8307 = vor.u32 %v8305, %v8303
      %v8309 = vshll.u32 %v8206, 16
      %v8311 = vrot.slane %v8309, 1
      %v8312 = vsel %vm3247, %v8307, %v8311
      %v8313 = vshrl.u32 %v8206, 16
      %v8315 = vor.u32 %v8313, %v8311
      %v8317 = vshll.u32 %v8207, 16
      %v8319 = vrot.slane %v8317, 1
      %v8320 = vsel %vm3247, %v8315, %v8319
      %v8321 = vshrl.u32 %v8207, 16
      %v8323 = vor.u32 %v8321, %v8319
      %v8325 = vshll.u32 %v8208, 16
      %v8327 = vrot.slane %v8325, 1
      %v8328 = vsel %vm3247, %v8323, %v8327
      %v8329 = vshrl.u32 %v8208, 16
      %v8331 = vor.u32 %v8329, %v8327
      %v8333 = vshll.u32 %v8209, 16
      %v8335 = vrot.slane %v8333, 1
      %v8336 = vsel %vm3247, %v8331, %v8335
      %v8337 = vshrl.u32 %v8209, 16
      %v8339 = vor.u32 %v8337, %v8335
      %v8341 = vshll.u32 %v8210, 16
      %v8343 = vrot.slane %v8341, 1
      %v8344 = vsel %vm3247, %v8339, %v8343
      %v8345 = vshrl.u32 %v8210, 16
      %v8347 = vor.u32 %v8345, %v8343
      %v8349 = vshll.u32 %v8211, 16
      %v8351 = vrot.slane %v8349, 1
      %v8352 = vsel %vm3247, %v8347, %v8351
      %v8353 = vshrl.u32 %v8211, 16
      %v8355 = vor.u32 %v8353, %v8351
      %v8357 = vshll.u32 %v8212, 16
      %v8359 = vrot.slane %v8357, 1
      %v8360 = vsel %vm3247, %v8355, %v8359
      %v8395 = vunpack.c.l.b16 %v8104
      %v8396 = vunpack.c.l.b16 %v8105
      %v8397 = vunpack.c.l.b16 %v8106
      %v8398 = vunpack.c.l.b16 %v8107
      %v8399 = vunpack.c.l.b16 %v8108
      %v8400 = vunpack.c.l.b16 %v8109
      %v8401 = vunpack.c.l.b16 %v8110
      %v8402 = vunpack.c.l.b16 %v8111
      %v8403 = vunpack.c.l.b16 %v8112
      %v8404 = vunpack.c.l.b16 %v8113
      %v8405 = vunpack.c.l.b16 %v8114
      %v8406 = vunpack.c.l.b16 %v8115
      %v8407 = vunpack.c.l.b16 %v8116
      %v8408 = vunpack.c.l.b16 %v8117
      %v8409 = vunpack.c.l.b16 %v8118
      %v8410 = vunpack.c.l.b16 %v8119
      %v8411 = vpack.c.b16 %v8396, %v8395
      %v8412 = vpack.c.b16 %v8398, %v8397
      %v8413 = vpack.c.b16 %v8400, %v8399
      %v8414 = vpack.c.b16 %v8402, %v8401
      %v8415 = vpack.c.b16 %v8404, %v8403
      %v8416 = vpack.c.b16 %v8406, %v8405
      %v8417 = vpack.c.b16 %v8408, %v8407
      %v8418 = vpack.c.b16 %v8410, %v8409
      %8427 = vmatprep.subr.bf16.mxu0 0
      %8428 = vmatpush1.bf16.msra.mxu0 %v8418
      %8429 = vmatprep.subr.bf16.mxu0 0
      %8430 = vmatpush1.bf16.msra.mxu0 %v8417
      %8431 = vmatprep.subr.bf16.mxu0 0
      %8432 = vmatpush1.bf16.msra.mxu0 %v8416
      %8433 = vmatprep.subr.bf16.mxu0 0
      %8434 = vmatpush1.bf16.msra.mxu0 %v8415
      %8435 = vmatprep.subr.bf16.mxu0 0
      %8436 = vmatpush1.bf16.msra.mxu0 %v8414
      %8437 = vmatprep.subr.bf16.mxu0 0
      %8438 = vmatpush1.bf16.msra.mxu0 %v8413
      %8439 = vmatprep.subr.bf16.mxu0 0
      %8440 = vmatpush1.bf16.msra.mxu0 %v8412
      %8441 = vmatprep.subr.bf16.mxu0 0
      %8442 = vmatpush1.bf16.msra.mxu0 %v8411
      %8443 = vmatprep.subr.bf16.mxu0 0
      %8444 = vmatpush2.bf16.msra.mxu0 0
      %8445 = vmatprep.subr.bf16.mxu0 0
      %8446 = vmatpush2.bf16.msra.mxu0 0
      %8447 = vmatprep.subr.bf16.mxu0 0
      %8448 = vmatpush2.bf16.msra.mxu0 0
      %8449 = vmatprep.subr.bf16.mxu0 0
      %8450 = vmatpush2.bf16.msra.mxu0 0
      %8451 = vmatprep.subr.bf16.mxu0 0
      %8452 = vmatpush2.bf16.msra.mxu0 0
      %8453 = vmatprep.subr.bf16.mxu0 0
      %8454 = vmatpush2.bf16.msra.mxu0 0
      %8455 = vmatprep.subr.bf16.mxu0 0
      %8456 = vmatpush2.bf16.msra.mxu0 0
      %8457 = vmatprep.subr.bf16.mxu0 0
      %8458 = vmatpush2.bf16.msra.mxu0 0
      %8459 = vmatprep.mubr.bf16.mxu0 0
      %8460 = vmatmul.mubr.bf16.gmra.mxu0 %v8224
      %v8461 = vpop.f32.mrf.mxu0
      %v8462 = vadd.f32 0.0, %v8461
      %v8463 = vpop.f32.mrf.mxu0
      %v8464 = vpop.f32.mrf.mxu0
      %v8465 = vadd.f32 0.0, %v8464
      %v8466 = vpop.f32.mrf.mxu0
      %8467 = vmatprep.mubr.bf16.mxu0 0
      %8468 = vmatmul.mubr.bf16.gmra.mxu0 %v8232
      %v8469 = vpop.f32.mrf.mxu0
      %v8470 = vadd.f32 0.0, %v8469
      %v8471 = vpop.f32.mrf.mxu0
      %v8472 = vpop.f32.mrf.mxu0
      %v8473 = vadd.f32 0.0, %v8472
      %v8474 = vpop.f32.mrf.mxu0
      %8475 = vmatprep.mubr.bf16.mxu0 0
      %8476 = vmatmul.mubr.bf16.gmra.mxu0 %v8240
      %v8477 = vpop.f32.mrf.mxu0
      %v8478 = vadd.f32 0.0, %v8477
      %v8479 = vpop.f32.mrf.mxu0
      %v8480 = vpop.f32.mrf.mxu0
      %v8481 = vadd.f32 0.0, %v8480
      %v8482 = vpop.f32.mrf.mxu0
      %8483 = vmatprep.mubr.bf16.mxu0 0
      %8484 = vmatmul.mubr.bf16.gmra.mxu0 %v8248
      %v8485 = vpop.f32.mrf.mxu0
      %v8486 = vadd.f32 0.0, %v8485
      %v8487 = vpop.f32.mrf.mxu0
      %v8488 = vpop.f32.mrf.mxu0
      %v8489 = vadd.f32 0.0, %v8488
      %v8490 = vpop.f32.mrf.mxu0
      %8491 = vmatprep.mubr.bf16.mxu0 0
      %8492 = vmatmul.mubr.bf16.gmra.mxu0 %v8256
      %v8493 = vpop.f32.mrf.mxu0
      %v8494 = vadd.f32 0.0, %v8493
      %v8495 = vpop.f32.mrf.mxu0
      %v8496 = vpop.f32.mrf.mxu0
      %v8497 = vadd.f32 0.0, %v8496
      %v8498 = vpop.f32.mrf.mxu0
      %8499 = vmatprep.mubr.bf16.mxu0 0
      %8500 = vmatmul.mubr.bf16.gmra.mxu0 %v8264
      %v8501 = vpop.f32.mrf.mxu0
      %v8502 = vadd.f32 0.0, %v8501
      %v8503 = vpop.f32.mrf.mxu0
      %v8504 = vpop.f32.mrf.mxu0
      %v8505 = vadd.f32 0.0, %v8504
      %v8506 = vpop.f32.mrf.mxu0
      %8507 = vmatprep.mubr.bf16.mxu0 0
      %8508 = vmatmul.mubr.bf16.gmra.mxu0 %v8272
      %v8509 = vpop.f32.mrf.mxu0
      %v8510 = vadd.f32 0.0, %v8509
      %v8511 = vpop.f32.mrf.mxu0
      %v8512 = vpop.f32.mrf.mxu0
      %v8513 = vadd.f32 0.0, %v8512
      %v8514 = vpop.f32.mrf.mxu0
      %8515 = vmatprep.mubr.bf16.mxu0 0
      %8516 = vmatmul.mubr.bf16.gmra.mxu0 %v8280
      %v8517 = vpop.f32.mrf.mxu0
      %v8518 = vadd.f32 0.0, %v8517
      %v8519 = vpop.f32.mrf.mxu0
      %v8520 = vpop.f32.mrf.mxu0
      %v8521 = vadd.f32 0.0, %v8520
      %v8522 = vpop.f32.mrf.mxu0
      %8523 = vmatprep.mubr.bf16.mxu0 0
      %8524 = vmatmul.mubr.bf16.gmra.mxu0 %v8288
      %v8525 = vpop.f32.mrf.mxu0
      %v8526 = vadd.f32 0.0, %v8525
      %v8527 = vpop.f32.mrf.mxu0
      %v8528 = vpop.f32.mrf.mxu0
      %v8529 = vadd.f32 0.0, %v8528
      %v8530 = vpop.f32.mrf.mxu0
      %8531 = vmatprep.mubr.bf16.mxu0 0
      %8532 = vmatmul.mubr.bf16.gmra.mxu0 %v8296
      %v8533 = vpop.f32.mrf.mxu0
      %v8534 = vadd.f32 0.0, %v8533
      %v8535 = vpop.f32.mrf.mxu0
      %v8536 = vpop.f32.mrf.mxu0
      %v8537 = vadd.f32 0.0, %v8536
      %v8538 = vpop.f32.mrf.mxu0
      %8539 = vmatprep.mubr.bf16.mxu0 0
      %8540 = vmatmul.mubr.bf16.gmra.mxu0 %v8304
      %v8541 = vpop.f32.mrf.mxu0
      %v8542 = vadd.f32 0.0, %v8541
      %v8543 = vpop.f32.mrf.mxu0
      %v8544 = vpop.f32.mrf.mxu0
      %v8545 = vadd.f32 0.0, %v8544
      %v8546 = vpop.f32.mrf.mxu0
      %8547 = vmatprep.mubr.bf16.mxu0 0
      %8548 = vmatmul.mubr.bf16.gmra.mxu0 %v8312
      %v8549 = vpop.f32.mrf.mxu0
      %v8550 = vadd.f32 0.0, %v8549
      %v8551 = vpop.f32.mrf.mxu0
      %v8552 = vpop.f32.mrf.mxu0
      %v8553 = vadd.f32 0.0, %v8552
      %v8554 = vpop.f32.mrf.mxu0
      %8555 = vmatprep.mubr.bf16.mxu0 0
      %8556 = vmatmul.mubr.bf16.gmra.mxu0 %v8320
      %v8557 = vpop.f32.mrf.mxu0
      %v8558 = vadd.f32 0.0, %v8557
      %v8559 = vpop.f32.mrf.mxu0
      %v8560 = vpop.f32.mrf.mxu0
      %v8561 = vadd.f32 0.0, %v8560
      %v8562 = vpop.f32.mrf.mxu0
      %8563 = vmatprep.mubr.bf16.mxu0 0
      %8564 = vmatmul.mubr.bf16.gmra.mxu0 %v8328
      %v8565 = vpop.f32.mrf.mxu0
      %v8566 = vadd.f32 0.0, %v8565
      %v8567 = vpop.f32.mrf.mxu0
      %v8568 = vpop.f32.mrf.mxu0
      %v8569 = vadd.f32 0.0, %v8568
      %v8570 = vpop.f32.mrf.mxu0
      %8571 = vmatprep.mubr.bf16.mxu0 0
      %8572 = vmatmul.mubr.bf16.gmra.mxu0 %v8336
      %v8573 = vpop.f32.mrf.mxu0
      %v8574 = vadd.f32 0.0, %v8573
      %v8575 = vpop.f32.mrf.mxu0
      %v8576 = vpop.f32.mrf.mxu0
      %v8577 = vadd.f32 0.0, %v8576
      %v8578 = vpop.f32.mrf.mxu0
      %8579 = vmatprep.mubr.bf16.mxu0 0
      %8580 = vmatmul.mubr.bf16.gmra.mxu0 %v8344
      %v8581 = vpop.f32.mrf.mxu0
      %v8582 = vadd.f32 0.0, %v8581
      %v8583 = vpop.f32.mrf.mxu0
      %v8584 = vpop.f32.mrf.mxu0
      %v8585 = vadd.f32 0.0, %v8584
      %v8586 = vpop.f32.mrf.mxu0
      %8587 = vmatprep.mubr.bf16.mxu0 0
      %8588 = vmatmul.mubr.bf16.gmra.mxu0 %v8352
      %v8589 = vpop.f32.mrf.mxu0
      %v8590 = vadd.f32 0.0, %v8589
      %v8591 = vpop.f32.mrf.mxu0
      %v8592 = vpop.f32.mrf.mxu0
      %v8593 = vadd.f32 0.0, %v8592
      %v8594 = vpop.f32.mrf.mxu0
      %8595 = vmatprep.mubr.bf16.mxu0 0
      %8596 = vmatmul.mubr.bf16.gmra.mxu0 %v8360
      %v8597 = vpop.f32.mrf.mxu0
      %v8598 = vadd.f32 0.0, %v8597
      %v8599 = vpop.f32.mrf.mxu0
      %v8600 = vpop.f32.mrf.mxu0
      %v8601 = vadd.f32 0.0, %v8600
      %v8602 = vpop.f32.mrf.mxu0
      %8603 = vdwg.mxu0
      %v8604 = vadd.f32 %v8031, %v8462
      %v8605 = vadd.f32 %v8032, %v8465
      %v8606 = vadd.f32 %v8033, %v8470
      %v8607 = vadd.f32 %v8034, %v8473
      %v8608 = vadd.f32 %v8035, %v8478
      %v8609 = vadd.f32 %v8036, %v8481
      %v8610 = vadd.f32 %v8037, %v8486
      %v8611 = vadd.f32 %v8038, %v8489
      %v8612 = vadd.f32 %v8039, %v8494
      %v8613 = vadd.f32 %v8040, %v8497
      %v8614 = vadd.f32 %v8041, %v8502
      %v8615 = vadd.f32 %v8042, %v8505
      %v8616 = vadd.f32 %v8043, %v8510
      %v8617 = vadd.f32 %v8044, %v8513
      %v8618 = vadd.f32 %v8045, %v8518
      %v8619 = vadd.f32 %v8046, %v8521
      %v8620 = vadd.f32 %v8047, %v8526
      %v8621 = vadd.f32 %v8048, %v8529
      %v8622 = vadd.f32 %v8049, %v8534
      %v8623 = vadd.f32 %v8050, %v8537
      %v8624 = vadd.f32 %v8051, %v8542
      %v8625 = vadd.f32 %v8052, %v8545
      %v8626 = vadd.f32 %v8053, %v8550
      %v8627 = vadd.f32 %v8054, %v8553
      %v8628 = vadd.f32 %v8055, %v8558
      %v8629 = vadd.f32 %v8056, %v8561
      %v8630 = vadd.f32 %v8057, %v8566
      %v8631 = vadd.f32 %v8058, %v8569
      %v8632 = vadd.f32 %v8059, %v8574
      %v8633 = vadd.f32 %v8060, %v8577
      %v8634 = vadd.f32 %v8061, %v8582
      %v8635 = vadd.f32 %v8062, %v8585
      %v8636 = vadd.f32 %v8063, %v8590
      %v8637 = vadd.f32 %v8064, %v8593
      %v8638 = vadd.f32 %v8065, %v8598
      %v8639 = vadd.f32 %v8066, %v8601
      %v8640 = vld [vmem:[#allocation2 + $0x14] sm:$0xe]
      %v8641 = vld [vmem:[%s3 + $0x1c0] sm:$0xf]
      %v8642 = vld [vmem:[%s3 + $0x1c4] sm:$0xf]
      %v8643 = vld [vmem:[%s3 + $0x1c8] sm:$0xf]
      %v8644 = vld [vmem:[%s3 + $0x1cc] sm:$0xf]
      %v8645 = vld [vmem:[%s3 + $0x1d0] sm:$0xf]
      %v8646 = vld [vmem:[%s3 + $0x1d4] sm:$0xf]
      %v8647 = vld [vmem:[%s3 + $0x1d8] sm:$0xf]
      %v8648 = vld [vmem:[%s3 + $0x1dc] sm:$0xf]
      %v8649 = vld [vmem:[%s3 + $0x1e0] sm:$0xf]
      %v8650 = vld [vmem:[%s3 + $0x1e4] sm:$0xf]
      %v8651 = vld [vmem:[%s3 + $0x1e8] sm:$0xf]
      %v8652 = vld [vmem:[%s3 + $0x1ec] sm:$0xf]
      %v8653 = vld [vmem:[%s3 + $0x1f0] sm:$0xf]
      %v8654 = vld [vmem:[%s3 + $0x1f4] sm:$0xf]
      %v8655 = vld [vmem:[%s3 + $0x1f8] sm:$0xf]
      %v8656 = vld [vmem:[%s3 + $0x1fc] sm:$0xf]
      %v8658 = vunpack.c.l.b16 %v8640
      %v8659 = vpack.c.b16 %v8158, %v8658
      %v8660 = vrot.slane %v8659, 1
      %v8661 = vrot.slane %v8195, 1
      %v8662 = vsel %vm4268, %v8660, %v8661
      %v8663 = vrot.slane %v8196, 1
      %v8664 = vsel %vm4268, %v8661, %v8663
      %v8665 = vrot.slane %v8197, 1
      %v8666 = vsel %vm4268, %v8663, %v8665
      %v8667 = vrot.slane %v8198, 1
      %v8668 = vsel %vm4268, %v8665, %v8667
      %v8669 = vrot.slane %v8199, 1
      %v8670 = vsel %vm4268, %v8667, %v8669
      %v8671 = vrot.slane %v8200, 1
      %v8672 = vsel %vm4268, %v8669, %v8671
      %v8673 = vrot.slane %v8201, 1
      %v8674 = vsel %vm4268, %v8671, %v8673
      %v8675 = vrot.slane %v8202, 1
      %v8676 = vsel %vm4268, %v8673, %v8675
      %v8677 = vrot.slane %v8203, 1
      %v8678 = vsel %vm4268, %v8675, %v8677
      %v8679 = vrot.slane %v8204, 1
      %v8680 = vsel %vm4268, %v8677, %v8679
      %v8681 = vrot.slane %v8205, 1
      %v8682 = vsel %vm4268, %v8679, %v8681
      %v8683 = vrot.slane %v8206, 1
      %v8684 = vsel %vm4268, %v8681, %v8683
      %v8685 = vrot.slane %v8207, 1
      %v8686 = vsel %vm4268, %v8683, %v8685
      %v8687 = vrot.slane %v8208, 1
      %v8688 = vsel %vm4268, %v8685, %v8687
      %v8689 = vrot.slane %v8209, 1
      %v8690 = vsel %vm4268, %v8687, %v8689
      %v8691 = vrot.slane %v8210, 1
      %v8692 = vsel %vm4268, %v8689, %v8691
      %v8693 = vrot.slane %v8211, 1
      %v8694 = vsel %vm4268, %v8691, %v8693
      %v8695 = vrot.slane %v8212, 1
      %v8696 = vsel %vm4268, %v8693, %v8695
      %v8731 = vunpack.c.l.b16 %v8641
      %v8732 = vunpack.c.l.b16 %v8642
      %v8733 = vunpack.c.l.b16 %v8643
      %v8734 = vunpack.c.l.b16 %v8644
      %v8735 = vunpack.c.l.b16 %v8645
      %v8736 = vunpack.c.l.b16 %v8646
      %v8737 = vunpack.c.l.b16 %v8647
      %v8738 = vunpack.c.l.b16 %v8648
      %v8739 = vunpack.c.l.b16 %v8649
      %v8740 = vunpack.c.l.b16 %v8650
      %v8741 = vunpack.c.l.b16 %v8651
      %v8742 = vunpack.c.l.b16 %v8652
      %v8743 = vunpack.c.l.b16 %v8653
      %v8744 = vunpack.c.l.b16 %v8654
      %v8745 = vunpack.c.l.b16 %v8655
      %v8746 = vunpack.c.l.b16 %v8656
      %v8747 = vpack.c.b16 %v8732, %v8731
      %v8748 = vpack.c.b16 %v8734, %v8733
      %v8749 = vpack.c.b16 %v8736, %v8735
      %v8750 = vpack.c.b16 %v8738, %v8737
      %v8751 = vpack.c.b16 %v8740, %v8739
      %v8752 = vpack.c.b16 %v8742, %v8741
      %v8753 = vpack.c.b16 %v8744, %v8743
      %v8754 = vpack.c.b16 %v8746, %v8745
      %8763 = vmatprep.subr.bf16.mxu0 0
      %8764 = vmatpush1.bf16.msra.mxu0 %v8754
      %8765 = vmatprep.subr.bf16.mxu0 0
      %8766 = vmatpush1.bf16.msra.mxu0 %v8753
      %8767 = vmatprep.subr.bf16.mxu0 0
      %8768 = vmatpush1.bf16.msra.mxu0 %v8752
      %8769 = vmatprep.subr.bf16.mxu0 0
      %8770 = vmatpush1.bf16.msra.mxu0 %v8751
      %8771 = vmatprep.subr.bf16.mxu0 0
      %8772 = vmatpush1.bf16.msra.mxu0 %v8750
      %8773 = vmatprep.subr.bf16.mxu0 0
      %8774 = vmatpush1.bf16.msra.mxu0 %v8749
      %8775 = vmatprep.subr.bf16.mxu0 0
      %8776 = vmatpush1.bf16.msra.mxu0 %v8748
      %8777 = vmatprep.subr.bf16.mxu0 0
      %8778 = vmatpush1.bf16.msra.mxu0 %v8747
      %8779 = vmatprep.subr.bf16.mxu0 0
      %8780 = vmatpush2.bf16.msra.mxu0 0
      %8781 = vmatprep.subr.bf16.mxu0 0
      %8782 = vmatpush2.bf16.msra.mxu0 0
      %8783 = vmatprep.subr.bf16.mxu0 0
      %8784 = vmatpush2.bf16.msra.mxu0 0
      %8785 = vmatprep.subr.bf16.mxu0 0
      %8786 = vmatpush2.bf16.msra.mxu0 0
      %8787 = vmatprep.subr.bf16.mxu0 0
      %8788 = vmatpush2.bf16.msra.mxu0 0
      %8789 = vmatprep.subr.bf16.mxu0 0
      %8790 = vmatpush2.bf16.msra.mxu0 0
      %8791 = vmatprep.subr.bf16.mxu0 0
      %8792 = vmatpush2.bf16.msra.mxu0 0
      %8793 = vmatprep.subr.bf16.mxu0 0
      %8794 = vmatpush2.bf16.msra.mxu0 0
      %8795 = vmatprep.mubr.bf16.mxu0 0
      %8796 = vmatmul.mubr.bf16.gmra.mxu0 %v8662
      %v8797 = vpop.f32.mrf.mxu0
      %v8798 = vadd.f32 0.0, %v8797
      %v8799 = vpop.f32.mrf.mxu0
      %v8800 = vpop.f32.mrf.mxu0
      %v8801 = vadd.f32 0.0, %v8800
      %v8802 = vpop.f32.mrf.mxu0
      %8803 = vmatprep.mubr.bf16.mxu0 0
      %8804 = vmatmul.mubr.bf16.gmra.mxu0 %v8664
      %v8805 = vpop.f32.mrf.mxu0
      %v8806 = vadd.f32 0.0, %v8805
      %v8807 = vpop.f32.mrf.mxu0
      %v8808 = vpop.f32.mrf.mxu0
      %v8809 = vadd.f32 0.0, %v8808
      %v8810 = vpop.f32.mrf.mxu0
      %8811 = vmatprep.mubr.bf16.mxu0 0
      %8812 = vmatmul.mubr.bf16.gmra.mxu0 %v8666
      %v8813 = vpop.f32.mrf.mxu0
      %v8814 = vadd.f32 0.0, %v8813
      %v8815 = vpop.f32.mrf.mxu0
      %v8816 = vpop.f32.mrf.mxu0
      %v8817 = vadd.f32 0.0, %v8816
      %v8818 = vpop.f32.mrf.mxu0
      %8819 = vmatprep.mubr.bf16.mxu0 0
      %8820 = vmatmul.mubr.bf16.gmra.mxu0 %v8668
      %v8821 = vpop.f32.mrf.mxu0
      %v8822 = vadd.f32 0.0, %v8821
      %v8823 = vpop.f32.mrf.mxu0
      %v8824 = vpop.f32.mrf.mxu0
      %v8825 = vadd.f32 0.0, %v8824
      %v8826 = vpop.f32.mrf.mxu0
      %8827 = vmatprep.mubr.bf16.mxu0 0
      %8828 = vmatmul.mubr.bf16.gmra.mxu0 %v8670
      %v8829 = vpop.f32.mrf.mxu0
      %v8830 = vadd.f32 0.0, %v8829
      %v8831 = vpop.f32.mrf.mxu0
      %v8832 = vpop.f32.mrf.mxu0
      %v8833 = vadd.f32 0.0, %v8832
      %v8834 = vpop.f32.mrf.mxu0
      %8835 = vmatprep.mubr.bf16.mxu0 0
      %8836 = vmatmul.mubr.bf16.gmra.mxu0 %v8672
      %v8837 = vpop.f32.mrf.mxu0
      %v8838 = vadd.f32 0.0, %v8837
      %v8839 = vpop.f32.mrf.mxu0
      %v8840 = vpop.f32.mrf.mxu0
      %v8841 = vadd.f32 0.0, %v8840
      %v8842 = vpop.f32.mrf.mxu0
      %8843 = vmatprep.mubr.bf16.mxu0 0
      %8844 = vmatmul.mubr.bf16.gmra.mxu0 %v8674
      %v8845 = vpop.f32.mrf.mxu0
      %v8846 = vadd.f32 0.0, %v8845
      %v8847 = vpop.f32.mrf.mxu0
      %v8848 = vpop.f32.mrf.mxu0
      %v8849 = vadd.f32 0.0, %v8848
      %v8850 = vpop.f32.mrf.mxu0
      %8851 = vmatprep.mubr.bf16.mxu0 0
      %8852 = vmatmul.mubr.bf16.gmra.mxu0 %v8676
      %v8853 = vpop.f32.mrf.mxu0
      %v8854 = vadd.f32 0.0, %v8853
      %v8855 = vpop.f32.mrf.mxu0
      %v8856 = vpop.f32.mrf.mxu0
      %v8857 = vadd.f32 0.0, %v8856
      %v8858 = vpop.f32.mrf.mxu0
      %8859 = vmatprep.mubr.bf16.mxu0 0
      %8860 = vmatmul.mubr.bf16.gmra.mxu0 %v8678
      %v8861 = vpop.f32.mrf.mxu0
      %v8862 = vadd.f32 0.0, %v8861
      %v8863 = vpop.f32.mrf.mxu0
      %v8864 = vpop.f32.mrf.mxu0
      %v8865 = vadd.f32 0.0, %v8864
      %v8866 = vpop.f32.mrf.mxu0
      %8867 = vmatprep.mubr.bf16.mxu0 0
      %8868 = vmatmul.mubr.bf16.gmra.mxu0 %v8680
      %v8869 = vpop.f32.mrf.mxu0
      %v8870 = vadd.f32 0.0, %v8869
      %v8871 = vpop.f32.mrf.mxu0
      %v8872 = vpop.f32.mrf.mxu0
      %v8873 = vadd.f32 0.0, %v8872
      %v8874 = vpop.f32.mrf.mxu0
      %8875 = vmatprep.mubr.bf16.mxu0 0
      %8876 = vmatmul.mubr.bf16.gmra.mxu0 %v8682
      %v8877 = vpop.f32.mrf.mxu0
      %v8878 = vadd.f32 0.0, %v8877
      %v8879 = vpop.f32.mrf.mxu0
      %v8880 = vpop.f32.mrf.mxu0
      %v8881 = vadd.f32 0.0, %v8880
      %v8882 = vpop.f32.mrf.mxu0
      %8883 = vmatprep.mubr.bf16.mxu0 0
      %8884 = vmatmul.mubr.bf16.gmra.mxu0 %v8684
      %v8885 = vpop.f32.mrf.mxu0
      %v8886 = vadd.f32 0.0, %v8885
      %v8887 = vpop.f32.mrf.mxu0
      %v8888 = vpop.f32.mrf.mxu0
      %v8889 = vadd.f32 0.0, %v8888
      %v8890 = vpop.f32.mrf.mxu0
      %8891 = vmatprep.mubr.bf16.mxu0 0
      %8892 = vmatmul.mubr.bf16.gmra.mxu0 %v8686
      %v8893 = vpop.f32.mrf.mxu0
      %v8894 = vadd.f32 0.0, %v8893
      %v8895 = vpop.f32.mrf.mxu0
      %v8896 = vpop.f32.mrf.mxu0
      %v8897 = vadd.f32 0.0, %v8896
      %v8898 = vpop.f32.mrf.mxu0
      %8899 = vmatprep.mubr.bf16.mxu0 0
      %8900 = vmatmul.mubr.bf16.gmra.mxu0 %v8688
      %v8901 = vpop.f32.mrf.mxu0
      %v8902 = vadd.f32 0.0, %v8901
      %v8903 = vpop.f32.mrf.mxu0
      %v8904 = vpop.f32.mrf.mxu0
      %v8905 = vadd.f32 0.0, %v8904
      %v8906 = vpop.f32.mrf.mxu0
      %8907 = vmatprep.mubr.bf16.mxu0 0
      %8908 = vmatmul.mubr.bf16.gmra.mxu0 %v8690
      %v8909 = vpop.f32.mrf.mxu0
      %v8910 = vadd.f32 0.0, %v8909
      %v8911 = vpop.f32.mrf.mxu0
      %v8912 = vpop.f32.mrf.mxu0
      %v8913 = vadd.f32 0.0, %v8912
      %v8914 = vpop.f32.mrf.mxu0
      %8915 = vmatprep.mubr.bf16.mxu0 0
      %8916 = vmatmul.mubr.bf16.gmra.mxu0 %v8692
      %v8917 = vpop.f32.mrf.mxu0
      %v8918 = vadd.f32 0.0, %v8917
      %v8919 = vpop.f32.mrf.mxu0
      %v8920 = vpop.f32.mrf.mxu0
      %v8921 = vadd.f32 0.0, %v8920
      %v8922 = vpop.f32.mrf.mxu0
      %8923 = vmatprep.mubr.bf16.mxu0 0
      %8924 = vmatmul.mubr.bf16.gmra.mxu0 %v8694
      %v8925 = vpop.f32.mrf.mxu0
      %v8926 = vadd.f32 0.0, %v8925
      %v8927 = vpop.f32.mrf.mxu0
      %v8928 = vpop.f32.mrf.mxu0
      %v8929 = vadd.f32 0.0, %v8928
      %v8930 = vpop.f32.mrf.mxu0
      %8931 = vmatprep.mubr.bf16.mxu0 0
      %8932 = vmatmul.mubr.bf16.gmra.mxu0 %v8696
      %v8933 = vpop.f32.mrf.mxu0
      %v8934 = vadd.f32 0.0, %v8933
      %v8935 = vpop.f32.mrf.mxu0
      %v8936 = vpop.f32.mrf.mxu0
      %v8937 = vadd.f32 0.0, %v8936
      %v8938 = vpop.f32.mrf.mxu0
      %8939 = vdwg.mxu0
      %v8940 = vadd.f32 %v8604, %v8798
      %v8941 = vadd.f32 %v8605, %v8801
      %v8942 = vadd.f32 %v8606, %v8806
      %v8943 = vadd.f32 %v8607, %v8809
      %v8944 = vadd.f32 %v8608, %v8814
      %v8945 = vadd.f32 %v8609, %v8817
      %v8946 = vadd.f32 %v8610, %v8822
      %v8947 = vadd.f32 %v8611, %v8825
      %v8948 = vadd.f32 %v8612, %v8830
      %v8949 = vadd.f32 %v8613, %v8833
      %v8950 = vadd.f32 %v8614, %v8838
      %v8951 = vadd.f32 %v8615, %v8841
      %v8952 = vadd.f32 %v8616, %v8846
      %v8953 = vadd.f32 %v8617, %v8849
      %v8954 = vadd.f32 %v8618, %v8854
      %v8955 = vadd.f32 %v8619, %v8857
      %v8956 = vadd.f32 %v8620, %v8862
      %v8957 = vadd.f32 %v8621, %v8865
      %v8958 = vadd.f32 %v8622, %v8870
      %v8959 = vadd.f32 %v8623, %v8873
      %v8960 = vadd.f32 %v8624, %v8878
      %v8961 = vadd.f32 %v8625, %v8881
      %v8962 = vadd.f32 %v8626, %v8886
      %v8963 = vadd.f32 %v8627, %v8889
      %v8964 = vadd.f32 %v8628, %v8894
      %v8965 = vadd.f32 %v8629, %v8897
      %v8966 = vadd.f32 %v8630, %v8902
      %v8967 = vadd.f32 %v8631, %v8905
      %v8968 = vadd.f32 %v8632, %v8910
      %v8969 = vadd.f32 %v8633, %v8913
      %v8970 = vadd.f32 %v8634, %v8918
      %v8971 = vadd.f32 %v8635, %v8921
      %v8972 = vadd.f32 %v8636, %v8926
      %v8973 = vadd.f32 %v8637, %v8929
      %v8974 = vadd.f32 %v8638, %v8934
      %v8975 = vadd.f32 %v8639, %v8937
      %v8976 = vld [vmem:[#allocation2 + $0xa4] sm:$0x3]
      %v8977 = vld [vmem:[%s3 + $0x200] sm:$0xf]
      %v8978 = vld [vmem:[%s3 + $0x204] sm:$0xf]
      %v8979 = vld [vmem:[%s3 + $0x208] sm:$0xf]
      %v8980 = vld [vmem:[%s3 + $0x20c] sm:$0xf]
      %v8981 = vld [vmem:[%s3 + $0x210] sm:$0xf]
      %v8982 = vld [vmem:[%s3 + $0x214] sm:$0xf]
      %v8983 = vld [vmem:[%s3 + $0x218] sm:$0xf]
      %v8984 = vld [vmem:[%s3 + $0x21c] sm:$0xf]
      %v8985 = vld [vmem:[%s3 + $0x220] sm:$0xf]
      %v8986 = vld [vmem:[%s3 + $0x224] sm:$0xf]
      %v8987 = vld [vmem:[%s3 + $0x228] sm:$0xf]
      %v8988 = vld [vmem:[%s3 + $0x22c] sm:$0xf]
      %v8989 = vld [vmem:[%s3 + $0x230] sm:$0xf]
      %v8990 = vld [vmem:[%s3 + $0x234] sm:$0xf]
      %v8991 = vld [vmem:[%s3 + $0x238] sm:$0xf]
      %v8992 = vld [vmem:[%s3 + $0x23c] sm:$0xf]
      %v8994 = vunpack.c.l.b16 %v8976
      %v8995 = vpack.c.b16 %v8994, %v8994
      %v8997 = vshrl.u32 %v8659, 16
      %v8999 = vrot.slane %v8997, 1
      %v9000 = vshll.u32 %v8659, 16
      %v9002 = vrot.slane %v9000, 2
      %v9003 = vor.u32 %v8999, %v9002
      %v9004 = vrot.slane %v8225, 1
      %v9005 = vrot.slane %v8221, 2
      %v9006 = vor.u32 %v9004, %v9005
      %v9007 = vsel %vm4605, %v9003, %v9006
      %v9008 = vrot.slane %v8233, 1
      %v9009 = vrot.slane %v8229, 2
      %v9010 = vor.u32 %v9008, %v9009
      %v9011 = vsel %vm4605, %v9006, %v9010
      %v9012 = vrot.slane %v8241, 1
      %v9013 = vrot.slane %v8237, 2
      %v9014 = vor.u32 %v9012, %v9013
      %v9015 = vsel %vm4605, %v9010, %v9014
      %v9016 = vrot.slane %v8249, 1
      %v9017 = vrot.slane %v8245, 2
      %v9018 = vor.u32 %v9016, %v9017
      %v9019 = vsel %vm4605, %v9014, %v9018
      %v9020 = vrot.slane %v8257, 1
      %v9021 = vrot.slane %v8253, 2
      %v9022 = vor.u32 %v9020, %v9021
      %v9023 = vsel %vm4605, %v9018, %v9022
      %v9024 = vrot.slane %v8265, 1
      %v9025 = vrot.slane %v8261, 2
      %v9026 = vor.u32 %v9024, %v9025
      %v9027 = vsel %vm4605, %v9022, %v9026
      %v9028 = vrot.slane %v8273, 1
      %v9029 = vrot.slane %v8269, 2
      %v9030 = vor.u32 %v9028, %v9029
      %v9031 = vsel %vm4605, %v9026, %v9030
      %v9032 = vrot.slane %v8281, 1
      %v9033 = vrot.slane %v8277, 2
      %v9034 = vor.u32 %v9032, %v9033
      %v9035 = vsel %vm4605, %v9030, %v9034
      %v9036 = vrot.slane %v8289, 1
      %v9037 = vrot.slane %v8285, 2
      %v9038 = vor.u32 %v9036, %v9037
      %v9039 = vsel %vm4605, %v9034, %v9038
      %v9040 = vrot.slane %v8297, 1
      %v9041 = vrot.slane %v8293, 2
      %v9042 = vor.u32 %v9040, %v9041
      %v9043 = vsel %vm4605, %v9038, %v9042
      %v9044 = vrot.slane %v8305, 1
      %v9045 = vrot.slane %v8301, 2
      %v9046 = vor.u32 %v9044, %v9045
      %v9047 = vsel %vm4605, %v9042, %v9046
      %v9048 = vrot.slane %v8313, 1
      %v9049 = vrot.slane %v8309, 2
      %v9050 = vor.u32 %v9048, %v9049
      %v9051 = vsel %vm4605, %v9046, %v9050
      %v9052 = vrot.slane %v8321, 1
      %v9053 = vrot.slane %v8317, 2
      %v9054 = vor.u32 %v9052, %v9053
      %v9055 = vsel %vm4605, %v9050, %v9054
      %v9056 = vrot.slane %v8329, 1
      %v9057 = vrot.slane %v8325, 2
      %v9058 = vor.u32 %v9056, %v9057
      %v9059 = vsel %vm4605, %v9054, %v9058
      %v9060 = vrot.slane %v8337, 1
      %v9061 = vrot.slane %v8333, 2
      %v9062 = vor.u32 %v9060, %v9061
      %v9063 = vsel %vm4605, %v9058, %v9062
      %v9064 = vrot.slane %v8345, 1
      %v9065 = vrot.slane %v8341, 2
      %v9066 = vor.u32 %v9064, %v9065
      %v9067 = vsel %vm4605, %v9062, %v9066
      %v9068 = vrot.slane %v8353, 1
      %v9069 = vrot.slane %v8349, 2
      %v9070 = vor.u32 %v9068, %v9069
      %v9071 = vsel %vm4605, %v9066, %v9070
      %v9073 = vshrl.u32 %v8995, 16
      %v9075 = vrot.slane %v9073, 1
      %v9076 = vshll.u32 %v8995, 16
      %v9078 = vrot.slane %v9076, 2
      %v9079 = vor.u32 %v9075, %v9078
      %v9080 = vsel %vm4605, %v9070, %v9079
      %v9115 = vunpack.c.l.b16 %v8977
      %v9116 = vunpack.c.l.b16 %v8978
      %v9117 = vunpack.c.l.b16 %v8979
      %v9118 = vunpack.c.l.b16 %v8980
      %v9119 = vunpack.c.l.b16 %v8981
      %v9120 = vunpack.c.l.b16 %v8982
      %v9121 = vunpack.c.l.b16 %v8983
      %v9122 = vunpack.c.l.b16 %v8984
      %v9123 = vunpack.c.l.b16 %v8985
      %v9124 = vunpack.c.l.b16 %v8986
      %v9125 = vunpack.c.l.b16 %v8987
      %v9126 = vunpack.c.l.b16 %v8988
      %v9127 = vunpack.c.l.b16 %v8989
      %v9128 = vunpack.c.l.b16 %v8990
      %v9129 = vunpack.c.l.b16 %v8991
      %v9130 = vunpack.c.l.b16 %v8992
      %v9131 = vpack.c.b16 %v9116, %v9115
      %v9132 = vpack.c.b16 %v9118, %v9117
      %v9133 = vpack.c.b16 %v9120, %v9119
      %v9134 = vpack.c.b16 %v9122, %v9121
      %v9135 = vpack.c.b16 %v9124, %v9123
      %v9136 = vpack.c.b16 %v9126, %v9125
      %v9137 = vpack.c.b16 %v9128, %v9127
      %v9138 = vpack.c.b16 %v9130, %v9129
      %9147 = vmatprep.subr.bf16.mxu0 0
      %9148 = vmatpush1.bf16.msra.mxu0 %v9138
      %9149 = vmatprep.subr.bf16.mxu0 0
      %9150 = vmatpush1.bf16.msra.mxu0 %v9137
      %9151 = vmatprep.subr.bf16.mxu0 0
      %9152 = vmatpush1.bf16.msra.mxu0 %v9136
      %9153 = vmatprep.subr.bf16.mxu0 0
      %9154 = vmatpush1.bf16.msra.mxu0 %v9135
      %9155 = vmatprep.subr.bf16.mxu0 0
      %9156 = vmatpush1.bf16.msra.mxu0 %v9134
      %9157 = vmatprep.subr.bf16.mxu0 0
      %9158 = vmatpush1.bf16.msra.mxu0 %v9133
      %9159 = vmatprep.subr.bf16.mxu0 0
      %9160 = vmatpush1.bf16.msra.mxu0 %v9132
      %9161 = vmatprep.subr.bf16.mxu0 0
      %9162 = vmatpush1.bf16.msra.mxu0 %v9131
      %9163 = vmatprep.subr.bf16.mxu0 0
      %9164 = vmatpush2.bf16.msra.mxu0 0
      %9165 = vmatprep.subr.bf16.mxu0 0
      %9166 = vmatpush2.bf16.msra.mxu0 0
      %9167 = vmatprep.subr.bf16.mxu0 0
      %9168 = vmatpush2.bf16.msra.mxu0 0
      %9169 = vmatprep.subr.bf16.mxu0 0
      %9170 = vmatpush2.bf16.msra.mxu0 0
      %9171 = vmatprep.subr.bf16.mxu0 0
      %9172 = vmatpush2.bf16.msra.mxu0 0
      %9173 = vmatprep.subr.bf16.mxu0 0
      %9174 = vmatpush2.bf16.msra.mxu0 0
      %9175 = vmatprep.subr.bf16.mxu0 0
      %9176 = vmatpush2.bf16.msra.mxu0 0
      %9177 = vmatprep.subr.bf16.mxu0 0
      %9178 = vmatpush2.bf16.msra.mxu0 0
      %9179 = vmatprep.mubr.bf16.mxu0 0
      %9180 = vmatmul.mubr.bf16.gmra.mxu0 %v9007
      %v9181 = vpop.f32.mrf.mxu0
      %v9182 = vadd.f32 0.0, %v9181
      %v9183 = vpop.f32.mrf.mxu0
      %v9184 = vpop.f32.mrf.mxu0
      %v9185 = vadd.f32 0.0, %v9184
      %v9186 = vpop.f32.mrf.mxu0
      %9187 = vmatprep.mubr.bf16.mxu0 0
      %9188 = vmatmul.mubr.bf16.gmra.mxu0 %v9011
      %v9189 = vpop.f32.mrf.mxu0
      %v9190 = vadd.f32 0.0, %v9189
      %v9191 = vpop.f32.mrf.mxu0
      %v9192 = vpop.f32.mrf.mxu0
      %v9193 = vadd.f32 0.0, %v9192
      %v9194 = vpop.f32.mrf.mxu0
      %9195 = vmatprep.mubr.bf16.mxu0 0
      %9196 = vmatmul.mubr.bf16.gmra.mxu0 %v9015
      %v9197 = vpop.f32.mrf.mxu0
      %v9198 = vadd.f32 0.0, %v9197
      %v9199 = vpop.f32.mrf.mxu0
      %v9200 = vpop.f32.mrf.mxu0
      %v9201 = vadd.f32 0.0, %v9200
      %v9202 = vpop.f32.mrf.mxu0
      %9203 = vmatprep.mubr.bf16.mxu0 0
      %9204 = vmatmul.mubr.bf16.gmra.mxu0 %v9019
      %v9205 = vpop.f32.mrf.mxu0
      %v9206 = vadd.f32 0.0, %v9205
      %v9207 = vpop.f32.mrf.mxu0
      %v9208 = vpop.f32.mrf.mxu0
      %v9209 = vadd.f32 0.0, %v9208
      %v9210 = vpop.f32.mrf.mxu0
      %9211 = vmatprep.mubr.bf16.mxu0 0
      %9212 = vmatmul.mubr.bf16.gmra.mxu0 %v9023
      %v9213 = vpop.f32.mrf.mxu0
      %v9214 = vadd.f32 0.0, %v9213
      %v9215 = vpop.f32.mrf.mxu0
      %v9216 = vpop.f32.mrf.mxu0
      %v9217 = vadd.f32 0.0, %v9216
      %v9218 = vpop.f32.mrf.mxu0
      %9219 = vmatprep.mubr.bf16.mxu0 0
      %9220 = vmatmul.mubr.bf16.gmra.mxu0 %v9027
      %v9221 = vpop.f32.mrf.mxu0
      %v9222 = vadd.f32 0.0, %v9221
      %v9223 = vpop.f32.mrf.mxu0
      %v9224 = vpop.f32.mrf.mxu0
      %v9225 = vadd.f32 0.0, %v9224
      %v9226 = vpop.f32.mrf.mxu0
      %9227 = vmatprep.mubr.bf16.mxu0 0
      %9228 = vmatmul.mubr.bf16.gmra.mxu0 %v9031
      %v9229 = vpop.f32.mrf.mxu0
      %v9230 = vadd.f32 0.0, %v9229
      %v9231 = vpop.f32.mrf.mxu0
      %v9232 = vpop.f32.mrf.mxu0
      %v9233 = vadd.f32 0.0, %v9232
      %v9234 = vpop.f32.mrf.mxu0
      %9235 = vmatprep.mubr.bf16.mxu0 0
      %9236 = vmatmul.mubr.bf16.gmra.mxu0 %v9035
      %v9237 = vpop.f32.mrf.mxu0
      %v9238 = vadd.f32 0.0, %v9237
      %v9239 = vpop.f32.mrf.mxu0
      %v9240 = vpop.f32.mrf.mxu0
      %v9241 = vadd.f32 0.0, %v9240
      %v9242 = vpop.f32.mrf.mxu0
      %9243 = vmatprep.mubr.bf16.mxu0 0
      %9244 = vmatmul.mubr.bf16.gmra.mxu0 %v9039
      %v9245 = vpop.f32.mrf.mxu0
      %v9246 = vadd.f32 0.0, %v9245
      %v9247 = vpop.f32.mrf.mxu0
      %v9248 = vpop.f32.mrf.mxu0
      %v9249 = vadd.f32 0.0, %v9248
      %v9250 = vpop.f32.mrf.mxu0
      %9251 = vmatprep.mubr.bf16.mxu0 0
      %9252 = vmatmul.mubr.bf16.gmra.mxu0 %v9043
      %v9253 = vpop.f32.mrf.mxu0
      %v9254 = vadd.f32 0.0, %v9253
      %v9255 = vpop.f32.mrf.mxu0
      %v9256 = vpop.f32.mrf.mxu0
      %v9257 = vadd.f32 0.0, %v9256
      %v9258 = vpop.f32.mrf.mxu0
      %9259 = vmatprep.mubr.bf16.mxu0 0
      %9260 = vmatmul.mubr.bf16.gmra.mxu0 %v9047
      %v9261 = vpop.f32.mrf.mxu0
      %v9262 = vadd.f32 0.0, %v9261
      %v9263 = vpop.f32.mrf.mxu0
      %v9264 = vpop.f32.mrf.mxu0
      %v9265 = vadd.f32 0.0, %v9264
      %v9266 = vpop.f32.mrf.mxu0
      %9267 = vmatprep.mubr.bf16.mxu0 0
      %9268 = vmatmul.mubr.bf16.gmra.mxu0 %v9051
      %v9269 = vpop.f32.mrf.mxu0
      %v9270 = vadd.f32 0.0, %v9269
      %v9271 = vpop.f32.mrf.mxu0
      %v9272 = vpop.f32.mrf.mxu0
      %v9273 = vadd.f32 0.0, %v9272
      %v9274 = vpop.f32.mrf.mxu0
      %9275 = vmatprep.mubr.bf16.mxu0 0
      %9276 = vmatmul.mubr.bf16.gmra.mxu0 %v9055
      %v9277 = vpop.f32.mrf.mxu0
      %v9278 = vadd.f32 0.0, %v9277
      %v9279 = vpop.f32.mrf.mxu0
      %v9280 = vpop.f32.mrf.mxu0
      %v9281 = vadd.f32 0.0, %v9280
      %v9282 = vpop.f32.mrf.mxu0
      %9283 = vmatprep.mubr.bf16.mxu0 0
      %9284 = vmatmul.mubr.bf16.gmra.mxu0 %v9059
      %v9285 = vpop.f32.mrf.mxu0
      %v9286 = vadd.f32 0.0, %v9285
      %v9287 = vpop.f32.mrf.mxu0
      %v9288 = vpop.f32.mrf.mxu0
      %v9289 = vadd.f32 0.0, %v9288
      %v9290 = vpop.f32.mrf.mxu0
      %9291 = vmatprep.mubr.bf16.mxu0 0
      %9292 = vmatmul.mubr.bf16.gmra.mxu0 %v9063
      %v9293 = vpop.f32.mrf.mxu0
      %v9294 = vadd.f32 0.0, %v9293
      %v9295 = vpop.f32.mrf.mxu0
      %v9296 = vpop.f32.mrf.mxu0
      %v9297 = vadd.f32 0.0, %v9296
      %v9298 = vpop.f32.mrf.mxu0
      %9299 = vmatprep.mubr.bf16.mxu0 0
      %9300 = vmatmul.mubr.bf16.gmra.mxu0 %v9067
      %v9301 = vpop.f32.mrf.mxu0
      %v9302 = vadd.f32 0.0, %v9301
      %v9303 = vpop.f32.mrf.mxu0
      %v9304 = vpop.f32.mrf.mxu0
      %v9305 = vadd.f32 0.0, %v9304
      %v9306 = vpop.f32.mrf.mxu0
      %9307 = vmatprep.mubr.bf16.mxu0 0
      %9308 = vmatmul.mubr.bf16.gmra.mxu0 %v9071
      %v9309 = vpop.f32.mrf.mxu0
      %v9310 = vadd.f32 0.0, %v9309
      %v9311 = vpop.f32.mrf.mxu0
      %v9312 = vpop.f32.mrf.mxu0
      %v9313 = vadd.f32 0.0, %v9312
      %v9314 = vpop.f32.mrf.mxu0
      %9315 = vmatprep.mubr.bf16.mxu0 0
      %9316 = vmatmul.mubr.bf16.gmra.mxu0 %v9080
      %v9317 = vpop.f32.mrf.mxu0
      %v9318 = vadd.f32 0.0, %v9317
      %v9319 = vpop.f32.mrf.mxu0
      %v9320 = vpop.f32.mrf.mxu0
      %v9321 = vadd.f32 0.0, %v9320
      %v9322 = vpop.f32.mrf.mxu0
      %9323 = vdwg.mxu0
      %v9324 = vadd.f32 %v8940, %v9182
      %v9325 = vadd.f32 %v8941, %v9185
      %v9326 = vadd.f32 %v8942, %v9190
      %v9327 = vadd.f32 %v8943, %v9193
      %v9328 = vadd.f32 %v8944, %v9198
      %v9329 = vadd.f32 %v8945, %v9201
      %v9330 = vadd.f32 %v8946, %v9206
      %v9331 = vadd.f32 %v8947, %v9209
      %v9332 = vadd.f32 %v8948, %v9214
      %v9333 = vadd.f32 %v8949, %v9217
      %v9334 = vadd.f32 %v8950, %v9222
      %v9335 = vadd.f32 %v8951, %v9225
      %v9336 = vadd.f32 %v8952, %v9230
      %v9337 = vadd.f32 %v8953, %v9233
      %v9338 = vadd.f32 %v8954, %v9238
      %v9339 = vadd.f32 %v8955, %v9241
      %v9340 = vadd.f32 %v8956, %v9246
      %v9341 = vadd.f32 %v8957, %v9249
      %v9342 = vadd.f32 %v8958, %v9254
      %v9343 = vadd.f32 %v8959, %v9257
      %v9344 = vadd.f32 %v8960, %v9262
      %v9345 = vadd.f32 %v8961, %v9265
      %v9346 = vadd.f32 %v8962, %v9270
      %v9347 = vadd.f32 %v8963, %v9273
      %v9348 = vadd.f32 %v8964, %v9278
      %v9349 = vadd.f32 %v8965, %v9281
      %v9350 = vadd.f32 %v8966, %v9286
      %v9351 = vadd.f32 %v8967, %v9289
      %v9352 = vadd.f32 %v8968, %v9294
      %v9353 = vadd.f32 %v8969, %v9297
      %v9354 = vadd.f32 %v8970, %v9302
      %v9355 = vadd.f32 %v8971, %v9305
      %v9356 = vadd.f32 %v8972, %v9310
      %v9357 = vadd.f32 %v8973, %v9313
      %v9358 = vadd.f32 %v8974, %v9318
      %v9359 = vadd.f32 %v8975, %v9321
      %v9360 = vld [vmem:[%s219 + $0xc] sm:$0xf]
      %v9361 = vld [vmem:[%s219 + $0x10] sm:$0xf]
      %v9362 = vld [vmem:[%s219 + $0x14] sm:$0xf]
      %v9363 = vld [vmem:[%s219 + $0x18] sm:$0xf]
      %v9364 = vld [vmem:[%s219 + $0x1c] sm:$0xf]
      %v9365 = vld [vmem:[%s219 + $0x20] sm:$0xf]
      %v9366 = vld [vmem:[%s219 + $0x24] sm:$0xf]
      %v9367 = vld [vmem:[%s219 + $0x28] sm:$0xf]
      %v9368 = vld [vmem:[%s219 + $0x2c] sm:$0xf]
      %v9369 = vld [vmem:[%s219 + $0x30] sm:$0xf]
      %v9370 = vld [vmem:[%s219 + $0x34] sm:$0xf]
      %v9371 = vld [vmem:[%s219 + $0x38] sm:$0xf]
      %v9372 = vld [vmem:[%s219 + $0x3c] sm:$0xf]
      %v9373 = vld [vmem:[%s219 + $0x40] sm:$0xf]
      %v9374 = vld [vmem:[%s219 + $0x44] sm:$0xf]
      %v9375 = vld [vmem:[%s219 + $0x48] sm:$0xf]
      %v9376 = vld [vmem:[%s219 + $0x4c] sm:$0xf]
      %v9377 = vld [vmem:[%s219 + $0x50] sm:$0xf]
      %v9378 = vld [vmem:[%s219 + $0x54] sm:$0xf]
      %v9379 = vld [vmem:[%s219 + $0x58] sm:$0xf]
      %v9380 = vld [vmem:[%s219 + $0x5c] sm:$0xf]
      %v9381 = vld [vmem:[%s219 + $0x60] sm:$0xf]
      %v9382 = vld [vmem:[%s219 + $0x64] sm:$0xf]
      %v9383 = vld [vmem:[%s219 + $0x68] sm:$0xf]
      %v9384 = vld [vmem:[%s219 + $0x6c] sm:$0xf]
      %v9385 = vld [vmem:[%s219 + $0x70] sm:$0xf]
      %v9386 = vld [vmem:[%s219 + $0x74] sm:$0xf]
      %v9387 = vld [vmem:[%s219 + $0x78] sm:$0xf]
      %v9388 = vld [vmem:[%s219 + $0x7c] sm:$0xf]
      %v9389 = vld [vmem:[%s219 + $0x80] sm:$0xf]
      %v9390 = vld [vmem:[%s219 + $0x84] sm:$0xf]
      %v9391 = vld [vmem:[%s219 + $0x88] sm:$0xf]
      %v9392 = vld [vmem:[%s219 + $0x8c] sm:$0xf]
      %v9393 = vld [vmem:[%s219 + $0x90] sm:$0xf]
      %v9394 = vld [vmem:[%s219 + $0x94] sm:$0xf]
      %v9395 = vld [vmem:[%s219 + $0x98] sm:$0xf]
      %v9396 = vunpack.c.l.bf16 %v9360
      %v9397 = vunpack.c.l.bf16 %v9361
      %v9398 = vunpack.c.l.bf16 %v9362
      %v9399 = vunpack.c.l.bf16 %v9363
      %v9400 = vunpack.c.l.bf16 %v9364
      %v9401 = vunpack.c.l.bf16 %v9365
      %v9402 = vunpack.c.l.bf16 %v9366
      %v9403 = vunpack.c.l.bf16 %v9367
      %v9404 = vunpack.c.l.bf16 %v9368
      %v9405 = vunpack.c.l.bf16 %v9369
      %v9406 = vunpack.c.l.bf16 %v9370
      %v9407 = vunpack.c.l.bf16 %v9371
      %v9408 = vunpack.c.l.bf16 %v9372
      %v9409 = vunpack.c.l.bf16 %v9373
      %v9410 = vunpack.c.l.bf16 %v9374
      %v9411 = vunpack.c.l.bf16 %v9375
      %v9412 = vunpack.c.l.bf16 %v9376
      %v9413 = vunpack.c.l.bf16 %v9377
      %v9414 = vunpack.c.l.bf16 %v9378
      %v9415 = vunpack.c.l.bf16 %v9379
      %v9416 = vunpack.c.l.bf16 %v9380
      %v9417 = vunpack.c.l.bf16 %v9381
      %v9418 = vunpack.c.l.bf16 %v9382
      %v9419 = vunpack.c.l.bf16 %v9383
      %v9420 = vunpack.c.l.bf16 %v9384
      %v9421 = vunpack.c.l.bf16 %v9385
      %v9422 = vunpack.c.l.bf16 %v9386
      %v9423 = vunpack.c.l.bf16 %v9387
      %v9424 = vunpack.c.l.bf16 %v9388
      %v9425 = vunpack.c.l.bf16 %v9389
      %v9426 = vunpack.c.l.bf16 %v9390
      %v9427 = vunpack.c.l.bf16 %v9391
      %v9428 = vunpack.c.l.bf16 %v9392
      %v9429 = vunpack.c.l.bf16 %v9393
      %v9430 = vunpack.c.l.bf16 %v9394
      %v9431 = vunpack.c.l.bf16 %v9395
      %v9432 = vld [vmem:[%s4] sm:$0x1]
      %v9434 = vlaneseq
      %v9435 = vshrl.u32 %v9434, 7
      %v9436 = vsub.s32 0, %v9435
      %v9437 = vrot.slane %v9432, %v9436
      %v9439 = vadd.f32 %v9324, %v9437
      %v9440 = vadd.f32 %v9325, %v9437
      %v9441 = vadd.f32 %v9326, %v9437
      %v9442 = vadd.f32 %v9327, %v9437
      %v9443 = vadd.f32 %v9328, %v9437
      %v9444 = vadd.f32 %v9329, %v9437
      %v9445 = vadd.f32 %v9330, %v9437
      %v9446 = vadd.f32 %v9331, %v9437
      %v9447 = vadd.f32 %v9332, %v9437
      %v9448 = vadd.f32 %v9333, %v9437
      %v9449 = vadd.f32 %v9334, %v9437
      %v9450 = vadd.f32 %v9335, %v9437
      %v9451 = vadd.f32 %v9336, %v9437
      %v9452 = vadd.f32 %v9337, %v9437
      %v9453 = vadd.f32 %v9338, %v9437
      %v9454 = vadd.f32 %v9339, %v9437
      %v9455 = vadd.f32 %v9340, %v9437
      %v9456 = vadd.f32 %v9341, %v9437
      %v9457 = vadd.f32 %v9342, %v9437
      %v9458 = vadd.f32 %v9343, %v9437
      %v9459 = vadd.f32 %v9344, %v9437
      %v9460 = vadd.f32 %v9345, %v9437
      %v9461 = vadd.f32 %v9346, %v9437
      %v9462 = vadd.f32 %v9347, %v9437
      %v9463 = vadd.f32 %v9348, %v9437
      %v9464 = vadd.f32 %v9349, %v9437
      %v9465 = vadd.f32 %v9350, %v9437
      %v9466 = vadd.f32 %v9351, %v9437
      %v9467 = vadd.f32 %v9352, %v9437
      %v9468 = vadd.f32 %v9353, %v9437
      %v9469 = vadd.f32 %v9354, %v9437
      %v9470 = vadd.f32 %v9355, %v9437
      %v9471 = vadd.f32 %v9356, %v9437
      %v9472 = vadd.f32 %v9357, %v9437
      %v9473 = vadd.f32 %v9358, %v9437
      %v9474 = vadd.f32 %v9359, %v9437
      %v9475 = vadd.f32 %v9439, %v9396
      %v9476 = vadd.f32 %v9440, %v9397
      %v9477 = vadd.f32 %v9441, %v9398
      %v9478 = vadd.f32 %v9442, %v9399
      %v9479 = vadd.f32 %v9443, %v9400
      %v9480 = vadd.f32 %v9444, %v9401
      %v9481 = vadd.f32 %v9445, %v9402
      %v9482 = vadd.f32 %v9446, %v9403
      %v9483 = vadd.f32 %v9447, %v9404
      %v9484 = vadd.f32 %v9448, %v9405
      %v9485 = vadd.f32 %v9449, %v9406
      %v9486 = vadd.f32 %v9450, %v9407
      %v9487 = vadd.f32 %v9451, %v9408
      %v9488 = vadd.f32 %v9452, %v9409
      %v9489 = vadd.f32 %v9453, %v9410
      %v9490 = vadd.f32 %v9454, %v9411
      %v9491 = vadd.f32 %v9455, %v9412
      %v9492 = vadd.f32 %v9456, %v9413
      %v9493 = vadd.f32 %v9457, %v9414
      %v9494 = vadd.f32 %v9458, %v9415
      %v9495 = vadd.f32 %v9459, %v9416
      %v9496 = vadd.f32 %v9460, %v9417
      %v9497 = vadd.f32 %v9461, %v9418
      %v9498 = vadd.f32 %v9462, %v9419
      %v9499 = vadd.f32 %v9463, %v9420
      %v9500 = vadd.f32 %v9464, %v9421
      %v9501 = vadd.f32 %v9465, %v9422
      %v9502 = vadd.f32 %v9466, %v9423
      %v9503 = vadd.f32 %v9467, %v9424
      %v9504 = vadd.f32 %v9468, %v9425
      %v9505 = vadd.f32 %v9469, %v9426
      %v9506 = vadd.f32 %v9470, %v9427
      %v9507 = vadd.f32 %v9471, %v9428
      %v9508 = vadd.f32 %v9472, %v9429
      %v9509 = vadd.f32 %v9473, %v9430
      %v9510 = vadd.f32 %v9474, %v9431
      %v9511 = vmax.f32 %v9475, 0.0
      %v9512 = vmax.f32 %v9476, 0.0
      %v9513 = vmax.f32 %v9477, 0.0
      %v9514 = vmax.f32 %v9478, 0.0
      %v9515 = vmax.f32 %v9479, 0.0
      %v9516 = vmax.f32 %v9480, 0.0
      %v9517 = vmax.f32 %v9481, 0.0
      %v9518 = vmax.f32 %v9482, 0.0
      %v9519 = vmax.f32 %v9483, 0.0
      %v9520 = vmax.f32 %v9484, 0.0
      %v9521 = vmax.f32 %v9485, 0.0
      %v9522 = vmax.f32 %v9486, 0.0
      %v9523 = vmax.f32 %v9487, 0.0
      %v9524 = vmax.f32 %v9488, 0.0
      %v9525 = vmax.f32 %v9489, 0.0
      %v9526 = vmax.f32 %v9490, 0.0
      %v9527 = vmax.f32 %v9491, 0.0
      %v9528 = vmax.f32 %v9492, 0.0
      %v9529 = vmax.f32 %v9493, 0.0
      %v9530 = vmax.f32 %v9494, 0.0
      %v9531 = vmax.f32 %v9495, 0.0
      %v9532 = vmax.f32 %v9496, 0.0
      %v9533 = vmax.f32 %v9497, 0.0
      %v9534 = vmax.f32 %v9498, 0.0
      %v9535 = vmax.f32 %v9499, 0.0
      %v9536 = vmax.f32 %v9500, 0.0
      %v9537 = vmax.f32 %v9501, 0.0
      %v9538 = vmax.f32 %v9502, 0.0
      %v9539 = vmax.f32 %v9503, 0.0
      %v9540 = vmax.f32 %v9504, 0.0
      %v9541 = vmax.f32 %v9505, 0.0
      %v9542 = vmax.f32 %v9506, 0.0
      %v9543 = vmax.f32 %v9507, 0.0
      %v9544 = vmax.f32 %v9508, 0.0
      %v9545 = vmax.f32 %v9509, 0.0
      %v9546 = vmax.f32 %v9510, 0.0
      %v9547 = vsel %vm5085, %v9511, 0.0
      %v9548 = vsel %vm5086, %v9512, 0.0
      %v9549 = vsel %vm5087, %v9513, 0.0
      %v9550 = vsel %vm5088, %v9514, 0.0
      %v9551 = vsel %vm5089, %v9515, 0.0
      %v9552 = vsel %vm5090, %v9516, 0.0
      %v9553 = vsel %vm5091, %v9517, 0.0
      %v9554 = vsel %vm5092, %v9518, 0.0
      %v9555 = vsel %vm5093, %v9519, 0.0
      %v9556 = vsel %vm5094, %v9520, 0.0
      %v9557 = vsel %vm5095, %v9521, 0.0
      %v9558 = vsel %vm5096, %v9522, 0.0
      %v9559 = vsel %vm5097, %v9523, 0.0
      %v9560 = vsel %vm5098, %v9524, 0.0
      %v9561 = vsel %vm5099, %v9525, 0.0
      %v9562 = vsel %vm5100, %v9526, 0.0
      %v9563 = vsel %vm5101, %v9527, 0.0
      %v9564 = vsel %vm5102, %v9528, 0.0
      %v9565 = vsel %vm5103, %v9529, 0.0
      %v9566 = vsel %vm5104, %v9530, 0.0
      %v9567 = vsel %vm5105, %v9531, 0.0
      %v9568 = vsel %vm5106, %v9532, 0.0
      %v9569 = vsel %vm5107, %v9533, 0.0
      %v9570 = vsel %vm5108, %v9534, 0.0
      %v9571 = vsel %vm5109, %v9535, 0.0
      %v9572 = vsel %vm5110, %v9536, 0.0
      %v9573 = vsel %vm5111, %v9537, 0.0
      %v9574 = vsel %vm5112, %v9538, 0.0
      %v9575 = vsel %vm5113, %v9539, 0.0
      %v9576 = vsel %vm5114, %v9540, 0.0
      %v9577 = vsel %vm5115, %v9541, 0.0
      %v9578 = vsel %vm5116, %v9542, 0.0
      %v9579 = vsel %vm5117, %v9543, 0.0
      %v9580 = vsel %vm5118, %v9544, 0.0
      %v9581 = vsel %vm5119, %v9545, 0.0
      %v9582 = vsel %vm5120, %v9546, 0.0
      %v9583 = vpack.c.bf16 %v9548, %v9547
      %v9584 = vpack.c.bf16 %v9550, %v9549
      %v9585 = vpack.c.bf16 %v9552, %v9551
      %v9586 = vpack.c.bf16 %v9554, %v9553
      %v9587 = vpack.c.bf16 %v9556, %v9555
      %v9588 = vpack.c.bf16 %v9558, %v9557
      %v9589 = vpack.c.bf16 %v9560, %v9559
      %v9590 = vpack.c.bf16 %v9562, %v9561
      %v9591 = vpack.c.bf16 %v9564, %v9563
      %v9592 = vpack.c.bf16 %v9566, %v9565
      %v9593 = vpack.c.bf16 %v9568, %v9567
      %v9594 = vpack.c.bf16 %v9570, %v9569
      %v9595 = vpack.c.bf16 %v9572, %v9571
      %v9596 = vpack.c.bf16 %v9574, %v9573
      %v9597 = vpack.c.bf16 %v9576, %v9575
      %v9598 = vpack.c.bf16 %v9578, %v9577
      %v9599 = vpack.c.bf16 %v9580, %v9579
      %v9600 = vpack.c.bf16 %v9582, %v9581
      %v9619 = vunpack.c.l.b16 %v9583
      %v9620 = vunpack.c.h.b16 %v9583
      %v9621 = vunpack.c.l.b16 %v9584
      %v9622 = vunpack.c.h.b16 %v9584
      %v9623 = vunpack.c.l.b16 %v9585
      %v9624 = vunpack.c.h.b16 %v9585
      %v9625 = vunpack.c.l.b16 %v9586
      %v9626 = vunpack.c.h.b16 %v9586
      %v9627 = vunpack.c.l.b16 %v9587
      %v9628 = vunpack.c.h.b16 %v9587
      %v9629 = vunpack.c.l.b16 %v9588
      %v9630 = vunpack.c.h.b16 %v9588
      %v9631 = vunpack.c.l.b16 %v9589
      %v9632 = vunpack.c.h.b16 %v9589
      %v9633 = vunpack.c.l.b16 %v9590
      %v9634 = vunpack.c.h.b16 %v9590
      %v9635 = vunpack.c.l.b16 %v9591
      %v9636 = vunpack.c.h.b16 %v9591
      %v9637 = vunpack.c.l.b16 %v9592
      %v9638 = vunpack.c.h.b16 %v9592
      %v9639 = vunpack.c.l.b16 %v9593
      %v9640 = vunpack.c.h.b16 %v9593
      %v9641 = vunpack.c.l.b16 %v9594
      %v9642 = vunpack.c.h.b16 %v9594
      %v9643 = vunpack.c.l.b16 %v9595
      %v9644 = vunpack.c.h.b16 %v9595
      %v9645 = vunpack.c.l.b16 %v9596
      %v9646 = vunpack.c.h.b16 %v9596
      %v9647 = vunpack.c.l.b16 %v9597
      %v9648 = vunpack.c.h.b16 %v9597
      %v9649 = vunpack.c.l.b16 %v9598
      %v9650 = vunpack.c.h.b16 %v9598
      %v9651 = vunpack.c.l.b16 %v9599
      %v9652 = vunpack.c.h.b16 %v9599
      %v9653 = vunpack.c.l.b16 %v9600
      %v9654 = vunpack.c.h.b16 %v9600
      %v9655 = vpack.c.b16 %v9619, %v9619
      %v9656 = vpack.c.b16 %v9620, %v9620
      %v9657 = vpack.c.b16 %v9621, %v9621
      %v9658 = vpack.c.b16 %v9622, %v9622
      %v9659 = vpack.c.b16 %v9623, %v9623
      %v9660 = vpack.c.b16 %v9624, %v9624
      %v9661 = vpack.c.b16 %v9625, %v9625
      %v9662 = vpack.c.b16 %v9626, %v9626
      %v9663 = vpack.c.b16 %v9627, %v9627
      %v9664 = vpack.c.b16 %v9628, %v9628
      %v9665 = vpack.c.b16 %v9629, %v9629
      %v9666 = vpack.c.b16 %v9630, %v9630
      %v9667 = vpack.c.b16 %v9631, %v9631
      %v9668 = vpack.c.b16 %v9632, %v9632
      %v9669 = vpack.c.b16 %v9633, %v9633
      %v9670 = vpack.c.b16 %v9634, %v9634
      %v9671 = vpack.c.b16 %v9635, %v9635
      %v9672 = vpack.c.b16 %v9636, %v9636
      %v9673 = vpack.c.b16 %v9637, %v9637
      %v9674 = vpack.c.b16 %v9638, %v9638
      %v9675 = vpack.c.b16 %v9639, %v9639
      %v9676 = vpack.c.b16 %v9640, %v9640
      %v9677 = vpack.c.b16 %v9641, %v9641
      %v9678 = vpack.c.b16 %v9642, %v9642
      %v9679 = vpack.c.b16 %v9643, %v9643
      %v9680 = vpack.c.b16 %v9644, %v9644
      %v9681 = vpack.c.b16 %v9645, %v9645
      %v9682 = vpack.c.b16 %v9646, %v9646
      %v9683 = vpack.c.b16 %v9647, %v9647
      %v9684 = vpack.c.b16 %v9648, %v9648
      %v9685 = vpack.c.b16 %v9649, %v9649
      %v9686 = vpack.c.b16 %v9650, %v9650
      %v9687 = vpack.c.b16 %v9651, %v9651
      %v9688 = vpack.c.b16 %v9652, %v9652
      %v9689 = vpack.c.b16 %v9653, %v9653
      %v9690 = vpack.c.b16 %v9654, %v9654
      %9727 = vst [vmem:[%s224] sm:$0xf] %v9655
      %9728 = vst [vmem:[%s224 + $0x4] sm:$0xf] %v9656
      %9729 = vst [vmem:[%s224 + $0x8] sm:$0xf] %v9657
      %9730 = vst [vmem:[%s224 + $0xc] sm:$0xf] %v9658
      %9731 = vst [vmem:[%s224 + $0x10] sm:$0xf] %v9659
      %9732 = vst [vmem:[%s224 + $0x14] sm:$0xf] %v9660
      %9733 = vst [vmem:[%s224 + $0x18] sm:$0xf] %v9661
      %9734 = vst [vmem:[%s224 + $0x1c] sm:$0xf] %v9662
      %9735 = vst [vmem:[%s224 + $0x20] sm:$0xf] %v9663
      %9736 = vst [vmem:[%s224 + $0x24] sm:$0xf] %v9664
      %9737 = vst [vmem:[%s224 + $0x28] sm:$0xf] %v9665
      %9738 = vst [vmem:[%s224 + $0x2c] sm:$0xf] %v9666
      %9739 = vst [vmem:[%s224 + $0x30] sm:$0xf] %v9667
      %9740 = vst [vmem:[%s224 + $0x34] sm:$0xf] %v9668
      %9741 = vst [vmem:[%s224 + $0x38] sm:$0xf] %v9669
      %9742 = vst [vmem:[%s224 + $0x3c] sm:$0xf] %v9670
      %9743 = vst [vmem:[%s224 + $0x40] sm:$0xf] %v9671
      %9744 = vst [vmem:[%s224 + $0x44] sm:$0xf] %v9672
      %9745 = vst [vmem:[%s224 + $0x48] sm:$0xf] %v9673
      %9746 = vst [vmem:[%s224 + $0x4c] sm:$0xf] %v9674
      %9747 = vst [vmem:[%s224 + $0x50] sm:$0xf] %v9675
      %9748 = vst [vmem:[%s224 + $0x54] sm:$0xf] %v9676
      %9749 = vst [vmem:[%s224 + $0x58] sm:$0xf] %v9677
      %9750 = vst [vmem:[%s224 + $0x5c] sm:$0xf] %v9678
      %9751 = vst [vmem:[%s224 + $0x60] sm:$0xf] %v9679
      %9752 = vst [vmem:[%s224 + $0x64] sm:$0xf] %v9680
      %9753 = vst [vmem:[%s224 + $0x68] sm:$0xf] %v9681
      %9754 = vst [vmem:[%s224 + $0x6c] sm:$0xf] %v9682
      %9755 = vst [vmem:[%s224 + $0x70] sm:$0xf] %v9683
      %9756 = vst [vmem:[%s224 + $0x74] sm:$0xf] %v9684
      %9757 = vst [vmem:[%s224 + $0x78] sm:$0xf] %v9685
      %9758 = vst [vmem:[%s224 + $0x7c] sm:$0xf] %v9686
      %9759 = vst [vmem:[%s224 + $0x80] sm:$0xf] %v9687
      %9760 = vst [vmem:[%s224 + $0x84] sm:$0xf] %v9688
      %9761 = vst [vmem:[%s224 + $0x88] sm:$0xf] %v9689
      %9762 = vst [vmem:[%s224 + $0x8c] sm:$0xf] %v9690
      %p9763 = scmp.lt.s32.totalorder %s16, 1
      %s9764 = scalar_select %p9763, %s16, 1
      %s9765 = smul.addr %s9764, 36
      %s9766 = smul.addr %s9765, 4
      %s9767 = scalar_lea.vmem %s5, %s9766
      // Predicated region
      $region41: #{basic_block_forward.1} parent=39 // pred_check
        %p9768 = pneg %p144
      $region42: #{basic_block_forward.1} parent=39 // pred_check_branch
        %9770 = sbr.rel (%p9768) target = $region44
      $region43: #{basic_block_forward.1} parent=39 // pred_region
        _
      $region44: #{basic_block_forward.1} parent=39 // pred_fallthru
        _
    $region40: #{basic_block_forward.1} parent=5 // pred_fallthru
      _
    %p9771 = scmp.le.s32.totalorder 2, %s11
    // Predicated region
    $region45: #{basic_block_forward.1} parent=5 // pred_check
      %p9772 = pneg %p9771
    $region46: #{basic_block_forward.1} parent=5 // pred_check_branch
      %9774 = sbr.rel (%p9772) target = $region48
    $region47: #{basic_block_forward.1} parent=5 // pred_region
      %s9775 = ssub.s32 %s11, 2
      // Predicated region
      $region49: #{basic_block_forward.1} parent=47 // pred_check
        %p9776 = pneg %p150
      $region50: #{basic_block_forward.1} parent=47 // pred_check_branch
        %9778 = sbr.rel (%p9776) target = $region52
      $region51: #{basic_block_forward.1} parent=47 // pred_region
        %p9779 = scmp.lt.s32.totalorder %s17, 1
        %s9780 = scalar_select %p9779, %s17, 1
        %s9781 = smul.addr %s9780, 36
        %s9782 = smul.addr %s9781, 4
        %s9783 = scalar_lea.vmem %s5, %s9782
      $region52: #{basic_block_forward.1} parent=47 // pred_fallthru
        _
    $region48: #{basic_block_forward.1} parent=5 // pred_fallthru
      _
  $region6: #{basic_block_forward.1} parent=0 // loop_footer
    %s15 = sadd.s32 1, %s11
  $region7: #{basic_block_forward.1} parent=0 // loop_footer_branch
    %10 = sbr.rel target = $region3
  $region8: #{basic_block_forward.1} parent=0 // loop_exit
    _

</llo_original>
